<compile_context>
chip_gen: v5e
topology: v5e:2x2
jax: 0.10.0
libtpu: 0.0.40
codegen_flags: <defaults>
</compile_context>

<pallas_src>
import jax
import jax.numpy as jnp
import numpy as np
from jax import lax
from jax.experimental import pallas as pl
from jax.experimental.pallas import tpu as pltpu


# ----------------------------------------------------------------------------
# Pallas kernel: one grid step = one chunk of TT time steps (fori_loop inside)
# ----------------------------------------------------------------------------
def _tap_kernel(
    # packed streamed input slab  (TT, B, WIN) = [sb_ | sbx | sbyg | mask | pad]
    xin_ref,
    # initial recurrent state (read at chunk 0 only)
    h0_ref, ap0_ref,
    # resident attention data
    pctxf_ref, cc_ref, cmask_ref,
    # resident (pre-fused) weights
    Wh_ref, Wh1_ref, Unlb_ref, Uxnlb_ref,
    band2_ref, UattBD_ref, Uattb_ref, Wmatt_ref, Uwhenw_ref, Uwhenb_ref, Wctx_ref,
    # packed output slab (TT, B, WOUT) = [h2 | ctx | alpha | pad]
    out_ref,
    # carried state (VMEM scratch, persists across grid steps)
    h_sc, ap_sc,
):
    c = pl.program_id(0)

    @pl.when(c == 0)
    def _init():
        h_sc[...] = h0_ref[...]
        ap_sc[...] = ap0_ref[...]

    B, D = h_sc.shape
    L = ap_sc.shape[1]
    A = Wmatt_ref.shape[1]
    C = cc_ref.shape[2]
    TT = xin_ref.shape[0]
    WOUT = out_ref.shape[2]

    dot = lambda a, b: jnp.dot(a, b, preferred_element_type=jnp.float32)

    # ---- loop-invariant loads / broadcasts hoisted out of the step loop ----
    pctxf = pctxf_ref[...]                                  # (B, L*A)
    cc = cc_ref[...]                                        # (B, L, C)
    cmask = cmask_ref[...]                                  # (B, L)
    cmask_sum = jnp.sum(cmask, axis=1, keepdims=True)       # (B, 1)
    unl_b = jnp.broadcast_to(Unlb_ref[...], (B, 2 * D))
    uxnl_b = jnp.broadcast_to(Uxnlb_ref[...], (B, D))
    pad_w = WOUT - (D + C + L)
    out_pad = jnp.zeros((B, pad_w), jnp.float32) if pad_w > 0 else None

    def step(s, carry):
        h_, ap = carry
        xin = xin_ref[s]                                    # (B, WIN)
        x = xin[:, :2 * D]
        xx = xin[:, 2 * D:3 * D]
        yg = xin[:, 3 * D:4 * D]
        m = xin[:, 4 * D:4 * D + 1]                         # (B, 1)

        # ---- first GRU cell + memory-gate preactivation (Whg bias folded in glue) ----
        hW = dot(h_, Wh_ref[...])                           # h_ @ [U|Ux|Whg] -> (B, 4D)
        preact1 = jax.nn.sigmoid(hW[:, :2 * D] + x)
        r1 = preact1[:, :D]
        u1 = preact1[:, D:]
        h1 = jnp.tanh(r1 * hW[:, 2 * D:3 * D] + xx)
        h1 = u1 * h_ + (1.0 - u1) * h1
        h1 = m * h1 + (1.0 - m) * h_
        g_m = jax.nn.sigmoid(yg + hW[:, 3 * D:])

        # ---- fused matmul on h1: [Umg | Wcomb | Unl | Uxnl] ----
        h1W = dot(h1, Wh1_ref[...])                         # (B, 4D + A)
        mt = g_m * jnp.tanh(h1W[:, :D])
        pstate = h1W[:, D:D + A]                            # (B, A)
        unl = h1W[:, D + A:3 * D + A] + unl_b               # (B, 2D)
        uxnl = h1W[:, 3 * D + A:4 * D + A] + uxnl_b         # (B, D)
        pstate_t = jnp.concatenate([pstate] * L, axis=-1)   # (B, L*A) lane-tile (no MXU)

        # ---- coverage attention (flat lane-dense (B, L*A) layout) ----
        cover = dot(ap, band2_ref[...])                     # conv+Uf folded: (B, L*A)
        pctx2 = jnp.tanh(pctxf + pstate_t + cover)
        e = dot(pctx2, UattBD_ref[...]) + Uattb_ref[...]    # block-diag U_att: (B, L)
        pctx_when = jnp.tanh(pstate + dot(mt, Wmatt_ref[...]))
        e_when = (jnp.sum(pctx_when * Uwhenw_ref[...], axis=1, keepdims=True)
                  + Uwhenb_ref[...])                        # (B, 1)
        # max-shift before exp: preserves alpha, alpha_mean/alpha_when ratio, beta
        e_max = jnp.maximum(jnp.max(e, axis=1, keepdims=True), e_when)
        alpha_u = jnp.exp(e - e_max) * cmask
        alpha_sum = jnp.sum(alpha_u, axis=1, keepdims=True)
        alpha = alpha_u / alpha_sum
        alpha_mean = alpha_sum / cmask_sum
        alpha_when = jnp.exp(e_when - e_max)
        beta = alpha_when / (alpha_mean + alpha_when)

        ap_new = ap + alpha
        # TODO(synk): at large L make this reduction lanes-major / chunked instead of a
        # cross-sublane XLU reduce over a lane-padded (B, L, C) buffer.
        ctx = jnp.sum(cc * alpha[:, :, None], axis=1)       # (B, C)
        ctx = beta * mt + (1.0 - beta) * ctx

        # ---- second GRU cell: fused ctx matmul [Wc | Wcx] ----
        cW = dot(ctx, Wctx_ref[...])                        # (B, 3D)
        preact2 = jax.nn.sigmoid(unl + cW[:, :2 * D])
        r2 = preact2[:, :D]
        u2 = preact2[:, D:]
        h2 = jnp.tanh(cW[:, 2 * D:] + r2 * uxnl)
        h2 = u2 * h1 + (1.0 - u2) * h2
        h2 = m * h2 + (1.0 - m) * h1

        # single lane-dense packed store per step
        pieces = [h2, ctx, alpha] + ([out_pad] if out_pad is not None else [])
        out_ref[s] = jnp.concatenate(pieces, axis=-1)
        return h2, ap_new

    h_fin, ap_fin = lax.fori_loop(0, TT, step, (h_sc[...], ap_sc[...]),
                                  unroll=(TT <= 8))
    h_sc[...] = h_fin
    ap_sc[...] = ap_fin


# ----------------------------------------------------------------------------
# Parameter setup (deterministic, synthetic)
# ----------------------------------------------------------------------------
def init_params(key, *, dim=32, dim_word=16, ctx_dim=32, dim_att=32,
                conv_ch=8, conv_k=121):
    ks = list(jax.random.split(key, 32))
    it = iter(ks)
    w = lambda shape, scale=0.1: (scale * jax.random.normal(next(it), shape)).astype(jnp.float32)
    p = {'dim': dim}
    p['Wcatt_w'] = w((ctx_dim, dim_att)); p['Wcatt_b'] = w((1, dim_att))
    p['Wx_w'] = w((dim_word, dim));       p['Wx_b'] = w((1, dim))
    p['W_w'] = w((dim_word, 2 * dim));    p['W_b'] = w((1, 2 * dim))
    p['Wyg_w'] = w((dim_word, dim));      p['Wyg_b'] = w((1, dim))
    p['U'] = w((dim, 2 * dim))
    p['Ux'] = w((dim, dim))
    p['Whg_w'] = w((dim, dim));           p['Whg_b'] = w((1, dim))
    p['Umg'] = w((dim, dim))
    p['Wcomb'] = w((dim, dim_att))
    p['convW'] = w((conv_ch, conv_k));    p['convb'] = w((1, conv_ch))
    p['Uf_w'] = w((conv_ch, dim_att));    p['Uf_b'] = w((1, dim_att))
    p['Uatt_w'] = w((1, dim_att));        p['Uatt_b'] = w((1, 1))
    p['Wmatt'] = w((dim, dim_att))
    p['Uwhen_w'] = w((1, dim_att));       p['Uwhen_b'] = w((1, 1))
    p['Unl_w'] = w((dim, 2 * dim));       p['Unl_b'] = w((1, 2 * dim))
    p['Wc'] = w((ctx_dim, 2 * dim))
    p['Uxnl_w'] = w((dim, dim));          p['Uxnl_b'] = w((1, dim))
    p['Wcx'] = w((ctx_dim, dim))
    return p


def _round_up(x, m):
    return ((x + m - 1) // m) * m


# ----------------------------------------------------------------------------
# Forward wrapper (glue: pre-projections, weight fusion, packing, one pallas_call)
# ----------------------------------------------------------------------------
def tap_gru_cond_forward(params, state_below, context, mask=None, context_mask=None,
                         init_state=None, alpha_past=None, time_chunk=32):
    """Non-one_step forward of Tap_gru_cond_layer (torch layout at the interface)."""
    T, B0, _ = state_below.shape
    L, _, C = context.shape
    D = params['dim']
    A = params['Wcomb'].shape[1]
    Cc, K = params['convW'].shape
    f32 = jnp.float32

    if mask is None:
        mask = jnp.ones((T, B0), f32)          # torch default is (T,); (T,B) is what the math needs
    if context_mask is None:
        context_mask = jnp.ones((L, B0), f32)
    if init_state is None:
        init_state = jnp.zeros((B0, D), f32)
    if alpha_past is None:
        alpha_past = jnp.zeros((B0, L), f32)

    # ---- glue: pre-projections (plain JAX, once per call) ----
    cover_bias = params['convb'] @ params['Uf_w'] + params['Uf_b']            # (1, A)
    pctx_ = context @ params['Wcatt_w'] + params['Wcatt_b'] + cover_bias      # (L, B0, A)
    sbx = state_below @ params['Wx_w'] + params['Wx_b']                       # (T, B0, D)
    sb_ = state_below @ params['W_w'] + params['W_b']                         # (T, B0, 2D)
    sbyg = (state_below @ params['Wyg_w'] + params['Wyg_b']
            + params['Whg_b'])                                                # (T, B0, D), Whg bias folded

    # ---- glue: fused weights (matmuls that share a LHS) ----
    Wh = jnp.concatenate([params['U'], params['Ux'], params['Whg_w']], axis=1)          # (D, 4D)
    Wh1 = jnp.concatenate([params['Umg'], params['Wcomb'], params['Unl_w'],
                           params['Uxnl_w']], axis=1)                                   # (D, 4D+A)
    Wctx = jnp.concatenate([params['Wc'], params['Wcx']], axis=1)                       # (C, 3D)

    # ---- glue: Conv2d(1,Cc,(K,1),pad=(K//2,0)) and conv_Uf folded into one band matrix ----
    pad_k = K // 2
    src = jnp.arange(L)[:, None, None]         # alpha_past position (contraction axis)
    dst = jnp.arange(L)[None, :, None]         # output annotation position
    ci = jnp.arange(Cc)[None, None, :]
    kk = pad_k + src - dst
    valid = (kk >= 0) & (kk < K)
    band3 = jnp.where(valid, params['convW'][ci, jnp.clip(kk, 0, K - 1)], 0.0)   # (L, L, Cc)
    band2 = jnp.einsum('slc,ca->sla', band3, params['Uf_w']).reshape(L, L * A).astype(f32)
    # TODO(synk): band2/UattBD are O(L^2*A); for large L replace band2 with a shifted-
    # accumulate over the conv taps (pltpu.roll) and UattBD with a segmented A-wide reduce
    # so v7x's 64 MiB VMEM is not exceeded.
    UattBD = jnp.einsum('a,lm->lam', params['Uatt_w'][0],
                        jnp.eye(L, dtype=f32)).reshape(L * A, L)

    # ---- glue: batch pad to full sublanes; time pad to a multiple of the chunk ----
    B = max(8, _round_up(B0, 8))
    pb = B - B0
    TT = min(T, time_chunk)
    nchunks = -(-T // TT)
    Tp = nchunks * TT

    def pad_batch(x, axis, value=0.0):
        x = x.astype(f32)
        if pb == 0:
            return x
        cfg = [(0, 0)] * x.ndim
        cfg[axis] = (0, pb)
        return jnp.pad(x, cfg, constant_values=value)

    # packed streamed slab: [sb_ | sbx | sbyg | mask | 0-pad] -> lane width multiple of 128
    WIN = _round_up(4 * D + 1, 128)
    xin = jnp.concatenate([sb_, sbx, sbyg, mask[..., None]], axis=-1)         # (T, B0, 4D+1)
    xin = pad_batch(xin, 1)                                                   # padded rows -> mask=0
    xin = jnp.pad(xin, ((0, Tp - T), (0, 0), (0, WIN - (4 * D + 1))))         # time + lane pad

    pctx_flat = pad_batch(jnp.transpose(pctx_, (1, 0, 2)), 0).reshape(B, L * A)   # (B, L*A)
    cc_blc = pad_batch(jnp.transpose(context, (1, 0, 2)), 0)                      # (B, L, C)
    cmask_bl = pad_batch(context_mask.T, 0, value=1.0)        # padded rows keep cmask=1 -> no 0/0
    h0 = pad_batch(init_state, 0)
    ap0 = pad_batch(alpha_past, 0)

    WOUT = _round_up(D + C + L, 128)           # packed output slab: [h2 | ctx | alpha | pad]

    def _resident(shape):                      # loop-invariant: stays resident in VMEM
        nd = len(shape)
        return pl.BlockSpec(shape, lambda c, _n=nd: (0,) * _n)

    in_specs = [
        pl.BlockSpec((TT, B, WIN), lambda c: (c, 0, 0)),     # packed streamed slab
        _resident((B, D)),                     # init_state
        _resident((B, L)),                     # initial alpha_past
        _resident((B, L * A)),                 # pctx_ (flat, biases folded)
        _resident((B, L, C)),                  # context
        _resident((B, L)),                     # context_mask
        _resident(Wh.shape),                   # [U | Ux | Whg]
        _resident(Wh1.shape),                  # [Umg | Wcomb | Unl | Uxnl]
        _resident((1, 2 * D)),                 # Unl bias
        _resident((1, D)),                     # Uxnl bias
        _resident(band2.shape),                # band2 (conv band * Uf)
        _resident(UattBD.shape),               # block-diagonal U_att
        _resident((1, 1)),                     # U_att bias
        _resident(params['Wmatt'].shape),      # W_m_att
        _resident((1, A)),                     # U_when_att
        _resident((1, 1)),                     # U_when_att bias
        _resident(Wctx.shape),                 # [Wc | Wcx]
    ]
    out_specs = pl.BlockSpec((TT, B, WOUT), lambda c: (c, 0, 0))
    out_shape = jax.ShapeDtypeStruct((Tp, B, WOUT), f32)

    # VMEM budget from actual buffer sizes (+ headroom), capped below v7x's 64 MiB physical
    def _bytes(*shapes):
        return 4 * sum(int(np.prod(s)) for s in shapes)
    vmem_bytes = (2 * _bytes((TT, B, WIN), (TT, B, WOUT))            # double-buffered streams
                  + 2 * _bytes((B, D), (B, L), (B, L * A), (B, L, C), (B, L),
                               Wh.shape, Wh1.shape, (1, 2 * D), (1, D),
                               band2.shape, UattBD.shape, (1, 1),
                               params['Wmatt'].shape, (1, A), (1, 1), Wctx.shape)
                  + _bytes((B, D), (B, L)))                          # scratch
    vmem_limit = int(min(max(vmem_bytes + (4 << 20), 16 << 20), 48 << 20))

    # TODO(synk): on v7x, if B grows past one sublane tile, add a "parallel" batch-tile grid
    # axis (or pl.core_map over the 2 TensorCores); the recurrence is independent per row.
    packed = pl.pallas_call(
        _tap_kernel,
        out_shape=out_shape,
        grid=(nchunks,),
        in_specs=in_specs,
        out_specs=out_specs,
        scratch_shapes=[pltpu.VMEM((B, D), f32), pltpu.VMEM((B, L), f32)],
        compiler_params=pltpu.CompilerParams(
            dimension_semantics=("arbitrary",),        # sequential recurrence over time chunks
            vmem_limit_bytes=vmem_limit,
        ),
    )(xin, h0, ap0, pctx_flat, cc_blc, cmask_bl,
      Wh.astype(f32), Wh1.astype(f32),
      params['Unl_b'].astype(f32), params['Uxnl_b'].astype(f32),
      band2, UattBD, params['Uatt_b'].astype(f32), params['Wmatt'].astype(f32),
      params['Uwhen_w'].astype(f32), params['Uwhen_b'].astype(f32), Wctx.astype(f32))

    # split packed slab, slice away batch/time padding, reconstruct alpha_pasts by cumsum
    h2ts = packed[:T, :B0, :D]
    cts = packed[:T, :B0, D:D + C]
    alphas = packed[:T, :B0, D + C:D + C + L]
    alpha_pasts = alpha_past.astype(f32)[None, :, :] + jnp.cumsum(alphas, axis=0)
    return h2ts, cts, alphas, alpha_pasts


# TODO(synk): only the non-one_step branch of forward() is exposed (one_step would be the
# same kernel with T=1 and betas returned).


# ----------------------------------------------------------------------------
# Pure-JAX reference (mirrors the torch code literally) for a sanity check
# ----------------------------------------------------------------------------
def ref_forward(params, state_below, context, mask, context_mask, init_state, alpha_past):
    T, B, _ = state_below.shape
    L, _, C = context.shape
    D = params['dim']
    Cc, K = params['convW'].shape
    pad = K // 2
    pctx_ = context @ params['Wcatt_w'] + params['Wcatt_b']
    sbx = state_below @ params['Wx_w'] + params['Wx_b']
    sb_ = state_below @ params['W_w'] + params['W_b']
    sbyg = state_below @ params['Wyg_w'] + params['Wyg_b']
    h, ap = init_state, alpha_past
    h2s, cts, als, aps = [], [], [], []
    for i in range(T):
        m_ = mask[i]
        preact1 = jax.nn.sigmoid(h @ params['U'] + sb_[i])
        r1, u1 = preact1[:, :D], preact1[:, D:]
        h1 = jnp.tanh(r1 * (h @ params['Ux']) + sbx[i])
        h1 = u1 * h + (1 - u1) * h1
        h1 = m_[:, None] * h1 + (1 - m_)[:, None] * h
        g_m = jax.nn.sigmoid(sbyg[i] + h @ params['Whg_w'] + params['Whg_b'])
        mt = g_m * jnp.tanh(h1 @ params['Umg'])
        pstate = h1 @ params['Wcomb']
        ap_pad = jnp.pad(ap, ((0, 0), (pad, pad)))
        idx = jnp.arange(L)[:, None] + jnp.arange(K)[None, :]
        windows = ap_pad[:, idx]                                        # (B, L, K)
        cover_F = jnp.einsum('blk,ck->lbc', windows, params['convW']) + params['convb'][0]
        cover_vec = cover_F @ params['Uf_w'] + params['Uf_b']           # (L, B, A)
        pctx2 = jnp.tanh(pctx_ + pstate[None] + cover_vec)
        alpha = jnp.exp(jnp.einsum('lba,a->lb', pctx2, params['Uatt_w'][0]) + params['Uatt_b'][0, 0])
        alpha = alpha * context_mask
        alpha_mean = alpha.sum(0, keepdims=True) / context_mask.sum(0, keepdims=True)
        pctx_when = jnp.tanh(pstate + mt @ params['Wmatt'])
        alpha_when = jnp.exp(jnp.sum(pctx_when * params['Uwhen_w'], axis=1, keepdims=True)
                             + params['Uwhen_b'])
        aw = jnp.concatenate([alpha_mean, alpha_when.T], axis=0)
        alpha = alpha / alpha.sum(0, keepdims=True)
        aw = aw / aw.sum(0, keepdims=True)
        beta = aw[-1]
        ap = ap + alpha.T
        ctx = (context * alpha[:, :, None]).sum(0)
        ctx = beta[:, None] * mt + (1 - beta)[:, None] * ctx
        preact2 = jax.nn.sigmoid(h1 @ params['Unl_w'] + params['Unl_b'] + ctx @ params['Wc'])
        r2, u2 = preact2[:, :D], preact2[:, D:]
        h2 = jnp.tanh(ctx @ params['Wcx'] + r2 * (h1 @ params['Uxnl_w'] + params['Uxnl_b']))
        h2 = u2 * h1 + (1 - u2) * h2
        h2 = m_[:, None] * h2 + (1 - m_)[:, None] * h1
        h = h2
        h2s.append(h2); cts.append(ctx); als.append(alpha.T); aps.append(ap)
    return jnp.stack(h2s), jnp.stack(cts), jnp.stack(als), jnp.stack(aps)


if __name__ == "__main__":
    key = jax.random.PRNGKey(0)
    T, B, E, D, L = 4, 2, 16, 32, 8      # steps, batch, word dim, hidden, #annotations
    C, A, Cc = D, 32, 8                  # ctx dim (== hidden, required by the module math), att dim, conv channels

    kp, k1, k2 = jax.random.split(key, 3)
    params = init_params(kp, dim=D, dim_word=E, ctx_dim=C, dim_att=A,
                         conv_ch=Cc, conv_k=121)
    state_below = jax.random.normal(k1, (T, B, E), jnp.float32)
    context = jax.random.normal(k2, (L, B, C), jnp.float32)
    mask = jnp.ones((T, B), jnp.float32)
    context_mask = jnp.ones((L, B), jnp.float32)

    with jax.default_matmul_precision("float32"):
        outs = tap_gru_cond_forward(params, state_below, context, mask, context_mask)
        outs = jax.block_until_ready(outs)
        ref = ref_forward(params, state_below, context, mask, context_mask,
                          jnp.zeros((B, D), jnp.float32), jnp.zeros((B, L), jnp.float32))
        ref = jax.block_until_ready(ref)

    for o, r in zip(outs, ref):
        np.testing.assert_allclose(np.asarray(o), np.asarray(r), rtol=2e-3, atol=2e-3)

    print("KERNEL_OK")
</pallas_src>

<mosaic_0001>
module attributes {stable_mosaic.version = 11 : i64} {
  func.func @_tap_kernel(%arg0: i32, %arg1: memref<4x8x256xf32, #tpu.memory_space<vmem>>, %arg2: memref<8x32xf32, #tpu.memory_space<vmem>>, %arg3: memref<8x8xf32, #tpu.memory_space<vmem>>, %arg4: memref<8x256xf32, #tpu.memory_space<vmem>>, %arg5: memref<8x8x32xf32, #tpu.memory_space<vmem>>, %arg6: memref<8x8xf32, #tpu.memory_space<vmem>>, %arg7: memref<32x128xf32, #tpu.memory_space<vmem>>, %arg8: memref<32x160xf32, #tpu.memory_space<vmem>>, %arg9: memref<1x64xf32, #tpu.memory_space<vmem>>, %arg10: memref<1x32xf32, #tpu.memory_space<vmem>>, %arg11: memref<8x256xf32, #tpu.memory_space<vmem>>, %arg12: memref<256x8xf32, #tpu.memory_space<vmem>>, %arg13: memref<1x1xf32, #tpu.memory_space<vmem>>, %arg14: memref<32x32xf32, #tpu.memory_space<vmem>>, %arg15: memref<1x32xf32, #tpu.memory_space<vmem>>, %arg16: memref<1x1xf32, #tpu.memory_space<vmem>>, %arg17: memref<32x96xf32, #tpu.memory_space<vmem>>, %arg18: memref<4x8x128xf32, #tpu.memory_space<vmem>>, %arg19: memref<8x32xf32, #tpu.memory_space<vmem>>, %arg20: memref<8x8xf32, #tpu.memory_space<vmem>>) attributes {dimension_semantics = [#tpu.dimension_semantics<arbitrary>], iteration_bounds = array<i64: 1>, scalar_prefetch = 0 : i64, scratch_operands = 2 : i64, tpu.core_type = #tpu.core_type<tc>, window_params = [{transform_indices = @transform_0, window_bounds = array<i64: 4, 8, 256>}, {pipeline_mode = #tpu.pipeline_mode<synchronous>, transform_indices = @transform_1, window_bounds = array<i64: 8, 32>}, {pipeline_mode = #tpu.pipeline_mode<synchronous>, transform_indices = @transform_2, window_bounds = array<i64: 8, 8>}, {pipeline_mode = #tpu.pipeline_mode<synchronous>, transform_indices = @transform_3, window_bounds = array<i64: 8, 256>}, {pipeline_mode = #tpu.pipeline_mode<synchronous>, transform_indices = @transform_4, window_bounds = array<i64: 8, 8, 32>}, {pipeline_mode = #tpu.pipeline_mode<synchronous>, transform_indices = @transform_5, window_bounds = array<i64: 8, 8>}, {pipeline_mode = #tpu.pipeline_mode<synchronous>, transform_indices = @transform_6, window_bounds = array<i64: 32, 128>}, {pipeline_mode = #tpu.pipeline_mode<synchronous>, transform_indices = @transform_7, window_bounds = array<i64: 32, 160>}, {pipeline_mode = #tpu.pipeline_mode<synchronous>, transform_indices = @transform_8, window_bounds = array<i64: 1, 64>}, {pipeline_mode = #tpu.pipeline_mode<synchronous>, transform_indices = @transform_9, window_bounds = array<i64: 1, 32>}, {pipeline_mode = #tpu.pipeline_mode<synchronous>, transform_indices = @transform_10, window_bounds = array<i64: 8, 256>}, {pipeline_mode = #tpu.pipeline_mode<synchronous>, transform_indices = @transform_11, window_bounds = array<i64: 256, 8>}, {pipeline_mode = #tpu.pipeline_mode<synchronous>, transform_indices = @transform_12, window_bounds = array<i64: 1, 1>}, {pipeline_mode = #tpu.pipeline_mode<synchronous>, transform_indices = @transform_13, window_bounds = array<i64: 32, 32>}, {pipeline_mode = #tpu.pipeline_mode<synchronous>, transform_indices = @transform_14, window_bounds = array<i64: 1, 32>}, {pipeline_mode = #tpu.pipeline_mode<synchronous>, transform_indices = @transform_15, window_bounds = array<i64: 1, 1>}, {pipeline_mode = #tpu.pipeline_mode<synchronous>, transform_indices = @transform_16, window_bounds = array<i64: 32, 96>}, {transform_indices = @transform_17, window_bounds = array<i64: 4, 8, 128>}]} {
    %c0_i32 = arith.constant 0 : i32
    %0 = arith.cmpi eq, %arg0, %c0_i32 : i32
    %1 = arith.extui %0 : i1 to i32
    %c0_i32_0 = arith.constant 0 : i32
    %2 = arith.cmpi ne, %1, %c0_i32_0 : i32
    scf.if %2 {
      %c0_181 = arith.constant 0 : index
      %c0_182 = arith.constant 0 : index
      %555 = vector.load %arg2[%c0_181, %c0_182] : memref<8x32xf32, #tpu.memory_space<vmem>>, vector<8x32xf32>
      %c0_183 = arith.constant 0 : index
      %c0_184 = arith.constant 0 : index
      %556 = vector.load %arg19[%c0_183, %c0_184] : memref<8x32xf32, #tpu.memory_space<vmem>>, vector<8x32xf32>
      tpu.vector_store %arg19[%c0_183, %c0_184], %555 {strides = array<i32>} : memref<8x32xf32, #tpu.memory_space<vmem>>, vector<8x32xf32>,
      %c0_185 = arith.constant 0 : index
      %c0_186 = arith.constant 0 : index
      %557 = vector.load %arg3[%c0_185, %c0_186] : memref<8x8xf32, #tpu.memory_space<vmem>>, vector<8x8xf32>
      %c0_187 = arith.constant 0 : index
      %c0_188 = arith.constant 0 : index
      %558 = vector.load %arg20[%c0_187, %c0_188] : memref<8x8xf32, #tpu.memory_space<vmem>>, vector<8x8xf32>
      tpu.vector_store %arg20[%c0_187, %c0_188], %557 {strides = array<i32>} : memref<8x8xf32, #tpu.memory_space<vmem>>, vector<8x8xf32>,
    } else {
    }
    %c0 = arith.constant 0 : index
    %c0_1 = arith.constant 0 : index
    %3 = vector.load %arg4[%c0, %c0_1] : memref<8x256xf32, #tpu.memory_space<vmem>>, vector<8x256xf32>
    %c0_2 = arith.constant 0 : index
    %c0_3 = arith.constant 0 : index
    %c0_4 = arith.constant 0 : index
    %4 = vector.load %arg5[%c0_2, %c0_3, %c0_4] : memref<8x8x32xf32, #tpu.memory_space<vmem>>, vector<8x8x32xf32>
    %c0_5 = arith.constant 0 : index
    %c0_6 = arith.constant 0 : index
    %5 = vector.load %arg6[%c0_5, %c0_6] : memref<8x8xf32, #tpu.memory_space<vmem>>, vector<8x8xf32>
    %cst = arith.constant dense<0.000000e+00> : vector<8xf32>
    %6 = vector.multi_reduction <add>, %5, %cst [1] : vector<8x8xf32> to vector<8xf32>
    %7 = vector.shape_cast %6 : vector<8xf32> to vector<8x1xf32>
    %c0_7 = arith.constant 0 : index
    %c0_8 = arith.constant 0 : index
    %8 = vector.load %arg9[%c0_7, %c0_8] : memref<1x64xf32, #tpu.memory_space<vmem>>, vector<1x64xf32>
    %9 = vector.shape_cast %8 : vector<1x64xf32> to vector<1x64xf32>
    %10 = vector.broadcast %9 : vector<1x64xf32> to vector<8x64xf32>
    %c0_9 = arith.constant 0 : index
    %c0_10 = arith.constant 0 : index
    %11 = vector.load %arg10[%c0_9, %c0_10] : memref<1x32xf32, #tpu.memory_space<vmem>>, vector<1x32xf32>
    %12 = vector.shape_cast %11 : vector<1x32xf32> to vector<1x32xf32>
    %13 = vector.broadcast %12 : vector<1x32xf32> to vector<8x32xf32>
    %cst_11 = arith.constant 0.000000e+00 : f32
    %14 = vector.broadcast %cst_11 : f32 to vector<8x56xf32>
    %c0_12 = arith.constant 0 : index
    %c0_13 = arith.constant 0 : index
    %15 = vector.load %arg19[%c0_12, %c0_13] : memref<8x32xf32, #tpu.memory_space<vmem>>, vector<8x32xf32>
    %c0_14 = arith.constant 0 : index
    %c0_15 = arith.constant 0 : index
    %16 = vector.load %arg20[%c0_14, %c0_15] : memref<8x8xf32, #tpu.memory_space<vmem>>, vector<8x8xf32>
    %c0_i32_16 = arith.constant 0 : i32
    %17 = arith.index_cast %c0_i32_16 : i32 to index
    %c0_17 = arith.constant 0 : index
    %c0_18 = arith.constant 0 : index
    %18 = vector.load %arg1[%17, %c0_17, %c0_18] : memref<4x8x256xf32, #tpu.memory_space<vmem>>, vector<1x8x256xf32>
    %19 = vector.shape_cast %18 : vector<1x8x256xf32> to vector<8x256xf32>
    %20 = vector.extract_strided_slice %19 {offsets = [0, 0], sizes = [8, 64], strides = [1, 1]} : vector<8x256xf32> to vector<8x64xf32>
    %21 = vector.extract_strided_slice %19 {offsets = [0, 64], sizes = [8, 32], strides = [1, 1]} : vector<8x256xf32> to vector<8x32xf32>
    %22 = vector.extract_strided_slice %19 {offsets = [0, 96], sizes = [8, 32], strides = [1, 1]} : vector<8x256xf32> to vector<8x32xf32>
    %23 = vector.extract_strided_slice %19 {offsets = [0, 128], sizes = [8, 1], strides = [1, 1]} : vector<8x256xf32> to vector<8x1xf32>
    %c0_19 = arith.constant 0 : index
    %c0_20 = arith.constant 0 : index
    %24 = vector.load %arg7[%c0_19, %c0_20] : memref<32x128xf32, #tpu.memory_space<vmem>>, vector<32x128xf32>
    %cst_21 = arith.constant dense<0.000000e+00> : vector<8x128xf32>
    %25 = tpu.matmul %15, %24, %cst_21 {dimension_numbers = #tpu.dot_dimension_numbers<[1], [0], [0], [1], [0, 0, 1, 1], [], []>, precision = #tpu.contract_precision<fp32>} : vector<8x32xf32>, vector<32x128xf32>, vector<8x128xf32> -> vector<8x128xf32>
    %26 = vector.extract_strided_slice %25 {offsets = [0, 0], sizes = [8, 64], strides = [1, 1]} : vector<8x128xf32> to vector<8x64xf32>
    %27 = arith.addf %26, %20 : vector<8x64xf32>
    %28 = arith.negf %27 : vector<8x64xf32>
    %29 = math.exp %28 : vector<8x64xf32>
    %cst_22 = arith.constant 1.000000e+00 : f32
    %30 = vector.broadcast %cst_22 : f32 to vector<8x64xf32>
    %31 = arith.addf %30, %29 : vector<8x64xf32>
    %32 = arith.divf %30, %31 : vector<8x64xf32>
    %33 = vector.extract_strided_slice %32 {offsets = [0, 0], sizes = [8, 32], strides = [1, 1]} : vector<8x64xf32> to vector<8x32xf32>
    %34 = vector.extract_strided_slice %32 {offsets = [0, 32], sizes = [8, 32], strides = [1, 1]} : vector<8x64xf32> to vector<8x32xf32>
    %35 = vector.extract_strided_slice %25 {offsets = [0, 64], sizes = [8, 32], strides = [1, 1]} : vector<8x128xf32> to vector<8x32xf32>
    %36 = arith.mulf %33, %35 : vector<8x32xf32>
    %37 = arith.addf %36, %21 : vector<8x32xf32>
    %38 = math.tanh %37 : vector<8x32xf32>
    %39 = arith.mulf %34, %15 : vector<8x32xf32>
    %cst_23 = arith.constant 1.000000e+00 : f32
    %40 = vector.broadcast %cst_23 : f32 to vector<8x32xf32>
    %41 = arith.subf %40, %34 : vector<8x32xf32>
    %42 = arith.mulf %41, %38 : vector<8x32xf32>
    %43 = arith.addf %39, %42 : vector<8x32xf32>
    %44 = vector.broadcast %23 : vector<8x1xf32> to vector<8x32xf32>
    %45 = arith.mulf %44, %43 : vector<8x32xf32>
    %cst_24 = arith.constant 1.000000e+00 : f32
    %46 = vector.broadcast %cst_24 : f32 to vector<8x1xf32>
    %47 = arith.subf %46, %23 : vector<8x1xf32>
    %48 = vector.broadcast %47 : vector<8x1xf32> to vector<8x32xf32>
    %49 = arith.mulf %48, %15 : vector<8x32xf32>
    %50 = arith.addf %45, %49 : vector<8x32xf32>
    %51 = vector.extract_strided_slice %25 {offsets = [0, 96], sizes = [8, 32], strides = [1, 1]} : vector<8x128xf32> to vector<8x32xf32>
    %52 = arith.addf %22, %51 : vector<8x32xf32>
    %53 = arith.negf %52 : vector<8x32xf32>
    %54 = math.exp %53 : vector<8x32xf32>
    %cst_25 = arith.constant 1.000000e+00 : f32
    %55 = vector.broadcast %cst_25 : f32 to vector<8x32xf32>
    %56 = arith.addf %55, %54 : vector<8x32xf32>
    %57 = arith.divf %55, %56 : vector<8x32xf32>
    %c0_26 = arith.constant 0 : index
    %c0_27 = arith.constant 0 : index
    %58 = vector.load %arg8[%c0_26, %c0_27] : memref<32x160xf32, #tpu.memory_space<vmem>>, vector<32x160xf32>
    %cst_28 = arith.constant dense<0.000000e+00> : vector<8x160xf32>
    %59 = tpu.matmul %50, %58, %cst_28 {dimension_numbers = #tpu.dot_dimension_numbers<[1], [0], [0], [1], [0, 0, 1, 1], [], []>, precision = #tpu.contract_precision<fp32>} : vector<8x32xf32>, vector<32x160xf32>, vector<8x160xf32> -> vector<8x160xf32>
    %60 = vector.extract_strided_slice %59 {offsets = [0, 0], sizes = [8, 32], strides = [1, 1]} : vector<8x160xf32> to vector<8x32xf32>
    %61 = math.tanh %60 : vector<8x32xf32>
    %62 = arith.mulf %57, %61 : vector<8x32xf32>
    %63 = vector.extract_strided_slice %59 {offsets = [0, 32], sizes = [8, 32], strides = [1, 1]} : vector<8x160xf32> to vector<8x32xf32>
    %64 = vector.extract_strided_slice %59 {offsets = [0, 64], sizes = [8, 64], strides = [1, 1]} : vector<8x160xf32> to vector<8x64xf32>
    %65 = arith.addf %64, %10 : vector<8x64xf32>
    %66 = vector.extract_strided_slice %59 {offsets = [0, 128], sizes = [8, 32], strides = [1, 1]} : vector<8x160xf32> to vector<8x32xf32>
    %67 = arith.addf %66, %13 : vector<8x32xf32>
    %68 = tpu.concatenate %63, %63, %63, %63, %63, %63, %63, %63 in 1 : vector<8x32xf32>, vector<8x32xf32>, vector<8x32xf32>, vector<8x32xf32>, vector<8x32xf32>, vector<8x32xf32>, vector<8x32xf32>, vector<8x32xf32> -> vector<8x256xf32>
    %c0_29 = arith.constant 0 : index
    %c0_30 = arith.constant 0 : index
    %69 = vector.load %arg11[%c0_29, %c0_30] : memref<8x256xf32, #tpu.memory_space<vmem>>, vector<8x256xf32>
    %cst_31 = arith.constant dense<0.000000e+00> : vector<8x256xf32>
    %70 = tpu.matmul %16, %69, %cst_31 {dimension_numbers = #tpu.dot_dimension_numbers<[1], [0], [0], [1], [0, 0, 1, 1], [], []>, precision = #tpu.contract_precision<fp32>} : vector<8x8xf32>, vector<8x256xf32>, vector<8x256xf32> -> vector<8x256xf32>
    %71 = arith.addf %3, %68 : vector<8x256xf32>
    %72 = arith.addf %71, %70 : vector<8x256xf32>
    %73 = math.tanh %72 : vector<8x256xf32>
    %c0_32 = arith.constant 0 : index
    %c0_33 = arith.constant 0 : index
    %74 = vector.load %arg12[%c0_32, %c0_33] : memref<256x8xf32, #tpu.memory_space<vmem>>, vector<256x8xf32>
    %cst_34 = arith.constant dense<0.000000e+00> : vector<8x8xf32>
    %75 = tpu.matmul %73, %74, %cst_34 {dimension_numbers = #tpu.dot_dimension_numbers<[1], [0], [0], [1], [0, 0, 1, 1], [], []>, precision = #tpu.contract_precision<fp32>} : vector<8x256xf32>, vector<256x8xf32>, vector<8x8xf32> -> vector<8x8xf32>
    %c0_35 = arith.constant 0 : index
    %c0_36 = arith.constant 0 : index
    %76 = vector.load %arg13[%c0_35, %c0_36] : memref<1x1xf32, #tpu.memory_space<vmem>>, vector<1x1xf32>
    %77 = vector.broadcast %76 : vector<1x1xf32> to vector<8x8xf32>
    %78 = arith.addf %75, %77 : vector<8x8xf32>
    %c0_37 = arith.constant 0 : index
    %c0_38 = arith.constant 0 : index
    %79 = vector.load %arg14[%c0_37, %c0_38] : memref<32x32xf32, #tpu.memory_space<vmem>>, vector<32x32xf32>
    %cst_39 = arith.constant dense<0.000000e+00> : vector<8x32xf32>
    %80 = tpu.matmul %62, %79, %cst_39 {dimension_numbers = #tpu.dot_dimension_numbers<[1], [0], [0], [1], [0, 0, 1, 1], [], []>, precision = #tpu.contract_precision<fp32>} : vector<8x32xf32>, vector<32x32xf32>, vector<8x32xf32> -> vector<8x32xf32>
    %81 = arith.addf %63, %80 : vector<8x32xf32>
    %82 = math.tanh %81 : vector<8x32xf32>
    %c0_40 = arith.constant 0 : index
    %c0_41 = arith.constant 0 : index
    %83 = vector.load %arg15[%c0_40, %c0_41] : memref<1x32xf32, #tpu.memory_space<vmem>>, vector<1x32xf32>
    %84 = vector.broadcast %83 : vector<1x32xf32> to vector<8x32xf32>
    %85 = arith.mulf %82, %84 : vector<8x32xf32>
    %cst_42 = arith.constant dense<0.000000e+00> : vector<8xf32>
    %86 = vector.multi_reduction <add>, %85, %cst_42 [1] : vector<8x32xf32> to vector<8xf32>
    %87 = vector.shape_cast %86 : vector<8xf32> to vector<8x1xf32>
    %c0_43 = arith.constant 0 : index
    %c0_44 = arith.constant 0 : index
    %88 = vector.load %arg16[%c0_43, %c0_44] : memref<1x1xf32, #tpu.memory_space<vmem>>, vector<1x1xf32>
    %89 = vector.broadcast %88 : vector<1x1xf32> to vector<8x1xf32>
    %90 = arith.addf %87, %89 : vector<8x1xf32>
    %cst_45 = arith.constant dense<0xFF800000> : vector<8xf32>
    %91 = vector.multi_reduction <maximumf>, %78, %cst_45 [1] : vector<8x8xf32> to vector<8xf32>
    %92 = vector.shape_cast %91 : vector<8xf32> to vector<8x1xf32>
    %93 = arith.maximumf %92, %90 : vector<8x1xf32>
    %94 = vector.broadcast %93 : vector<8x1xf32> to vector<8x8xf32>
    %95 = arith.subf %78, %94 : vector<8x8xf32>
    %96 = math.exp %95 : vector<8x8xf32>
    %97 = arith.mulf %96, %5 : vector<8x8xf32>
    %cst_46 = arith.constant dense<0.000000e+00> : vector<8xf32>
    %98 = vector.multi_reduction <add>, %97, %cst_46 [1] : vector<8x8xf32> to vector<8xf32>
    %99 = vector.shape_cast %98 : vector<8xf32> to vector<8x1xf32>
    %100 = vector.broadcast %99 : vector<8x1xf32> to vector<8x8xf32>
    %101 = arith.divf %97, %100 : vector<8x8xf32>
    %102 = arith.divf %99, %7 : vector<8x1xf32>
    %103 = arith.subf %90, %93 : vector<8x1xf32>
    %104 = math.exp %103 : vector<8x1xf32>
    %105 = arith.addf %102, %104 : vector<8x1xf32>
    %106 = arith.divf %104, %105 : vector<8x1xf32>
    %107 = arith.addf %16, %101 : vector<8x8xf32>
    %108 = vector.shape_cast %101 : vector<8x8xf32> to vector<8x8x1xf32>
    %109 = vector.broadcast %108 : vector<8x8x1xf32> to vector<8x8x32xf32>
    %110 = arith.mulf %4, %109 : vector<8x8x32xf32>
    %cst_47 = arith.constant dense<0.000000e+00> : vector<8x32xf32>
    %111 = vector.multi_reduction <add>, %110, %cst_47 [1] : vector<8x8x32xf32> to vector<8x32xf32>
    %112 = vector.broadcast %106 : vector<8x1xf32> to vector<8x32xf32>
    %113 = arith.mulf %112, %62 : vector<8x32xf32>
    %cst_48 = arith.constant 1.000000e+00 : f32
    %114 = vector.broadcast %cst_48 : f32 to vector<8x1xf32>
    %115 = arith.subf %114, %106 : vector<8x1xf32>
    %116 = vector.broadcast %115 : vector<8x1xf32> to vector<8x32xf32>
    %117 = arith.mulf %116, %111 : vector<8x32xf32>
    %118 = arith.addf %113, %117 : vector<8x32xf32>
    %c0_49 = arith.constant 0 : index
    %c0_50 = arith.constant 0 : index
    %119 = vector.load %arg17[%c0_49, %c0_50] : memref<32x96xf32, #tpu.memory_space<vmem>>, vector<32x96xf32>
    %cst_51 = arith.constant dense<0.000000e+00> : vector<8x96xf32>
    %120 = tpu.matmul %118, %119, %cst_51 {dimension_numbers = #tpu.dot_dimension_numbers<[1], [0], [0], [1], [0, 0, 1, 1], [], []>, precision = #tpu.contract_precision<fp32>} : vector<8x32xf32>, vector<32x96xf32>, vector<8x96xf32> -> vector<8x96xf32>
    %121 = vector.extract_strided_slice %120 {offsets = [0, 0], sizes = [8, 64], strides = [1, 1]} : vector<8x96xf32> to vector<8x64xf32>
    %122 = arith.addf %65, %121 : vector<8x64xf32>
    %123 = arith.negf %122 : vector<8x64xf32>
    %124 = math.exp %123 : vector<8x64xf32>
    %cst_52 = arith.constant 1.000000e+00 : f32
    %125 = vector.broadcast %cst_52 : f32 to vector<8x64xf32>
    %126 = arith.addf %125, %124 : vector<8x64xf32>
    %127 = arith.divf %125, %126 : vector<8x64xf32>
    %128 = vector.extract_strided_slice %127 {offsets = [0, 0], sizes = [8, 32], strides = [1, 1]} : vector<8x64xf32> to vector<8x32xf32>
    %129 = vector.extract_strided_slice %127 {offsets = [0, 32], sizes = [8, 32], strides = [1, 1]} : vector<8x64xf32> to vector<8x32xf32>
    %130 = vector.extract_strided_slice %120 {offsets = [0, 64], sizes = [8, 32], strides = [1, 1]} : vector<8x96xf32> to vector<8x32xf32>
    %131 = arith.mulf %128, %67 : vector<8x32xf32>
    %132 = arith.addf %130, %131 : vector<8x32xf32>
    %133 = math.tanh %132 : vector<8x32xf32>
    %134 = arith.mulf %129, %50 : vector<8x32xf32>
    %cst_53 = arith.constant 1.000000e+00 : f32
    %135 = vector.broadcast %cst_53 : f32 to vector<8x32xf32>
    %136 = arith.subf %135, %129 : vector<8x32xf32>
    %137 = arith.mulf %136, %133 : vector<8x32xf32>
    %138 = arith.addf %134, %137 : vector<8x32xf32>
    %139 = vector.broadcast %23 : vector<8x1xf32> to vector<8x32xf32>
    %140 = arith.mulf %139, %138 : vector<8x32xf32>
    %cst_54 = arith.constant 1.000000e+00 : f32
    %141 = vector.broadcast %cst_54 : f32 to vector<8x1xf32>
    %142 = arith.subf %141, %23 : vector<8x1xf32>
    %143 = vector.broadcast %142 : vector<8x1xf32> to vector<8x32xf32>
    %144 = arith.mulf %143, %50 : vector<8x32xf32>
    %145 = arith.addf %140, %144 : vector<8x32xf32>
    %146 = tpu.concatenate %145, %118, %101, %14 in 1 : vector<8x32xf32>, vector<8x32xf32>, vector<8x8xf32>, vector<8x56xf32> -> vector<8x128xf32>
    %147 = arith.index_cast %c0_i32_16 : i32 to index
    %c0_55 = arith.constant 0 : index
    %c0_56 = arith.constant 0 : index
    %148 = vector.load %arg18[%147, %c0_55, %c0_56] : memref<4x8x128xf32, #tpu.memory_space<vmem>>, vector<1x8x128xf32>
    %149 = vector.shape_cast %148 : vector<1x8x128xf32> to vector<8x128xf32>
    %150 = vector.shape_cast %146 : vector<8x128xf32> to vector<1x8x128xf32>
    tpu.vector_store %arg18[%147, %c0_55, %c0_56], %150 {strides = array<i32>} : memref<4x8x128xf32, #tpu.memory_space<vmem>>, vector<1x8x128xf32>,
    %c1_i32 = arith.constant 1 : i32
    %151 = arith.index_cast %c1_i32 : i32 to index
    %c0_57 = arith.constant 0 : index
    %c0_58 = arith.constant 0 : index
    %152 = vector.load %arg1[%151, %c0_57, %c0_58] : memref<4x8x256xf32, #tpu.memory_space<vmem>>, vector<1x8x256xf32>
    %153 = vector.shape_cast %152 : vector<1x8x256xf32> to vector<8x256xf32>
    %154 = vector.extract_strided_slice %153 {offsets = [0, 0], sizes = [8, 64], strides = [1, 1]} : vector<8x256xf32> to vector<8x64xf32>
    %155 = vector.extract_strided_slice %153 {offsets = [0, 64], sizes = [8, 32], strides = [1, 1]} : vector<8x256xf32> to vector<8x32xf32>
    %156 = vector.extract_strided_slice %153 {offsets = [0, 96], sizes = [8, 32], strides = [1, 1]} : vector<8x256xf32> to vector<8x32xf32>
    %157 = vector.extract_strided_slice %153 {offsets = [0, 128], sizes = [8, 1], strides = [1, 1]} : vector<8x256xf32> to vector<8x1xf32>
    %c0_59 = arith.constant 0 : index
    %c0_60 = arith.constant 0 : index
    %158 = vector.load %arg7[%c0_59, %c0_60] : memref<32x128xf32, #tpu.memory_space<vmem>>, vector<32x128xf32>
    %cst_61 = arith.constant dense<0.000000e+00> : vector<8x128xf32>
    %159 = tpu.matmul %145, %158, %cst_61 {dimension_numbers = #tpu.dot_dimension_numbers<[1], [0], [0], [1], [0, 0, 1, 1], [], []>, precision = #tpu.contract_precision<fp32>} : vector<8x32xf32>, vector<32x128xf32>, vector<8x128xf32> -> vector<8x128xf32>
    %160 = vector.extract_strided_slice %159 {offsets = [0, 0], sizes = [8, 64], strides = [1, 1]} : vector<8x128xf32> to vector<8x64xf32>
    %161 = arith.addf %160, %154 : vector<8x64xf32>
    %162 = arith.negf %161 : vector<8x64xf32>
    %163 = math.exp %162 : vector<8x64xf32>
    %cst_62 = arith.constant 1.000000e+00 : f32
    %164 = vector.broadcast %cst_62 : f32 to vector<8x64xf32>
    %165 = arith.addf %164, %163 : vector<8x64xf32>
    %166 = arith.divf %164, %165 : vector<8x64xf32>
    %167 = vector.extract_strided_slice %166 {offsets = [0, 0], sizes = [8, 32], strides = [1, 1]} : vector<8x64xf32> to vector<8x32xf32>
    %168 = vector.extract_strided_slice %166 {offsets = [0, 32], sizes = [8, 32], strides = [1, 1]} : vector<8x64xf32> to vector<8x32xf32>
    %169 = vector.extract_strided_slice %159 {offsets = [0, 64], sizes = [8, 32], strides = [1, 1]} : vector<8x128xf32> to vector<8x32xf32>
    %170 = arith.mulf %167, %169 : vector<8x32xf32>
    %171 = arith.addf %170, %155 : vector<8x32xf32>
    %172 = math.tanh %171 : vector<8x32xf32>
    %173 = arith.mulf %168, %145 : vector<8x32xf32>
    %cst_63 = arith.constant 1.000000e+00 : f32
    %174 = vector.broadcast %cst_63 : f32 to vector<8x32xf32>
    %175 = arith.subf %174, %168 : vector<8x32xf32>
    %176 = arith.mulf %175, %172 : vector<8x32xf32>
    %177 = arith.addf %173, %176 : vector<8x32xf32>
    %178 = vector.broadcast %157 : vector<8x1xf32> to vector<8x32xf32>
    %179 = arith.mulf %178, %177 : vector<8x32xf32>
    %cst_64 = arith.constant 1.000000e+00 : f32
    %180 = vector.broadcast %cst_64 : f32 to vector<8x1xf32>
    %181 = arith.subf %180, %157 : vector<8x1xf32>
    %182 = vector.broadcast %181 : vector<8x1xf32> to vector<8x32xf32>
    %183 = arith.mulf %182, %145 : vector<8x32xf32>
    %184 = arith.addf %179, %183 : vector<8x32xf32>
    %185 = vector.extract_strided_slice %159 {offsets = [0, 96], sizes = [8, 32], strides = [1, 1]} : vector<8x128xf32> to vector<8x32xf32>
    %186 = arith.addf %156, %185 : vector<8x32xf32>
    %187 = arith.negf %186 : vector<8x32xf32>
    %188 = math.exp %187 : vector<8x32xf32>
    %cst_65 = arith.constant 1.000000e+00 : f32
    %189 = vector.broadcast %cst_65 : f32 to vector<8x32xf32>
    %190 = arith.addf %189, %188 : vector<8x32xf32>
    %191 = arith.divf %189, %190 : vector<8x32xf32>
    %c0_66 = arith.constant 0 : index
    %c0_67 = arith.constant 0 : index
    %192 = vector.load %arg8[%c0_66, %c0_67] : memref<32x160xf32, #tpu.memory_space<vmem>>, vector<32x160xf32>
    %cst_68 = arith.constant dense<0.000000e+00> : vector<8x160xf32>
    %193 = tpu.matmul %184, %192, %cst_68 {dimension_numbers = #tpu.dot_dimension_numbers<[1], [0], [0], [1], [0, 0, 1, 1], [], []>, precision = #tpu.contract_precision<fp32>} : vector<8x32xf32>, vector<32x160xf32>, vector<8x160xf32> -> vector<8x160xf32>
    %194 = vector.extract_strided_slice %193 {offsets = [0, 0], sizes = [8, 32], strides = [1, 1]} : vector<8x160xf32> to vector<8x32xf32>
    %195 = math.tanh %194 : vector<8x32xf32>
    %196 = arith.mulf %191, %195 : vector<8x32xf32>
    %197 = vector.extract_strided_slice %193 {offsets = [0, 32], sizes = [8, 32], strides = [1, 1]} : vector<8x160xf32> to vector<8x32xf32>
    %198 = vector.extract_strided_slice %193 {offsets = [0, 64], sizes = [8, 64], strides = [1, 1]} : vector<8x160xf32> to vector<8x64xf32>
    %199 = arith.addf %198, %10 : vector<8x64xf32>
    %200 = vector.extract_strided_slice %193 {offsets = [0, 128], sizes = [8, 32], strides = [1, 1]} : vector<8x160xf32> to vector<8x32xf32>
    %201 = arith.addf %200, %13 : vector<8x32xf32>
    %202 = tpu.concatenate %197, %197, %197, %197, %197, %197, %197, %197 in 1 : vector<8x32xf32>, vector<8x32xf32>, vector<8x32xf32>, vector<8x32xf32>, vector<8x32xf32>, vector<8x32xf32>, vector<8x32xf32>, vector<8x32xf32> -> vector<8x256xf32>
    %c0_69 = arith.constant 0 : index
    %c0_70 = arith.constant 0 : index
    %203 = vector.load %arg11[%c0_69, %c0_70] : memref<8x256xf32, #tpu.memory_space<vmem>>, vector<8x256xf32>
    %cst_71 = arith.constant dense<0.000000e+00> : vector<8x256xf32>
    %204 = tpu.matmul %107, %203, %cst_71 {dimension_numbers = #tpu.dot_dimension_numbers<[1], [0], [0], [1], [0, 0, 1, 1], [], []>, precision = #tpu.contract_precision<fp32>} : vector<8x8xf32>, vector<8x256xf32>, vector<8x256xf32> -> vector<8x256xf32>
    %205 = arith.addf %3, %202 : vector<8x256xf32>
    %206 = arith.addf %205, %204 : vector<8x256xf32>
    %207 = math.tanh %206 : vector<8x256xf32>
    %c0_72 = arith.constant 0 : index
    %c0_73 = arith.constant 0 : index
    %208 = vector.load %arg12[%c0_72, %c0_73] : memref<256x8xf32, #tpu.memory_space<vmem>>, vector<256x8xf32>
    %cst_74 = arith.constant dense<0.000000e+00> : vector<8x8xf32>
    %209 = tpu.matmul %207, %208, %cst_74 {dimension_numbers = #tpu.dot_dimension_numbers<[1], [0], [0], [1], [0, 0, 1, 1], [], []>, precision = #tpu.contract_precision<fp32>} : vector<8x256xf32>, vector<256x8xf32>, vector<8x8xf32> -> vector<8x8xf32>
    %c0_75 = arith.constant 0 : index
    %c0_76 = arith.constant 0 : index
    %210 = vector.load %arg13[%c0_75, %c0_76] : memref<1x1xf32, #tpu.memory_space<vmem>>, vector<1x1xf32>
    %211 = vector.broadcast %210 : vector<1x1xf32> to vector<8x8xf32>
    %212 = arith.addf %209, %211 : vector<8x8xf32>
    %c0_77 = arith.constant 0 : index
    %c0_78 = arith.constant 0 : index
    %213 = vector.load %arg14[%c0_77, %c0_78] : memref<32x32xf32, #tpu.memory_space<vmem>>, vector<32x32xf32>
    %cst_79 = arith.constant dense<0.000000e+00> : vector<8x32xf32>
    %214 = tpu.matmul %196, %213, %cst_79 {dimension_numbers = #tpu.dot_dimension_numbers<[1], [0], [0], [1], [0, 0, 1, 1], [], []>, precision = #tpu.contract_precision<fp32>} : vector<8x32xf32>, vector<32x32xf32>, vector<8x32xf32> -> vector<8x32xf32>
    %215 = arith.addf %197, %214 : vector<8x32xf32>
    %216 = math.tanh %215 : vector<8x32xf32>
    %c0_80 = arith.constant 0 : index
    %c0_81 = arith.constant 0 : index
    %217 = vector.load %arg15[%c0_80, %c0_81] : memref<1x32xf32, #tpu.memory_space<vmem>>, vector<1x32xf32>
    %218 = vector.broadcast %217 : vector<1x32xf32> to vector<8x32xf32>
    %219 = arith.mulf %216, %218 : vector<8x32xf32>
    %cst_82 = arith.constant dense<0.000000e+00> : vector<8xf32>
    %220 = vector.multi_reduction <add>, %219, %cst_82 [1] : vector<8x32xf32> to vector<8xf32>
    %221 = vector.shape_cast %220 : vector<8xf32> to vector<8x1xf32>
    %c0_83 = arith.constant 0 : index
    %c0_84 = arith.constant 0 : index
    %222 = vector.load %arg16[%c0_83, %c0_84] : memref<1x1xf32, #tpu.memory_space<vmem>>, vector<1x1xf32>
    %223 = vector.broadcast %222 : vector<1x1xf32> to vector<8x1xf32>
    %224 = arith.addf %221, %223 : vector<8x1xf32>
    %cst_85 = arith.constant dense<0xFF800000> : vector<8xf32>
    %225 = vector.multi_reduction <maximumf>, %212, %cst_85 [1] : vector<8x8xf32> to vector<8xf32>
    %226 = vector.shape_cast %225 : vector<8xf32> to vector<8x1xf32>
    %227 = arith.maximumf %226, %224 : vector<8x1xf32>
    %228 = vector.broadcast %227 : vector<8x1xf32> to vector<8x8xf32>
    %229 = arith.subf %212, %228 : vector<8x8xf32>
    %230 = math.exp %229 : vector<8x8xf32>
    %231 = arith.mulf %230, %5 : vector<8x8xf32>
    %cst_86 = arith.constant dense<0.000000e+00> : vector<8xf32>
    %232 = vector.multi_reduction <add>, %231, %cst_86 [1] : vector<8x8xf32> to vector<8xf32>
    %233 = vector.shape_cast %232 : vector<8xf32> to vector<8x1xf32>
    %234 = vector.broadcast %233 : vector<8x1xf32> to vector<8x8xf32>
    %235 = arith.divf %231, %234 : vector<8x8xf32>
    %236 = arith.divf %233, %7 : vector<8x1xf32>
    %237 = arith.subf %224, %227 : vector<8x1xf32>
    %238 = math.exp %237 : vector<8x1xf32>
    %239 = arith.addf %236, %238 : vector<8x1xf32>
    %240 = arith.divf %238, %239 : vector<8x1xf32>
    %241 = arith.addf %107, %235 : vector<8x8xf32>
    %242 = vector.shape_cast %235 : vector<8x8xf32> to vector<8x8x1xf32>
    %243 = vector.broadcast %242 : vector<8x8x1xf32> to vector<8x8x32xf32>
    %244 = arith.mulf %4, %243 : vector<8x8x32xf32>
    %cst_87 = arith.constant dense<0.000000e+00> : vector<8x32xf32>
    %245 = vector.multi_reduction <add>, %244, %cst_87 [1] : vector<8x8x32xf32> to vector<8x32xf32>
    %246 = vector.broadcast %240 : vector<8x1xf32> to vector<8x32xf32>
    %247 = arith.mulf %246, %196 : vector<8x32xf32>
    %cst_88 = arith.constant 1.000000e+00 : f32
    %248 = vector.broadcast %cst_88 : f32 to vector<8x1xf32>
    %249 = arith.subf %248, %240 : vector<8x1xf32>
    %250 = vector.broadcast %249 : vector<8x1xf32> to vector<8x32xf32>
    %251 = arith.mulf %250, %245 : vector<8x32xf32>
    %252 = arith.addf %247, %251 : vector<8x32xf32>
    %c0_89 = arith.constant 0 : index
    %c0_90 = arith.constant 0 : index
    %253 = vector.load %arg17[%c0_89, %c0_90] : memref<32x96xf32, #tpu.memory_space<vmem>>, vector<32x96xf32>
    %cst_91 = arith.constant dense<0.000000e+00> : vector<8x96xf32>
    %254 = tpu.matmul %252, %253, %cst_91 {dimension_numbers = #tpu.dot_dimension_numbers<[1], [0], [0], [1], [0, 0, 1, 1], [], []>, precision = #tpu.contract_precision<fp32>} : vector<8x32xf32>, vector<32x96xf32>, vector<8x96xf32> -> vector<8x96xf32>
    %255 = vector.extract_strided_slice %254 {offsets = [0, 0], sizes = [8, 64], strides = [1, 1]} : vector<8x96xf32> to vector<8x64xf32>
    %256 = arith.addf %199, %255 : vector<8x64xf32>
    %257 = arith.negf %256 : vector<8x64xf32>
    %258 = math.exp %257 : vector<8x64xf32>
    %cst_92 = arith.constant 1.000000e+00 : f32
    %259 = vector.broadcast %cst_92 : f32 to vector<8x64xf32>
    %260 = arith.addf %259, %258 : vector<8x64xf32>
    %261 = arith.divf %259, %260 : vector<8x64xf32>
    %262 = vector.extract_strided_slice %261 {offsets = [0, 0], sizes = [8, 32], strides = [1, 1]} : vector<8x64xf32> to vector<8x32xf32>
    %263 = vector.extract_strided_slice %261 {offsets = [0, 32], sizes = [8, 32], strides = [1, 1]} : vector<8x64xf32> to vector<8x32xf32>
    %264 = vector.extract_strided_slice %254 {offsets = [0, 64], sizes = [8, 32], strides = [1, 1]} : vector<8x96xf32> to vector<8x32xf32>
    %265 = arith.mulf %262, %201 : vector<8x32xf32>
    %266 = arith.addf %264, %265 : vector<8x32xf32>
    %267 = math.tanh %266 : vector<8x32xf32>
    %268 = arith.mulf %263, %184 : vector<8x32xf32>
    %cst_93 = arith.constant 1.000000e+00 : f32
    %269 = vector.broadcast %cst_93 : f32 to vector<8x32xf32>
    %270 = arith.subf %269, %263 : vector<8x32xf32>
    %271 = arith.mulf %270, %267 : vector<8x32xf32>
    %272 = arith.addf %268, %271 : vector<8x32xf32>
    %273 = vector.broadcast %157 : vector<8x1xf32> to vector<8x32xf32>
    %274 = arith.mulf %273, %272 : vector<8x32xf32>
    %cst_94 = arith.constant 1.000000e+00 : f32
    %275 = vector.broadcast %cst_94 : f32 to vector<8x1xf32>
    %276 = arith.subf %275, %157 : vector<8x1xf32>
    %277 = vector.broadcast %276 : vector<8x1xf32> to vector<8x32xf32>
    %278 = arith.mulf %277, %184 : vector<8x32xf32>
    %279 = arith.addf %274, %278 : vector<8x32xf32>
    %280 = tpu.concatenate %279, %252, %235, %14 in 1 : vector<8x32xf32>, vector<8x32xf32>, vector<8x8xf32>, vector<8x56xf32> -> vector<8x128xf32>
    %281 = arith.index_cast %c1_i32 : i32 to index
    %c0_95 = arith.constant 0 : index
    %c0_96 = arith.constant 0 : index
    %282 = vector.load %arg18[%281, %c0_95, %c0_96] : memref<4x8x128xf32, #tpu.memory_space<vmem>>, vector<1x8x128xf32>
    %283 = vector.shape_cast %282 : vector<1x8x128xf32> to vector<8x128xf32>
    %284 = vector.shape_cast %280 : vector<8x128xf32> to vector<1x8x128xf32>
    tpu.vector_store %arg18[%281, %c0_95, %c0_96], %284 {strides = array<i32>} : memref<4x8x128xf32, #tpu.memory_space<vmem>>, vector<1x8x128xf32>,
    %c2_i32 = arith.constant 2 : i32
    %285 = arith.index_cast %c2_i32 : i32 to index
    %c0_97 = arith.constant 0 : index
    %c0_98 = arith.constant 0 : index
    %286 = vector.load %arg1[%285, %c0_97, %c0_98] : memref<4x8x256xf32, #tpu.memory_space<vmem>>, vector<1x8x256xf32>
    %287 = vector.shape_cast %286 : vector<1x8x256xf32> to vector<8x256xf32>
    %288 = vector.extract_strided_slice %287 {offsets = [0, 0], sizes = [8, 64], strides = [1, 1]} : vector<8x256xf32> to vector<8x64xf32>
    %289 = vector.extract_strided_slice %287 {offsets = [0, 64], sizes = [8, 32], strides = [1, 1]} : vector<8x256xf32> to vector<8x32xf32>
    %290 = vector.extract_strided_slice %287 {offsets = [0, 96], sizes = [8, 32], strides = [1, 1]} : vector<8x256xf32> to vector<8x32xf32>
    %291 = vector.extract_strided_slice %287 {offsets = [0, 128], sizes = [8, 1], strides = [1, 1]} : vector<8x256xf32> to vector<8x1xf32>
    %c0_99 = arith.constant 0 : index
    %c0_100 = arith.constant 0 : index
    %292 = vector.load %arg7[%c0_99, %c0_100] : memref<32x128xf32, #tpu.memory_space<vmem>>, vector<32x128xf32>
    %cst_101 = arith.constant dense<0.000000e+00> : vector<8x128xf32>
    %293 = tpu.matmul %279, %292, %cst_101 {dimension_numbers = #tpu.dot_dimension_numbers<[1], [0], [0], [1], [0, 0, 1, 1], [], []>, precision = #tpu.contract_precision<fp32>} : vector<8x32xf32>, vector<32x128xf32>, vector<8x128xf32> -> vector<8x128xf32>
    %294 = vector.extract_strided_slice %293 {offsets = [0, 0], sizes = [8, 64], strides = [1, 1]} : vector<8x128xf32> to vector<8x64xf32>
    %295 = arith.addf %294, %288 : vector<8x64xf32>
    %296 = arith.negf %295 : vector<8x64xf32>
    %297 = math.exp %296 : vector<8x64xf32>
    %cst_102 = arith.constant 1.000000e+00 : f32
    %298 = vector.broadcast %cst_102 : f32 to vector<8x64xf32>
    %299 = arith.addf %298, %297 : vector<8x64xf32>
    %300 = arith.divf %298, %299 : vector<8x64xf32>
    %301 = vector.extract_strided_slice %300 {offsets = [0, 0], sizes = [8, 32], strides = [1, 1]} : vector<8x64xf32> to vector<8x32xf32>
    %302 = vector.extract_strided_slice %300 {offsets = [0, 32], sizes = [8, 32], strides = [1, 1]} : vector<8x64xf32> to vector<8x32xf32>
    %303 = vector.extract_strided_slice %293 {offsets = [0, 64], sizes = [8, 32], strides = [1, 1]} : vector<8x128xf32> to vector<8x32xf32>
    %304 = arith.mulf %301, %303 : vector<8x32xf32>
    %305 = arith.addf %304, %289 : vector<8x32xf32>
    %306 = math.tanh %305 : vector<8x32xf32>
    %307 = arith.mulf %302, %279 : vector<8x32xf32>
    %cst_103 = arith.constant 1.000000e+00 : f32
    %308 = vector.broadcast %cst_103 : f32 to vector<8x32xf32>
    %309 = arith.subf %308, %302 : vector<8x32xf32>
    %310 = arith.mulf %309, %306 : vector<8x32xf32>
    %311 = arith.addf %307, %310 : vector<8x32xf32>
    %312 = vector.broadcast %291 : vector<8x1xf32> to vector<8x32xf32>
    %313 = arith.mulf %312, %311 : vector<8x32xf32>
    %cst_104 = arith.constant 1.000000e+00 : f32
    %314 = vector.broadcast %cst_104 : f32 to vector<8x1xf32>
    %315 = arith.subf %314, %291 : vector<8x1xf32>
    %316 = vector.broadcast %315 : vector<8x1xf32> to vector<8x32xf32>
    %317 = arith.mulf %316, %279 : vector<8x32xf32>
    %318 = arith.addf %313, %317 : vector<8x32xf32>
    %319 = vector.extract_strided_slice %293 {offsets = [0, 96], sizes = [8, 32], strides = [1, 1]} : vector<8x128xf32> to vector<8x32xf32>
    %320 = arith.addf %290, %319 : vector<8x32xf32>
    %321 = arith.negf %320 : vector<8x32xf32>
    %322 = math.exp %321 : vector<8x32xf32>
    %cst_105 = arith.constant 1.000000e+00 : f32
    %323 = vector.broadcast %cst_105 : f32 to vector<8x32xf32>
    %324 = arith.addf %323, %322 : vector<8x32xf32>
    %325 = arith.divf %323, %324 : vector<8x32xf32>
    %c0_106 = arith.constant 0 : index
    %c0_107 = arith.constant 0 : index
    %326 = vector.load %arg8[%c0_106, %c0_107] : memref<32x160xf32, #tpu.memory_space<vmem>>, vector<32x160xf32>
    %cst_108 = arith.constant dense<0.000000e+00> : vector<8x160xf32>
    %327 = tpu.matmul %318, %326, %cst_108 {dimension_numbers = #tpu.dot_dimension_numbers<[1], [0], [0], [1], [0, 0, 1, 1], [], []>, precision = #tpu.contract_precision<fp32>} : vector<8x32xf32>, vector<32x160xf32>, vector<8x160xf32> -> vector<8x160xf32>
    %328 = vector.extract_strided_slice %327 {offsets = [0, 0], sizes = [8, 32], strides = [1, 1]} : vector<8x160xf32> to vector<8x32xf32>
    %329 = math.tanh %328 : vector<8x32xf32>
    %330 = arith.mulf %325, %329 : vector<8x32xf32>
    %331 = vector.extract_strided_slice %327 {offsets = [0, 32], sizes = [8, 32], strides = [1, 1]} : vector<8x160xf32> to vector<8x32xf32>
    %332 = vector.extract_strided_slice %327 {offsets = [0, 64], sizes = [8, 64], strides = [1, 1]} : vector<8x160xf32> to vector<8x64xf32>
    %333 = arith.addf %332, %10 : vector<8x64xf32>
    %334 = vector.extract_strided_slice %327 {offsets = [0, 128], sizes = [8, 32], strides = [1, 1]} : vector<8x160xf32> to vector<8x32xf32>
    %335 = arith.addf %334, %13 : vector<8x32xf32>
    %336 = tpu.concatenate %331, %331, %331, %331, %331, %331, %331, %331 in 1 : vector<8x32xf32>, vector<8x32xf32>, vector<8x32xf32>, vector<8x32xf32>, vector<8x32xf32>, vector<8x32xf32>, vector<8x32xf32>, vector<8x32xf32> -> vector<8x256xf32>
    %c0_109 = arith.constant 0 : index
    %c0_110 = arith.constant 0 : index
    %337 = vector.load %arg11[%c0_109, %c0_110] : memref<8x256xf32, #tpu.memory_space<vmem>>, vector<8x256xf32>
    %cst_111 = arith.constant dense<0.000000e+00> : vector<8x256xf32>
    %338 = tpu.matmul %241, %337, %cst_111 {dimension_numbers = #tpu.dot_dimension_numbers<[1], [0], [0], [1], [0, 0, 1, 1], [], []>, precision = #tpu.contract_precision<fp32>} : vector<8x8xf32>, vector<8x256xf32>, vector<8x256xf32> -> vector<8x256xf32>
    %339 = arith.addf %3, %336 : vector<8x256xf32>
    %340 = arith.addf %339, %338 : vector<8x256xf32>
    %341 = math.tanh %340 : vector<8x256xf32>
    %c0_112 = arith.constant 0 : index
    %c0_113 = arith.constant 0 : index
    %342 = vector.load %arg12[%c0_112, %c0_113] : memref<256x8xf32, #tpu.memory_space<vmem>>, vector<256x8xf32>
    %cst_114 = arith.constant dense<0.000000e+00> : vector<8x8xf32>
    %343 = tpu.matmul %341, %342, %cst_114 {dimension_numbers = #tpu.dot_dimension_numbers<[1], [0], [0], [1], [0, 0, 1, 1], [], []>, precision = #tpu.contract_precision<fp32>} : vector<8x256xf32>, vector<256x8xf32>, vector<8x8xf32> -> vector<8x8xf32>
    %c0_115 = arith.constant 0 : index
    %c0_116 = arith.constant 0 : index
    %344 = vector.load %arg13[%c0_115, %c0_116] : memref<1x1xf32, #tpu.memory_space<vmem>>, vector<1x1xf32>
    %345 = vector.broadcast %344 : vector<1x1xf32> to vector<8x8xf32>
    %346 = arith.addf %343, %345 : vector<8x8xf32>
    %c0_117 = arith.constant 0 : index
    %c0_118 = arith.constant 0 : index
    %347 = vector.load %arg14[%c0_117, %c0_118] : memref<32x32xf32, #tpu.memory_space<vmem>>, vector<32x32xf32>
    %cst_119 = arith.constant dense<0.000000e+00> : vector<8x32xf32>
    %348 = tpu.matmul %330, %347, %cst_119 {dimension_numbers = #tpu.dot_dimension_numbers<[1], [0], [0], [1], [0, 0, 1, 1], [], []>, precision = #tpu.contract_precision<fp32>} : vector<8x32xf32>, vector<32x32xf32>, vector<8x32xf32> -> vector<8x32xf32>
    %349 = arith.addf %331, %348 : vector<8x32xf32>
    %350 = math.tanh %349 : vector<8x32xf32>
    %c0_120 = arith.constant 0 : index
    %c0_121 = arith.constant 0 : index
    %351 = vector.load %arg15[%c0_120, %c0_121] : memref<1x32xf32, #tpu.memory_space<vmem>>, vector<1x32xf32>
    %352 = vector.broadcast %351 : vector<1x32xf32> to vector<8x32xf32>
    %353 = arith.mulf %350, %352 : vector<8x32xf32>
    %cst_122 = arith.constant dense<0.000000e+00> : vector<8xf32>
    %354 = vector.multi_reduction <add>, %353, %cst_122 [1] : vector<8x32xf32> to vector<8xf32>
    %355 = vector.shape_cast %354 : vector<8xf32> to vector<8x1xf32>
    %c0_123 = arith.constant 0 : index
    %c0_124 = arith.constant 0 : index
    %356 = vector.load %arg16[%c0_123, %c0_124] : memref<1x1xf32, #tpu.memory_space<vmem>>, vector<1x1xf32>
    %357 = vector.broadcast %356 : vector<1x1xf32> to vector<8x1xf32>
    %358 = arith.addf %355, %357 : vector<8x1xf32>
    %cst_125 = arith.constant dense<0xFF800000> : vector<8xf32>
    %359 = vector.multi_reduction <maximumf>, %346, %cst_125 [1] : vector<8x8xf32> to vector<8xf32>
    %360 = vector.shape_cast %359 : vector<8xf32> to vector<8x1xf32>
    %361 = arith.maximumf %360, %358 : vector<8x1xf32>
    %362 = vector.broadcast %361 : vector<8x1xf32> to vector<8x8xf32>
    %363 = arith.subf %346, %362 : vector<8x8xf32>
    %364 = math.exp %363 : vector<8x8xf32>
    %365 = arith.mulf %364, %5 : vector<8x8xf32>
    %cst_126 = arith.constant dense<0.000000e+00> : vector<8xf32>
    %366 = vector.multi_reduction <add>, %365, %cst_126 [1] : vector<8x8xf32> to vector<8xf32>
    %367 = vector.shape_cast %366 : vector<8xf32> to vector<8x1xf32>
    %368 = vector.broadcast %367 : vector<8x1xf32> to vector<8x8xf32>
    %369 = arith.divf %365, %368 : vector<8x8xf32>
    %370 = arith.divf %367, %7 : vector<8x1xf32>
    %371 = arith.subf %358, %361 : vector<8x1xf32>
    %372 = math.exp %371 : vector<8x1xf32>
    %373 = arith.addf %370, %372 : vector<8x1xf32>
    %374 = arith.divf %372, %373 : vector<8x1xf32>
    %375 = arith.addf %241, %369 : vector<8x8xf32>
    %376 = vector.shape_cast %369 : vector<8x8xf32> to vector<8x8x1xf32>
    %377 = vector.broadcast %376 : vector<8x8x1xf32> to vector<8x8x32xf32>
    %378 = arith.mulf %4, %377 : vector<8x8x32xf32>
    %cst_127 = arith.constant dense<0.000000e+00> : vector<8x32xf32>
    %379 = vector.multi_reduction <add>, %378, %cst_127 [1] : vector<8x8x32xf32> to vector<8x32xf32>
    %380 = vector.broadcast %374 : vector<8x1xf32> to vector<8x32xf32>
    %381 = arith.mulf %380, %330 : vector<8x32xf32>
    %cst_128 = arith.constant 1.000000e+00 : f32
    %382 = vector.broadcast %cst_128 : f32 to vector<8x1xf32>
    %383 = arith.subf %382, %374 : vector<8x1xf32>
    %384 = vector.broadcast %383 : vector<8x1xf32> to vector<8x32xf32>
    %385 = arith.mulf %384, %379 : vector<8x32xf32>
    %386 = arith.addf %381, %385 : vector<8x32xf32>
    %c0_129 = arith.constant 0 : index
    %c0_130 = arith.constant 0 : index
    %387 = vector.load %arg17[%c0_129, %c0_130] : memref<32x96xf32, #tpu.memory_space<vmem>>, vector<32x96xf32>
    %cst_131 = arith.constant dense<0.000000e+00> : vector<8x96xf32>
    %388 = tpu.matmul %386, %387, %cst_131 {dimension_numbers = #tpu.dot_dimension_numbers<[1], [0], [0], [1], [0, 0, 1, 1], [], []>, precision = #tpu.contract_precision<fp32>} : vector<8x32xf32>, vector<32x96xf32>, vector<8x96xf32> -> vector<8x96xf32>
    %389 = vector.extract_strided_slice %388 {offsets = [0, 0], sizes = [8, 64], strides = [1, 1]} : vector<8x96xf32> to vector<8x64xf32>
    %390 = arith.addf %333, %389 : vector<8x64xf32>
    %391 = arith.negf %390 : vector<8x64xf32>
    %392 = math.exp %391 : vector<8x64xf32>
    %cst_132 = arith.constant 1.000000e+00 : f32
    %393 = vector.broadcast %cst_132 : f32 to vector<8x64xf32>
    %394 = arith.addf %393, %392 : vector<8x64xf32>
    %395 = arith.divf %393, %394 : vector<8x64xf32>
    %396 = vector.extract_strided_slice %395 {offsets = [0, 0], sizes = [8, 32], strides = [1, 1]} : vector<8x64xf32> to vector<8x32xf32>
    %397 = vector.extract_strided_slice %395 {offsets = [0, 32], sizes = [8, 32], strides = [1, 1]} : vector<8x64xf32> to vector<8x32xf32>
    %398 = vector.extract_strided_slice %388 {offsets = [0, 64], sizes = [8, 32], strides = [1, 1]} : vector<8x96xf32> to vector<8x32xf32>
    %399 = arith.mulf %396, %335 : vector<8x32xf32>
    %400 = arith.addf %398, %399 : vector<8x32xf32>
    %401 = math.tanh %400 : vector<8x32xf32>
    %402 = arith.mulf %397, %318 : vector<8x32xf32>
    %cst_133 = arith.constant 1.000000e+00 : f32
    %403 = vector.broadcast %cst_133 : f32 to vector<8x32xf32>
    %404 = arith.subf %403, %397 : vector<8x32xf32>
    %405 = arith.mulf %404, %401 : vector<8x32xf32>
    %406 = arith.addf %402, %405 : vector<8x32xf32>
    %407 = vector.broadcast %291 : vector<8x1xf32> to vector<8x32xf32>
    %408 = arith.mulf %407, %406 : vector<8x32xf32>
    %cst_134 = arith.constant 1.000000e+00 : f32
    %409 = vector.broadcast %cst_134 : f32 to vector<8x1xf32>
    %410 = arith.subf %409, %291 : vector<8x1xf32>
    %411 = vector.broadcast %410 : vector<8x1xf32> to vector<8x32xf32>
    %412 = arith.mulf %411, %318 : vector<8x32xf32>
    %413 = arith.addf %408, %412 : vector<8x32xf32>
    %414 = tpu.concatenate %413, %386, %369, %14 in 1 : vector<8x32xf32>, vector<8x32xf32>, vector<8x8xf32>, vector<8x56xf32> -> vector<8x128xf32>
    %415 = arith.index_cast %c2_i32 : i32 to index
    %c0_135 = arith.constant 0 : index
    %c0_136 = arith.constant 0 : index
    %416 = vector.load %arg18[%415, %c0_135, %c0_136] : memref<4x8x128xf32, #tpu.memory_space<vmem>>, vector<1x8x128xf32>
    %417 = vector.shape_cast %416 : vector<1x8x128xf32> to vector<8x128xf32>
    %418 = vector.shape_cast %414 : vector<8x128xf32> to vector<1x8x128xf32>
    tpu.vector_store %arg18[%415, %c0_135, %c0_136], %418 {strides = array<i32>} : memref<4x8x128xf32, #tpu.memory_space<vmem>>, vector<1x8x128xf32>,
    %c3_i32 = arith.constant 3 : i32
    %419 = arith.index_cast %c3_i32 : i32 to index
    %c0_137 = arith.constant 0 : index
    %c0_138 = arith.constant 0 : index
    %420 = vector.load %arg1[%419, %c0_137, %c0_138] : memref<4x8x256xf32, #tpu.memory_space<vmem>>, vector<1x8x256xf32>
    %421 = vector.shape_cast %420 : vector<1x8x256xf32> to vector<8x256xf32>
    %422 = vector.extract_strided_slice %421 {offsets = [0, 0], sizes = [8, 64], strides = [1, 1]} : vector<8x256xf32> to vector<8x64xf32>
    %423 = vector.extract_strided_slice %421 {offsets = [0, 64], sizes = [8, 32], strides = [1, 1]} : vector<8x256xf32> to vector<8x32xf32>
    %424 = vector.extract_strided_slice %421 {offsets = [0, 96], sizes = [8, 32], strides = [1, 1]} : vector<8x256xf32> to vector<8x32xf32>
    %425 = vector.extract_strided_slice %421 {offsets = [0, 128], sizes = [8, 1], strides = [1, 1]} : vector<8x256xf32> to vector<8x1xf32>
    %c0_139 = arith.constant 0 : index
    %c0_140 = arith.constant 0 : index
    %426 = vector.load %arg7[%c0_139, %c0_140] : memref<32x128xf32, #tpu.memory_space<vmem>>, vector<32x128xf32>
    %cst_141 = arith.constant dense<0.000000e+00> : vector<8x128xf32>
    %427 = tpu.matmul %413, %426, %cst_141 {dimension_numbers = #tpu.dot_dimension_numbers<[1], [0], [0], [1], [0, 0, 1, 1], [], []>, precision = #tpu.contract_precision<fp32>} : vector<8x32xf32>, vector<32x128xf32>, vector<8x128xf32> -> vector<8x128xf32>
    %428 = vector.extract_strided_slice %427 {offsets = [0, 0], sizes = [8, 64], strides = [1, 1]} : vector<8x128xf32> to vector<8x64xf32>
    %429 = arith.addf %428, %422 : vector<8x64xf32>
    %430 = arith.negf %429 : vector<8x64xf32>
    %431 = math.exp %430 : vector<8x64xf32>
    %cst_142 = arith.constant 1.000000e+00 : f32
    %432 = vector.broadcast %cst_142 : f32 to vector<8x64xf32>
    %433 = arith.addf %432, %431 : vector<8x64xf32>
    %434 = arith.divf %432, %433 : vector<8x64xf32>
    %435 = vector.extract_strided_slice %434 {offsets = [0, 0], sizes = [8, 32], strides = [1, 1]} : vector<8x64xf32> to vector<8x32xf32>
    %436 = vector.extract_strided_slice %434 {offsets = [0, 32], sizes = [8, 32], strides = [1, 1]} : vector<8x64xf32> to vector<8x32xf32>
    %437 = vector.extract_strided_slice %427 {offsets = [0, 64], sizes = [8, 32], strides = [1, 1]} : vector<8x128xf32> to vector<8x32xf32>
    %438 = arith.mulf %435, %437 : vector<8x32xf32>
    %439 = arith.addf %438, %423 : vector<8x32xf32>
    %440 = math.tanh %439 : vector<8x32xf32>
    %441 = arith.mulf %436, %413 : vector<8x32xf32>
    %cst_143 = arith.constant 1.000000e+00 : f32
    %442 = vector.broadcast %cst_143 : f32 to vector<8x32xf32>
    %443 = arith.subf %442, %436 : vector<8x32xf32>
    %444 = arith.mulf %443, %440 : vector<8x32xf32>
    %445 = arith.addf %441, %444 : vector<8x32xf32>
    %446 = vector.broadcast %425 : vector<8x1xf32> to vector<8x32xf32>
    %447 = arith.mulf %446, %445 : vector<8x32xf32>
    %cst_144 = arith.constant 1.000000e+00 : f32
    %448 = vector.broadcast %cst_144 : f32 to vector<8x1xf32>
    %449 = arith.subf %448, %425 : vector<8x1xf32>
    %450 = vector.broadcast %449 : vector<8x1xf32> to vector<8x32xf32>
    %451 = arith.mulf %450, %413 : vector<8x32xf32>
    %452 = arith.addf %447, %451 : vector<8x32xf32>
    %453 = vector.extract_strided_slice %427 {offsets = [0, 96], sizes = [8, 32], strides = [1, 1]} : vector<8x128xf32> to vector<8x32xf32>
    %454 = arith.addf %424, %453 : vector<8x32xf32>
    %455 = arith.negf %454 : vector<8x32xf32>
    %456 = math.exp %455 : vector<8x32xf32>
    %cst_145 = arith.constant 1.000000e+00 : f32
    %457 = vector.broadcast %cst_145 : f32 to vector<8x32xf32>
    %458 = arith.addf %457, %456 : vector<8x32xf32>
    %459 = arith.divf %457, %458 : vector<8x32xf32>
    %c0_146 = arith.constant 0 : index
    %c0_147 = arith.constant 0 : index
    %460 = vector.load %arg8[%c0_146, %c0_147] : memref<32x160xf32, #tpu.memory_space<vmem>>, vector<32x160xf32>
    %cst_148 = arith.constant dense<0.000000e+00> : vector<8x160xf32>
    %461 = tpu.matmul %452, %460, %cst_148 {dimension_numbers = #tpu.dot_dimension_numbers<[1], [0], [0], [1], [0, 0, 1, 1], [], []>, precision = #tpu.contract_precision<fp32>} : vector<8x32xf32>, vector<32x160xf32>, vector<8x160xf32> -> vector<8x160xf32>
    %462 = vector.extract_strided_slice %461 {offsets = [0, 0], sizes = [8, 32], strides = [1, 1]} : vector<8x160xf32> to vector<8x32xf32>
    %463 = math.tanh %462 : vector<8x32xf32>
    %464 = arith.mulf %459, %463 : vector<8x32xf32>
    %465 = vector.extract_strided_slice %461 {offsets = [0, 32], sizes = [8, 32], strides = [1, 1]} : vector<8x160xf32> to vector<8x32xf32>
    %466 = vector.extract_strided_slice %461 {offsets = [0, 64], sizes = [8, 64], strides = [1, 1]} : vector<8x160xf32> to vector<8x64xf32>
    %467 = arith.addf %466, %10 : vector<8x64xf32>
    %468 = vector.extract_strided_slice %461 {offsets = [0, 128], sizes = [8, 32], strides = [1, 1]} : vector<8x160xf32> to vector<8x32xf32>
    %469 = arith.addf %468, %13 : vector<8x32xf32>
    %470 = tpu.concatenate %465, %465, %465, %465, %465, %465, %465, %465 in 1 : vector<8x32xf32>, vector<8x32xf32>, vector<8x32xf32>, vector<8x32xf32>, vector<8x32xf32>, vector<8x32xf32>, vector<8x32xf32>, vector<8x32xf32> -> vector<8x256xf32>
    %c0_149 = arith.constant 0 : index
    %c0_150 = arith.constant 0 : index
    %471 = vector.load %arg11[%c0_149, %c0_150] : memref<8x256xf32, #tpu.memory_space<vmem>>, vector<8x256xf32>
    %cst_151 = arith.constant dense<0.000000e+00> : vector<8x256xf32>
    %472 = tpu.matmul %375, %471, %cst_151 {dimension_numbers = #tpu.dot_dimension_numbers<[1], [0], [0], [1], [0, 0, 1, 1], [], []>, precision = #tpu.contract_precision<fp32>} : vector<8x8xf32>, vector<8x256xf32>, vector<8x256xf32> -> vector<8x256xf32>
    %473 = arith.addf %3, %470 : vector<8x256xf32>
    %474 = arith.addf %473, %472 : vector<8x256xf32>
    %475 = math.tanh %474 : vector<8x256xf32>
    %c0_152 = arith.constant 0 : index
    %c0_153 = arith.constant 0 : index
    %476 = vector.load %arg12[%c0_152, %c0_153] : memref<256x8xf32, #tpu.memory_space<vmem>>, vector<256x8xf32>
    %cst_154 = arith.constant dense<0.000000e+00> : vector<8x8xf32>
    %477 = tpu.matmul %475, %476, %cst_154 {dimension_numbers = #tpu.dot_dimension_numbers<[1], [0], [0], [1], [0, 0, 1, 1], [], []>, precision = #tpu.contract_precision<fp32>} : vector<8x256xf32>, vector<256x8xf32>, vector<8x8xf32> -> vector<8x8xf32>
    %c0_155 = arith.constant 0 : index
    %c0_156 = arith.constant 0 : index
    %478 = vector.load %arg13[%c0_155, %c0_156] : memref<1x1xf32, #tpu.memory_space<vmem>>, vector<1x1xf32>
    %479 = vector.broadcast %478 : vector<1x1xf32> to vector<8x8xf32>
    %480 = arith.addf %477, %479 : vector<8x8xf32>
    %c0_157 = arith.constant 0 : index
    %c0_158 = arith.constant 0 : index
    %481 = vector.load %arg14[%c0_157, %c0_158] : memref<32x32xf32, #tpu.memory_space<vmem>>, vector<32x32xf32>
    %cst_159 = arith.constant dense<0.000000e+00> : vector<8x32xf32>
    %482 = tpu.matmul %464, %481, %cst_159 {dimension_numbers = #tpu.dot_dimension_numbers<[1], [0], [0], [1], [0, 0, 1, 1], [], []>, precision = #tpu.contract_precision<fp32>} : vector<8x32xf32>, vector<32x32xf32>, vector<8x32xf32> -> vector<8x32xf32>
    %483 = arith.addf %465, %482 : vector<8x32xf32>
    %484 = math.tanh %483 : vector<8x32xf32>
    %c0_160 = arith.constant 0 : index
    %c0_161 = arith.constant 0 : index
    %485 = vector.load %arg15[%c0_160, %c0_161] : memref<1x32xf32, #tpu.memory_space<vmem>>, vector<1x32xf32>
    %486 = vector.broadcast %485 : vector<1x32xf32> to vector<8x32xf32>
    %487 = arith.mulf %484, %486 : vector<8x32xf32>
    %cst_162 = arith.constant dense<0.000000e+00> : vector<8xf32>
    %488 = vector.multi_reduction <add>, %487, %cst_162 [1] : vector<8x32xf32> to vector<8xf32>
    %489 = vector.shape_cast %488 : vector<8xf32> to vector<8x1xf32>
    %c0_163 = arith.constant 0 : index
    %c0_164 = arith.constant 0 : index
    %490 = vector.load %arg16[%c0_163, %c0_164] : memref<1x1xf32, #tpu.memory_space<vmem>>, vector<1x1xf32>
    %491 = vector.broadcast %490 : vector<1x1xf32> to vector<8x1xf32>
    %492 = arith.addf %489, %491 : vector<8x1xf32>
    %cst_165 = arith.constant dense<0xFF800000> : vector<8xf32>
    %493 = vector.multi_reduction <maximumf>, %480, %cst_165 [1] : vector<8x8xf32> to vector<8xf32>
    %494 = vector.shape_cast %493 : vector<8xf32> to vector<8x1xf32>
    %495 = arith.maximumf %494, %492 : vector<8x1xf32>
    %496 = vector.broadcast %495 : vector<8x1xf32> to vector<8x8xf32>
    %497 = arith.subf %480, %496 : vector<8x8xf32>
    %498 = math.exp %497 : vector<8x8xf32>
    %499 = arith.mulf %498, %5 : vector<8x8xf32>
    %cst_166 = arith.constant dense<0.000000e+00> : vector<8xf32>
    %500 = vector.multi_reduction <add>, %499, %cst_166 [1] : vector<8x8xf32> to vector<8xf32>
    %501 = vector.shape_cast %500 : vector<8xf32> to vector<8x1xf32>
    %502 = vector.broadcast %501 : vector<8x1xf32> to vector<8x8xf32>
    %503 = arith.divf %499, %502 : vector<8x8xf32>
    %504 = arith.divf %501, %7 : vector<8x1xf32>
    %505 = arith.subf %492, %495 : vector<8x1xf32>
    %506 = math.exp %505 : vector<8x1xf32>
    %507 = arith.addf %504, %506 : vector<8x1xf32>
    %508 = arith.divf %506, %507 : vector<8x1xf32>
    %509 = arith.addf %375, %503 : vector<8x8xf32>
    %510 = vector.shape_cast %503 : vector<8x8xf32> to vector<8x8x1xf32>
    %511 = vector.broadcast %510 : vector<8x8x1xf32> to vector<8x8x32xf32>
    %512 = arith.mulf %4, %511 : vector<8x8x32xf32>
    %cst_167 = arith.constant dense<0.000000e+00> : vector<8x32xf32>
    %513 = vector.multi_reduction <add>, %512, %cst_167 [1] : vector<8x8x32xf32> to vector<8x32xf32>
    %514 = vector.broadcast %508 : vector<8x1xf32> to vector<8x32xf32>
    %515 = arith.mulf %514, %464 : vector<8x32xf32>
    %cst_168 = arith.constant 1.000000e+00 : f32
    %516 = vector.broadcast %cst_168 : f32 to vector<8x1xf32>
    %517 = arith.subf %516, %508 : vector<8x1xf32>
    %518 = vector.broadcast %517 : vector<8x1xf32> to vector<8x32xf32>
    %519 = arith.mulf %518, %513 : vector<8x32xf32>
    %520 = arith.addf %515, %519 : vector<8x32xf32>
    %c0_169 = arith.constant 0 : index
    %c0_170 = arith.constant 0 : index
    %521 = vector.load %arg17[%c0_169, %c0_170] : memref<32x96xf32, #tpu.memory_space<vmem>>, vector<32x96xf32>
    %cst_171 = arith.constant dense<0.000000e+00> : vector<8x96xf32>
    %522 = tpu.matmul %520, %521, %cst_171 {dimension_numbers = #tpu.dot_dimension_numbers<[1], [0], [0], [1], [0, 0, 1, 1], [], []>, precision = #tpu.contract_precision<fp32>} : vector<8x32xf32>, vector<32x96xf32>, vector<8x96xf32> -> vector<8x96xf32>
    %523 = vector.extract_strided_slice %522 {offsets = [0, 0], sizes = [8, 64], strides = [1, 1]} : vector<8x96xf32> to vector<8x64xf32>
    %524 = arith.addf %467, %523 : vector<8x64xf32>
    %525 = arith.negf %524 : vector<8x64xf32>
    %526 = math.exp %525 : vector<8x64xf32>
    %cst_172 = arith.constant 1.000000e+00 : f32
    %527 = vector.broadcast %cst_172 : f32 to vector<8x64xf32>
    %528 = arith.addf %527, %526 : vector<8x64xf32>
    %529 = arith.divf %527, %528 : vector<8x64xf32>
    %530 = vector.extract_strided_slice %529 {offsets = [0, 0], sizes = [8, 32], strides = [1, 1]} : vector<8x64xf32> to vector<8x32xf32>
    %531 = vector.extract_strided_slice %529 {offsets = [0, 32], sizes = [8, 32], strides = [1, 1]} : vector<8x64xf32> to vector<8x32xf32>
    %532 = vector.extract_strided_slice %522 {offsets = [0, 64], sizes = [8, 32], strides = [1, 1]} : vector<8x96xf32> to vector<8x32xf32>
    %533 = arith.mulf %530, %469 : vector<8x32xf32>
    %534 = arith.addf %532, %533 : vector<8x32xf32>
    %535 = math.tanh %534 : vector<8x32xf32>
    %536 = arith.mulf %531, %452 : vector<8x32xf32>
    %cst_173 = arith.constant 1.000000e+00 : f32
    %537 = vector.broadcast %cst_173 : f32 to vector<8x32xf32>
    %538 = arith.subf %537, %531 : vector<8x32xf32>
    %539 = arith.mulf %538, %535 : vector<8x32xf32>
    %540 = arith.addf %536, %539 : vector<8x32xf32>
    %541 = vector.broadcast %425 : vector<8x1xf32> to vector<8x32xf32>
    %542 = arith.mulf %541, %540 : vector<8x32xf32>
    %cst_174 = arith.constant 1.000000e+00 : f32
    %543 = vector.broadcast %cst_174 : f32 to vector<8x1xf32>
    %544 = arith.subf %543, %425 : vector<8x1xf32>
    %545 = vector.broadcast %544 : vector<8x1xf32> to vector<8x32xf32>
    %546 = arith.mulf %545, %452 : vector<8x32xf32>
    %547 = arith.addf %542, %546 : vector<8x32xf32>
    %548 = tpu.concatenate %547, %520, %503, %14 in 1 : vector<8x32xf32>, vector<8x32xf32>, vector<8x8xf32>, vector<8x56xf32> -> vector<8x128xf32>
    %549 = arith.index_cast %c3_i32 : i32 to index
    %c0_175 = arith.constant 0 : index
    %c0_176 = arith.constant 0 : index
    %550 = vector.load %arg18[%549, %c0_175, %c0_176] : memref<4x8x128xf32, #tpu.memory_space<vmem>>, vector<1x8x128xf32>
    %551 = vector.shape_cast %550 : vector<1x8x128xf32> to vector<8x128xf32>
    %552 = vector.shape_cast %548 : vector<8x128xf32> to vector<1x8x128xf32>
    tpu.vector_store %arg18[%549, %c0_175, %c0_176], %552 {strides = array<i32>} : memref<4x8x128xf32, #tpu.memory_space<vmem>>, vector<1x8x128xf32>,
    %c4_i32 = arith.constant 4 : i32
    %c0_177 = arith.constant 0 : index
    %c0_178 = arith.constant 0 : index
    %553 = vector.load %arg19[%c0_177, %c0_178] : memref<8x32xf32, #tpu.memory_space<vmem>>, vector<8x32xf32>
    tpu.vector_store %arg19[%c0_177, %c0_178], %547 {strides = array<i32>} : memref<8x32xf32, #tpu.memory_space<vmem>>, vector<8x32xf32>,
    %c0_179 = arith.constant 0 : index
    %c0_180 = arith.constant 0 : index
    %554 = vector.load %arg20[%c0_179, %c0_180] : memref<8x8xf32, #tpu.memory_space<vmem>>, vector<8x8xf32>
    tpu.vector_store %arg20[%c0_179, %c0_180], %509 {strides = array<i32>} : memref<8x8xf32, #tpu.memory_space<vmem>>, vector<8x8xf32>,
    return
  }
  func.func @transform_0(%arg0: i32) -> (i32, i32, i32) {
    %c0_i32 = arith.constant 0 : i32
    %c0_i32_0 = arith.constant 0 : i32
    %c0_i32_1 = arith.constant 0 : i32
    return %arg0, %c0_i32, %c0_i32_0 : i32, i32, i32
  }
  func.func @transform_1(%arg0: i32) -> (i32, i32) {
    %c0_i32 = arith.constant 0 : i32
    %c0_i32_0 = arith.constant 0 : i32
    %c0_i32_1 = arith.constant 0 : i32
    return %c0_i32, %c0_i32_0 : i32, i32
  }
  func.func @transform_2(%arg0: i32) -> (i32, i32) {
    %c0_i32 = arith.constant 0 : i32
    %c0_i32_0 = arith.constant 0 : i32
    %c0_i32_1 = arith.constant 0 : i32
    return %c0_i32, %c0_i32_0 : i32, i32
  }
  func.func @transform_3(%arg0: i32) -> (i32, i32) {
    %c0_i32 = arith.constant 0 : i32
    %c0_i32_0 = arith.constant 0 : i32
    %c0_i32_1 = arith.constant 0 : i32
    return %c0_i32, %c0_i32_0 : i32, i32
  }
  func.func @transform_4(%arg0: i32) -> (i32, i32, i32) {
    %c0_i32 = arith.constant 0 : i32
    %c0_i32_0 = arith.constant 0 : i32
    %c0_i32_1 = arith.constant 0 : i32
    %c0_i32_2 = arith.constant 0 : i32
    return %c0_i32, %c0_i32_0, %c0_i32_1 : i32, i32, i32
  }
  func.func @transform_5(%arg0: i32) -> (i32, i32) {
    %c0_i32 = arith.constant 0 : i32
    %c0_i32_0 = arith.constant 0 : i32
    %c0_i32_1 = arith.constant 0 : i32
    return %c0_i32, %c0_i32_0 : i32, i32
  }
  func.func @transform_6(%arg0: i32) -> (i32, i32) {
    %c0_i32 = arith.constant 0 : i32
    %c0_i32_0 = arith.constant 0 : i32
    %c0_i32_1 = arith.constant 0 : i32
    return %c0_i32, %c0_i32_0 : i32, i32
  }
  func.func @transform_7(%arg0: i32) -> (i32, i32) {
    %c0_i32 = arith.constant 0 : i32
    %c0_i32_0 = arith.constant 0 : i32
    %c0_i32_1 = arith.constant 0 : i32
    return %c0_i32, %c0_i32_0 : i32, i32
  }
  func.func @transform_8(%arg0: i32) -> (i32, i32) {
    %c0_i32 = arith.constant 0 : i32
    %c0_i32_0 = arith.constant 0 : i32
    %c0_i32_1 = arith.constant 0 : i32
    return %c0_i32, %c0_i32_0 : i32, i32
  }
  func.func @transform_9(%arg0: i32) -> (i32, i32) {
    %c0_i32 = arith.constant 0 : i32
    %c0_i32_0 = arith.constant 0 : i32
    %c0_i32_1 = arith.constant 0 : i32
    return %c0_i32, %c0_i32_0 : i32, i32
  }
  func.func @transform_10(%arg0: i32) -> (i32, i32) {
    %c0_i32 = arith.constant 0 : i32
    %c0_i32_0 = arith.constant 0 : i32
    %c0_i32_1 = arith.constant 0 : i32
    return %c0_i32, %c0_i32_0 : i32, i32
  }
  func.func @transform_11(%arg0: i32) -> (i32, i32) {
    %c0_i32 = arith.constant 0 : i32
    %c0_i32_0 = arith.constant 0 : i32
    %c0_i32_1 = arith.constant 0 : i32
    return %c0_i32, %c0_i32_0 : i32, i32
  }
  func.func @transform_12(%arg0: i32) -> (i32, i32) {
    %c0_i32 = arith.constant 0 : i32
    %c0_i32_0 = arith.constant 0 : i32
    %c0_i32_1 = arith.constant 0 : i32
    return %c0_i32, %c0_i32_0 : i32, i32
  }
  func.func @transform_13(%arg0: i32) -> (i32, i32) {
    %c0_i32 = arith.constant 0 : i32
    %c0_i32_0 = arith.constant 0 : i32
    %c0_i32_1 = arith.constant 0 : i32
    return %c0_i32, %c0_i32_0 : i32, i32
  }
  func.func @transform_14(%arg0: i32) -> (i32, i32) {
    %c0_i32 = arith.constant 0 : i32
    %c0_i32_0 = arith.constant 0 : i32
    %c0_i32_1 = arith.constant 0 : i32
    return %c0_i32, %c0_i32_0 : i32, i32
  }
  func.func @transform_15(%arg0: i32) -> (i32, i32) {
    %c0_i32 = arith.constant 0 : i32
    %c0_i32_0 = arith.constant 0 : i32
    %c0_i32_1 = arith.constant 0 : i32
    return %c0_i32, %c0_i32_0 : i32, i32
  }
  func.func @transform_16(%arg0: i32) -> (i32, i32) {
    %c0_i32 = arith.constant 0 : i32
    %c0_i32_0 = arith.constant 0 : i32
    %c0_i32_1 = arith.constant 0 : i32
    return %c0_i32, %c0_i32_0 : i32, i32
  }
  func.func @transform_17(%arg0: i32) -> (i32, i32, i32) {
    %c0_i32 = arith.constant 0 : i32
    %c0_i32_0 = arith.constant 0 : i32
    %c0_i32_1 = arith.constant 0 : i32
    return %arg0, %c0_i32, %c0_i32_0 : i32, i32, i32
  }
}

</mosaic_0001>

<llo_original>
// kernel: tpu_custom_call.1
$region0: #{tpu_custom_call.1}
  #allocation0 [shape = 'u32[]', space=smem, size = 0x4, offset = 0x4, fixed_abs, tag = 'smem constant byte address 0x4 - core index']
  #allocation1 [shape = 'u32[72,128]{1,0:T(1,128)}', space=vmem, size = 0x9000, scoped, tag = 'internal scratch']
  #allocation2 [shape = 'f32[8,32]{1,0:T(8,128)}', space=vmem, size = 0x1000, scoped, tag = 'scratch operand']
  #allocation3 [shape = 'f32[8,8]{1,0:T(8,128)}', space=vmem, size = 0x1000, scoped, tag = 'scratch operand']
  #allocation4 [shape = 'f32[1,1]{1,0:T(1,128)S(1)}', space=vmem, size = 0x200, scoped, tag = 'scoped memory for tpu_custom_call.1']
  #allocation5 [shape = 'f32[1,1]{1,0:T(1,128)S(1)}', space=vmem, size = 0x200, scoped, tag = 'scoped memory for tpu_custom_call.1']
  %s0 = inlined_call_operand.vmem [shape: f32[4,8,256], index: 0, kind: input, shape index: {}]
  %s1 = inlined_call_operand.hbm [shape: f32[8,32], index: 1, kind: input, shape index: {}]
  %s2 = inlined_call_operand.hbm [shape: f32[8,8], index: 2, kind: input, shape index: {}]
  %s3 = inlined_call_operand.vmem [shape: f32[8,256], index: 3, kind: input, shape index: {}]
  %s4 = inlined_call_operand.vmem [shape: f32[8,8,32], index: 4, kind: input, shape index: {}]
  %s5 = inlined_call_operand.hbm [shape: f32[8,8], index: 5, kind: input, shape index: {}]
  %s6 = inlined_call_operand.vmem [shape: f32[32,128], index: 6, kind: input, shape index: {}]
  %s7 = inlined_call_operand.vmem [shape: f32[32,160], index: 7, kind: input, shape index: {}]
  %s8 = inlined_call_operand.vmem [shape: f32[1,64], index: 8, kind: input, shape index: {}]
  %s9 = inlined_call_operand.vmem [shape: f32[1,32], index: 9, kind: input, shape index: {}]
  %s10 = inlined_call_operand.hbm [shape: f32[8,256], index: 10, kind: input, shape index: {}]
  %s11 = inlined_call_operand.vmem [shape: f32[256,8], index: 11, kind: input, shape index: {}]
  %s12 = inlined_call_operand.<no memory space> [shape: f32[1,1], index: 12, kind: input, shape index: {}]
  %s13 = inlined_call_operand.vmem [shape: f32[32,32], index: 13, kind: input, shape index: {}]
  %s14 = inlined_call_operand.vmem [shape: f32[1,32], index: 14, kind: input, shape index: {}]
  %s15 = inlined_call_operand.<no memory space> [shape: f32[1,1], index: 15, kind: input, shape index: {}]
  %s16 = inlined_call_operand.hbm [shape: f32[32,96], index: 16, kind: input, shape index: {}]
  %s17 = inlined_call_operand.hbm [shape: f32[4,8,128], index: 17, kind: output, shape index: {}]
  %s18 = sld [smem:[#allocation0]]
  $region102: #{tpu_custom_call.1} parent=0
    _
  %s20 = ssub.s32 1, %s18
  %s21 = scalar_select 0, %s20, %s18
  %v22 = vstv %s12
  %23 = vst [vmem:[#allocation4] sm:$0x1] %v22
  %v24 = vstv %s15
  %25 = vst [vmem:[#allocation5] sm:$0x1] %v24
  $region1: #{tpu_custom_call.1} parent=0
    #allocation6 [shape = 'u8[4096]{0}', space=vmem, size = 0x1000, scoped, tag = 'input window, operand 1, single buffered']
    #allocation7 [shape = 's32[1]{0}', space=sflag, size = 0x4, scoped, tag = 'scoped memory for tpu_custom_call.1']
    #allocation8 [shape = 's32[1]{0}', space=sflag, size = 0x4, scoped, tag = 'scoped memory for tpu_custom_call.1']
    #allocation9 [shape = 'u8[4096]{0}', space=vmem, size = 0x1000, scoped, tag = 'input window, operand 2, single buffered']
    #allocation10 [shape = 's32[1]{0}', space=sflag, size = 0x4, scoped, tag = 'scoped memory for tpu_custom_call.1']
    #allocation11 [shape = 'u8[4096]{0}', space=vmem, size = 0x1000, scoped, tag = 'input window, operand 5, single buffered']
    #allocation12 [shape = 'u8[8192]{0}', space=vmem, size = 0x2000, scoped, tag = 'input window, operand 10, single buffered']
    #allocation13 [shape = 's32[1]{0}', space=sflag, size = 0x4, scoped, tag = 'scoped memory for tpu_custom_call.1']
    #allocation14 [shape = 'u8[16384]{0}', space=vmem, size = 0x4000, scoped, tag = 'input window, operand 16, single buffered']
    #allocation15 [shape = 'u8[16384]{0}', space=vmem, size = 0x4000, scoped, tag = 'output window, operand 0, single buffered']
    %26 = vsyncpa [#allocation7], 0
    %27 = vsyncpa [#allocation10], 0
    %28 = vsyncpa [#allocation13], 0
    %29 = vsyncpa [#allocation8], 0
    // Predicated region
    $region2: #{tpu_custom_call.1} parent=1 // pred_check
      _
    $region3: #{tpu_custom_call.1} parent=1 // pred_check_branch
      %31 = sbr.rel (0) target = $region5
    $region4: #{tpu_custom_call.1} parent=1 // pred_region
      _
    $region5: #{tpu_custom_call.1} parent=1 // pred_fallthru
      _
    // Predicated region
    $region6: #{tpu_custom_call.1} parent=1 // pred_check
      _
    $region7: #{tpu_custom_call.1} parent=1 // pred_check_branch
      %33 = sbr.rel (0) target = $region9
    $region8: #{tpu_custom_call.1} parent=1 // pred_region
      %35 = vsyncadd [#allocation7], 0
      %s37 = sshll.u32 %s1, 4
      %s38 = int_to_ptr.hbm [resolvable:$true] %s37
      %s39 = sshll.u32 [#allocation6], 4
      %s40 = int_to_ptr.vmem [resolvable:$true] %s39
      %42 = dma.hbm_to_vmem [thread:$0]  %s38, 128, %s40, [#allocation7]
    $region9: #{tpu_custom_call.1} parent=1 // pred_fallthru
      _
    // Predicated region
    $region10: #{tpu_custom_call.1} parent=1 // pred_check
      _
    $region11: #{tpu_custom_call.1} parent=1 // pred_check_branch
      %44 = sbr.rel (0) target = $region13
    $region12: #{tpu_custom_call.1} parent=1 // pred_region
      %46 = vsyncadd [#allocation10], 0
      %s48 = sshll.u32 %s2, 4
      %s49 = int_to_ptr.hbm [resolvable:$true] %s48
      %s50 = sshll.u32 [#allocation9], 4
      %s51 = int_to_ptr.vmem [resolvable:$true] %s50
      %53 = dma.hbm_to_vmem [thread:$0]  %s49, 128, %s51, [#allocation10]
    $region13: #{tpu_custom_call.1} parent=1 // pred_fallthru
      _
    // Predicated region
    $region14: #{tpu_custom_call.1} parent=1 // pred_check
      _
    $region15: #{tpu_custom_call.1} parent=1 // pred_check_branch
      %55 = sbr.rel (0) target = $region17
    $region16: #{tpu_custom_call.1} parent=1 // pred_region
      _
    $region17: #{tpu_custom_call.1} parent=1 // pred_fallthru
      _
    // Predicated region
    $region18: #{tpu_custom_call.1} parent=1 // pred_check
      _
    $region19: #{tpu_custom_call.1} parent=1 // pred_check_branch
      %57 = sbr.rel (0) target = $region21
    $region20: #{tpu_custom_call.1} parent=1 // pred_region
      _
    $region21: #{tpu_custom_call.1} parent=1 // pred_fallthru
      _
    // Predicated region
    $region22: #{tpu_custom_call.1} parent=1 // pred_check
      _
    $region23: #{tpu_custom_call.1} parent=1 // pred_check_branch
      %59 = sbr.rel (0) target = $region25
    $region24: #{tpu_custom_call.1} parent=1 // pred_region
      %61 = vsyncadd [#allocation10], 0
      %s63 = sshll.u32 %s5, 4
      %s64 = int_to_ptr.hbm [resolvable:$true] %s63
      %s65 = sshll.u32 [#allocation11], 4
      %s66 = int_to_ptr.vmem [resolvable:$true] %s65
      %68 = dma.hbm_to_vmem [thread:$0]  %s64, 128, %s66, [#allocation10]
    $region25: #{tpu_custom_call.1} parent=1 // pred_fallthru
      _
    // Predicated region
    $region26: #{tpu_custom_call.1} parent=1 // pred_check
      _
    $region27: #{tpu_custom_call.1} parent=1 // pred_check_branch
      %70 = sbr.rel (0) target = $region29
    $region28: #{tpu_custom_call.1} parent=1 // pred_region
      _
    $region29: #{tpu_custom_call.1} parent=1 // pred_fallthru
      _
    // Predicated region
    $region30: #{tpu_custom_call.1} parent=1 // pred_check
      _
    $region31: #{tpu_custom_call.1} parent=1 // pred_check_branch
      %72 = sbr.rel (0) target = $region33
    $region32: #{tpu_custom_call.1} parent=1 // pred_region
      _
    $region33: #{tpu_custom_call.1} parent=1 // pred_fallthru
      _
    // Predicated region
    $region34: #{tpu_custom_call.1} parent=1 // pred_check
      _
    $region35: #{tpu_custom_call.1} parent=1 // pred_check_branch
      %74 = sbr.rel (0) target = $region37
    $region36: #{tpu_custom_call.1} parent=1 // pred_region
      _
    $region37: #{tpu_custom_call.1} parent=1 // pred_fallthru
      _
    // Predicated region
    $region38: #{tpu_custom_call.1} parent=1 // pred_check
      _
    $region39: #{tpu_custom_call.1} parent=1 // pred_check_branch
      %76 = sbr.rel (0) target = $region41
    $region40: #{tpu_custom_call.1} parent=1 // pred_region
      _
    $region41: #{tpu_custom_call.1} parent=1 // pred_fallthru
      _
    // Predicated region
    $region42: #{tpu_custom_call.1} parent=1 // pred_check
      _
    $region43: #{tpu_custom_call.1} parent=1 // pred_check_branch
      %78 = sbr.rel (0) target = $region45
    $region44: #{tpu_custom_call.1} parent=1 // pred_region
      %80 = vsyncadd [#allocation13], 0
      %s82 = sshll.u32 %s10, 4
      %s83 = int_to_ptr.hbm [resolvable:$true] %s82
      %s84 = sshll.u32 [#allocation12], 4
      %s85 = int_to_ptr.vmem [resolvable:$true] %s84
      %87 = dma.hbm_to_vmem [thread:$0]  %s83, 256, %s85, [#allocation13]
    $region45: #{tpu_custom_call.1} parent=1 // pred_fallthru
      _
    // Predicated region
    $region46: #{tpu_custom_call.1} parent=1 // pred_check
      _
    $region47: #{tpu_custom_call.1} parent=1 // pred_check_branch
      %89 = sbr.rel (0) target = $region49
    $region48: #{tpu_custom_call.1} parent=1 // pred_region
      _
    $region49: #{tpu_custom_call.1} parent=1 // pred_fallthru
      _
    // Predicated region
    $region50: #{tpu_custom_call.1} parent=1 // pred_check
      _
    $region51: #{tpu_custom_call.1} parent=1 // pred_check_branch
      %91 = sbr.rel (0) target = $region53
    $region52: #{tpu_custom_call.1} parent=1 // pred_region
      _
    $region53: #{tpu_custom_call.1} parent=1 // pred_fallthru
      _
    // Predicated region
    $region54: #{tpu_custom_call.1} parent=1 // pred_check
      _
    $region55: #{tpu_custom_call.1} parent=1 // pred_check_branch
      %93 = sbr.rel (0) target = $region57
    $region56: #{tpu_custom_call.1} parent=1 // pred_region
      _
    $region57: #{tpu_custom_call.1} parent=1 // pred_fallthru
      _
    // Predicated region
    $region58: #{tpu_custom_call.1} parent=1 // pred_check
      _
    $region59: #{tpu_custom_call.1} parent=1 // pred_check_branch
      %95 = sbr.rel (0) target = $region61
    $region60: #{tpu_custom_call.1} parent=1 // pred_region
      _
    $region61: #{tpu_custom_call.1} parent=1 // pred_fallthru
      _
    // Predicated region
    $region62: #{tpu_custom_call.1} parent=1 // pred_check
      _
    $region63: #{tpu_custom_call.1} parent=1 // pred_check_branch
      %97 = sbr.rel (0) target = $region65
    $region64: #{tpu_custom_call.1} parent=1 // pred_region
      _
    $region65: #{tpu_custom_call.1} parent=1 // pred_fallthru
      _
    // Predicated region
    $region66: #{tpu_custom_call.1} parent=1 // pred_check
      _
    $region67: #{tpu_custom_call.1} parent=1 // pred_check_branch
      %99 = sbr.rel (0) target = $region69
    $region68: #{tpu_custom_call.1} parent=1 // pred_region
      %101 = vsyncadd [#allocation13], 0
      %s102 = sshll.u32 %s16, 4
      %s103 = int_to_ptr.hbm [resolvable:$true] %s102
      %s104 = sshll.u32 [#allocation14], 4
      %s105 = int_to_ptr.vmem [resolvable:$true] %s104
      %110 = dma.hbm_to_vmem [thread:$0]  %s103, 512, %s105, [#allocation13], 128, 128, 8
    $region69: #{tpu_custom_call.1} parent=1 // pred_fallthru
      _
    // Predicated region
    $region70: #{tpu_custom_call.1} parent=1 // pred_check
      _
    $region71: #{tpu_custom_call.1} parent=1 // pred_check_branch
      %112 = sbr.rel (0) target = $region73
    $region72: #{tpu_custom_call.1} parent=1 // pred_region
      %114 = dma.done [#allocation7], 128
    $region73: #{tpu_custom_call.1} parent=1 // pred_fallthru
      _
    // Predicated region
    $region74: #{tpu_custom_call.1} parent=1 // pred_check
      _
    $region75: #{tpu_custom_call.1} parent=1 // pred_check_branch
      %116 = sbr.rel (0) target = $region77
    $region76: #{tpu_custom_call.1} parent=1 // pred_region
      %118 = dma.done [#allocation10], 128
    $region77: #{tpu_custom_call.1} parent=1 // pred_fallthru
      _
    // Predicated region
    $region78: #{tpu_custom_call.1} parent=1 // pred_check
      _
    $region79: #{tpu_custom_call.1} parent=1 // pred_check_branch
      %120 = sbr.rel (0) target = $region81
    $region80: #{tpu_custom_call.1} parent=1 // pred_region
      %122 = dma.done [#allocation10], 128
    $region81: #{tpu_custom_call.1} parent=1 // pred_fallthru
      _
    // Predicated region
    $region82: #{tpu_custom_call.1} parent=1 // pred_check
      _
    $region83: #{tpu_custom_call.1} parent=1 // pred_check_branch
      %124 = sbr.rel (0) target = $region85
    $region84: #{tpu_custom_call.1} parent=1 // pred_region
      %126 = dma.done [#allocation13], 256
    $region85: #{tpu_custom_call.1} parent=1 // pred_fallthru
      _
    // Predicated region
    $region86: #{tpu_custom_call.1} parent=1 // pred_check
      _
    $region87: #{tpu_custom_call.1} parent=1 // pred_check_branch
      %128 = sbr.rel (0) target = $region89
    $region88: #{tpu_custom_call.1} parent=1 // pred_region
      %130 = dma.done [#allocation13], 512
    $region89: #{tpu_custom_call.1} parent=1 // pred_fallthru
      _
    %p131 = scmp.eq.s32.totalorder 0, 0
    // Predicated region
    $region90: #{tpu_custom_call.1} parent=1 // pred_check
      %p132 = pneg %p131
    $region91: #{tpu_custom_call.1} parent=1 // pred_check_branch
      %134 = sbr.rel (%p132) target = $region93
    $region92: #{tpu_custom_call.1} parent=1 // pred_region
      %v135 = vld [vmem:[#allocation6] sm:$0xff]
      %vm136 = vcmask 261120
      %137 = vst.msk [vmem:[#allocation2] sm:$0xff] %vm136, %v135
      %v138 = vld [vmem:[#allocation9] sm:$0xff]
      %vm139 = vcmask 64512
      %140 = vst.msk [vmem:[#allocation3] sm:$0xff] %vm139, %v138
    $region93: #{tpu_custom_call.1} parent=1 // pred_fallthru
      _
    %v141 = vld [vmem:[%s3] sm:$0xff]
    %v142 = vld [vmem:[%s3 + $0x8] sm:$0xff]
    %v143 = vld [vmem:[%s4] sm:$0xff]
    %v144 = vld [vmem:[%s4 + $0x8] sm:$0xff]
    %v145 = vld [vmem:[%s4 + $0x10] sm:$0xff]
    %v146 = vld [vmem:[%s4 + $0x18] sm:$0xff]
    %v147 = vld [vmem:[%s4 + $0x20] sm:$0xff]
    %v148 = vld [vmem:[%s4 + $0x28] sm:$0xff]
    %v149 = vld [vmem:[%s4 + $0x30] sm:$0xff]
    %v150 = vld [vmem:[%s4 + $0x38] sm:$0xff]
    %v151 = vld [vmem:[#allocation11] sm:$0xff]
    %vm152 = vcmask 64512
    %v153 = vsel %vm152, %v151, 0.0
    %154 = vadd.xlane.f32.xlu0 %v153
    %v155 = vpop.xlane.xlu0 %154
    %v156 = vld [vmem:[%s8] sm:$0x1]
    %v158 = vperm.slane %v156, 0
    %v159 = vld [vmem:[%s9] sm:$0x1]
    %v161 = vperm.slane %v159, 0
    %v163 = vld [vmem:[#allocation2] sm:$0xff]
    %v164 = vld [vmem:[#allocation3] sm:$0xff]
    %v165 = vld [vmem:[%s0] sm:$0xff]
    %v166 = vld [vmem:[%s0 + $0x8] sm:$0xff]
    %v167 = vld [vmem:[%s6] sm:$0xff]
    %v168 = vld [vmem:[%s6 + $0x8] sm:$0xff]
    %v169 = vld [vmem:[%s6 + $0x10] sm:$0xff]
    %v170 = vld [vmem:[%s6 + $0x18] sm:$0xff]
    %vm171 = vcmask 261120
    %v173 = vsel %vm171, %v163, 0
    %175 = vmatpush.msra.mxu0 0.0
    %176 = vmatpush.msra.mxu0 0.0
    %177 = vmatpush.msra.mxu0 0.0
    %178 = vmatpush.msra.mxu0 0.0
    %179 = vmatpush.msra.mxu0 0.0
    %180 = vmatpush.msra.mxu0 0.0
    %181 = vmatpush.msra.mxu0 0.0
    %182 = vmatpush.msra.mxu0 0.0
    %183 = vmatpush.msra.mxu0 0.0
    %184 = vmatpush.msra.mxu0 0.0
    %185 = vmatpush.msra.mxu0 0.0
    %186 = vmatpush.msra.mxu0 0.0
    %v187 = vand.u32 %v170, 4294901760
    %188 = vmatpush.msra.mxu0 %v187
    %v189 = vand.u32 %v169, 4294901760
    %190 = vmatpush.msra.mxu0 %v189
    %v191 = vand.u32 %v168, 4294901760
    %192 = vmatpush.msra.mxu0 %v191
    %v193 = vand.u32 %v167, 4294901760
    %194 = vmatpush.msra.mxu0 %v193
    %v195 = vand.u32 %v173, 4294901760
    %v196 = vsub.f32 %v173, %v195
    %v197 = vand.u32 %v196, 4294901760
    %v198 = vsub.f32 %v196, %v197
    %v199 = vand.u32 %v198, 4294901760
    %200 = vmatmul.f32.gmra.mxu0 %v199
    %v201 = vpop.f32.mrf.mxu0
    %v202 = vadd.f32 0.0, %v201
    %203 = vdwg.mxu0
    %204 = vmatpush.msra.mxu0 0.0
    %205 = vmatpush.msra.mxu0 0.0
    %206 = vmatpush.msra.mxu0 0.0
    %207 = vmatpush.msra.mxu0 0.0
    %208 = vmatpush.msra.mxu0 0.0
    %209 = vmatpush.msra.mxu0 0.0
    %210 = vmatpush.msra.mxu0 0.0
    %211 = vmatpush.msra.mxu0 0.0
    %212 = vmatpush.msra.mxu0 0.0
    %213 = vmatpush.msra.mxu0 0.0
    %214 = vmatpush.msra.mxu0 0.0
    %215 = vmatpush.msra.mxu0 0.0
    %v216 = vand.u32 %v170, 4294901760
    %v217 = vsub.f32 %v170, %v216
    %v218 = vand.u32 %v217, 4294901760
    %v219 = vsub.f32 %v217, %v218
    %v220 = vand.u32 %v219, 4294901760
    %221 = vmatpush.msra.mxu0 %v220
    %v222 = vand.u32 %v169, 4294901760
    %v223 = vsub.f32 %v169, %v222
    %v224 = vand.u32 %v223, 4294901760
    %v225 = vsub.f32 %v223, %v224
    %v226 = vand.u32 %v225, 4294901760
    %227 = vmatpush.msra.mxu0 %v226
    %v228 = vand.u32 %v168, 4294901760
    %v229 = vsub.f32 %v168, %v228
    %v230 = vand.u32 %v229, 4294901760
    %v231 = vsub.f32 %v229, %v230
    %v232 = vand.u32 %v231, 4294901760
    %233 = vmatpush.msra.mxu0 %v232
    %v234 = vand.u32 %v167, 4294901760
    %v235 = vsub.f32 %v167, %v234
    %v236 = vand.u32 %v235, 4294901760
    %v237 = vsub.f32 %v235, %v236
    %v238 = vand.u32 %v237, 4294901760
    %239 = vmatpush.msra.mxu0 %v238
    %v240 = vand.u32 %v173, 4294901760
    %241 = vmatmul.f32.gmra.mxu0 %v240
    %v242 = vpop.f32.mrf.mxu0
    %v243 = vadd.f32 %v202, %v242
    %244 = vdwg.mxu0
    %245 = vmatpush.msra.mxu0 0.0
    %246 = vmatpush.msra.mxu0 0.0
    %247 = vmatpush.msra.mxu0 0.0
    %248 = vmatpush.msra.mxu0 0.0
    %249 = vmatpush.msra.mxu0 0.0
    %250 = vmatpush.msra.mxu0 0.0
    %251 = vmatpush.msra.mxu0 0.0
    %252 = vmatpush.msra.mxu0 0.0
    %253 = vmatpush.msra.mxu0 0.0
    %254 = vmatpush.msra.mxu0 0.0
    %255 = vmatpush.msra.mxu0 0.0
    %256 = vmatpush.msra.mxu0 0.0
    %v257 = vand.u32 %v170, 4294901760
    %v258 = vsub.f32 %v170, %v257
    %259 = vmatpush.msra.mxu0 %v258
    %v260 = vand.u32 %v169, 4294901760
    %v261 = vsub.f32 %v169, %v260
    %262 = vmatpush.msra.mxu0 %v261
    %v263 = vand.u32 %v168, 4294901760
    %v264 = vsub.f32 %v168, %v263
    %265 = vmatpush.msra.mxu0 %v264
    %v266 = vand.u32 %v167, 4294901760
    %v267 = vsub.f32 %v167, %v266
    %268 = vmatpush.msra.mxu0 %v267
    %v269 = vand.u32 %v173, 4294901760
    %v270 = vsub.f32 %v173, %v269
    %271 = vmatmul.f32.gmra.mxu0 %v270
    %v272 = vpop.f32.mrf.mxu0
    %v273 = vadd.f32 %v243, %v272
    %274 = vdwg.mxu0
    %275 = vmatpush.msra.mxu0 0.0
    %276 = vmatpush.msra.mxu0 0.0
    %277 = vmatpush.msra.mxu0 0.0
    %278 = vmatpush.msra.mxu0 0.0
    %279 = vmatpush.msra.mxu0 0.0
    %280 = vmatpush.msra.mxu0 0.0
    %281 = vmatpush.msra.mxu0 0.0
    %282 = vmatpush.msra.mxu0 0.0
    %283 = vmatpush.msra.mxu0 0.0
    %284 = vmatpush.msra.mxu0 0.0
    %285 = vmatpush.msra.mxu0 0.0
    %286 = vmatpush.msra.mxu0 0.0
    %v287 = vand.u32 %v170, 4294901760
    %288 = vmatpush.msra.mxu0 %v287
    %v289 = vand.u32 %v169, 4294901760
    %290 = vmatpush.msra.mxu0 %v289
    %v291 = vand.u32 %v168, 4294901760
    %292 = vmatpush.msra.mxu0 %v291
    %v293 = vand.u32 %v167, 4294901760
    %294 = vmatpush.msra.mxu0 %v293
    %v295 = vand.u32 %v173, 4294901760
    %v296 = vsub.f32 %v173, %v295
    %v297 = vand.u32 %v296, 4294901760
    %298 = vmatmul.f32.gmra.mxu0 %v297
    %v299 = vpop.f32.mrf.mxu0
    %v300 = vadd.f32 %v273, %v299
    %301 = vdwg.mxu0
    %302 = vmatpush.msra.mxu0 0.0
    %303 = vmatpush.msra.mxu0 0.0
    %304 = vmatpush.msra.mxu0 0.0
    %305 = vmatpush.msra.mxu0 0.0
    %306 = vmatpush.msra.mxu0 0.0
    %307 = vmatpush.msra.mxu0 0.0
    %308 = vmatpush.msra.mxu0 0.0
    %309 = vmatpush.msra.mxu0 0.0
    %310 = vmatpush.msra.mxu0 0.0
    %311 = vmatpush.msra.mxu0 0.0
    %312 = vmatpush.msra.mxu0 0.0
    %313 = vmatpush.msra.mxu0 0.0
    %v314 = vand.u32 %v170, 4294901760
    %v315 = vsub.f32 %v170, %v314
    %v316 = vand.u32 %v315, 4294901760
    %317 = vmatpush.msra.mxu0 %v316
    %v318 = vand.u32 %v169, 4294901760
    %v319 = vsub.f32 %v169, %v318
    %v320 = vand.u32 %v319, 4294901760
    %321 = vmatpush.msra.mxu0 %v320
    %v322 = vand.u32 %v168, 4294901760
    %v323 = vsub.f32 %v168, %v322
    %v324 = vand.u32 %v323, 4294901760
    %325 = vmatpush.msra.mxu0 %v324
    %v326 = vand.u32 %v167, 4294901760
    %v327 = vsub.f32 %v167, %v326
    %v328 = vand.u32 %v327, 4294901760
    %329 = vmatpush.msra.mxu0 %v328
    %v330 = vand.u32 %v173, 4294901760
    %331 = vmatmul.f32.gmra.mxu0 %v330
    %v332 = vpop.f32.mrf.mxu0
    %v333 = vadd.f32 %v300, %v332
    %334 = vdwg.mxu0
    %335 = vmatpush.msra.mxu0 0.0
    %336 = vmatpush.msra.mxu0 0.0
    %337 = vmatpush.msra.mxu0 0.0
    %338 = vmatpush.msra.mxu0 0.0
    %339 = vmatpush.msra.mxu0 0.0
    %340 = vmatpush.msra.mxu0 0.0
    %341 = vmatpush.msra.mxu0 0.0
    %342 = vmatpush.msra.mxu0 0.0
    %343 = vmatpush.msra.mxu0 0.0
    %344 = vmatpush.msra.mxu0 0.0
    %345 = vmatpush.msra.mxu0 0.0
    %346 = vmatpush.msra.mxu0 0.0
    %v347 = vand.u32 %v170, 4294901760
    %348 = vmatpush.msra.mxu0 %v347
    %v349 = vand.u32 %v169, 4294901760
    %350 = vmatpush.msra.mxu0 %v349
    %v351 = vand.u32 %v168, 4294901760
    %352 = vmatpush.msra.mxu0 %v351
    %v353 = vand.u32 %v167, 4294901760
    %354 = vmatpush.msra.mxu0 %v353
    %v355 = vand.u32 %v173, 4294901760
    %356 = vmatmul.f32.gmra.mxu0 %v355
    %v357 = vpop.f32.mrf.mxu0
    %v358 = vadd.f32 %v333, %v357
    %359 = vdwg.mxu0
    %v360 = vadd.f32 %v358, %v165
    %v361 = vxor.u32 %v360, 2147483648
    %v362 = vmul.f32 %v361, 1.442695
    %v363 = vpow.pop %v362
    %v364 = vadd.f32 %v363, 1.0
    %v365 = vrcp.pop %v364
    %v366 = vmul.f32 %v364, %v365
    %v367 = vsub.f32 1.0, %v366
    %v368 = vmul.f32 %v365, %v367
    %v369 = vadd.f32 %v365, %v368
    %vm370 = vweird.f32 %v364
    %vm371 = vweird.f32 %v365
    %vm372 = vmor %vm370, %vm371
    %v373 = vsel %vm372, %v365, %v369
    %v374 = vand.u32 2147483647, %v364
    %vm375 = vcmp.eq.f32.partialorder %v374, 8.507059e+37
    %v376 = vand.u32 %v364, 2147483648
    %v377 = vor.u32 1.1754944e-38, %v376
    %v378 = vsel %vm375, %v377, %v373
    %v379 = vmul.f32 1.0, %v378
    %381 = vrot.lane.b32.xlu0 %v358, 64
    %v382 = vpop.permute.xlu0 %381
    %v384 = vmul.f32 %v379, %v382
    %386 = vrot.lane.b32.xlu0 %v165, 64
    %v387 = vpop.permute.xlu0 %386
    %v389 = vadd.f32 %v384, %v387
    %v390 = vtanh.pop %v389
    %391 = vrot.lane.b32.xlu0 %v163, 32
    %v392 = vpop.permute.xlu0 %391
    %v394 = vmul.f32 %v379, %v392
    %v395 = vsub.f32 1.0, %v379
    %397 = vrot.lane.b32.xlu0 %v390, 32
    %v398 = vpop.permute.xlu0 %397
    %v400 = vmul.f32 %v395, %v398
    %v401 = vadd.f32 %v394, %v400
    %403 = vset.pattern.permute.xlu0 0
    %404 = vperm.xlu0 %403, %v166
    %v405 = vpop.permute.xlu0 %404
    %v407 = vmul.f32 %v405, %v401
    %v408 = vsub.f32 1.0, %v166
    %410 = vset.pattern.permute.xlu0 0
    %411 = vperm.xlu0 %410, %v408
    %v412 = vpop.permute.xlu0 %411
    %v414 = vmul.f32 %v412, %v163
    %416 = vrot.lane.b32.xlu0 %v414, 32
    %v417 = vpop.permute.xlu0 %416
    %v419 = vadd.f32 %v407, %v417
    %v420 = vld [vmem:[%s7] sm:$0xff]
    %v421 = vld [vmem:[%s7 + $0x8] sm:$0xff]
    %v422 = vld [vmem:[%s7 + $0x10] sm:$0xff]
    %v423 = vld [vmem:[%s7 + $0x18] sm:$0xff]
    %v424 = vld [vmem:[%s7 + $0x20] sm:$0xff]
    %v425 = vld [vmem:[%s7 + $0x28] sm:$0xff]
    %v426 = vld [vmem:[%s7 + $0x30] sm:$0xff]
    %v427 = vld [vmem:[%s7 + $0x38] sm:$0xff]
    %429 = vrot.lane.b32.xlu0 %v419, 96
    %v430 = vpop.permute.xlu0 %429
    %v431 = vsel %vm171, %v430, 0
    %433 = vmatpush.msra.mxu0 0.0
    %434 = vmatpush.msra.mxu0 0.0
    %435 = vmatpush.msra.mxu0 0.0
    %436 = vmatpush.msra.mxu0 0.0
    %437 = vmatpush.msra.mxu0 0.0
    %438 = vmatpush.msra.mxu0 0.0
    %439 = vmatpush.msra.mxu0 0.0
    %440 = vmatpush.msra.mxu0 0.0
    %441 = vmatpush.msra.mxu0 0.0
    %442 = vmatpush.msra.mxu0 0.0
    %443 = vmatpush.msra.mxu0 0.0
    %444 = vmatpush.msra.mxu0 0.0
    %v445 = vand.u32 %v426, 4294901760
    %446 = vmatpush.msra.mxu0 %v445
    %v447 = vand.u32 %v424, 4294901760
    %448 = vmatpush.msra.mxu0 %v447
    %v449 = vand.u32 %v422, 4294901760
    %450 = vmatpush.msra.mxu0 %v449
    %v451 = vand.u32 %v420, 4294901760
    %452 = vmatpush.msra.mxu0 %v451
    %v453 = vand.u32 %v431, 4294901760
    %v454 = vsub.f32 %v431, %v453
    %v455 = vand.u32 %v454, 4294901760
    %v456 = vsub.f32 %v454, %v455
    %v457 = vand.u32 %v456, 4294901760
    %458 = vmatmul.f32.gmra.mxu0 %v457
    %v459 = vpop.f32.mrf.mxu0
    %v460 = vadd.f32 0.0, %v459
    %461 = vdwg.mxu0
    %462 = vmatpush.msra.mxu0 0.0
    %463 = vmatpush.msra.mxu0 0.0
    %464 = vmatpush.msra.mxu0 0.0
    %465 = vmatpush.msra.mxu0 0.0
    %466 = vmatpush.msra.mxu0 0.0
    %467 = vmatpush.msra.mxu0 0.0
    %468 = vmatpush.msra.mxu0 0.0
    %469 = vmatpush.msra.mxu0 0.0
    %470 = vmatpush.msra.mxu0 0.0
    %471 = vmatpush.msra.mxu0 0.0
    %472 = vmatpush.msra.mxu0 0.0
    %473 = vmatpush.msra.mxu0 0.0
    %v474 = vand.u32 %v426, 4294901760
    %v475 = vsub.f32 %v426, %v474
    %v476 = vand.u32 %v475, 4294901760
    %v477 = vsub.f32 %v475, %v476
    %v478 = vand.u32 %v477, 4294901760
    %479 = vmatpush.msra.mxu0 %v478
    %v480 = vand.u32 %v424, 4294901760
    %v481 = vsub.f32 %v424, %v480
    %v482 = vand.u32 %v481, 4294901760
    %v483 = vsub.f32 %v481, %v482
    %v484 = vand.u32 %v483, 4294901760
    %485 = vmatpush.msra.mxu0 %v484
    %v486 = vand.u32 %v422, 4294901760
    %v487 = vsub.f32 %v422, %v486
    %v488 = vand.u32 %v487, 4294901760
    %v489 = vsub.f32 %v487, %v488
    %v490 = vand.u32 %v489, 4294901760
    %491 = vmatpush.msra.mxu0 %v490
    %v492 = vand.u32 %v420, 4294901760
    %v493 = vsub.f32 %v420, %v492
    %v494 = vand.u32 %v493, 4294901760
    %v495 = vsub.f32 %v493, %v494
    %v496 = vand.u32 %v495, 4294901760
    %497 = vmatpush.msra.mxu0 %v496
    %v498 = vand.u32 %v431, 4294901760
    %499 = vmatmul.f32.gmra.mxu0 %v498
    %v500 = vpop.f32.mrf.mxu0
    %v501 = vadd.f32 %v460, %v500
    %502 = vdwg.mxu0
    %503 = vmatpush.msra.mxu0 0.0
    %504 = vmatpush.msra.mxu0 0.0
    %505 = vmatpush.msra.mxu0 0.0
    %506 = vmatpush.msra.mxu0 0.0
    %507 = vmatpush.msra.mxu0 0.0
    %508 = vmatpush.msra.mxu0 0.0
    %509 = vmatpush.msra.mxu0 0.0
    %510 = vmatpush.msra.mxu0 0.0
    %511 = vmatpush.msra.mxu0 0.0
    %512 = vmatpush.msra.mxu0 0.0
    %513 = vmatpush.msra.mxu0 0.0
    %514 = vmatpush.msra.mxu0 0.0
    %v515 = vand.u32 %v426, 4294901760
    %v516 = vsub.f32 %v426, %v515
    %517 = vmatpush.msra.mxu0 %v516
    %v518 = vand.u32 %v424, 4294901760
    %v519 = vsub.f32 %v424, %v518
    %520 = vmatpush.msra.mxu0 %v519
    %v521 = vand.u32 %v422, 4294901760
    %v522 = vsub.f32 %v422, %v521
    %523 = vmatpush.msra.mxu0 %v522
    %v524 = vand.u32 %v420, 4294901760
    %v525 = vsub.f32 %v420, %v524
    %526 = vmatpush.msra.mxu0 %v525
    %v527 = vand.u32 %v431, 4294901760
    %v528 = vsub.f32 %v431, %v527
    %529 = vmatmul.f32.gmra.mxu0 %v528
    %v530 = vpop.f32.mrf.mxu0
    %v531 = vadd.f32 %v501, %v530
    %532 = vdwg.mxu0
    %533 = vmatpush.msra.mxu0 0.0
    %534 = vmatpush.msra.mxu0 0.0
    %535 = vmatpush.msra.mxu0 0.0
    %536 = vmatpush.msra.mxu0 0.0
    %537 = vmatpush.msra.mxu0 0.0
    %538 = vmatpush.msra.mxu0 0.0
    %539 = vmatpush.msra.mxu0 0.0
    %540 = vmatpush.msra.mxu0 0.0
    %541 = vmatpush.msra.mxu0 0.0
    %542 = vmatpush.msra.mxu0 0.0
    %543 = vmatpush.msra.mxu0 0.0
    %544 = vmatpush.msra.mxu0 0.0
    %v545 = vand.u32 %v426, 4294901760
    %546 = vmatpush.msra.mxu0 %v545
    %v547 = vand.u32 %v424, 4294901760
    %548 = vmatpush.msra.mxu0 %v547
    %v549 = vand.u32 %v422, 4294901760
    %550 = vmatpush.msra.mxu0 %v549
    %v551 = vand.u32 %v420, 4294901760
    %552 = vmatpush.msra.mxu0 %v551
    %v553 = vand.u32 %v431, 4294901760
    %v554 = vsub.f32 %v431, %v553
    %v555 = vand.u32 %v554, 4294901760
    %556 = vmatmul.f32.gmra.mxu0 %v555
    %v557 = vpop.f32.mrf.mxu0
    %v558 = vadd.f32 %v531, %v557
    %559 = vdwg.mxu0
    %560 = vmatpush.msra.mxu0 0.0
    %561 = vmatpush.msra.mxu0 0.0
    %562 = vmatpush.msra.mxu0 0.0
    %563 = vmatpush.msra.mxu0 0.0
    %564 = vmatpush.msra.mxu0 0.0
    %565 = vmatpush.msra.mxu0 0.0
    %566 = vmatpush.msra.mxu0 0.0
    %567 = vmatpush.msra.mxu0 0.0
    %568 = vmatpush.msra.mxu0 0.0
    %569 = vmatpush.msra.mxu0 0.0
    %570 = vmatpush.msra.mxu0 0.0
    %571 = vmatpush.msra.mxu0 0.0
    %v572 = vand.u32 %v426, 4294901760
    %v573 = vsub.f32 %v426, %v572
    %v574 = vand.u32 %v573, 4294901760
    %575 = vmatpush.msra.mxu0 %v574
    %v576 = vand.u32 %v424, 4294901760
    %v577 = vsub.f32 %v424, %v576
    %v578 = vand.u32 %v577, 4294901760
    %579 = vmatpush.msra.mxu0 %v578
    %v580 = vand.u32 %v422, 4294901760
    %v581 = vsub.f32 %v422, %v580
    %v582 = vand.u32 %v581, 4294901760
    %583 = vmatpush.msra.mxu0 %v582
    %v584 = vand.u32 %v420, 4294901760
    %v585 = vsub.f32 %v420, %v584
    %v586 = vand.u32 %v585, 4294901760
    %587 = vmatpush.msra.mxu0 %v586
    %v588 = vand.u32 %v431, 4294901760
    %589 = vmatmul.f32.gmra.mxu0 %v588
    %v590 = vpop.f32.mrf.mxu0
    %v591 = vadd.f32 %v558, %v590
    %592 = vdwg.mxu0
    %593 = vmatpush.msra.mxu0 0.0
    %594 = vmatpush.msra.mxu0 0.0
    %595 = vmatpush.msra.mxu0 0.0
    %596 = vmatpush.msra.mxu0 0.0
    %597 = vmatpush.msra.mxu0 0.0
    %598 = vmatpush.msra.mxu0 0.0
    %599 = vmatpush.msra.mxu0 0.0
    %600 = vmatpush.msra.mxu0 0.0
    %601 = vmatpush.msra.mxu0 0.0
    %602 = vmatpush.msra.mxu0 0.0
    %603 = vmatpush.msra.mxu0 0.0
    %604 = vmatpush.msra.mxu0 0.0
    %v605 = vand.u32 %v426, 4294901760
    %606 = vmatpush.msra.mxu0 %v605
    %v607 = vand.u32 %v424, 4294901760
    %608 = vmatpush.msra.mxu0 %v607
    %v609 = vand.u32 %v422, 4294901760
    %610 = vmatpush.msra.mxu0 %v609
    %v611 = vand.u32 %v420, 4294901760
    %612 = vmatpush.msra.mxu0 %v611
    %v613 = vand.u32 %v431, 4294901760
    %614 = vmatmul.f32.gmra.mxu0 %v613
    %v615 = vpop.f32.mrf.mxu0
    %v616 = vadd.f32 %v591, %v615
    %617 = vdwg.mxu0
    %618 = vmatpush.msra.mxu0 0.0
    %619 = vmatpush.msra.mxu0 0.0
    %620 = vmatpush.msra.mxu0 0.0
    %621 = vmatpush.msra.mxu0 0.0
    %622 = vmatpush.msra.mxu0 0.0
    %623 = vmatpush.msra.mxu0 0.0
    %624 = vmatpush.msra.mxu0 0.0
    %625 = vmatpush.msra.mxu0 0.0
    %626 = vmatpush.msra.mxu0 0.0
    %627 = vmatpush.msra.mxu0 0.0
    %628 = vmatpush.msra.mxu0 0.0
    %629 = vmatpush.msra.mxu0 0.0
    %v630 = vand.u32 %v427, 4294901760
    %631 = vmatpush.msra.mxu0 %v630
    %v632 = vand.u32 %v425, 4294901760
    %633 = vmatpush.msra.mxu0 %v632
    %v634 = vand.u32 %v423, 4294901760
    %635 = vmatpush.msra.mxu0 %v634
    %v636 = vand.u32 %v421, 4294901760
    %637 = vmatpush.msra.mxu0 %v636
    %v638 = vand.u32 %v431, 4294901760
    %v639 = vsub.f32 %v431, %v638
    %v640 = vand.u32 %v639, 4294901760
    %v641 = vsub.f32 %v639, %v640
    %v642 = vand.u32 %v641, 4294901760
    %643 = vmatmul.f32.gmra.mxu0 %v642
    %v644 = vpop.f32.mrf.mxu0
    %v645 = vadd.f32 0.0, %v644
    %646 = vdwg.mxu0
    %647 = vmatpush.msra.mxu0 0.0
    %648 = vmatpush.msra.mxu0 0.0
    %649 = vmatpush.msra.mxu0 0.0
    %650 = vmatpush.msra.mxu0 0.0
    %651 = vmatpush.msra.mxu0 0.0
    %652 = vmatpush.msra.mxu0 0.0
    %653 = vmatpush.msra.mxu0 0.0
    %654 = vmatpush.msra.mxu0 0.0
    %655 = vmatpush.msra.mxu0 0.0
    %656 = vmatpush.msra.mxu0 0.0
    %657 = vmatpush.msra.mxu0 0.0
    %658 = vmatpush.msra.mxu0 0.0
    %v659 = vand.u32 %v427, 4294901760
    %v660 = vsub.f32 %v427, %v659
    %v661 = vand.u32 %v660, 4294901760
    %v662 = vsub.f32 %v660, %v661
    %v663 = vand.u32 %v662, 4294901760
    %664 = vmatpush.msra.mxu0 %v663
    %v665 = vand.u32 %v425, 4294901760
    %v666 = vsub.f32 %v425, %v665
    %v667 = vand.u32 %v666, 4294901760
    %v668 = vsub.f32 %v666, %v667
    %v669 = vand.u32 %v668, 4294901760
    %670 = vmatpush.msra.mxu0 %v669
    %v671 = vand.u32 %v423, 4294901760
    %v672 = vsub.f32 %v423, %v671
    %v673 = vand.u32 %v672, 4294901760
    %v674 = vsub.f32 %v672, %v673
    %v675 = vand.u32 %v674, 4294901760
    %676 = vmatpush.msra.mxu0 %v675
    %v677 = vand.u32 %v421, 4294901760
    %v678 = vsub.f32 %v421, %v677
    %v679 = vand.u32 %v678, 4294901760
    %v680 = vsub.f32 %v678, %v679
    %v681 = vand.u32 %v680, 4294901760
    %682 = vmatpush.msra.mxu0 %v681
    %v683 = vand.u32 %v431, 4294901760
    %684 = vmatmul.f32.gmra.mxu0 %v683
    %v685 = vpop.f32.mrf.mxu0
    %v686 = vadd.f32 %v645, %v685
    %687 = vdwg.mxu0
    %688 = vmatpush.msra.mxu0 0.0
    %689 = vmatpush.msra.mxu0 0.0
    %690 = vmatpush.msra.mxu0 0.0
    %691 = vmatpush.msra.mxu0 0.0
    %692 = vmatpush.msra.mxu0 0.0
    %693 = vmatpush.msra.mxu0 0.0
    %694 = vmatpush.msra.mxu0 0.0
    %695 = vmatpush.msra.mxu0 0.0
    %696 = vmatpush.msra.mxu0 0.0
    %697 = vmatpush.msra.mxu0 0.0
    %698 = vmatpush.msra.mxu0 0.0
    %699 = vmatpush.msra.mxu0 0.0
    %v700 = vand.u32 %v427, 4294901760
    %v701 = vsub.f32 %v427, %v700
    %702 = vmatpush.msra.mxu0 %v701
    %v703 = vand.u32 %v425, 4294901760
    %v704 = vsub.f32 %v425, %v703
    %705 = vmatpush.msra.mxu0 %v704
    %v706 = vand.u32 %v423, 4294901760
    %v707 = vsub.f32 %v423, %v706
    %708 = vmatpush.msra.mxu0 %v707
    %v709 = vand.u32 %v421, 4294901760
    %v710 = vsub.f32 %v421, %v709
    %711 = vmatpush.msra.mxu0 %v710
    %v712 = vand.u32 %v431, 4294901760
    %v713 = vsub.f32 %v431, %v712
    %714 = vmatmul.f32.gmra.mxu0 %v713
    %v715 = vpop.f32.mrf.mxu0
    %v716 = vadd.f32 %v686, %v715
    %717 = vdwg.mxu0
    %718 = vmatpush.msra.mxu0 0.0
    %719 = vmatpush.msra.mxu0 0.0
    %720 = vmatpush.msra.mxu0 0.0
    %721 = vmatpush.msra.mxu0 0.0
    %722 = vmatpush.msra.mxu0 0.0
    %723 = vmatpush.msra.mxu0 0.0
    %724 = vmatpush.msra.mxu0 0.0
    %725 = vmatpush.msra.mxu0 0.0
    %726 = vmatpush.msra.mxu0 0.0
    %727 = vmatpush.msra.mxu0 0.0
    %728 = vmatpush.msra.mxu0 0.0
    %729 = vmatpush.msra.mxu0 0.0
    %v730 = vand.u32 %v427, 4294901760
    %731 = vmatpush.msra.mxu0 %v730
    %v732 = vand.u32 %v425, 4294901760
    %733 = vmatpush.msra.mxu0 %v732
    %v734 = vand.u32 %v423, 4294901760
    %735 = vmatpush.msra.mxu0 %v734
    %v736 = vand.u32 %v421, 4294901760
    %737 = vmatpush.msra.mxu0 %v736
    %v738 = vand.u32 %v431, 4294901760
    %v739 = vsub.f32 %v431, %v738
    %v740 = vand.u32 %v739, 4294901760
    %741 = vmatmul.f32.gmra.mxu0 %v740
    %v742 = vpop.f32.mrf.mxu0
    %v743 = vadd.f32 %v716, %v742
    %744 = vdwg.mxu0
    %745 = vmatpush.msra.mxu0 0.0
    %746 = vmatpush.msra.mxu0 0.0
    %747 = vmatpush.msra.mxu0 0.0
    %748 = vmatpush.msra.mxu0 0.0
    %749 = vmatpush.msra.mxu0 0.0
    %750 = vmatpush.msra.mxu0 0.0
    %751 = vmatpush.msra.mxu0 0.0
    %752 = vmatpush.msra.mxu0 0.0
    %753 = vmatpush.msra.mxu0 0.0
    %754 = vmatpush.msra.mxu0 0.0
    %755 = vmatpush.msra.mxu0 0.0
    %756 = vmatpush.msra.mxu0 0.0
    %v757 = vand.u32 %v427, 4294901760
    %v758 = vsub.f32 %v427, %v757
    %v759 = vand.u32 %v758, 4294901760
    %760 = vmatpush.msra.mxu0 %v759
    %v761 = vand.u32 %v425, 4294901760
    %v762 = vsub.f32 %v425, %v761
    %v763 = vand.u32 %v762, 4294901760
    %764 = vmatpush.msra.mxu0 %v763
    %v765 = vand.u32 %v423, 4294901760
    %v766 = vsub.f32 %v423, %v765
    %v767 = vand.u32 %v766, 4294901760
    %768 = vmatpush.msra.mxu0 %v767
    %v769 = vand.u32 %v421, 4294901760
    %v770 = vsub.f32 %v421, %v769
    %v771 = vand.u32 %v770, 4294901760
    %772 = vmatpush.msra.mxu0 %v771
    %v773 = vand.u32 %v431, 4294901760
    %774 = vmatmul.f32.gmra.mxu0 %v773
    %v775 = vpop.f32.mrf.mxu0
    %v776 = vadd.f32 %v743, %v775
    %777 = vdwg.mxu0
    %778 = vmatpush.msra.mxu0 0.0
    %779 = vmatpush.msra.mxu0 0.0
    %780 = vmatpush.msra.mxu0 0.0
    %781 = vmatpush.msra.mxu0 0.0
    %782 = vmatpush.msra.mxu0 0.0
    %783 = vmatpush.msra.mxu0 0.0
    %784 = vmatpush.msra.mxu0 0.0
    %785 = vmatpush.msra.mxu0 0.0
    %786 = vmatpush.msra.mxu0 0.0
    %787 = vmatpush.msra.mxu0 0.0
    %788 = vmatpush.msra.mxu0 0.0
    %789 = vmatpush.msra.mxu0 0.0
    %v790 = vand.u32 %v427, 4294901760
    %791 = vmatpush.msra.mxu0 %v790
    %v792 = vand.u32 %v425, 4294901760
    %793 = vmatpush.msra.mxu0 %v792
    %v794 = vand.u32 %v423, 4294901760
    %795 = vmatpush.msra.mxu0 %v794
    %v796 = vand.u32 %v421, 4294901760
    %797 = vmatpush.msra.mxu0 %v796
    %v798 = vand.u32 %v431, 4294901760
    %799 = vmatmul.f32.gmra.mxu0 %v798
    %v800 = vpop.f32.mrf.mxu0
    %v801 = vadd.f32 %v776, %v800
    %802 = vdwg.mxu0
    %v803 = vtanh.pop %v616
    %805 = vrot.lane.b32.xlu0 %v803, 96
    %v806 = vpop.permute.xlu0 %805
    %v808 = vmul.f32 %v379, %v806
    %809 = vrot.lane.b32.xlu0 %v158, 64
    %v810 = vpop.permute.xlu0 %809
    %v812 = vadd.f32 %v616, %v810
    %v813 = vadd.f32 %v801, %v161
    %815 = vrot.lane.b32.xlu0 %v616, 96
    %v816 = vpop.permute.xlu0 %815
    %818 = vrot.lane.b32.xlu0 %v616, 32
    %v819 = vpop.permute.xlu0 %818
    %821 = vrot.lane.b32.xlu0 %v616, 64
    %v822 = vpop.permute.xlu0 %821
    %v824 = vsel %vm171, %v816, %v616
    %vm825 = vcmask 523264
    %v826 = vsel %vm825, %v824, %v819
    %vm827 = vcmask 785408
    %v828 = vsel %vm827, %v826, %v822
    %v829 = vld [vmem:[#allocation12] sm:$0xff]
    %v830 = vld [vmem:[#allocation12 + $0x8] sm:$0xff]
    %v832 = vsel %vm152, %v164, 0
    %834 = vmatpush.msra.mxu0 0.0
    %835 = vmatpush.msra.mxu0 0.0
    %836 = vmatpush.msra.mxu0 0.0
    %837 = vmatpush.msra.mxu0 0.0
    %838 = vmatpush.msra.mxu0 0.0
    %839 = vmatpush.msra.mxu0 0.0
    %840 = vmatpush.msra.mxu0 0.0
    %841 = vmatpush.msra.mxu0 0.0
    %842 = vmatpush.msra.mxu0 0.0
    %843 = vmatpush.msra.mxu0 0.0
    %844 = vmatpush.msra.mxu0 0.0
    %845 = vmatpush.msra.mxu0 0.0
    %846 = vmatpush.msra.mxu0 0.0
    %847 = vmatpush.msra.mxu0 0.0
    %848 = vmatpush.msra.mxu0 0.0
    %v849 = vand.u32 %v829, 4294901760
    %850 = vmatpush.msra.mxu0 %v849
    %v851 = vand.u32 %v832, 4294901760
    %v852 = vsub.f32 %v832, %v851
    %v853 = vand.u32 %v852, 4294901760
    %v854 = vsub.f32 %v852, %v853
    %v855 = vand.u32 %v854, 4294901760
    %856 = vmatmul.f32.gmra.mxu0 %v855
    %v857 = vpop.f32.mrf.mxu0
    %v858 = vadd.f32 0.0, %v857
    %859 = vdwg.mxu0
    %860 = vmatpush.msra.mxu0 0.0
    %861 = vmatpush.msra.mxu0 0.0
    %862 = vmatpush.msra.mxu0 0.0
    %863 = vmatpush.msra.mxu0 0.0
    %864 = vmatpush.msra.mxu0 0.0
    %865 = vmatpush.msra.mxu0 0.0
    %866 = vmatpush.msra.mxu0 0.0
    %867 = vmatpush.msra.mxu0 0.0
    %868 = vmatpush.msra.mxu0 0.0
    %869 = vmatpush.msra.mxu0 0.0
    %870 = vmatpush.msra.mxu0 0.0
    %871 = vmatpush.msra.mxu0 0.0
    %872 = vmatpush.msra.mxu0 0.0
    %873 = vmatpush.msra.mxu0 0.0
    %874 = vmatpush.msra.mxu0 0.0
    %v875 = vand.u32 %v829, 4294901760
    %v876 = vsub.f32 %v829, %v875
    %v877 = vand.u32 %v876, 4294901760
    %v878 = vsub.f32 %v876, %v877
    %v879 = vand.u32 %v878, 4294901760
    %880 = vmatpush.msra.mxu0 %v879
    %v881 = vand.u32 %v832, 4294901760
    %882 = vmatmul.f32.gmra.mxu0 %v881
    %v883 = vpop.f32.mrf.mxu0
    %v884 = vadd.f32 %v858, %v883
    %885 = vdwg.mxu0
    %886 = vmatpush.msra.mxu0 0.0
    %887 = vmatpush.msra.mxu0 0.0
    %888 = vmatpush.msra.mxu0 0.0
    %889 = vmatpush.msra.mxu0 0.0
    %890 = vmatpush.msra.mxu0 0.0
    %891 = vmatpush.msra.mxu0 0.0
    %892 = vmatpush.msra.mxu0 0.0
    %893 = vmatpush.msra.mxu0 0.0
    %894 = vmatpush.msra.mxu0 0.0
    %895 = vmatpush.msra.mxu0 0.0
    %896 = vmatpush.msra.mxu0 0.0
    %897 = vmatpush.msra.mxu0 0.0
    %898 = vmatpush.msra.mxu0 0.0
    %899 = vmatpush.msra.mxu0 0.0
    %900 = vmatpush.msra.mxu0 0.0
    %v901 = vand.u32 %v829, 4294901760
    %v902 = vsub.f32 %v829, %v901
    %903 = vmatpush.msra.mxu0 %v902
    %v904 = vand.u32 %v832, 4294901760
    %v905 = vsub.f32 %v832, %v904
    %906 = vmatmul.f32.gmra.mxu0 %v905
    %v907 = vpop.f32.mrf.mxu0
    %v908 = vadd.f32 %v884, %v907
    %909 = vdwg.mxu0
    %910 = vmatpush.msra.mxu0 0.0
    %911 = vmatpush.msra.mxu0 0.0
    %912 = vmatpush.msra.mxu0 0.0
    %913 = vmatpush.msra.mxu0 0.0
    %914 = vmatpush.msra.mxu0 0.0
    %915 = vmatpush.msra.mxu0 0.0
    %916 = vmatpush.msra.mxu0 0.0
    %917 = vmatpush.msra.mxu0 0.0
    %918 = vmatpush.msra.mxu0 0.0
    %919 = vmatpush.msra.mxu0 0.0
    %920 = vmatpush.msra.mxu0 0.0
    %921 = vmatpush.msra.mxu0 0.0
    %922 = vmatpush.msra.mxu0 0.0
    %923 = vmatpush.msra.mxu0 0.0
    %924 = vmatpush.msra.mxu0 0.0
    %v925 = vand.u32 %v829, 4294901760
    %926 = vmatpush.msra.mxu0 %v925
    %v927 = vand.u32 %v832, 4294901760
    %v928 = vsub.f32 %v832, %v927
    %v929 = vand.u32 %v928, 4294901760
    %930 = vmatmul.f32.gmra.mxu0 %v929
    %v931 = vpop.f32.mrf.mxu0
    %v932 = vadd.f32 %v908, %v931
    %933 = vdwg.mxu0
    %934 = vmatpush.msra.mxu0 0.0
    %935 = vmatpush.msra.mxu0 0.0
    %936 = vmatpush.msra.mxu0 0.0
    %937 = vmatpush.msra.mxu0 0.0
    %938 = vmatpush.msra.mxu0 0.0
    %939 = vmatpush.msra.mxu0 0.0
    %940 = vmatpush.msra.mxu0 0.0
    %941 = vmatpush.msra.mxu0 0.0
    %942 = vmatpush.msra.mxu0 0.0
    %943 = vmatpush.msra.mxu0 0.0
    %944 = vmatpush.msra.mxu0 0.0
    %945 = vmatpush.msra.mxu0 0.0
    %946 = vmatpush.msra.mxu0 0.0
    %947 = vmatpush.msra.mxu0 0.0
    %948 = vmatpush.msra.mxu0 0.0
    %v949 = vand.u32 %v829, 4294901760
    %v950 = vsub.f32 %v829, %v949
    %v951 = vand.u32 %v950, 4294901760
    %952 = vmatpush.msra.mxu0 %v951
    %v953 = vand.u32 %v832, 4294901760
    %954 = vmatmul.f32.gmra.mxu0 %v953
    %v955 = vpop.f32.mrf.mxu0
    %v956 = vadd.f32 %v932, %v955
    %957 = vdwg.mxu0
    %958 = vmatpush.msra.mxu0 0.0
    %959 = vmatpush.msra.mxu0 0.0
    %960 = vmatpush.msra.mxu0 0.0
    %961 = vmatpush.msra.mxu0 0.0
    %962 = vmatpush.msra.mxu0 0.0
    %963 = vmatpush.msra.mxu0 0.0
    %964 = vmatpush.msra.mxu0 0.0
    %965 = vmatpush.msra.mxu0 0.0
    %966 = vmatpush.msra.mxu0 0.0
    %967 = vmatpush.msra.mxu0 0.0
    %968 = vmatpush.msra.mxu0 0.0
    %969 = vmatpush.msra.mxu0 0.0
    %970 = vmatpush.msra.mxu0 0.0
    %971 = vmatpush.msra.mxu0 0.0
    %972 = vmatpush.msra.mxu0 0.0
    %v973 = vand.u32 %v829, 4294901760
    %974 = vmatpush.msra.mxu0 %v973
    %v975 = vand.u32 %v832, 4294901760
    %976 = vmatmul.f32.gmra.mxu0 %v975
    %v977 = vpop.f32.mrf.mxu0
    %v978 = vadd.f32 %v956, %v977
    %979 = vdwg.mxu0
    %980 = vmatpush.msra.mxu0 0.0
    %981 = vmatpush.msra.mxu0 0.0
    %982 = vmatpush.msra.mxu0 0.0
    %983 = vmatpush.msra.mxu0 0.0
    %984 = vmatpush.msra.mxu0 0.0
    %985 = vmatpush.msra.mxu0 0.0
    %986 = vmatpush.msra.mxu0 0.0
    %987 = vmatpush.msra.mxu0 0.0
    %988 = vmatpush.msra.mxu0 0.0
    %989 = vmatpush.msra.mxu0 0.0
    %990 = vmatpush.msra.mxu0 0.0
    %991 = vmatpush.msra.mxu0 0.0
    %992 = vmatpush.msra.mxu0 0.0
    %993 = vmatpush.msra.mxu0 0.0
    %994 = vmatpush.msra.mxu0 0.0
    %v995 = vand.u32 %v830, 4294901760
    %996 = vmatpush.msra.mxu0 %v995
    %v997 = vand.u32 %v832, 4294901760
    %v998 = vsub.f32 %v832, %v997
    %v999 = vand.u32 %v998, 4294901760
    %v1000 = vsub.f32 %v998, %v999
    %v1001 = vand.u32 %v1000, 4294901760
    %1002 = vmatmul.f32.gmra.mxu0 %v1001
    %v1003 = vpop.f32.mrf.mxu0
    %v1004 = vadd.f32 0.0, %v1003
    %1005 = vdwg.mxu0
    %1006 = vmatpush.msra.mxu0 0.0
    %1007 = vmatpush.msra.mxu0 0.0
    %1008 = vmatpush.msra.mxu0 0.0
    %1009 = vmatpush.msra.mxu0 0.0
    %1010 = vmatpush.msra.mxu0 0.0
    %1011 = vmatpush.msra.mxu0 0.0
    %1012 = vmatpush.msra.mxu0 0.0
    %1013 = vmatpush.msra.mxu0 0.0
    %1014 = vmatpush.msra.mxu0 0.0
    %1015 = vmatpush.msra.mxu0 0.0
    %1016 = vmatpush.msra.mxu0 0.0
    %1017 = vmatpush.msra.mxu0 0.0
    %1018 = vmatpush.msra.mxu0 0.0
    %1019 = vmatpush.msra.mxu0 0.0
    %1020 = vmatpush.msra.mxu0 0.0
    %v1021 = vand.u32 %v830, 4294901760
    %v1022 = vsub.f32 %v830, %v1021
    %v1023 = vand.u32 %v1022, 4294901760
    %v1024 = vsub.f32 %v1022, %v1023
    %v1025 = vand.u32 %v1024, 4294901760
    %1026 = vmatpush.msra.mxu0 %v1025
    %v1027 = vand.u32 %v832, 4294901760
    %1028 = vmatmul.f32.gmra.mxu0 %v1027
    %v1029 = vpop.f32.mrf.mxu0
    %v1030 = vadd.f32 %v1004, %v1029
    %1031 = vdwg.mxu0
    %1032 = vmatpush.msra.mxu0 0.0
    %1033 = vmatpush.msra.mxu0 0.0
    %1034 = vmatpush.msra.mxu0 0.0
    %1035 = vmatpush.msra.mxu0 0.0
    %1036 = vmatpush.msra.mxu0 0.0
    %1037 = vmatpush.msra.mxu0 0.0
    %1038 = vmatpush.msra.mxu0 0.0
    %1039 = vmatpush.msra.mxu0 0.0
    %1040 = vmatpush.msra.mxu0 0.0
    %1041 = vmatpush.msra.mxu0 0.0
    %1042 = vmatpush.msra.mxu0 0.0
    %1043 = vmatpush.msra.mxu0 0.0
    %1044 = vmatpush.msra.mxu0 0.0
    %1045 = vmatpush.msra.mxu0 0.0
    %1046 = vmatpush.msra.mxu0 0.0
    %v1047 = vand.u32 %v830, 4294901760
    %v1048 = vsub.f32 %v830, %v1047
    %1049 = vmatpush.msra.mxu0 %v1048
    %v1050 = vand.u32 %v832, 4294901760
    %v1051 = vsub.f32 %v832, %v1050
    %1052 = vmatmul.f32.gmra.mxu0 %v1051
    %v1053 = vpop.f32.mrf.mxu0
    %v1054 = vadd.f32 %v1030, %v1053
    %1055 = vdwg.mxu0
    %1056 = vmatpush.msra.mxu0 0.0
    %1057 = vmatpush.msra.mxu0 0.0
    %1058 = vmatpush.msra.mxu0 0.0
    %1059 = vmatpush.msra.mxu0 0.0
    %1060 = vmatpush.msra.mxu0 0.0
    %1061 = vmatpush.msra.mxu0 0.0
    %1062 = vmatpush.msra.mxu0 0.0
    %1063 = vmatpush.msra.mxu0 0.0
    %1064 = vmatpush.msra.mxu0 0.0
    %1065 = vmatpush.msra.mxu0 0.0
    %1066 = vmatpush.msra.mxu0 0.0
    %1067 = vmatpush.msra.mxu0 0.0
    %1068 = vmatpush.msra.mxu0 0.0
    %1069 = vmatpush.msra.mxu0 0.0
    %1070 = vmatpush.msra.mxu0 0.0
    %v1071 = vand.u32 %v830, 4294901760
    %1072 = vmatpush.msra.mxu0 %v1071
    %v1073 = vand.u32 %v832, 4294901760
    %v1074 = vsub.f32 %v832, %v1073
    %v1075 = vand.u32 %v1074, 4294901760
    %1076 = vmatmul.f32.gmra.mxu0 %v1075
    %v1077 = vpop.f32.mrf.mxu0
    %v1078 = vadd.f32 %v1054, %v1077
    %1079 = vdwg.mxu0
    %1080 = vmatpush.msra.mxu0 0.0
    %1081 = vmatpush.msra.mxu0 0.0
    %1082 = vmatpush.msra.mxu0 0.0
    %1083 = vmatpush.msra.mxu0 0.0
    %1084 = vmatpush.msra.mxu0 0.0
    %1085 = vmatpush.msra.mxu0 0.0
    %1086 = vmatpush.msra.mxu0 0.0
    %1087 = vmatpush.msra.mxu0 0.0
    %1088 = vmatpush.msra.mxu0 0.0
    %1089 = vmatpush.msra.mxu0 0.0
    %1090 = vmatpush.msra.mxu0 0.0
    %1091 = vmatpush.msra.mxu0 0.0
    %1092 = vmatpush.msra.mxu0 0.0
    %1093 = vmatpush.msra.mxu0 0.0
    %1094 = vmatpush.msra.mxu0 0.0
    %v1095 = vand.u32 %v830, 4294901760
    %v1096 = vsub.f32 %v830, %v1095
    %v1097 = vand.u32 %v1096, 4294901760
    %1098 = vmatpush.msra.mxu0 %v1097
    %v1099 = vand.u32 %v832, 4294901760
    %1100 = vmatmul.f32.gmra.mxu0 %v1099
    %v1101 = vpop.f32.mrf.mxu0
    %v1102 = vadd.f32 %v1078, %v1101
    %1103 = vdwg.mxu0
    %1104 = vmatpush.msra.mxu0 0.0
    %1105 = vmatpush.msra.mxu0 0.0
    %1106 = vmatpush.msra.mxu0 0.0
    %1107 = vmatpush.msra.mxu0 0.0
    %1108 = vmatpush.msra.mxu0 0.0
    %1109 = vmatpush.msra.mxu0 0.0
    %1110 = vmatpush.msra.mxu0 0.0
    %1111 = vmatpush.msra.mxu0 0.0
    %1112 = vmatpush.msra.mxu0 0.0
    %1113 = vmatpush.msra.mxu0 0.0
    %1114 = vmatpush.msra.mxu0 0.0
    %1115 = vmatpush.msra.mxu0 0.0
    %1116 = vmatpush.msra.mxu0 0.0
    %1117 = vmatpush.msra.mxu0 0.0
    %1118 = vmatpush.msra.mxu0 0.0
    %v1119 = vand.u32 %v830, 4294901760
    %1120 = vmatpush.msra.mxu0 %v1119
    %v1121 = vand.u32 %v832, 4294901760
    %1122 = vmatmul.f32.gmra.mxu0 %v1121
    %v1123 = vpop.f32.mrf.mxu0
    %v1124 = vadd.f32 %v1102, %v1123
    %1125 = vdwg.mxu0
    %v1126 = vadd.f32 %v141, %v828
    %v1127 = vadd.f32 %v142, %v828
    %v1128 = vadd.f32 %v1126, %v978
    %v1129 = vadd.f32 %v1127, %v1124
    %v1130 = vtanh.pop %v1128
    %v1131 = vtanh.pop %v1129
    %v1132 = vld [vmem:[%s11] sm:$0xff]
    %v1133 = vld [vmem:[%s11 + $0x8] sm:$0xff]
    %v1134 = vld [vmem:[%s11 + $0x10] sm:$0xff]
    %v1135 = vld [vmem:[%s11 + $0x18] sm:$0xff]
    %v1136 = vld [vmem:[%s11 + $0x20] sm:$0xff]
    %v1137 = vld [vmem:[%s11 + $0x28] sm:$0xff]
    %v1138 = vld [vmem:[%s11 + $0x30] sm:$0xff]
    %v1139 = vld [vmem:[%s11 + $0x38] sm:$0xff]
    %v1140 = vld [vmem:[%s11 + $0x40] sm:$0xff]
    %v1141 = vld [vmem:[%s11 + $0x48] sm:$0xff]
    %v1142 = vld [vmem:[%s11 + $0x50] sm:$0xff]
    %v1143 = vld [vmem:[%s11 + $0x58] sm:$0xff]
    %v1144 = vld [vmem:[%s11 + $0x60] sm:$0xff]
    %v1145 = vld [vmem:[%s11 + $0x68] sm:$0xff]
    %v1146 = vld [vmem:[%s11 + $0x70] sm:$0xff]
    %v1147 = vld [vmem:[%s11 + $0x78] sm:$0xff]
    %v1148 = vld [vmem:[%s11 + $0x80] sm:$0xff]
    %v1149 = vld [vmem:[%s11 + $0x88] sm:$0xff]
    %v1150 = vld [vmem:[%s11 + $0x90] sm:$0xff]
    %v1151 = vld [vmem:[%s11 + $0x98] sm:$0xff]
    %v1152 = vld [vmem:[%s11 + $0xa0] sm:$0xff]
    %v1153 = vld [vmem:[%s11 + $0xa8] sm:$0xff]
    %v1154 = vld [vmem:[%s11 + $0xb0] sm:$0xff]
    %v1155 = vld [vmem:[%s11 + $0xb8] sm:$0xff]
    %v1156 = vld [vmem:[%s11 + $0xc0] sm:$0xff]
    %v1157 = vld [vmem:[%s11 + $0xc8] sm:$0xff]
    %v1158 = vld [vmem:[%s11 + $0xd0] sm:$0xff]
    %v1159 = vld [vmem:[%s11 + $0xd8] sm:$0xff]
    %v1160 = vld [vmem:[%s11 + $0xe0] sm:$0xff]
    %v1161 = vld [vmem:[%s11 + $0xe8] sm:$0xff]
    %v1162 = vld [vmem:[%s11 + $0xf0] sm:$0xff]
    %v1163 = vld [vmem:[%s11 + $0xf8] sm:$0xff]
    %v1164 = vld [vmem:[#allocation4] sm:$0x1]
    %v1166 = vperm.slane %v1164, 0
    %1167 = vset.pattern.permute.xlu0 0
    %1168 = vperm.xlu0 %1167, %v1166
    %v1169 = vpop.permute.xlu0 %1168
    %v1171 = vand.u32 %v1147, 4294901760
    %1172 = vmatpush.msra.mxu0 %v1171
    %v1173 = vand.u32 %v1146, 4294901760
    %1174 = vmatpush.msra.mxu0 %v1173
    %v1175 = vand.u32 %v1145, 4294901760
    %1176 = vmatpush.msra.mxu0 %v1175
    %v1177 = vand.u32 %v1144, 4294901760
    %1178 = vmatpush.msra.mxu0 %v1177
    %v1179 = vand.u32 %v1143, 4294901760
    %1180 = vmatpush.msra.mxu0 %v1179
    %v1181 = vand.u32 %v1142, 4294901760
    %1182 = vmatpush.msra.mxu0 %v1181
    %v1183 = vand.u32 %v1141, 4294901760
    %1184 = vmatpush.msra.mxu0 %v1183
    %v1185 = vand.u32 %v1140, 4294901760
    %1186 = vmatpush.msra.mxu0 %v1185
    %v1187 = vand.u32 %v1139, 4294901760
    %1188 = vmatpush.msra.mxu0 %v1187
    %v1189 = vand.u32 %v1138, 4294901760
    %1190 = vmatpush.msra.mxu0 %v1189
    %v1191 = vand.u32 %v1137, 4294901760
    %1192 = vmatpush.msra.mxu0 %v1191
    %v1193 = vand.u32 %v1136, 4294901760
    %1194 = vmatpush.msra.mxu0 %v1193
    %v1195 = vand.u32 %v1135, 4294901760
    %1196 = vmatpush.msra.mxu0 %v1195
    %v1197 = vand.u32 %v1134, 4294901760
    %1198 = vmatpush.msra.mxu0 %v1197
    %v1199 = vand.u32 %v1133, 4294901760
    %1200 = vmatpush.msra.mxu0 %v1199
    %v1201 = vand.u32 %v1132, 4294901760
    %1202 = vmatpush.msra.mxu0 %v1201
    %v1203 = vand.u32 %v1130, 4294901760
    %v1204 = vsub.f32 %v1130, %v1203
    %v1205 = vand.u32 %v1204, 4294901760
    %v1206 = vsub.f32 %v1204, %v1205
    %v1207 = vand.u32 %v1206, 4294901760
    %1208 = vmatmul.f32.gmra.mxu0 %v1207
    %v1209 = vpop.f32.mrf.mxu0
    %v1210 = vadd.f32 %v1169, %v1209
    %1211 = vdwg.mxu0
    %v1212 = vand.u32 %v1147, 4294901760
    %v1213 = vsub.f32 %v1147, %v1212
    %v1214 = vand.u32 %v1213, 4294901760
    %v1215 = vsub.f32 %v1213, %v1214
    %v1216 = vand.u32 %v1215, 4294901760
    %1217 = vmatpush.msra.mxu0 %v1216
    %v1218 = vand.u32 %v1146, 4294901760
    %v1219 = vsub.f32 %v1146, %v1218
    %v1220 = vand.u32 %v1219, 4294901760
    %v1221 = vsub.f32 %v1219, %v1220
    %v1222 = vand.u32 %v1221, 4294901760
    %1223 = vmatpush.msra.mxu0 %v1222
    %v1224 = vand.u32 %v1145, 4294901760
    %v1225 = vsub.f32 %v1145, %v1224
    %v1226 = vand.u32 %v1225, 4294901760
    %v1227 = vsub.f32 %v1225, %v1226
    %v1228 = vand.u32 %v1227, 4294901760
    %1229 = vmatpush.msra.mxu0 %v1228
    %v1230 = vand.u32 %v1144, 4294901760
    %v1231 = vsub.f32 %v1144, %v1230
    %v1232 = vand.u32 %v1231, 4294901760
    %v1233 = vsub.f32 %v1231, %v1232
    %v1234 = vand.u32 %v1233, 4294901760
    %1235 = vmatpush.msra.mxu0 %v1234
    %v1236 = vand.u32 %v1143, 4294901760
    %v1237 = vsub.f32 %v1143, %v1236
    %v1238 = vand.u32 %v1237, 4294901760
    %v1239 = vsub.f32 %v1237, %v1238
    %v1240 = vand.u32 %v1239, 4294901760
    %1241 = vmatpush.msra.mxu0 %v1240
    %v1242 = vand.u32 %v1142, 4294901760
    %v1243 = vsub.f32 %v1142, %v1242
    %v1244 = vand.u32 %v1243, 4294901760
    %v1245 = vsub.f32 %v1243, %v1244
    %v1246 = vand.u32 %v1245, 4294901760
    %1247 = vmatpush.msra.mxu0 %v1246
    %v1248 = vand.u32 %v1141, 4294901760
    %v1249 = vsub.f32 %v1141, %v1248
    %v1250 = vand.u32 %v1249, 4294901760
    %v1251 = vsub.f32 %v1249, %v1250
    %v1252 = vand.u32 %v1251, 4294901760
    %1253 = vmatpush.msra.mxu0 %v1252
    %v1254 = vand.u32 %v1140, 4294901760
    %v1255 = vsub.f32 %v1140, %v1254
    %v1256 = vand.u32 %v1255, 4294901760
    %v1257 = vsub.f32 %v1255, %v1256
    %v1258 = vand.u32 %v1257, 4294901760
    %1259 = vmatpush.msra.mxu0 %v1258
    %v1260 = vand.u32 %v1139, 4294901760
    %v1261 = vsub.f32 %v1139, %v1260
    %v1262 = vand.u32 %v1261, 4294901760
    %v1263 = vsub.f32 %v1261, %v1262
    %v1264 = vand.u32 %v1263, 4294901760
    %1265 = vmatpush.msra.mxu0 %v1264
    %v1266 = vand.u32 %v1138, 4294901760
    %v1267 = vsub.f32 %v1138, %v1266
    %v1268 = vand.u32 %v1267, 4294901760
    %v1269 = vsub.f32 %v1267, %v1268
    %v1270 = vand.u32 %v1269, 4294901760
    %1271 = vmatpush.msra.mxu0 %v1270
    %v1272 = vand.u32 %v1137, 4294901760
    %v1273 = vsub.f32 %v1137, %v1272
    %v1274 = vand.u32 %v1273, 4294901760
    %v1275 = vsub.f32 %v1273, %v1274
    %v1276 = vand.u32 %v1275, 4294901760
    %1277 = vmatpush.msra.mxu0 %v1276
    %v1278 = vand.u32 %v1136, 4294901760
    %v1279 = vsub.f32 %v1136, %v1278
    %v1280 = vand.u32 %v1279, 4294901760
    %v1281 = vsub.f32 %v1279, %v1280
    %v1282 = vand.u32 %v1281, 4294901760
    %1283 = vmatpush.msra.mxu0 %v1282
    %v1284 = vand.u32 %v1135, 4294901760
    %v1285 = vsub.f32 %v1135, %v1284
    %v1286 = vand.u32 %v1285, 4294901760
    %v1287 = vsub.f32 %v1285, %v1286
    %v1288 = vand.u32 %v1287, 4294901760
    %1289 = vmatpush.msra.mxu0 %v1288
    %v1290 = vand.u32 %v1134, 4294901760
    %v1291 = vsub.f32 %v1134, %v1290
    %v1292 = vand.u32 %v1291, 4294901760
    %v1293 = vsub.f32 %v1291, %v1292
    %v1294 = vand.u32 %v1293, 4294901760
    %1295 = vmatpush.msra.mxu0 %v1294
    %v1296 = vand.u32 %v1133, 4294901760
    %v1297 = vsub.f32 %v1133, %v1296
    %v1298 = vand.u32 %v1297, 4294901760
    %v1299 = vsub.f32 %v1297, %v1298
    %v1300 = vand.u32 %v1299, 4294901760
    %1301 = vmatpush.msra.mxu0 %v1300
    %v1302 = vand.u32 %v1132, 4294901760
    %v1303 = vsub.f32 %v1132, %v1302
    %v1304 = vand.u32 %v1303, 4294901760
    %v1305 = vsub.f32 %v1303, %v1304
    %v1306 = vand.u32 %v1305, 4294901760
    %1307 = vmatpush.msra.mxu0 %v1306
    %v1308 = vand.u32 %v1130, 4294901760
    %1309 = vmatmul.f32.gmra.mxu0 %v1308
    %v1310 = vpop.f32.mrf.mxu0
    %v1311 = vadd.f32 %v1210, %v1310
    %1312 = vdwg.mxu0
    %v1313 = vand.u32 %v1147, 4294901760
    %v1314 = vsub.f32 %v1147, %v1313
    %1315 = vmatpush.msra.mxu0 %v1314
    %v1316 = vand.u32 %v1146, 4294901760
    %v1317 = vsub.f32 %v1146, %v1316
    %1318 = vmatpush.msra.mxu0 %v1317
    %v1319 = vand.u32 %v1145, 4294901760
    %v1320 = vsub.f32 %v1145, %v1319
    %1321 = vmatpush.msra.mxu0 %v1320
    %v1322 = vand.u32 %v1144, 4294901760
    %v1323 = vsub.f32 %v1144, %v1322
    %1324 = vmatpush.msra.mxu0 %v1323
    %v1325 = vand.u32 %v1143, 4294901760
    %v1326 = vsub.f32 %v1143, %v1325
    %1327 = vmatpush.msra.mxu0 %v1326
    %v1328 = vand.u32 %v1142, 4294901760
    %v1329 = vsub.f32 %v1142, %v1328
    %1330 = vmatpush.msra.mxu0 %v1329
    %v1331 = vand.u32 %v1141, 4294901760
    %v1332 = vsub.f32 %v1141, %v1331
    %1333 = vmatpush.msra.mxu0 %v1332
    %v1334 = vand.u32 %v1140, 4294901760
    %v1335 = vsub.f32 %v1140, %v1334
    %1336 = vmatpush.msra.mxu0 %v1335
    %v1337 = vand.u32 %v1139, 4294901760
    %v1338 = vsub.f32 %v1139, %v1337
    %1339 = vmatpush.msra.mxu0 %v1338
    %v1340 = vand.u32 %v1138, 4294901760
    %v1341 = vsub.f32 %v1138, %v1340
    %1342 = vmatpush.msra.mxu0 %v1341
    %v1343 = vand.u32 %v1137, 4294901760
    %v1344 = vsub.f32 %v1137, %v1343
    %1345 = vmatpush.msra.mxu0 %v1344
    %v1346 = vand.u32 %v1136, 4294901760
    %v1347 = vsub.f32 %v1136, %v1346
    %1348 = vmatpush.msra.mxu0 %v1347
    %v1349 = vand.u32 %v1135, 4294901760
    %v1350 = vsub.f32 %v1135, %v1349
    %1351 = vmatpush.msra.mxu0 %v1350
    %v1352 = vand.u32 %v1134, 4294901760
    %v1353 = vsub.f32 %v1134, %v1352
    %1354 = vmatpush.msra.mxu0 %v1353
    %v1355 = vand.u32 %v1133, 4294901760
    %v1356 = vsub.f32 %v1133, %v1355
    %1357 = vmatpush.msra.mxu0 %v1356
    %v1358 = vand.u32 %v1132, 4294901760
    %v1359 = vsub.f32 %v1132, %v1358
    %1360 = vmatpush.msra.mxu0 %v1359
    %v1361 = vand.u32 %v1130, 4294901760
    %v1362 = vsub.f32 %v1130, %v1361
    %1363 = vmatmul.f32.gmra.mxu0 %v1362
    %v1364 = vpop.f32.mrf.mxu0
    %v1365 = vadd.f32 %v1311, %v1364
    %1366 = vdwg.mxu0
    %v1367 = vand.u32 %v1147, 4294901760
    %1368 = vmatpush.msra.mxu0 %v1367
    %v1369 = vand.u32 %v1146, 4294901760
    %1370 = vmatpush.msra.mxu0 %v1369
    %v1371 = vand.u32 %v1145, 4294901760
    %1372 = vmatpush.msra.mxu0 %v1371
    %v1373 = vand.u32 %v1144, 4294901760
    %1374 = vmatpush.msra.mxu0 %v1373
    %v1375 = vand.u32 %v1143, 4294901760
    %1376 = vmatpush.msra.mxu0 %v1375
    %v1377 = vand.u32 %v1142, 4294901760
    %1378 = vmatpush.msra.mxu0 %v1377
    %v1379 = vand.u32 %v1141, 4294901760
    %1380 = vmatpush.msra.mxu0 %v1379
    %v1381 = vand.u32 %v1140, 4294901760
    %1382 = vmatpush.msra.mxu0 %v1381
    %v1383 = vand.u32 %v1139, 4294901760
    %1384 = vmatpush.msra.mxu0 %v1383
    %v1385 = vand.u32 %v1138, 4294901760
    %1386 = vmatpush.msra.mxu0 %v1385
    %v1387 = vand.u32 %v1137, 4294901760
    %1388 = vmatpush.msra.mxu0 %v1387
    %v1389 = vand.u32 %v1136, 4294901760
    %1390 = vmatpush.msra.mxu0 %v1389
    %v1391 = vand.u32 %v1135, 4294901760
    %1392 = vmatpush.msra.mxu0 %v1391
    %v1393 = vand.u32 %v1134, 4294901760
    %1394 = vmatpush.msra.mxu0 %v1393
    %v1395 = vand.u32 %v1133, 4294901760
    %1396 = vmatpush.msra.mxu0 %v1395
    %v1397 = vand.u32 %v1132, 4294901760
    %1398 = vmatpush.msra.mxu0 %v1397
    %v1399 = vand.u32 %v1130, 4294901760
    %v1400 = vsub.f32 %v1130, %v1399
    %v1401 = vand.u32 %v1400, 4294901760
    %1402 = vmatmul.f32.gmra.mxu0 %v1401
    %v1403 = vpop.f32.mrf.mxu0
    %v1404 = vadd.f32 %v1365, %v1403
    %1405 = vdwg.mxu0
    %v1406 = vand.u32 %v1147, 4294901760
    %v1407 = vsub.f32 %v1147, %v1406
    %v1408 = vand.u32 %v1407, 4294901760
    %1409 = vmatpush.msra.mxu0 %v1408
    %v1410 = vand.u32 %v1146, 4294901760
    %v1411 = vsub.f32 %v1146, %v1410
    %v1412 = vand.u32 %v1411, 4294901760
    %1413 = vmatpush.msra.mxu0 %v1412
    %v1414 = vand.u32 %v1145, 4294901760
    %v1415 = vsub.f32 %v1145, %v1414
    %v1416 = vand.u32 %v1415, 4294901760
    %1417 = vmatpush.msra.mxu0 %v1416
    %v1418 = vand.u32 %v1144, 4294901760
    %v1419 = vsub.f32 %v1144, %v1418
    %v1420 = vand.u32 %v1419, 4294901760
    %1421 = vmatpush.msra.mxu0 %v1420
    %v1422 = vand.u32 %v1143, 4294901760
    %v1423 = vsub.f32 %v1143, %v1422
    %v1424 = vand.u32 %v1423, 4294901760
    %1425 = vmatpush.msra.mxu0 %v1424
    %v1426 = vand.u32 %v1142, 4294901760
    %v1427 = vsub.f32 %v1142, %v1426
    %v1428 = vand.u32 %v1427, 4294901760
    %1429 = vmatpush.msra.mxu0 %v1428
    %v1430 = vand.u32 %v1141, 4294901760
    %v1431 = vsub.f32 %v1141, %v1430
    %v1432 = vand.u32 %v1431, 4294901760
    %1433 = vmatpush.msra.mxu0 %v1432
    %v1434 = vand.u32 %v1140, 4294901760
    %v1435 = vsub.f32 %v1140, %v1434
    %v1436 = vand.u32 %v1435, 4294901760
    %1437 = vmatpush.msra.mxu0 %v1436
    %v1438 = vand.u32 %v1139, 4294901760
    %v1439 = vsub.f32 %v1139, %v1438
    %v1440 = vand.u32 %v1439, 4294901760
    %1441 = vmatpush.msra.mxu0 %v1440
    %v1442 = vand.u32 %v1138, 4294901760
    %v1443 = vsub.f32 %v1138, %v1442
    %v1444 = vand.u32 %v1443, 4294901760
    %1445 = vmatpush.msra.mxu0 %v1444
    %v1446 = vand.u32 %v1137, 4294901760
    %v1447 = vsub.f32 %v1137, %v1446
    %v1448 = vand.u32 %v1447, 4294901760
    %1449 = vmatpush.msra.mxu0 %v1448
    %v1450 = vand.u32 %v1136, 4294901760
    %v1451 = vsub.f32 %v1136, %v1450
    %v1452 = vand.u32 %v1451, 4294901760
    %1453 = vmatpush.msra.mxu0 %v1452
    %v1454 = vand.u32 %v1135, 4294901760
    %v1455 = vsub.f32 %v1135, %v1454
    %v1456 = vand.u32 %v1455, 4294901760
    %1457 = vmatpush.msra.mxu0 %v1456
    %v1458 = vand.u32 %v1134, 4294901760
    %v1459 = vsub.f32 %v1134, %v1458
    %v1460 = vand.u32 %v1459, 4294901760
    %1461 = vmatpush.msra.mxu0 %v1460
    %v1462 = vand.u32 %v1133, 4294901760
    %v1463 = vsub.f32 %v1133, %v1462
    %v1464 = vand.u32 %v1463, 4294901760
    %1465 = vmatpush.msra.mxu0 %v1464
    %v1466 = vand.u32 %v1132, 4294901760
    %v1467 = vsub.f32 %v1132, %v1466
    %v1468 = vand.u32 %v1467, 4294901760
    %1469 = vmatpush.msra.mxu0 %v1468
    %v1470 = vand.u32 %v1130, 4294901760
    %1471 = vmatmul.f32.gmra.mxu0 %v1470
    %v1472 = vpop.f32.mrf.mxu0
    %v1473 = vadd.f32 %v1404, %v1472
    %1474 = vdwg.mxu0
    %v1475 = vand.u32 %v1147, 4294901760
    %1476 = vmatpush.msra.mxu0 %v1475
    %v1477 = vand.u32 %v1146, 4294901760
    %1478 = vmatpush.msra.mxu0 %v1477
    %v1479 = vand.u32 %v1145, 4294901760
    %1480 = vmatpush.msra.mxu0 %v1479
    %v1481 = vand.u32 %v1144, 4294901760
    %1482 = vmatpush.msra.mxu0 %v1481
    %v1483 = vand.u32 %v1143, 4294901760
    %1484 = vmatpush.msra.mxu0 %v1483
    %v1485 = vand.u32 %v1142, 4294901760
    %1486 = vmatpush.msra.mxu0 %v1485
    %v1487 = vand.u32 %v1141, 4294901760
    %1488 = vmatpush.msra.mxu0 %v1487
    %v1489 = vand.u32 %v1140, 4294901760
    %1490 = vmatpush.msra.mxu0 %v1489
    %v1491 = vand.u32 %v1139, 4294901760
    %1492 = vmatpush.msra.mxu0 %v1491
    %v1493 = vand.u32 %v1138, 4294901760
    %1494 = vmatpush.msra.mxu0 %v1493
    %v1495 = vand.u32 %v1137, 4294901760
    %1496 = vmatpush.msra.mxu0 %v1495
    %v1497 = vand.u32 %v1136, 4294901760
    %1498 = vmatpush.msra.mxu0 %v1497
    %v1499 = vand.u32 %v1135, 4294901760
    %1500 = vmatpush.msra.mxu0 %v1499
    %v1501 = vand.u32 %v1134, 4294901760
    %1502 = vmatpush.msra.mxu0 %v1501
    %v1503 = vand.u32 %v1133, 4294901760
    %1504 = vmatpush.msra.mxu0 %v1503
    %v1505 = vand.u32 %v1132, 4294901760
    %1506 = vmatpush.msra.mxu0 %v1505
    %v1507 = vand.u32 %v1130, 4294901760
    %1508 = vmatmul.f32.gmra.mxu0 %v1507
    %v1509 = vpop.f32.mrf.mxu0
    %v1510 = vadd.f32 %v1473, %v1509
    %1511 = vdwg.mxu0
    %v1512 = vand.u32 %v1163, 4294901760
    %1513 = vmatpush.msra.mxu0 %v1512
    %v1514 = vand.u32 %v1162, 4294901760
    %1515 = vmatpush.msra.mxu0 %v1514
    %v1516 = vand.u32 %v1161, 4294901760
    %1517 = vmatpush.msra.mxu0 %v1516
    %v1518 = vand.u32 %v1160, 4294901760
    %1519 = vmatpush.msra.mxu0 %v1518
    %v1520 = vand.u32 %v1159, 4294901760
    %1521 = vmatpush.msra.mxu0 %v1520
    %v1522 = vand.u32 %v1158, 4294901760
    %1523 = vmatpush.msra.mxu0 %v1522
    %v1524 = vand.u32 %v1157, 4294901760
    %1525 = vmatpush.msra.mxu0 %v1524
    %v1526 = vand.u32 %v1156, 4294901760
    %1527 = vmatpush.msra.mxu0 %v1526
    %v1528 = vand.u32 %v1155, 4294901760
    %1529 = vmatpush.msra.mxu0 %v1528
    %v1530 = vand.u32 %v1154, 4294901760
    %1531 = vmatpush.msra.mxu0 %v1530
    %v1532 = vand.u32 %v1153, 4294901760
    %1533 = vmatpush.msra.mxu0 %v1532
    %v1534 = vand.u32 %v1152, 4294901760
    %1535 = vmatpush.msra.mxu0 %v1534
    %v1536 = vand.u32 %v1151, 4294901760
    %1537 = vmatpush.msra.mxu0 %v1536
    %v1538 = vand.u32 %v1150, 4294901760
    %1539 = vmatpush.msra.mxu0 %v1538
    %v1540 = vand.u32 %v1149, 4294901760
    %1541 = vmatpush.msra.mxu0 %v1540
    %v1542 = vand.u32 %v1148, 4294901760
    %1543 = vmatpush.msra.mxu0 %v1542
    %v1544 = vand.u32 %v1131, 4294901760
    %v1545 = vsub.f32 %v1131, %v1544
    %v1546 = vand.u32 %v1545, 4294901760
    %v1547 = vsub.f32 %v1545, %v1546
    %v1548 = vand.u32 %v1547, 4294901760
    %1549 = vmatmul.f32.gmra.mxu0 %v1548
    %v1550 = vpop.f32.mrf.mxu0
    %v1551 = vadd.f32 %v1510, %v1550
    %1552 = vdwg.mxu0
    %v1553 = vand.u32 %v1163, 4294901760
    %v1554 = vsub.f32 %v1163, %v1553
    %v1555 = vand.u32 %v1554, 4294901760
    %v1556 = vsub.f32 %v1554, %v1555
    %v1557 = vand.u32 %v1556, 4294901760
    %1558 = vmatpush.msra.mxu0 %v1557
    %v1559 = vand.u32 %v1162, 4294901760
    %v1560 = vsub.f32 %v1162, %v1559
    %v1561 = vand.u32 %v1560, 4294901760
    %v1562 = vsub.f32 %v1560, %v1561
    %v1563 = vand.u32 %v1562, 4294901760
    %1564 = vmatpush.msra.mxu0 %v1563
    %v1565 = vand.u32 %v1161, 4294901760
    %v1566 = vsub.f32 %v1161, %v1565
    %v1567 = vand.u32 %v1566, 4294901760
    %v1568 = vsub.f32 %v1566, %v1567
    %v1569 = vand.u32 %v1568, 4294901760
    %1570 = vmatpush.msra.mxu0 %v1569
    %v1571 = vand.u32 %v1160, 4294901760
    %v1572 = vsub.f32 %v1160, %v1571
    %v1573 = vand.u32 %v1572, 4294901760
    %v1574 = vsub.f32 %v1572, %v1573
    %v1575 = vand.u32 %v1574, 4294901760
    %1576 = vmatpush.msra.mxu0 %v1575
    %v1577 = vand.u32 %v1159, 4294901760
    %v1578 = vsub.f32 %v1159, %v1577
    %v1579 = vand.u32 %v1578, 4294901760
    %v1580 = vsub.f32 %v1578, %v1579
    %v1581 = vand.u32 %v1580, 4294901760
    %1582 = vmatpush.msra.mxu0 %v1581
    %v1583 = vand.u32 %v1158, 4294901760
    %v1584 = vsub.f32 %v1158, %v1583
    %v1585 = vand.u32 %v1584, 4294901760
    %v1586 = vsub.f32 %v1584, %v1585
    %v1587 = vand.u32 %v1586, 4294901760
    %1588 = vmatpush.msra.mxu0 %v1587
    %v1589 = vand.u32 %v1157, 4294901760
    %v1590 = vsub.f32 %v1157, %v1589
    %v1591 = vand.u32 %v1590, 4294901760
    %v1592 = vsub.f32 %v1590, %v1591
    %v1593 = vand.u32 %v1592, 4294901760
    %1594 = vmatpush.msra.mxu0 %v1593
    %v1595 = vand.u32 %v1156, 4294901760
    %v1596 = vsub.f32 %v1156, %v1595
    %v1597 = vand.u32 %v1596, 4294901760
    %v1598 = vsub.f32 %v1596, %v1597
    %v1599 = vand.u32 %v1598, 4294901760
    %1600 = vmatpush.msra.mxu0 %v1599
    %v1601 = vand.u32 %v1155, 4294901760
    %v1602 = vsub.f32 %v1155, %v1601
    %v1603 = vand.u32 %v1602, 4294901760
    %v1604 = vsub.f32 %v1602, %v1603
    %v1605 = vand.u32 %v1604, 4294901760
    %1606 = vmatpush.msra.mxu0 %v1605
    %v1607 = vand.u32 %v1154, 4294901760
    %v1608 = vsub.f32 %v1154, %v1607
    %v1609 = vand.u32 %v1608, 4294901760
    %v1610 = vsub.f32 %v1608, %v1609
    %v1611 = vand.u32 %v1610, 4294901760
    %1612 = vmatpush.msra.mxu0 %v1611
    %v1613 = vand.u32 %v1153, 4294901760
    %v1614 = vsub.f32 %v1153, %v1613
    %v1615 = vand.u32 %v1614, 4294901760
    %v1616 = vsub.f32 %v1614, %v1615
    %v1617 = vand.u32 %v1616, 4294901760
    %1618 = vmatpush.msra.mxu0 %v1617
    %v1619 = vand.u32 %v1152, 4294901760
    %v1620 = vsub.f32 %v1152, %v1619
    %v1621 = vand.u32 %v1620, 4294901760
    %v1622 = vsub.f32 %v1620, %v1621
    %v1623 = vand.u32 %v1622, 4294901760
    %1624 = vmatpush.msra.mxu0 %v1623
    %v1625 = vand.u32 %v1151, 4294901760
    %v1626 = vsub.f32 %v1151, %v1625
    %v1627 = vand.u32 %v1626, 4294901760
    %v1628 = vsub.f32 %v1626, %v1627
    %v1629 = vand.u32 %v1628, 4294901760
    %1630 = vmatpush.msra.mxu0 %v1629
    %v1631 = vand.u32 %v1150, 4294901760
    %v1632 = vsub.f32 %v1150, %v1631
    %v1633 = vand.u32 %v1632, 4294901760
    %v1634 = vsub.f32 %v1632, %v1633
    %v1635 = vand.u32 %v1634, 4294901760
    %1636 = vmatpush.msra.mxu0 %v1635
    %v1637 = vand.u32 %v1149, 4294901760
    %v1638 = vsub.f32 %v1149, %v1637
    %v1639 = vand.u32 %v1638, 4294901760
    %v1640 = vsub.f32 %v1638, %v1639
    %v1641 = vand.u32 %v1640, 4294901760
    %1642 = vmatpush.msra.mxu0 %v1641
    %v1643 = vand.u32 %v1148, 4294901760
    %v1644 = vsub.f32 %v1148, %v1643
    %v1645 = vand.u32 %v1644, 4294901760
    %v1646 = vsub.f32 %v1644, %v1645
    %v1647 = vand.u32 %v1646, 4294901760
    %1648 = vmatpush.msra.mxu0 %v1647
    %v1649 = vand.u32 %v1131, 4294901760
    %1650 = vmatmul.f32.gmra.mxu0 %v1649
    %v1651 = vpop.f32.mrf.mxu0
    %v1652 = vadd.f32 %v1551, %v1651
    %1653 = vdwg.mxu0
    %v1654 = vand.u32 %v1163, 4294901760
    %v1655 = vsub.f32 %v1163, %v1654
    %1656 = vmatpush.msra.mxu0 %v1655
    %v1657 = vand.u32 %v1162, 4294901760
    %v1658 = vsub.f32 %v1162, %v1657
    %1659 = vmatpush.msra.mxu0 %v1658
    %v1660 = vand.u32 %v1161, 4294901760
    %v1661 = vsub.f32 %v1161, %v1660
    %1662 = vmatpush.msra.mxu0 %v1661
    %v1663 = vand.u32 %v1160, 4294901760
    %v1664 = vsub.f32 %v1160, %v1663
    %1665 = vmatpush.msra.mxu0 %v1664
    %v1666 = vand.u32 %v1159, 4294901760
    %v1667 = vsub.f32 %v1159, %v1666
    %1668 = vmatpush.msra.mxu0 %v1667
    %v1669 = vand.u32 %v1158, 4294901760
    %v1670 = vsub.f32 %v1158, %v1669
    %1671 = vmatpush.msra.mxu0 %v1670
    %v1672 = vand.u32 %v1157, 4294901760
    %v1673 = vsub.f32 %v1157, %v1672
    %1674 = vmatpush.msra.mxu0 %v1673
    %v1675 = vand.u32 %v1156, 4294901760
    %v1676 = vsub.f32 %v1156, %v1675
    %1677 = vmatpush.msra.mxu0 %v1676
    %v1678 = vand.u32 %v1155, 4294901760
    %v1679 = vsub.f32 %v1155, %v1678
    %1680 = vmatpush.msra.mxu0 %v1679
    %v1681 = vand.u32 %v1154, 4294901760
    %v1682 = vsub.f32 %v1154, %v1681
    %1683 = vmatpush.msra.mxu0 %v1682
    %v1684 = vand.u32 %v1153, 4294901760
    %v1685 = vsub.f32 %v1153, %v1684
    %1686 = vmatpush.msra.mxu0 %v1685
    %v1687 = vand.u32 %v1152, 4294901760
    %v1688 = vsub.f32 %v1152, %v1687
    %1689 = vmatpush.msra.mxu0 %v1688
    %v1690 = vand.u32 %v1151, 4294901760
    %v1691 = vsub.f32 %v1151, %v1690
    %1692 = vmatpush.msra.mxu0 %v1691
    %v1693 = vand.u32 %v1150, 4294901760
    %v1694 = vsub.f32 %v1150, %v1693
    %1695 = vmatpush.msra.mxu0 %v1694
    %v1696 = vand.u32 %v1149, 4294901760
    %v1697 = vsub.f32 %v1149, %v1696
    %1698 = vmatpush.msra.mxu0 %v1697
    %v1699 = vand.u32 %v1148, 4294901760
    %v1700 = vsub.f32 %v1148, %v1699
    %1701 = vmatpush.msra.mxu0 %v1700
    %v1702 = vand.u32 %v1131, 4294901760
    %v1703 = vsub.f32 %v1131, %v1702
    %1704 = vmatmul.f32.gmra.mxu0 %v1703
    %v1705 = vpop.f32.mrf.mxu0
    %v1706 = vadd.f32 %v1652, %v1705
    %1707 = vdwg.mxu0
    %v1708 = vand.u32 %v1163, 4294901760
    %1709 = vmatpush.msra.mxu0 %v1708
    %v1710 = vand.u32 %v1162, 4294901760
    %1711 = vmatpush.msra.mxu0 %v1710
    %v1712 = vand.u32 %v1161, 4294901760
    %1713 = vmatpush.msra.mxu0 %v1712
    %v1714 = vand.u32 %v1160, 4294901760
    %1715 = vmatpush.msra.mxu0 %v1714
    %v1716 = vand.u32 %v1159, 4294901760
    %1717 = vmatpush.msra.mxu0 %v1716
    %v1718 = vand.u32 %v1158, 4294901760
    %1719 = vmatpush.msra.mxu0 %v1718
    %v1720 = vand.u32 %v1157, 4294901760
    %1721 = vmatpush.msra.mxu0 %v1720
    %v1722 = vand.u32 %v1156, 4294901760
    %1723 = vmatpush.msra.mxu0 %v1722
    %v1724 = vand.u32 %v1155, 4294901760
    %1725 = vmatpush.msra.mxu0 %v1724
    %v1726 = vand.u32 %v1154, 4294901760
    %1727 = vmatpush.msra.mxu0 %v1726
    %v1728 = vand.u32 %v1153, 4294901760
    %1729 = vmatpush.msra.mxu0 %v1728
    %v1730 = vand.u32 %v1152, 4294901760
    %1731 = vmatpush.msra.mxu0 %v1730
    %v1732 = vand.u32 %v1151, 4294901760
    %1733 = vmatpush.msra.mxu0 %v1732
    %v1734 = vand.u32 %v1150, 4294901760
    %1735 = vmatpush.msra.mxu0 %v1734
    %v1736 = vand.u32 %v1149, 4294901760
    %1737 = vmatpush.msra.mxu0 %v1736
    %v1738 = vand.u32 %v1148, 4294901760
    %1739 = vmatpush.msra.mxu0 %v1738
    %v1740 = vand.u32 %v1131, 4294901760
    %v1741 = vsub.f32 %v1131, %v1740
    %v1742 = vand.u32 %v1741, 4294901760
    %1743 = vmatmul.f32.gmra.mxu0 %v1742
    %v1744 = vpop.f32.mrf.mxu0
    %v1745 = vadd.f32 %v1706, %v1744
    %1746 = vdwg.mxu0
    %v1747 = vand.u32 %v1163, 4294901760
    %v1748 = vsub.f32 %v1163, %v1747
    %v1749 = vand.u32 %v1748, 4294901760
    %1750 = vmatpush.msra.mxu0 %v1749
    %v1751 = vand.u32 %v1162, 4294901760
    %v1752 = vsub.f32 %v1162, %v1751
    %v1753 = vand.u32 %v1752, 4294901760
    %1754 = vmatpush.msra.mxu0 %v1753
    %v1755 = vand.u32 %v1161, 4294901760
    %v1756 = vsub.f32 %v1161, %v1755
    %v1757 = vand.u32 %v1756, 4294901760
    %1758 = vmatpush.msra.mxu0 %v1757
    %v1759 = vand.u32 %v1160, 4294901760
    %v1760 = vsub.f32 %v1160, %v1759
    %v1761 = vand.u32 %v1760, 4294901760
    %1762 = vmatpush.msra.mxu0 %v1761
    %v1763 = vand.u32 %v1159, 4294901760
    %v1764 = vsub.f32 %v1159, %v1763
    %v1765 = vand.u32 %v1764, 4294901760
    %1766 = vmatpush.msra.mxu0 %v1765
    %v1767 = vand.u32 %v1158, 4294901760
    %v1768 = vsub.f32 %v1158, %v1767
    %v1769 = vand.u32 %v1768, 4294901760
    %1770 = vmatpush.msra.mxu0 %v1769
    %v1771 = vand.u32 %v1157, 4294901760
    %v1772 = vsub.f32 %v1157, %v1771
    %v1773 = vand.u32 %v1772, 4294901760
    %1774 = vmatpush.msra.mxu0 %v1773
    %v1775 = vand.u32 %v1156, 4294901760
    %v1776 = vsub.f32 %v1156, %v1775
    %v1777 = vand.u32 %v1776, 4294901760
    %1778 = vmatpush.msra.mxu0 %v1777
    %v1779 = vand.u32 %v1155, 4294901760
    %v1780 = vsub.f32 %v1155, %v1779
    %v1781 = vand.u32 %v1780, 4294901760
    %1782 = vmatpush.msra.mxu0 %v1781
    %v1783 = vand.u32 %v1154, 4294901760
    %v1784 = vsub.f32 %v1154, %v1783
    %v1785 = vand.u32 %v1784, 4294901760
    %1786 = vmatpush.msra.mxu0 %v1785
    %v1787 = vand.u32 %v1153, 4294901760
    %v1788 = vsub.f32 %v1153, %v1787
    %v1789 = vand.u32 %v1788, 4294901760
    %1790 = vmatpush.msra.mxu0 %v1789
    %v1791 = vand.u32 %v1152, 4294901760
    %v1792 = vsub.f32 %v1152, %v1791
    %v1793 = vand.u32 %v1792, 4294901760
    %1794 = vmatpush.msra.mxu0 %v1793
    %v1795 = vand.u32 %v1151, 4294901760
    %v1796 = vsub.f32 %v1151, %v1795
    %v1797 = vand.u32 %v1796, 4294901760
    %1798 = vmatpush.msra.mxu0 %v1797
    %v1799 = vand.u32 %v1150, 4294901760
    %v1800 = vsub.f32 %v1150, %v1799
    %v1801 = vand.u32 %v1800, 4294901760
    %1802 = vmatpush.msra.mxu0 %v1801
    %v1803 = vand.u32 %v1149, 4294901760
    %v1804 = vsub.f32 %v1149, %v1803
    %v1805 = vand.u32 %v1804, 4294901760
    %1806 = vmatpush.msra.mxu0 %v1805
    %v1807 = vand.u32 %v1148, 4294901760
    %v1808 = vsub.f32 %v1148, %v1807
    %v1809 = vand.u32 %v1808, 4294901760
    %1810 = vmatpush.msra.mxu0 %v1809
    %v1811 = vand.u32 %v1131, 4294901760
    %1812 = vmatmul.f32.gmra.mxu0 %v1811
    %v1813 = vpop.f32.mrf.mxu0
    %v1814 = vadd.f32 %v1745, %v1813
    %1815 = vdwg.mxu0
    %v1816 = vand.u32 %v1163, 4294901760
    %1817 = vmatpush.msra.mxu0 %v1816
    %v1818 = vand.u32 %v1162, 4294901760
    %1819 = vmatpush.msra.mxu0 %v1818
    %v1820 = vand.u32 %v1161, 4294901760
    %1821 = vmatpush.msra.mxu0 %v1820
    %v1822 = vand.u32 %v1160, 4294901760
    %1823 = vmatpush.msra.mxu0 %v1822
    %v1824 = vand.u32 %v1159, 4294901760
    %1825 = vmatpush.msra.mxu0 %v1824
    %v1826 = vand.u32 %v1158, 4294901760
    %1827 = vmatpush.msra.mxu0 %v1826
    %v1828 = vand.u32 %v1157, 4294901760
    %1829 = vmatpush.msra.mxu0 %v1828
    %v1830 = vand.u32 %v1156, 4294901760
    %1831 = vmatpush.msra.mxu0 %v1830
    %v1832 = vand.u32 %v1155, 4294901760
    %1833 = vmatpush.msra.mxu0 %v1832
    %v1834 = vand.u32 %v1154, 4294901760
    %1835 = vmatpush.msra.mxu0 %v1834
    %v1836 = vand.u32 %v1153, 4294901760
    %1837 = vmatpush.msra.mxu0 %v1836
    %v1838 = vand.u32 %v1152, 4294901760
    %1839 = vmatpush.msra.mxu0 %v1838
    %v1840 = vand.u32 %v1151, 4294901760
    %1841 = vmatpush.msra.mxu0 %v1840
    %v1842 = vand.u32 %v1150, 4294901760
    %1843 = vmatpush.msra.mxu0 %v1842
    %v1844 = vand.u32 %v1149, 4294901760
    %1845 = vmatpush.msra.mxu0 %v1844
    %v1846 = vand.u32 %v1148, 4294901760
    %1847 = vmatpush.msra.mxu0 %v1846
    %v1848 = vand.u32 %v1131, 4294901760
    %1849 = vmatmul.f32.gmra.mxu0 %v1848
    %v1850 = vpop.f32.mrf.mxu0
    %v1851 = vadd.f32 %v1814, %v1850
    %1852 = vdwg.mxu0
    %v1853 = vld [vmem:[%s13] sm:$0xff]
    %v1854 = vld [vmem:[%s13 + $0x8] sm:$0xff]
    %v1855 = vld [vmem:[%s13 + $0x10] sm:$0xff]
    %v1856 = vld [vmem:[%s13 + $0x18] sm:$0xff]
    %1858 = vrot.lane.b32.xlu0 %v808, 32
    %v1859 = vpop.permute.xlu0 %1858
    %v1860 = vsel %vm171, %v1859, 0
    %1862 = vmatpush.msra.mxu0 0.0
    %1863 = vmatpush.msra.mxu0 0.0
    %1864 = vmatpush.msra.mxu0 0.0
    %1865 = vmatpush.msra.mxu0 0.0
    %1866 = vmatpush.msra.mxu0 0.0
    %1867 = vmatpush.msra.mxu0 0.0
    %1868 = vmatpush.msra.mxu0 0.0
    %1869 = vmatpush.msra.mxu0 0.0
    %1870 = vmatpush.msra.mxu0 0.0
    %1871 = vmatpush.msra.mxu0 0.0
    %1872 = vmatpush.msra.mxu0 0.0
    %1873 = vmatpush.msra.mxu0 0.0
    %v1874 = vand.u32 %v1856, 4294901760
    %1875 = vmatpush.msra.mxu0 %v1874
    %v1876 = vand.u32 %v1855, 4294901760
    %1877 = vmatpush.msra.mxu0 %v1876
    %v1878 = vand.u32 %v1854, 4294901760
    %1879 = vmatpush.msra.mxu0 %v1878
    %v1880 = vand.u32 %v1853, 4294901760
    %1881 = vmatpush.msra.mxu0 %v1880
    %v1882 = vand.u32 %v1860, 4294901760
    %v1883 = vsub.f32 %v1860, %v1882
    %v1884 = vand.u32 %v1883, 4294901760
    %v1885 = vsub.f32 %v1883, %v1884
    %v1886 = vand.u32 %v1885, 4294901760
    %1887 = vmatmul.f32.gmra.mxu0 %v1886
    %v1888 = vpop.f32.mrf.mxu0
    %v1889 = vadd.f32 0.0, %v1888
    %1890 = vdwg.mxu0
    %1891 = vmatpush.msra.mxu0 0.0
    %1892 = vmatpush.msra.mxu0 0.0
    %1893 = vmatpush.msra.mxu0 0.0
    %1894 = vmatpush.msra.mxu0 0.0
    %1895 = vmatpush.msra.mxu0 0.0
    %1896 = vmatpush.msra.mxu0 0.0
    %1897 = vmatpush.msra.mxu0 0.0
    %1898 = vmatpush.msra.mxu0 0.0
    %1899 = vmatpush.msra.mxu0 0.0
    %1900 = vmatpush.msra.mxu0 0.0
    %1901 = vmatpush.msra.mxu0 0.0
    %1902 = vmatpush.msra.mxu0 0.0
    %v1903 = vand.u32 %v1856, 4294901760
    %v1904 = vsub.f32 %v1856, %v1903
    %v1905 = vand.u32 %v1904, 4294901760
    %v1906 = vsub.f32 %v1904, %v1905
    %v1907 = vand.u32 %v1906, 4294901760
    %1908 = vmatpush.msra.mxu0 %v1907
    %v1909 = vand.u32 %v1855, 4294901760
    %v1910 = vsub.f32 %v1855, %v1909
    %v1911 = vand.u32 %v1910, 4294901760
    %v1912 = vsub.f32 %v1910, %v1911
    %v1913 = vand.u32 %v1912, 4294901760
    %1914 = vmatpush.msra.mxu0 %v1913
    %v1915 = vand.u32 %v1854, 4294901760
    %v1916 = vsub.f32 %v1854, %v1915
    %v1917 = vand.u32 %v1916, 4294901760
    %v1918 = vsub.f32 %v1916, %v1917
    %v1919 = vand.u32 %v1918, 4294901760
    %1920 = vmatpush.msra.mxu0 %v1919
    %v1921 = vand.u32 %v1853, 4294901760
    %v1922 = vsub.f32 %v1853, %v1921
    %v1923 = vand.u32 %v1922, 4294901760
    %v1924 = vsub.f32 %v1922, %v1923
    %v1925 = vand.u32 %v1924, 4294901760
    %1926 = vmatpush.msra.mxu0 %v1925
    %v1927 = vand.u32 %v1860, 4294901760
    %1928 = vmatmul.f32.gmra.mxu0 %v1927
    %v1929 = vpop.f32.mrf.mxu0
    %v1930 = vadd.f32 %v1889, %v1929
    %1931 = vdwg.mxu0
    %1932 = vmatpush.msra.mxu0 0.0
    %1933 = vmatpush.msra.mxu0 0.0
    %1934 = vmatpush.msra.mxu0 0.0
    %1935 = vmatpush.msra.mxu0 0.0
    %1936 = vmatpush.msra.mxu0 0.0
    %1937 = vmatpush.msra.mxu0 0.0
    %1938 = vmatpush.msra.mxu0 0.0
    %1939 = vmatpush.msra.mxu0 0.0
    %1940 = vmatpush.msra.mxu0 0.0
    %1941 = vmatpush.msra.mxu0 0.0
    %1942 = vmatpush.msra.mxu0 0.0
    %1943 = vmatpush.msra.mxu0 0.0
    %v1944 = vand.u32 %v1856, 4294901760
    %v1945 = vsub.f32 %v1856, %v1944
    %1946 = vmatpush.msra.mxu0 %v1945
    %v1947 = vand.u32 %v1855, 4294901760
    %v1948 = vsub.f32 %v1855, %v1947
    %1949 = vmatpush.msra.mxu0 %v1948
    %v1950 = vand.u32 %v1854, 4294901760
    %v1951 = vsub.f32 %v1854, %v1950
    %1952 = vmatpush.msra.mxu0 %v1951
    %v1953 = vand.u32 %v1853, 4294901760
    %v1954 = vsub.f32 %v1853, %v1953
    %1955 = vmatpush.msra.mxu0 %v1954
    %v1956 = vand.u32 %v1860, 4294901760
    %v1957 = vsub.f32 %v1860, %v1956
    %1958 = vmatmul.f32.gmra.mxu0 %v1957
    %v1959 = vpop.f32.mrf.mxu0
    %v1960 = vadd.f32 %v1930, %v1959
    %1961 = vdwg.mxu0
    %1962 = vmatpush.msra.mxu0 0.0
    %1963 = vmatpush.msra.mxu0 0.0
    %1964 = vmatpush.msra.mxu0 0.0
    %1965 = vmatpush.msra.mxu0 0.0
    %1966 = vmatpush.msra.mxu0 0.0
    %1967 = vmatpush.msra.mxu0 0.0
    %1968 = vmatpush.msra.mxu0 0.0
    %1969 = vmatpush.msra.mxu0 0.0
    %1970 = vmatpush.msra.mxu0 0.0
    %1971 = vmatpush.msra.mxu0 0.0
    %1972 = vmatpush.msra.mxu0 0.0
    %1973 = vmatpush.msra.mxu0 0.0
    %v1974 = vand.u32 %v1856, 4294901760
    %1975 = vmatpush.msra.mxu0 %v1974
    %v1976 = vand.u32 %v1855, 4294901760
    %1977 = vmatpush.msra.mxu0 %v1976
    %v1978 = vand.u32 %v1854, 4294901760
    %1979 = vmatpush.msra.mxu0 %v1978
    %v1980 = vand.u32 %v1853, 4294901760
    %1981 = vmatpush.msra.mxu0 %v1980
    %v1982 = vand.u32 %v1860, 4294901760
    %v1983 = vsub.f32 %v1860, %v1982
    %v1984 = vand.u32 %v1983, 4294901760
    %1985 = vmatmul.f32.gmra.mxu0 %v1984
    %v1986 = vpop.f32.mrf.mxu0
    %v1987 = vadd.f32 %v1960, %v1986
    %1988 = vdwg.mxu0
    %1989 = vmatpush.msra.mxu0 0.0
    %1990 = vmatpush.msra.mxu0 0.0
    %1991 = vmatpush.msra.mxu0 0.0
    %1992 = vmatpush.msra.mxu0 0.0
    %1993 = vmatpush.msra.mxu0 0.0
    %1994 = vmatpush.msra.mxu0 0.0
    %1995 = vmatpush.msra.mxu0 0.0
    %1996 = vmatpush.msra.mxu0 0.0
    %1997 = vmatpush.msra.mxu0 0.0
    %1998 = vmatpush.msra.mxu0 0.0
    %1999 = vmatpush.msra.mxu0 0.0
    %2000 = vmatpush.msra.mxu0 0.0
    %v2001 = vand.u32 %v1856, 4294901760
    %v2002 = vsub.f32 %v1856, %v2001
    %v2003 = vand.u32 %v2002, 4294901760
    %2004 = vmatpush.msra.mxu0 %v2003
    %v2005 = vand.u32 %v1855, 4294901760
    %v2006 = vsub.f32 %v1855, %v2005
    %v2007 = vand.u32 %v2006, 4294901760
    %2008 = vmatpush.msra.mxu0 %v2007
    %v2009 = vand.u32 %v1854, 4294901760
    %v2010 = vsub.f32 %v1854, %v2009
    %v2011 = vand.u32 %v2010, 4294901760
    %2012 = vmatpush.msra.mxu0 %v2011
    %v2013 = vand.u32 %v1853, 4294901760
    %v2014 = vsub.f32 %v1853, %v2013
    %v2015 = vand.u32 %v2014, 4294901760
    %2016 = vmatpush.msra.mxu0 %v2015
    %v2017 = vand.u32 %v1860, 4294901760
    %2018 = vmatmul.f32.gmra.mxu0 %v2017
    %v2019 = vpop.f32.mrf.mxu0
    %v2020 = vadd.f32 %v1987, %v2019
    %2021 = vdwg.mxu0
    %2022 = vmatpush.msra.mxu0 0.0
    %2023 = vmatpush.msra.mxu0 0.0
    %2024 = vmatpush.msra.mxu0 0.0
    %2025 = vmatpush.msra.mxu0 0.0
    %2026 = vmatpush.msra.mxu0 0.0
    %2027 = vmatpush.msra.mxu0 0.0
    %2028 = vmatpush.msra.mxu0 0.0
    %2029 = vmatpush.msra.mxu0 0.0
    %2030 = vmatpush.msra.mxu0 0.0
    %2031 = vmatpush.msra.mxu0 0.0
    %2032 = vmatpush.msra.mxu0 0.0
    %2033 = vmatpush.msra.mxu0 0.0
    %v2034 = vand.u32 %v1856, 4294901760
    %2035 = vmatpush.msra.mxu0 %v2034
    %v2036 = vand.u32 %v1855, 4294901760
    %2037 = vmatpush.msra.mxu0 %v2036
    %v2038 = vand.u32 %v1854, 4294901760
    %2039 = vmatpush.msra.mxu0 %v2038
    %v2040 = vand.u32 %v1853, 4294901760
    %2041 = vmatpush.msra.mxu0 %v2040
    %v2042 = vand.u32 %v1860, 4294901760
    %2043 = vmatmul.f32.gmra.mxu0 %v2042
    %v2044 = vpop.f32.mrf.mxu0
    %v2045 = vadd.f32 %v2020, %v2044
    %2046 = vdwg.mxu0
    %2048 = vrot.lane.b32.xlu0 %v2045, 32
    %v2049 = vpop.permute.xlu0 %2048
    %v2051 = vadd.f32 %v616, %v2049
    %v2052 = vtanh.pop %v2051
    %v2053 = vld [vmem:[%s14] sm:$0x1]
    %v2055 = vperm.slane %v2053, 0
    %2056 = vrot.lane.b32.xlu0 %v2055, 32
    %v2057 = vpop.permute.xlu0 %2056
    %v2059 = vmul.f32 %v2052, %v2057
    %2061 = vrot.lane.b32.xlu0 %v2059, 96
    %v2062 = vpop.permute.xlu0 %2061
    %v2064 = vsel %vm171, %v2062, 0.0
    %2065 = vadd.xlane.f32.xlu0 %v2064
    %v2066 = vpop.xlane.xlu0 %2065
    %v2067 = vld [vmem:[#allocation5] sm:$0x1]
    %v2069 = vperm.slane %v2067, 0
    %v2071 = vadd.f32 %v2066, %v2069
    %v2072 = vsel %vm152, %v1851, -inf
    %2073 = vmax.xlane.f32.xlu0 %v2072
    %v2074 = vpop.xlane.xlu0 %2073
    %v2075 = vmax.f32 %v2074, %v2071
    %2077 = vset.pattern.permute.xlu0 0
    %2078 = vperm.xlu0 %2077, %v2075
    %v2079 = vpop.permute.xlu0 %2078
    %v2081 = vsub.f32 %v1851, %v2079
    %v2082 = vmul.f32 %v2081, 1.442695
    %v2083 = vpow.pop %v2082
    %v2084 = vmul.f32 %v2083, %v151
    %v2085 = vsel %vm152, %v2084, 0.0
    %2086 = vadd.xlane.f32.xlu0 %v2085
    %v2087 = vpop.xlane.xlu0 %2086
    %v2088 = vrcp.pop %v2087
    %v2089 = vmul.f32 %v2087, %v2088
    %v2090 = vsub.f32 1.0, %v2089
    %v2091 = vmul.f32 %v2088, %v2090
    %v2092 = vadd.f32 %v2088, %v2091
    %vm2093 = vweird.f32 %v2087
    %vm2094 = vweird.f32 %v2088
    %vm2095 = vmor %vm2093, %vm2094
    %v2096 = vsel %vm2095, %v2088, %v2092
    %v2097 = vand.u32 2147483647, %v2087
    %vm2098 = vcmp.eq.f32.partialorder %v2097, 8.507059e+37
    %v2099 = vand.u32 %v2087, 2147483648
    %v2100 = vor.u32 1.1754944e-38, %v2099
    %v2101 = vsel %vm2098, %v2100, %v2096
    %v2102 = vmul.f32 %v2084, %v2101
    %v2103 = vrcp.pop %v155
    %v2104 = vmul.f32 %v155, %v2103
    %v2105 = vsub.f32 1.0, %v2104
    %v2106 = vmul.f32 %v2103, %v2105
    %v2107 = vadd.f32 %v2103, %v2106
    %vm2108 = vweird.f32 %v155
    %vm2109 = vweird.f32 %v2103
    %vm2110 = vmor %vm2108, %vm2109
    %v2111 = vsel %vm2110, %v2103, %v2107
    %v2112 = vand.u32 2147483647, %v155
    %vm2113 = vcmp.eq.f32.partialorder %v2112, 8.507059e+37
    %v2114 = vand.u32 %v155, 2147483648
    %v2115 = vor.u32 1.1754944e-38, %v2114
    %v2116 = vsel %vm2113, %v2115, %v2111
    %v2117 = vmul.f32 %v2087, %v2116
    %v2118 = vsub.f32 %v2071, %v2075
    %v2119 = vmul.f32 %v2118, 1.442695
    %v2120 = vpow.pop %v2119
    %v2121 = vadd.f32 %v2117, %v2120
    %v2122 = vrcp.pop %v2121
    %v2123 = vmul.f32 %v2121, %v2122
    %v2124 = vsub.f32 1.0, %v2123
    %v2125 = vmul.f32 %v2122, %v2124
    %v2126 = vadd.f32 %v2122, %v2125
    %vm2127 = vweird.f32 %v2121
    %vm2128 = vweird.f32 %v2122
    %vm2129 = vmor %vm2127, %vm2128
    %v2130 = vsel %vm2129, %v2122, %v2126
    %v2131 = vand.u32 2147483647, %v2121
    %vm2132 = vcmp.eq.f32.partialorder %v2131, 8.507059e+37
    %v2133 = vand.u32 %v2121, 2147483648
    %v2134 = vor.u32 1.1754944e-38, %v2133
    %v2135 = vsel %vm2132, %v2134, %v2130
    %v2136 = vmul.f32 %v2120, %v2135
    %v2137 = vadd.f32 %v164, %v2102
    %v2138 = vperm.slane %v2102, 0
    %v2139 = vlaneseq
    %v2140 = vshrl.u32 %v2139, 7
    %2142 = vset.pattern.permute.xlu0 %v2140
    %2143 = vperm.xlu0 %2142, %v2138
    %v2144 = vpop.permute.xlu0 %2143
    %v2145 = vperm.slane %v2102, 1
    %v2146 = vlaneseq
    %v2147 = vshrl.u32 %v2146, 7
    %2149 = vset.pattern.permute.xlu0 %v2147
    %2150 = vperm.xlu0 %2149, %v2145
    %v2151 = vpop.permute.xlu0 %2150
    %v2152 = vperm.slane %v2102, 2
    %v2153 = vlaneseq
    %v2154 = vshrl.u32 %v2153, 7
    %2156 = vset.pattern.permute.xlu0 %v2154
    %2157 = vperm.xlu0 %2156, %v2152
    %v2158 = vpop.permute.xlu0 %2157
    %v2159 = vperm.slane %v2102, 3
    %v2160 = vlaneseq
    %v2161 = vshrl.u32 %v2160, 7
    %2163 = vset.pattern.permute.xlu0 %v2161
    %2164 = vperm.xlu0 %2163, %v2159
    %v2165 = vpop.permute.xlu0 %2164
    %v2166 = vperm.slane %v2102, 4
    %v2167 = vlaneseq
    %v2168 = vshrl.u32 %v2167, 7
    %2170 = vset.pattern.permute.xlu0 %v2168
    %2171 = vperm.xlu0 %2170, %v2166
    %v2172 = vpop.permute.xlu0 %2171
    %v2173 = vperm.slane %v2102, 5
    %v2174 = vlaneseq
    %v2175 = vshrl.u32 %v2174, 7
    %2177 = vset.pattern.permute.xlu0 %v2175
    %2178 = vperm.xlu0 %2177, %v2173
    %v2179 = vpop.permute.xlu0 %2178
    %v2180 = vperm.slane %v2102, 6
    %v2181 = vlaneseq
    %v2182 = vshrl.u32 %v2181, 7
    %2184 = vset.pattern.permute.xlu0 %v2182
    %2185 = vperm.xlu0 %2184, %v2180
    %v2186 = vpop.permute.xlu0 %2185
    %v2187 = vperm.slane %v2102, 7
    %v2188 = vlaneseq
    %v2189 = vshrl.u32 %v2188, 7
    %2191 = vset.pattern.permute.xlu0 %v2189
    %2192 = vperm.xlu0 %2191, %v2187
    %v2193 = vpop.permute.xlu0 %2192
    %v2194 = vmul.f32 %v143, %v2144
    %v2195 = vmul.f32 %v144, %v2151
    %v2196 = vmul.f32 %v145, %v2158
    %v2197 = vmul.f32 %v146, %v2165
    %v2198 = vmul.f32 %v147, %v2172
    %v2199 = vmul.f32 %v148, %v2179
    %v2200 = vmul.f32 %v149, %v2186
    %v2201 = vmul.f32 %v150, %v2193
    %v2202 = vsel %vm171, %v2194, 0.0
    %v2203 = vrot.slane %v2202, 4
    %v2204 = vadd.f32 %v2202, %v2203
    %v2205 = vrot.slane %v2204, 2
    %v2206 = vadd.f32 %v2204, %v2205
    %v2207 = vrot.slane %v2206, 1
    %v2208 = vadd.f32 %v2206, %v2207
    %v2209 = vsel %vm171, %v2195, 0.0
    %v2210 = vrot.slane %v2209, 4
    %v2211 = vadd.f32 %v2209, %v2210
    %v2212 = vrot.slane %v2211, 2
    %v2213 = vadd.f32 %v2211, %v2212
    %v2214 = vrot.slane %v2213, 1
    %v2215 = vadd.f32 %v2213, %v2214
    %v2216 = vsel %vm171, %v2196, 0.0
    %v2217 = vrot.slane %v2216, 4
    %v2218 = vadd.f32 %v2216, %v2217
    %v2219 = vrot.slane %v2218, 2
    %v2220 = vadd.f32 %v2218, %v2219
    %v2221 = vrot.slane %v2220, 1
    %v2222 = vadd.f32 %v2220, %v2221
    %v2223 = vsel %vm171, %v2197, 0.0
    %v2224 = vrot.slane %v2223, 4
    %v2225 = vadd.f32 %v2223, %v2224
    %v2226 = vrot.slane %v2225, 2
    %v2227 = vadd.f32 %v2225, %v2226
    %v2228 = vrot.slane %v2227, 1
    %v2229 = vadd.f32 %v2227, %v2228
    %v2230 = vsel %vm171, %v2198, 0.0
    %v2231 = vrot.slane %v2230, 4
    %v2232 = vadd.f32 %v2230, %v2231
    %v2233 = vrot.slane %v2232, 2
    %v2234 = vadd.f32 %v2232, %v2233
    %v2235 = vrot.slane %v2234, 1
    %v2236 = vadd.f32 %v2234, %v2235
    %v2237 = vsel %vm171, %v2199, 0.0
    %v2238 = vrot.slane %v2237, 4
    %v2239 = vadd.f32 %v2237, %v2238
    %v2240 = vrot.slane %v2239, 2
    %v2241 = vadd.f32 %v2239, %v2240
    %v2242 = vrot.slane %v2241, 1
    %v2243 = vadd.f32 %v2241, %v2242
    %v2244 = vsel %vm171, %v2200, 0.0
    %v2245 = vrot.slane %v2244, 4
    %v2246 = vadd.f32 %v2244, %v2245
    %v2247 = vrot.slane %v2246, 2
    %v2248 = vadd.f32 %v2246, %v2247
    %v2249 = vrot.slane %v2248, 1
    %v2250 = vadd.f32 %v2248, %v2249
    %v2251 = vsel %vm171, %v2201, 0.0
    %v2252 = vrot.slane %v2251, 4
    %v2253 = vadd.f32 %v2251, %v2252
    %v2254 = vrot.slane %v2253, 2
    %v2255 = vadd.f32 %v2253, %v2254
    %v2256 = vrot.slane %v2255, 1
    %v2257 = vadd.f32 %v2255, %v2256
    %2259 = vset.pattern.permute.xlu0 0
    %2260 = vperm.xlu0 %2259, %v2136
    %v2261 = vpop.permute.xlu0 %2260
    %v2263 = vmul.f32 %v2261, %v808
    %v2264 = vsub.f32 1.0, %v2136
    %2266 = vset.pattern.permute.xlu0 0
    %2267 = vperm.xlu0 %2266, %v2264
    %v2268 = vpop.permute.xlu0 %2267
    %vm2278 = vcmask 1041409
    %v2279 = vsel %vm2278, %v2215, %v2208
    %vm2280 = vcmask 1042434
    %v2281 = vsel %vm2280, %v2222, %v2279
    %vm2282 = vcmask 1043459
    %v2283 = vsel %vm2282, %v2229, %v2281
    %vm2284 = vcmask 1044484
    %v2285 = vsel %vm2284, %v2236, %v2283
    %vm2286 = vcmask 1045509
    %v2287 = vsel %vm2286, %v2243, %v2285
    %vm2288 = vcmask 1046534
    %v2289 = vsel %vm2288, %v2250, %v2287
    %vm2290 = vcmask 1047559
    %v2291 = vsel %vm2290, %v2257, %v2289
    %v2293 = vmul.f32 %v2268, %v2291
    %2295 = vrot.lane.b32.xlu0 %v2293, 96
    %v2296 = vpop.permute.xlu0 %2295
    %v2298 = vadd.f32 %v2263, %v2296
    %v2299 = vld [vmem:[#allocation14] sm:$0xff]
    %v2300 = vld [vmem:[#allocation14 + $0x8] sm:$0xff]
    %v2301 = vld [vmem:[#allocation14 + $0x10] sm:$0xff]
    %v2302 = vld [vmem:[#allocation14 + $0x18] sm:$0xff]
    %2304 = vrot.lane.b32.xlu0 %v2298, 32
    %v2305 = vpop.permute.xlu0 %2304
    %v2306 = vsel %vm171, %v2305, 0
    %2308 = vmatpush.msra.mxu0 0.0
    %2309 = vmatpush.msra.mxu0 0.0
    %2310 = vmatpush.msra.mxu0 0.0
    %2311 = vmatpush.msra.mxu0 0.0
    %2312 = vmatpush.msra.mxu0 0.0
    %2313 = vmatpush.msra.mxu0 0.0
    %2314 = vmatpush.msra.mxu0 0.0
    %2315 = vmatpush.msra.mxu0 0.0
    %2316 = vmatpush.msra.mxu0 0.0
    %2317 = vmatpush.msra.mxu0 0.0
    %2318 = vmatpush.msra.mxu0 0.0
    %2319 = vmatpush.msra.mxu0 0.0
    %v2320 = vand.u32 %v2302, 4294901760
    %2321 = vmatpush.msra.mxu0 %v2320
    %v2322 = vand.u32 %v2301, 4294901760
    %2323 = vmatpush.msra.mxu0 %v2322
    %v2324 = vand.u32 %v2300, 4294901760
    %2325 = vmatpush.msra.mxu0 %v2324
    %v2326 = vand.u32 %v2299, 4294901760
    %2327 = vmatpush.msra.mxu0 %v2326
    %v2328 = vand.u32 %v2306, 4294901760
    %v2329 = vsub.f32 %v2306, %v2328
    %v2330 = vand.u32 %v2329, 4294901760
    %v2331 = vsub.f32 %v2329, %v2330
    %v2332 = vand.u32 %v2331, 4294901760
    %2333 = vmatmul.f32.gmra.mxu0 %v2332
    %v2334 = vpop.f32.mrf.mxu0
    %v2335 = vadd.f32 0.0, %v2334
    %2336 = vdwg.mxu0
    %2337 = vmatpush.msra.mxu0 0.0
    %2338 = vmatpush.msra.mxu0 0.0
    %2339 = vmatpush.msra.mxu0 0.0
    %2340 = vmatpush.msra.mxu0 0.0
    %2341 = vmatpush.msra.mxu0 0.0
    %2342 = vmatpush.msra.mxu0 0.0
    %2343 = vmatpush.msra.mxu0 0.0
    %2344 = vmatpush.msra.mxu0 0.0
    %2345 = vmatpush.msra.mxu0 0.0
    %2346 = vmatpush.msra.mxu0 0.0
    %2347 = vmatpush.msra.mxu0 0.0
    %2348 = vmatpush.msra.mxu0 0.0
    %v2349 = vand.u32 %v2302, 4294901760
    %v2350 = vsub.f32 %v2302, %v2349
    %v2351 = vand.u32 %v2350, 4294901760
    %v2352 = vsub.f32 %v2350, %v2351
    %v2353 = vand.u32 %v2352, 4294901760
    %2354 = vmatpush.msra.mxu0 %v2353
    %v2355 = vand.u32 %v2301, 4294901760
    %v2356 = vsub.f32 %v2301, %v2355
    %v2357 = vand.u32 %v2356, 4294901760
    %v2358 = vsub.f32 %v2356, %v2357
    %v2359 = vand.u32 %v2358, 4294901760
    %2360 = vmatpush.msra.mxu0 %v2359
    %v2361 = vand.u32 %v2300, 4294901760
    %v2362 = vsub.f32 %v2300, %v2361
    %v2363 = vand.u32 %v2362, 4294901760
    %v2364 = vsub.f32 %v2362, %v2363
    %v2365 = vand.u32 %v2364, 4294901760
    %2366 = vmatpush.msra.mxu0 %v2365
    %v2367 = vand.u32 %v2299, 4294901760
    %v2368 = vsub.f32 %v2299, %v2367
    %v2369 = vand.u32 %v2368, 4294901760
    %v2370 = vsub.f32 %v2368, %v2369
    %v2371 = vand.u32 %v2370, 4294901760
    %2372 = vmatpush.msra.mxu0 %v2371
    %v2373 = vand.u32 %v2306, 4294901760
    %2374 = vmatmul.f32.gmra.mxu0 %v2373
    %v2375 = vpop.f32.mrf.mxu0
    %v2376 = vadd.f32 %v2335, %v2375
    %2377 = vdwg.mxu0
    %2378 = vmatpush.msra.mxu0 0.0
    %2379 = vmatpush.msra.mxu0 0.0
    %2380 = vmatpush.msra.mxu0 0.0
    %2381 = vmatpush.msra.mxu0 0.0
    %2382 = vmatpush.msra.mxu0 0.0
    %2383 = vmatpush.msra.mxu0 0.0
    %2384 = vmatpush.msra.mxu0 0.0
    %2385 = vmatpush.msra.mxu0 0.0
    %2386 = vmatpush.msra.mxu0 0.0
    %2387 = vmatpush.msra.mxu0 0.0
    %2388 = vmatpush.msra.mxu0 0.0
    %2389 = vmatpush.msra.mxu0 0.0
    %v2390 = vand.u32 %v2302, 4294901760
    %v2391 = vsub.f32 %v2302, %v2390
    %2392 = vmatpush.msra.mxu0 %v2391
    %v2393 = vand.u32 %v2301, 4294901760
    %v2394 = vsub.f32 %v2301, %v2393
    %2395 = vmatpush.msra.mxu0 %v2394
    %v2396 = vand.u32 %v2300, 4294901760
    %v2397 = vsub.f32 %v2300, %v2396
    %2398 = vmatpush.msra.mxu0 %v2397
    %v2399 = vand.u32 %v2299, 4294901760
    %v2400 = vsub.f32 %v2299, %v2399
    %2401 = vmatpush.msra.mxu0 %v2400
    %v2402 = vand.u32 %v2306, 4294901760
    %v2403 = vsub.f32 %v2306, %v2402
    %2404 = vmatmul.f32.gmra.mxu0 %v2403
    %v2405 = vpop.f32.mrf.mxu0
    %v2406 = vadd.f32 %v2376, %v2405
    %2407 = vdwg.mxu0
    %2408 = vmatpush.msra.mxu0 0.0
    %2409 = vmatpush.msra.mxu0 0.0
    %2410 = vmatpush.msra.mxu0 0.0
    %2411 = vmatpush.msra.mxu0 0.0
    %2412 = vmatpush.msra.mxu0 0.0
    %2413 = vmatpush.msra.mxu0 0.0
    %2414 = vmatpush.msra.mxu0 0.0
    %2415 = vmatpush.msra.mxu0 0.0
    %2416 = vmatpush.msra.mxu0 0.0
    %2417 = vmatpush.msra.mxu0 0.0
    %2418 = vmatpush.msra.mxu0 0.0
    %2419 = vmatpush.msra.mxu0 0.0
    %v2420 = vand.u32 %v2302, 4294901760
    %2421 = vmatpush.msra.mxu0 %v2420
    %v2422 = vand.u32 %v2301, 4294901760
    %2423 = vmatpush.msra.mxu0 %v2422
    %v2424 = vand.u32 %v2300, 4294901760
    %2425 = vmatpush.msra.mxu0 %v2424
    %v2426 = vand.u32 %v2299, 4294901760
    %2427 = vmatpush.msra.mxu0 %v2426
    %v2428 = vand.u32 %v2306, 4294901760
    %v2429 = vsub.f32 %v2306, %v2428
    %v2430 = vand.u32 %v2429, 4294901760
    %2431 = vmatmul.f32.gmra.mxu0 %v2430
    %v2432 = vpop.f32.mrf.mxu0
    %v2433 = vadd.f32 %v2406, %v2432
    %2434 = vdwg.mxu0
    %2435 = vmatpush.msra.mxu0 0.0
    %2436 = vmatpush.msra.mxu0 0.0
    %2437 = vmatpush.msra.mxu0 0.0
    %2438 = vmatpush.msra.mxu0 0.0
    %2439 = vmatpush.msra.mxu0 0.0
    %2440 = vmatpush.msra.mxu0 0.0
    %2441 = vmatpush.msra.mxu0 0.0
    %2442 = vmatpush.msra.mxu0 0.0
    %2443 = vmatpush.msra.mxu0 0.0
    %2444 = vmatpush.msra.mxu0 0.0
    %2445 = vmatpush.msra.mxu0 0.0
    %2446 = vmatpush.msra.mxu0 0.0
    %v2447 = vand.u32 %v2302, 4294901760
    %v2448 = vsub.f32 %v2302, %v2447
    %v2449 = vand.u32 %v2448, 4294901760
    %2450 = vmatpush.msra.mxu0 %v2449
    %v2451 = vand.u32 %v2301, 4294901760
    %v2452 = vsub.f32 %v2301, %v2451
    %v2453 = vand.u32 %v2452, 4294901760
    %2454 = vmatpush.msra.mxu0 %v2453
    %v2455 = vand.u32 %v2300, 4294901760
    %v2456 = vsub.f32 %v2300, %v2455
    %v2457 = vand.u32 %v2456, 4294901760
    %2458 = vmatpush.msra.mxu0 %v2457
    %v2459 = vand.u32 %v2299, 4294901760
    %v2460 = vsub.f32 %v2299, %v2459
    %v2461 = vand.u32 %v2460, 4294901760
    %2462 = vmatpush.msra.mxu0 %v2461
    %v2463 = vand.u32 %v2306, 4294901760
    %2464 = vmatmul.f32.gmra.mxu0 %v2463
    %v2465 = vpop.f32.mrf.mxu0
    %v2466 = vadd.f32 %v2433, %v2465
    %2467 = vdwg.mxu0
    %2468 = vmatpush.msra.mxu0 0.0
    %2469 = vmatpush.msra.mxu0 0.0
    %2470 = vmatpush.msra.mxu0 0.0
    %2471 = vmatpush.msra.mxu0 0.0
    %2472 = vmatpush.msra.mxu0 0.0
    %2473 = vmatpush.msra.mxu0 0.0
    %2474 = vmatpush.msra.mxu0 0.0
    %2475 = vmatpush.msra.mxu0 0.0
    %2476 = vmatpush.msra.mxu0 0.0
    %2477 = vmatpush.msra.mxu0 0.0
    %2478 = vmatpush.msra.mxu0 0.0
    %2479 = vmatpush.msra.mxu0 0.0
    %v2480 = vand.u32 %v2302, 4294901760
    %2481 = vmatpush.msra.mxu0 %v2480
    %v2482 = vand.u32 %v2301, 4294901760
    %2483 = vmatpush.msra.mxu0 %v2482
    %v2484 = vand.u32 %v2300, 4294901760
    %2485 = vmatpush.msra.mxu0 %v2484
    %v2486 = vand.u32 %v2299, 4294901760
    %2487 = vmatpush.msra.mxu0 %v2486
    %v2488 = vand.u32 %v2306, 4294901760
    %2489 = vmatmul.f32.gmra.mxu0 %v2488
    %v2490 = vpop.f32.mrf.mxu0
    %v2491 = vadd.f32 %v2466, %v2490
    %2492 = vdwg.mxu0
    %2494 = vrot.lane.b32.xlu0 %v2491, 64
    %v2495 = vpop.permute.xlu0 %2494
    %v2497 = vadd.f32 %v812, %v2495
    %v2498 = vxor.u32 %v2497, 2147483648
    %v2499 = vmul.f32 %v2498, 1.442695
    %v2500 = vpow.pop %v2499
    %v2501 = vadd.f32 %v2500, 1.0
    %v2502 = vrcp.pop %v2501
    %v2503 = vmul.f32 %v2501, %v2502
    %v2504 = vsub.f32 1.0, %v2503
    %v2505 = vmul.f32 %v2502, %v2504
    %v2506 = vadd.f32 %v2502, %v2505
    %vm2507 = vweird.f32 %v2501
    %vm2508 = vweird.f32 %v2502
    %vm2509 = vmor %vm2507, %vm2508
    %v2510 = vsel %vm2509, %v2502, %v2506
    %v2511 = vand.u32 2147483647, %v2501
    %vm2512 = vcmp.eq.f32.partialorder %v2511, 8.507059e+37
    %v2513 = vand.u32 %v2501, 2147483648
    %v2514 = vor.u32 1.1754944e-38, %v2513
    %v2515 = vsel %vm2512, %v2514, %v2510
    %v2516 = vmul.f32 1.0, %v2515
    %2518 = vrot.lane.b32.xlu0 %v813, 64
    %v2519 = vpop.permute.xlu0 %2518
    %v2521 = vmul.f32 %v2516, %v2519
    %v2522 = vadd.f32 %v2491, %v2521
    %v2523 = vtanh.pop %v2522
    %2524 = vrot.lane.b32.xlu0 %v419, 64
    %v2525 = vpop.permute.xlu0 %2524
    %v2527 = vmul.f32 %v2516, %v2525
    %v2528 = vsub.f32 1.0, %v2516
    %2530 = vrot.lane.b32.xlu0 %v2523, 32
    %v2531 = vpop.permute.xlu0 %2530
    %v2533 = vmul.f32 %v2528, %v2531
    %v2534 = vadd.f32 %v2527, %v2533
    %v2535 = vmul.f32 %v405, %v2534
    %v2536 = vmul.f32 %v412, %v419
    %2538 = vrot.lane.b32.xlu0 %v2536, 64
    %v2539 = vpop.permute.xlu0 %2538
    %v2541 = vadd.f32 %v2535, %v2539
    %2543 = vrot.lane.b32.xlu0 %v2541, 32
    %v2544 = vpop.permute.xlu0 %2543
    %2546 = vrot.lane.b32.xlu0 %v2298, 64
    %v2547 = vpop.permute.xlu0 %2546
    %2550 = vrot.lane.b32.xlu0 %v2102, 64
    %v2551 = vpop.permute.xlu0 %2550
    %v2553 = vsel %vm171, %v2544, %v2547
    %v2554 = vsel %vm825, %v2553, %v2551
    %vm2555 = vcmask 588800
    %v2556 = vsel %vm2555, %v2554, 0.0
    %2557 = vst [vmem:[#allocation15] sm:$0xff] %v2556
    %s2558 = scalar_lea.vmem %s0, 16
    %v2559 = vld [vmem:[%s2558] sm:$0xff]
    %v2560 = vld [vmem:[%s2558 + $0x8] sm:$0xff]
    %v2561 = vld [vmem:[%s6] sm:$0xff]
    %v2562 = vld [vmem:[%s6 + $0x8] sm:$0xff]
    %v2563 = vld [vmem:[%s6 + $0x10] sm:$0xff]
    %v2564 = vld [vmem:[%s6 + $0x18] sm:$0xff]
    %v2565 = vsel %vm171, %v2544, 0
    %2567 = vmatpush.msra.mxu0 0.0
    %2568 = vmatpush.msra.mxu0 0.0
    %2569 = vmatpush.msra.mxu0 0.0
    %2570 = vmatpush.msra.mxu0 0.0
    %2571 = vmatpush.msra.mxu0 0.0
    %2572 = vmatpush.msra.mxu0 0.0
    %2573 = vmatpush.msra.mxu0 0.0
    %2574 = vmatpush.msra.mxu0 0.0
    %2575 = vmatpush.msra.mxu0 0.0
    %2576 = vmatpush.msra.mxu0 0.0
    %2577 = vmatpush.msra.mxu0 0.0
    %2578 = vmatpush.msra.mxu0 0.0
    %v2579 = vand.u32 %v2564, 4294901760
    %2580 = vmatpush.msra.mxu0 %v2579
    %v2581 = vand.u32 %v2563, 4294901760
    %2582 = vmatpush.msra.mxu0 %v2581
    %v2583 = vand.u32 %v2562, 4294901760
    %2584 = vmatpush.msra.mxu0 %v2583
    %v2585 = vand.u32 %v2561, 4294901760
    %2586 = vmatpush.msra.mxu0 %v2585
    %v2587 = vand.u32 %v2565, 4294901760
    %v2588 = vsub.f32 %v2565, %v2587
    %v2589 = vand.u32 %v2588, 4294901760
    %v2590 = vsub.f32 %v2588, %v2589
    %v2591 = vand.u32 %v2590, 4294901760
    %2592 = vmatmul.f32.gmra.mxu0 %v2591
    %v2593 = vpop.f32.mrf.mxu0
    %v2594 = vadd.f32 0.0, %v2593
    %2595 = vdwg.mxu0
    %2596 = vmatpush.msra.mxu0 0.0
    %2597 = vmatpush.msra.mxu0 0.0
    %2598 = vmatpush.msra.mxu0 0.0
    %2599 = vmatpush.msra.mxu0 0.0
    %2600 = vmatpush.msra.mxu0 0.0
    %2601 = vmatpush.msra.mxu0 0.0
    %2602 = vmatpush.msra.mxu0 0.0
    %2603 = vmatpush.msra.mxu0 0.0
    %2604 = vmatpush.msra.mxu0 0.0
    %2605 = vmatpush.msra.mxu0 0.0
    %2606 = vmatpush.msra.mxu0 0.0
    %2607 = vmatpush.msra.mxu0 0.0
    %v2608 = vand.u32 %v2564, 4294901760
    %v2609 = vsub.f32 %v2564, %v2608
    %v2610 = vand.u32 %v2609, 4294901760
    %v2611 = vsub.f32 %v2609, %v2610
    %v2612 = vand.u32 %v2611, 4294901760
    %2613 = vmatpush.msra.mxu0 %v2612
    %v2614 = vand.u32 %v2563, 4294901760
    %v2615 = vsub.f32 %v2563, %v2614
    %v2616 = vand.u32 %v2615, 4294901760
    %v2617 = vsub.f32 %v2615, %v2616
    %v2618 = vand.u32 %v2617, 4294901760
    %2619 = vmatpush.msra.mxu0 %v2618
    %v2620 = vand.u32 %v2562, 4294901760
    %v2621 = vsub.f32 %v2562, %v2620
    %v2622 = vand.u32 %v2621, 4294901760
    %v2623 = vsub.f32 %v2621, %v2622
    %v2624 = vand.u32 %v2623, 4294901760
    %2625 = vmatpush.msra.mxu0 %v2624
    %v2626 = vand.u32 %v2561, 4294901760
    %v2627 = vsub.f32 %v2561, %v2626
    %v2628 = vand.u32 %v2627, 4294901760
    %v2629 = vsub.f32 %v2627, %v2628
    %v2630 = vand.u32 %v2629, 4294901760
    %2631 = vmatpush.msra.mxu0 %v2630
    %v2632 = vand.u32 %v2565, 4294901760
    %2633 = vmatmul.f32.gmra.mxu0 %v2632
    %v2634 = vpop.f32.mrf.mxu0
    %v2635 = vadd.f32 %v2594, %v2634
    %2636 = vdwg.mxu0
    %2637 = vmatpush.msra.mxu0 0.0
    %2638 = vmatpush.msra.mxu0 0.0
    %2639 = vmatpush.msra.mxu0 0.0
    %2640 = vmatpush.msra.mxu0 0.0
    %2641 = vmatpush.msra.mxu0 0.0
    %2642 = vmatpush.msra.mxu0 0.0
    %2643 = vmatpush.msra.mxu0 0.0
    %2644 = vmatpush.msra.mxu0 0.0
    %2645 = vmatpush.msra.mxu0 0.0
    %2646 = vmatpush.msra.mxu0 0.0
    %2647 = vmatpush.msra.mxu0 0.0
    %2648 = vmatpush.msra.mxu0 0.0
    %v2649 = vand.u32 %v2564, 4294901760
    %v2650 = vsub.f32 %v2564, %v2649
    %2651 = vmatpush.msra.mxu0 %v2650
    %v2652 = vand.u32 %v2563, 4294901760
    %v2653 = vsub.f32 %v2563, %v2652
    %2654 = vmatpush.msra.mxu0 %v2653
    %v2655 = vand.u32 %v2562, 4294901760
    %v2656 = vsub.f32 %v2562, %v2655
    %2657 = vmatpush.msra.mxu0 %v2656
    %v2658 = vand.u32 %v2561, 4294901760
    %v2659 = vsub.f32 %v2561, %v2658
    %2660 = vmatpush.msra.mxu0 %v2659
    %v2661 = vand.u32 %v2565, 4294901760
    %v2662 = vsub.f32 %v2565, %v2661
    %2663 = vmatmul.f32.gmra.mxu0 %v2662
    %v2664 = vpop.f32.mrf.mxu0
    %v2665 = vadd.f32 %v2635, %v2664
    %2666 = vdwg.mxu0
    %2667 = vmatpush.msra.mxu0 0.0
    %2668 = vmatpush.msra.mxu0 0.0
    %2669 = vmatpush.msra.mxu0 0.0
    %2670 = vmatpush.msra.mxu0 0.0
    %2671 = vmatpush.msra.mxu0 0.0
    %2672 = vmatpush.msra.mxu0 0.0
    %2673 = vmatpush.msra.mxu0 0.0
    %2674 = vmatpush.msra.mxu0 0.0
    %2675 = vmatpush.msra.mxu0 0.0
    %2676 = vmatpush.msra.mxu0 0.0
    %2677 = vmatpush.msra.mxu0 0.0
    %2678 = vmatpush.msra.mxu0 0.0
    %v2679 = vand.u32 %v2564, 4294901760
    %2680 = vmatpush.msra.mxu0 %v2679
    %v2681 = vand.u32 %v2563, 4294901760
    %2682 = vmatpush.msra.mxu0 %v2681
    %v2683 = vand.u32 %v2562, 4294901760
    %2684 = vmatpush.msra.mxu0 %v2683
    %v2685 = vand.u32 %v2561, 4294901760
    %2686 = vmatpush.msra.mxu0 %v2685
    %v2687 = vand.u32 %v2565, 4294901760
    %v2688 = vsub.f32 %v2565, %v2687
    %v2689 = vand.u32 %v2688, 4294901760
    %2690 = vmatmul.f32.gmra.mxu0 %v2689
    %v2691 = vpop.f32.mrf.mxu0
    %v2692 = vadd.f32 %v2665, %v2691
    %2693 = vdwg.mxu0
    %2694 = vmatpush.msra.mxu0 0.0
    %2695 = vmatpush.msra.mxu0 0.0
    %2696 = vmatpush.msra.mxu0 0.0
    %2697 = vmatpush.msra.mxu0 0.0
    %2698 = vmatpush.msra.mxu0 0.0
    %2699 = vmatpush.msra.mxu0 0.0
    %2700 = vmatpush.msra.mxu0 0.0
    %2701 = vmatpush.msra.mxu0 0.0
    %2702 = vmatpush.msra.mxu0 0.0
    %2703 = vmatpush.msra.mxu0 0.0
    %2704 = vmatpush.msra.mxu0 0.0
    %2705 = vmatpush.msra.mxu0 0.0
    %v2706 = vand.u32 %v2564, 4294901760
    %v2707 = vsub.f32 %v2564, %v2706
    %v2708 = vand.u32 %v2707, 4294901760
    %2709 = vmatpush.msra.mxu0 %v2708
    %v2710 = vand.u32 %v2563, 4294901760
    %v2711 = vsub.f32 %v2563, %v2710
    %v2712 = vand.u32 %v2711, 4294901760
    %2713 = vmatpush.msra.mxu0 %v2712
    %v2714 = vand.u32 %v2562, 4294901760
    %v2715 = vsub.f32 %v2562, %v2714
    %v2716 = vand.u32 %v2715, 4294901760
    %2717 = vmatpush.msra.mxu0 %v2716
    %v2718 = vand.u32 %v2561, 4294901760
    %v2719 = vsub.f32 %v2561, %v2718
    %v2720 = vand.u32 %v2719, 4294901760
    %2721 = vmatpush.msra.mxu0 %v2720
    %v2722 = vand.u32 %v2565, 4294901760
    %2723 = vmatmul.f32.gmra.mxu0 %v2722
    %v2724 = vpop.f32.mrf.mxu0
    %v2725 = vadd.f32 %v2692, %v2724
    %2726 = vdwg.mxu0
    %2727 = vmatpush.msra.mxu0 0.0
    %2728 = vmatpush.msra.mxu0 0.0
    %2729 = vmatpush.msra.mxu0 0.0
    %2730 = vmatpush.msra.mxu0 0.0
    %2731 = vmatpush.msra.mxu0 0.0
    %2732 = vmatpush.msra.mxu0 0.0
    %2733 = vmatpush.msra.mxu0 0.0
    %2734 = vmatpush.msra.mxu0 0.0
    %2735 = vmatpush.msra.mxu0 0.0
    %2736 = vmatpush.msra.mxu0 0.0
    %2737 = vmatpush.msra.mxu0 0.0
    %2738 = vmatpush.msra.mxu0 0.0
    %v2739 = vand.u32 %v2564, 4294901760
    %2740 = vmatpush.msra.mxu0 %v2739
    %v2741 = vand.u32 %v2563, 4294901760
    %2742 = vmatpush.msra.mxu0 %v2741
    %v2743 = vand.u32 %v2562, 4294901760
    %2744 = vmatpush.msra.mxu0 %v2743
    %v2745 = vand.u32 %v2561, 4294901760
    %2746 = vmatpush.msra.mxu0 %v2745
    %v2747 = vand.u32 %v2565, 4294901760
    %2748 = vmatmul.f32.gmra.mxu0 %v2747
    %v2749 = vpop.f32.mrf.mxu0
    %v2750 = vadd.f32 %v2725, %v2749
    %2751 = vdwg.mxu0
    %v2752 = vadd.f32 %v2750, %v2559
    %v2753 = vxor.u32 %v2752, 2147483648
    %v2754 = vmul.f32 %v2753, 1.442695
    %v2755 = vpow.pop %v2754
    %v2756 = vadd.f32 %v2755, 1.0
    %v2757 = vrcp.pop %v2756
    %v2758 = vmul.f32 %v2756, %v2757
    %v2759 = vsub.f32 1.0, %v2758
    %v2760 = vmul.f32 %v2757, %v2759
    %v2761 = vadd.f32 %v2757, %v2760
    %vm2762 = vweird.f32 %v2756
    %vm2763 = vweird.f32 %v2757
    %vm2764 = vmor %vm2762, %vm2763
    %v2765 = vsel %vm2764, %v2757, %v2761
    %v2766 = vand.u32 2147483647, %v2756
    %vm2767 = vcmp.eq.f32.partialorder %v2766, 8.507059e+37
    %v2768 = vand.u32 %v2756, 2147483648
    %v2769 = vor.u32 1.1754944e-38, %v2768
    %v2770 = vsel %vm2767, %v2769, %v2765
    %v2771 = vmul.f32 1.0, %v2770
    %2773 = vrot.lane.b32.xlu0 %v2750, 64
    %v2774 = vpop.permute.xlu0 %2773
    %v2776 = vmul.f32 %v2771, %v2774
    %2778 = vrot.lane.b32.xlu0 %v2559, 64
    %v2779 = vpop.permute.xlu0 %2778
    %v2781 = vadd.f32 %v2776, %v2779
    %v2782 = vtanh.pop %v2781
    %2783 = vrot.lane.b32.xlu0 %v2541, 64
    %v2784 = vpop.permute.xlu0 %2783
    %v2786 = vmul.f32 %v2771, %v2784
    %v2787 = vsub.f32 1.0, %v2771
    %2789 = vrot.lane.b32.xlu0 %v2782, 32
    %v2790 = vpop.permute.xlu0 %2789
    %v2792 = vmul.f32 %v2787, %v2790
    %v2793 = vadd.f32 %v2786, %v2792
    %2795 = vset.pattern.permute.xlu0 0
    %2796 = vperm.xlu0 %2795, %v2560
    %v2797 = vpop.permute.xlu0 %2796
    %v2799 = vmul.f32 %v2797, %v2793
    %v2800 = vsub.f32 1.0, %v2560
    %2802 = vset.pattern.permute.xlu0 0
    %2803 = vperm.xlu0 %2802, %v2800
    %v2804 = vpop.permute.xlu0 %2803
    %v2806 = vmul.f32 %v2804, %v2541
    %2808 = vrot.lane.b32.xlu0 %v2806, 64
    %v2809 = vpop.permute.xlu0 %2808
    %v2811 = vadd.f32 %v2799, %v2809
    %v2812 = vld [vmem:[%s7] sm:$0xff]
    %v2813 = vld [vmem:[%s7 + $0x8] sm:$0xff]
    %v2814 = vld [vmem:[%s7 + $0x10] sm:$0xff]
    %v2815 = vld [vmem:[%s7 + $0x18] sm:$0xff]
    %v2816 = vld [vmem:[%s7 + $0x20] sm:$0xff]
    %v2817 = vld [vmem:[%s7 + $0x28] sm:$0xff]
    %v2818 = vld [vmem:[%s7 + $0x30] sm:$0xff]
    %v2819 = vld [vmem:[%s7 + $0x38] sm:$0xff]
    %2821 = vrot.lane.b32.xlu0 %v2811, 96
    %v2822 = vpop.permute.xlu0 %2821
    %v2823 = vsel %vm171, %v2822, 0
    %2825 = vmatpush.msra.mxu0 0.0
    %2826 = vmatpush.msra.mxu0 0.0
    %2827 = vmatpush.msra.mxu0 0.0
    %2828 = vmatpush.msra.mxu0 0.0
    %2829 = vmatpush.msra.mxu0 0.0
    %2830 = vmatpush.msra.mxu0 0.0
    %2831 = vmatpush.msra.mxu0 0.0
    %2832 = vmatpush.msra.mxu0 0.0
    %2833 = vmatpush.msra.mxu0 0.0
    %2834 = vmatpush.msra.mxu0 0.0
    %2835 = vmatpush.msra.mxu0 0.0
    %2836 = vmatpush.msra.mxu0 0.0
    %v2837 = vand.u32 %v2818, 4294901760
    %2838 = vmatpush.msra.mxu0 %v2837
    %v2839 = vand.u32 %v2816, 4294901760
    %2840 = vmatpush.msra.mxu0 %v2839
    %v2841 = vand.u32 %v2814, 4294901760
    %2842 = vmatpush.msra.mxu0 %v2841
    %v2843 = vand.u32 %v2812, 4294901760
    %2844 = vmatpush.msra.mxu0 %v2843
    %v2845 = vand.u32 %v2823, 4294901760
    %v2846 = vsub.f32 %v2823, %v2845
    %v2847 = vand.u32 %v2846, 4294901760
    %v2848 = vsub.f32 %v2846, %v2847
    %v2849 = vand.u32 %v2848, 4294901760
    %2850 = vmatmul.f32.gmra.mxu0 %v2849
    %v2851 = vpop.f32.mrf.mxu0
    %v2852 = vadd.f32 0.0, %v2851
    %2853 = vdwg.mxu0
    %2854 = vmatpush.msra.mxu0 0.0
    %2855 = vmatpush.msra.mxu0 0.0
    %2856 = vmatpush.msra.mxu0 0.0
    %2857 = vmatpush.msra.mxu0 0.0
    %2858 = vmatpush.msra.mxu0 0.0
    %2859 = vmatpush.msra.mxu0 0.0
    %2860 = vmatpush.msra.mxu0 0.0
    %2861 = vmatpush.msra.mxu0 0.0
    %2862 = vmatpush.msra.mxu0 0.0
    %2863 = vmatpush.msra.mxu0 0.0
    %2864 = vmatpush.msra.mxu0 0.0
    %2865 = vmatpush.msra.mxu0 0.0
    %v2866 = vand.u32 %v2818, 4294901760
    %v2867 = vsub.f32 %v2818, %v2866
    %v2868 = vand.u32 %v2867, 4294901760
    %v2869 = vsub.f32 %v2867, %v2868
    %v2870 = vand.u32 %v2869, 4294901760
    %2871 = vmatpush.msra.mxu0 %v2870
    %v2872 = vand.u32 %v2816, 4294901760
    %v2873 = vsub.f32 %v2816, %v2872
    %v2874 = vand.u32 %v2873, 4294901760
    %v2875 = vsub.f32 %v2873, %v2874
    %v2876 = vand.u32 %v2875, 4294901760
    %2877 = vmatpush.msra.mxu0 %v2876
    %v2878 = vand.u32 %v2814, 4294901760
    %v2879 = vsub.f32 %v2814, %v2878
    %v2880 = vand.u32 %v2879, 4294901760
    %v2881 = vsub.f32 %v2879, %v2880
    %v2882 = vand.u32 %v2881, 4294901760
    %2883 = vmatpush.msra.mxu0 %v2882
    %v2884 = vand.u32 %v2812, 4294901760
    %v2885 = vsub.f32 %v2812, %v2884
    %v2886 = vand.u32 %v2885, 4294901760
    %v2887 = vsub.f32 %v2885, %v2886
    %v2888 = vand.u32 %v2887, 4294901760
    %2889 = vmatpush.msra.mxu0 %v2888
    %v2890 = vand.u32 %v2823, 4294901760
    %2891 = vmatmul.f32.gmra.mxu0 %v2890
    %v2892 = vpop.f32.mrf.mxu0
    %v2893 = vadd.f32 %v2852, %v2892
    %2894 = vdwg.mxu0
    %2895 = vmatpush.msra.mxu0 0.0
    %2896 = vmatpush.msra.mxu0 0.0
    %2897 = vmatpush.msra.mxu0 0.0
    %2898 = vmatpush.msra.mxu0 0.0
    %2899 = vmatpush.msra.mxu0 0.0
    %2900 = vmatpush.msra.mxu0 0.0
    %2901 = vmatpush.msra.mxu0 0.0
    %2902 = vmatpush.msra.mxu0 0.0
    %2903 = vmatpush.msra.mxu0 0.0
    %2904 = vmatpush.msra.mxu0 0.0
    %2905 = vmatpush.msra.mxu0 0.0
    %2906 = vmatpush.msra.mxu0 0.0
    %v2907 = vand.u32 %v2818, 4294901760
    %v2908 = vsub.f32 %v2818, %v2907
    %2909 = vmatpush.msra.mxu0 %v2908
    %v2910 = vand.u32 %v2816, 4294901760
    %v2911 = vsub.f32 %v2816, %v2910
    %2912 = vmatpush.msra.mxu0 %v2911
    %v2913 = vand.u32 %v2814, 4294901760
    %v2914 = vsub.f32 %v2814, %v2913
    %2915 = vmatpush.msra.mxu0 %v2914
    %v2916 = vand.u32 %v2812, 4294901760
    %v2917 = vsub.f32 %v2812, %v2916
    %2918 = vmatpush.msra.mxu0 %v2917
    %v2919 = vand.u32 %v2823, 4294901760
    %v2920 = vsub.f32 %v2823, %v2919
    %2921 = vmatmul.f32.gmra.mxu0 %v2920
    %v2922 = vpop.f32.mrf.mxu0
    %v2923 = vadd.f32 %v2893, %v2922
    %2924 = vdwg.mxu0
    %2925 = vmatpush.msra.mxu0 0.0
    %2926 = vmatpush.msra.mxu0 0.0
    %2927 = vmatpush.msra.mxu0 0.0
    %2928 = vmatpush.msra.mxu0 0.0
    %2929 = vmatpush.msra.mxu0 0.0
    %2930 = vmatpush.msra.mxu0 0.0
    %2931 = vmatpush.msra.mxu0 0.0
    %2932 = vmatpush.msra.mxu0 0.0
    %2933 = vmatpush.msra.mxu0 0.0
    %2934 = vmatpush.msra.mxu0 0.0
    %2935 = vmatpush.msra.mxu0 0.0
    %2936 = vmatpush.msra.mxu0 0.0
    %v2937 = vand.u32 %v2818, 4294901760
    %2938 = vmatpush.msra.mxu0 %v2937
    %v2939 = vand.u32 %v2816, 4294901760
    %2940 = vmatpush.msra.mxu0 %v2939
    %v2941 = vand.u32 %v2814, 4294901760
    %2942 = vmatpush.msra.mxu0 %v2941
    %v2943 = vand.u32 %v2812, 4294901760
    %2944 = vmatpush.msra.mxu0 %v2943
    %v2945 = vand.u32 %v2823, 4294901760
    %v2946 = vsub.f32 %v2823, %v2945
    %v2947 = vand.u32 %v2946, 4294901760
    %2948 = vmatmul.f32.gmra.mxu0 %v2947
    %v2949 = vpop.f32.mrf.mxu0
    %v2950 = vadd.f32 %v2923, %v2949
    %2951 = vdwg.mxu0
    %2952 = vmatpush.msra.mxu0 0.0
    %2953 = vmatpush.msra.mxu0 0.0
    %2954 = vmatpush.msra.mxu0 0.0
    %2955 = vmatpush.msra.mxu0 0.0
    %2956 = vmatpush.msra.mxu0 0.0
    %2957 = vmatpush.msra.mxu0 0.0
    %2958 = vmatpush.msra.mxu0 0.0
    %2959 = vmatpush.msra.mxu0 0.0
    %2960 = vmatpush.msra.mxu0 0.0
    %2961 = vmatpush.msra.mxu0 0.0
    %2962 = vmatpush.msra.mxu0 0.0
    %2963 = vmatpush.msra.mxu0 0.0
    %v2964 = vand.u32 %v2818, 4294901760
    %v2965 = vsub.f32 %v2818, %v2964
    %v2966 = vand.u32 %v2965, 4294901760
    %2967 = vmatpush.msra.mxu0 %v2966
    %v2968 = vand.u32 %v2816, 4294901760
    %v2969 = vsub.f32 %v2816, %v2968
    %v2970 = vand.u32 %v2969, 4294901760
    %2971 = vmatpush.msra.mxu0 %v2970
    %v2972 = vand.u32 %v2814, 4294901760
    %v2973 = vsub.f32 %v2814, %v2972
    %v2974 = vand.u32 %v2973, 4294901760
    %2975 = vmatpush.msra.mxu0 %v2974
    %v2976 = vand.u32 %v2812, 4294901760
    %v2977 = vsub.f32 %v2812, %v2976
    %v2978 = vand.u32 %v2977, 4294901760
    %2979 = vmatpush.msra.mxu0 %v2978
    %v2980 = vand.u32 %v2823, 4294901760
    %2981 = vmatmul.f32.gmra.mxu0 %v2980
    %v2982 = vpop.f32.mrf.mxu0
    %v2983 = vadd.f32 %v2950, %v2982
    %2984 = vdwg.mxu0
    %2985 = vmatpush.msra.mxu0 0.0
    %2986 = vmatpush.msra.mxu0 0.0
    %2987 = vmatpush.msra.mxu0 0.0
    %2988 = vmatpush.msra.mxu0 0.0
    %2989 = vmatpush.msra.mxu0 0.0
    %2990 = vmatpush.msra.mxu0 0.0
    %2991 = vmatpush.msra.mxu0 0.0
    %2992 = vmatpush.msra.mxu0 0.0
    %2993 = vmatpush.msra.mxu0 0.0
    %2994 = vmatpush.msra.mxu0 0.0
    %2995 = vmatpush.msra.mxu0 0.0
    %2996 = vmatpush.msra.mxu0 0.0
    %v2997 = vand.u32 %v2818, 4294901760
    %2998 = vmatpush.msra.mxu0 %v2997
    %v2999 = vand.u32 %v2816, 4294901760
    %3000 = vmatpush.msra.mxu0 %v2999
    %v3001 = vand.u32 %v2814, 4294901760
    %3002 = vmatpush.msra.mxu0 %v3001
    %v3003 = vand.u32 %v2812, 4294901760
    %3004 = vmatpush.msra.mxu0 %v3003
    %v3005 = vand.u32 %v2823, 4294901760
    %3006 = vmatmul.f32.gmra.mxu0 %v3005
    %v3007 = vpop.f32.mrf.mxu0
    %v3008 = vadd.f32 %v2983, %v3007
    %3009 = vdwg.mxu0
    %3010 = vmatpush.msra.mxu0 0.0
    %3011 = vmatpush.msra.mxu0 0.0
    %3012 = vmatpush.msra.mxu0 0.0
    %3013 = vmatpush.msra.mxu0 0.0
    %3014 = vmatpush.msra.mxu0 0.0
    %3015 = vmatpush.msra.mxu0 0.0
    %3016 = vmatpush.msra.mxu0 0.0
    %3017 = vmatpush.msra.mxu0 0.0
    %3018 = vmatpush.msra.mxu0 0.0
    %3019 = vmatpush.msra.mxu0 0.0
    %3020 = vmatpush.msra.mxu0 0.0
    %3021 = vmatpush.msra.mxu0 0.0
    %v3022 = vand.u32 %v2819, 4294901760
    %3023 = vmatpush.msra.mxu0 %v3022
    %v3024 = vand.u32 %v2817, 4294901760
    %3025 = vmatpush.msra.mxu0 %v3024
    %v3026 = vand.u32 %v2815, 4294901760
    %3027 = vmatpush.msra.mxu0 %v3026
    %v3028 = vand.u32 %v2813, 4294901760
    %3029 = vmatpush.msra.mxu0 %v3028
    %v3030 = vand.u32 %v2823, 4294901760
    %v3031 = vsub.f32 %v2823, %v3030
    %v3032 = vand.u32 %v3031, 4294901760
    %v3033 = vsub.f32 %v3031, %v3032
    %v3034 = vand.u32 %v3033, 4294901760
    %3035 = vmatmul.f32.gmra.mxu0 %v3034
    %v3036 = vpop.f32.mrf.mxu0
    %v3037 = vadd.f32 0.0, %v3036
    %3038 = vdwg.mxu0
    %3039 = vmatpush.msra.mxu0 0.0
    %3040 = vmatpush.msra.mxu0 0.0
    %3041 = vmatpush.msra.mxu0 0.0
    %3042 = vmatpush.msra.mxu0 0.0
    %3043 = vmatpush.msra.mxu0 0.0
    %3044 = vmatpush.msra.mxu0 0.0
    %3045 = vmatpush.msra.mxu0 0.0
    %3046 = vmatpush.msra.mxu0 0.0
    %3047 = vmatpush.msra.mxu0 0.0
    %3048 = vmatpush.msra.mxu0 0.0
    %3049 = vmatpush.msra.mxu0 0.0
    %3050 = vmatpush.msra.mxu0 0.0
    %v3051 = vand.u32 %v2819, 4294901760
    %v3052 = vsub.f32 %v2819, %v3051
    %v3053 = vand.u32 %v3052, 4294901760
    %v3054 = vsub.f32 %v3052, %v3053
    %v3055 = vand.u32 %v3054, 4294901760
    %3056 = vmatpush.msra.mxu0 %v3055
    %v3057 = vand.u32 %v2817, 4294901760
    %v3058 = vsub.f32 %v2817, %v3057
    %v3059 = vand.u32 %v3058, 4294901760
    %v3060 = vsub.f32 %v3058, %v3059
    %v3061 = vand.u32 %v3060, 4294901760
    %3062 = vmatpush.msra.mxu0 %v3061
    %v3063 = vand.u32 %v2815, 4294901760
    %v3064 = vsub.f32 %v2815, %v3063
    %v3065 = vand.u32 %v3064, 4294901760
    %v3066 = vsub.f32 %v3064, %v3065
    %v3067 = vand.u32 %v3066, 4294901760
    %3068 = vmatpush.msra.mxu0 %v3067
    %v3069 = vand.u32 %v2813, 4294901760
    %v3070 = vsub.f32 %v2813, %v3069
    %v3071 = vand.u32 %v3070, 4294901760
    %v3072 = vsub.f32 %v3070, %v3071
    %v3073 = vand.u32 %v3072, 4294901760
    %3074 = vmatpush.msra.mxu0 %v3073
    %v3075 = vand.u32 %v2823, 4294901760
    %3076 = vmatmul.f32.gmra.mxu0 %v3075
    %v3077 = vpop.f32.mrf.mxu0
    %v3078 = vadd.f32 %v3037, %v3077
    %3079 = vdwg.mxu0
    %3080 = vmatpush.msra.mxu0 0.0
    %3081 = vmatpush.msra.mxu0 0.0
    %3082 = vmatpush.msra.mxu0 0.0
    %3083 = vmatpush.msra.mxu0 0.0
    %3084 = vmatpush.msra.mxu0 0.0
    %3085 = vmatpush.msra.mxu0 0.0
    %3086 = vmatpush.msra.mxu0 0.0
    %3087 = vmatpush.msra.mxu0 0.0
    %3088 = vmatpush.msra.mxu0 0.0
    %3089 = vmatpush.msra.mxu0 0.0
    %3090 = vmatpush.msra.mxu0 0.0
    %3091 = vmatpush.msra.mxu0 0.0
    %v3092 = vand.u32 %v2819, 4294901760
    %v3093 = vsub.f32 %v2819, %v3092
    %3094 = vmatpush.msra.mxu0 %v3093
    %v3095 = vand.u32 %v2817, 4294901760
    %v3096 = vsub.f32 %v2817, %v3095
    %3097 = vmatpush.msra.mxu0 %v3096
    %v3098 = vand.u32 %v2815, 4294901760
    %v3099 = vsub.f32 %v2815, %v3098
    %3100 = vmatpush.msra.mxu0 %v3099
    %v3101 = vand.u32 %v2813, 4294901760
    %v3102 = vsub.f32 %v2813, %v3101
    %3103 = vmatpush.msra.mxu0 %v3102
    %v3104 = vand.u32 %v2823, 4294901760
    %v3105 = vsub.f32 %v2823, %v3104
    %3106 = vmatmul.f32.gmra.mxu0 %v3105
    %v3107 = vpop.f32.mrf.mxu0
    %v3108 = vadd.f32 %v3078, %v3107
    %3109 = vdwg.mxu0
    %3110 = vmatpush.msra.mxu0 0.0
    %3111 = vmatpush.msra.mxu0 0.0
    %3112 = vmatpush.msra.mxu0 0.0
    %3113 = vmatpush.msra.mxu0 0.0
    %3114 = vmatpush.msra.mxu0 0.0
    %3115 = vmatpush.msra.mxu0 0.0
    %3116 = vmatpush.msra.mxu0 0.0
    %3117 = vmatpush.msra.mxu0 0.0
    %3118 = vmatpush.msra.mxu0 0.0
    %3119 = vmatpush.msra.mxu0 0.0
    %3120 = vmatpush.msra.mxu0 0.0
    %3121 = vmatpush.msra.mxu0 0.0
    %v3122 = vand.u32 %v2819, 4294901760
    %3123 = vmatpush.msra.mxu0 %v3122
    %v3124 = vand.u32 %v2817, 4294901760
    %3125 = vmatpush.msra.mxu0 %v3124
    %v3126 = vand.u32 %v2815, 4294901760
    %3127 = vmatpush.msra.mxu0 %v3126
    %v3128 = vand.u32 %v2813, 4294901760
    %3129 = vmatpush.msra.mxu0 %v3128
    %v3130 = vand.u32 %v2823, 4294901760
    %v3131 = vsub.f32 %v2823, %v3130
    %v3132 = vand.u32 %v3131, 4294901760
    %3133 = vmatmul.f32.gmra.mxu0 %v3132
    %v3134 = vpop.f32.mrf.mxu0
    %v3135 = vadd.f32 %v3108, %v3134
    %3136 = vdwg.mxu0
    %3137 = vmatpush.msra.mxu0 0.0
    %3138 = vmatpush.msra.mxu0 0.0
    %3139 = vmatpush.msra.mxu0 0.0
    %3140 = vmatpush.msra.mxu0 0.0
    %3141 = vmatpush.msra.mxu0 0.0
    %3142 = vmatpush.msra.mxu0 0.0
    %3143 = vmatpush.msra.mxu0 0.0
    %3144 = vmatpush.msra.mxu0 0.0
    %3145 = vmatpush.msra.mxu0 0.0
    %3146 = vmatpush.msra.mxu0 0.0
    %3147 = vmatpush.msra.mxu0 0.0
    %3148 = vmatpush.msra.mxu0 0.0
    %v3149 = vand.u32 %v2819, 4294901760
    %v3150 = vsub.f32 %v2819, %v3149
    %v3151 = vand.u32 %v3150, 4294901760
    %3152 = vmatpush.msra.mxu0 %v3151
    %v3153 = vand.u32 %v2817, 4294901760
    %v3154 = vsub.f32 %v2817, %v3153
    %v3155 = vand.u32 %v3154, 4294901760
    %3156 = vmatpush.msra.mxu0 %v3155
    %v3157 = vand.u32 %v2815, 4294901760
    %v3158 = vsub.f32 %v2815, %v3157
    %v3159 = vand.u32 %v3158, 4294901760
    %3160 = vmatpush.msra.mxu0 %v3159
    %v3161 = vand.u32 %v2813, 4294901760
    %v3162 = vsub.f32 %v2813, %v3161
    %v3163 = vand.u32 %v3162, 4294901760
    %3164 = vmatpush.msra.mxu0 %v3163
    %v3165 = vand.u32 %v2823, 4294901760
    %3166 = vmatmul.f32.gmra.mxu0 %v3165
    %v3167 = vpop.f32.mrf.mxu0
    %v3168 = vadd.f32 %v3135, %v3167
    %3169 = vdwg.mxu0
    %3170 = vmatpush.msra.mxu0 0.0
    %3171 = vmatpush.msra.mxu0 0.0
    %3172 = vmatpush.msra.mxu0 0.0
    %3173 = vmatpush.msra.mxu0 0.0
    %3174 = vmatpush.msra.mxu0 0.0
    %3175 = vmatpush.msra.mxu0 0.0
    %3176 = vmatpush.msra.mxu0 0.0
    %3177 = vmatpush.msra.mxu0 0.0
    %3178 = vmatpush.msra.mxu0 0.0
    %3179 = vmatpush.msra.mxu0 0.0
    %3180 = vmatpush.msra.mxu0 0.0
    %3181 = vmatpush.msra.mxu0 0.0
    %v3182 = vand.u32 %v2819, 4294901760
    %3183 = vmatpush.msra.mxu0 %v3182
    %v3184 = vand.u32 %v2817, 4294901760
    %3185 = vmatpush.msra.mxu0 %v3184
    %v3186 = vand.u32 %v2815, 4294901760
    %3187 = vmatpush.msra.mxu0 %v3186
    %v3188 = vand.u32 %v2813, 4294901760
    %3189 = vmatpush.msra.mxu0 %v3188
    %v3190 = vand.u32 %v2823, 4294901760
    %3191 = vmatmul.f32.gmra.mxu0 %v3190
    %v3192 = vpop.f32.mrf.mxu0
    %v3193 = vadd.f32 %v3168, %v3192
    %3194 = vdwg.mxu0
    %v3195 = vtanh.pop %v3008
    %3197 = vrot.lane.b32.xlu0 %v3195, 96
    %v3198 = vpop.permute.xlu0 %3197
    %v3200 = vmul.f32 %v2771, %v3198
    %v3201 = vadd.f32 %v3008, %v810
    %v3202 = vadd.f32 %v3193, %v161
    %3204 = vrot.lane.b32.xlu0 %v3008, 96
    %v3205 = vpop.permute.xlu0 %3204
    %3207 = vrot.lane.b32.xlu0 %v3008, 32
    %v3208 = vpop.permute.xlu0 %3207
    %3210 = vrot.lane.b32.xlu0 %v3008, 64
    %v3211 = vpop.permute.xlu0 %3210
    %v3213 = vsel %vm171, %v3205, %v3008
    %v3214 = vsel %vm825, %v3213, %v3208
    %v3215 = vsel %vm827, %v3214, %v3211
    %v3216 = vld [vmem:[#allocation12] sm:$0xff]
    %v3217 = vld [vmem:[#allocation12 + $0x8] sm:$0xff]
    %v3219 = vsel %vm152, %v2137, 0
    %3221 = vmatpush.msra.mxu0 0.0
    %3222 = vmatpush.msra.mxu0 0.0
    %3223 = vmatpush.msra.mxu0 0.0
    %3224 = vmatpush.msra.mxu0 0.0
    %3225 = vmatpush.msra.mxu0 0.0
    %3226 = vmatpush.msra.mxu0 0.0
    %3227 = vmatpush.msra.mxu0 0.0
    %3228 = vmatpush.msra.mxu0 0.0
    %3229 = vmatpush.msra.mxu0 0.0
    %3230 = vmatpush.msra.mxu0 0.0
    %3231 = vmatpush.msra.mxu0 0.0
    %3232 = vmatpush.msra.mxu0 0.0
    %3233 = vmatpush.msra.mxu0 0.0
    %3234 = vmatpush.msra.mxu0 0.0
    %3235 = vmatpush.msra.mxu0 0.0
    %v3236 = vand.u32 %v3216, 4294901760
    %3237 = vmatpush.msra.mxu0 %v3236
    %v3238 = vand.u32 %v3219, 4294901760
    %v3239 = vsub.f32 %v3219, %v3238
    %v3240 = vand.u32 %v3239, 4294901760
    %v3241 = vsub.f32 %v3239, %v3240
    %v3242 = vand.u32 %v3241, 4294901760
    %3243 = vmatmul.f32.gmra.mxu0 %v3242
    %v3244 = vpop.f32.mrf.mxu0
    %v3245 = vadd.f32 0.0, %v3244
    %3246 = vdwg.mxu0
    %3247 = vmatpush.msra.mxu0 0.0
    %3248 = vmatpush.msra.mxu0 0.0
    %3249 = vmatpush.msra.mxu0 0.0
    %3250 = vmatpush.msra.mxu0 0.0
    %3251 = vmatpush.msra.mxu0 0.0
    %3252 = vmatpush.msra.mxu0 0.0
    %3253 = vmatpush.msra.mxu0 0.0
    %3254 = vmatpush.msra.mxu0 0.0
    %3255 = vmatpush.msra.mxu0 0.0
    %3256 = vmatpush.msra.mxu0 0.0
    %3257 = vmatpush.msra.mxu0 0.0
    %3258 = vmatpush.msra.mxu0 0.0
    %3259 = vmatpush.msra.mxu0 0.0
    %3260 = vmatpush.msra.mxu0 0.0
    %3261 = vmatpush.msra.mxu0 0.0
    %v3262 = vand.u32 %v3216, 4294901760
    %v3263 = vsub.f32 %v3216, %v3262
    %v3264 = vand.u32 %v3263, 4294901760
    %v3265 = vsub.f32 %v3263, %v3264
    %v3266 = vand.u32 %v3265, 4294901760
    %3267 = vmatpush.msra.mxu0 %v3266
    %v3268 = vand.u32 %v3219, 4294901760
    %3269 = vmatmul.f32.gmra.mxu0 %v3268
    %v3270 = vpop.f32.mrf.mxu0
    %v3271 = vadd.f32 %v3245, %v3270
    %3272 = vdwg.mxu0
    %3273 = vmatpush.msra.mxu0 0.0
    %3274 = vmatpush.msra.mxu0 0.0
    %3275 = vmatpush.msra.mxu0 0.0
    %3276 = vmatpush.msra.mxu0 0.0
    %3277 = vmatpush.msra.mxu0 0.0
    %3278 = vmatpush.msra.mxu0 0.0
    %3279 = vmatpush.msra.mxu0 0.0
    %3280 = vmatpush.msra.mxu0 0.0
    %3281 = vmatpush.msra.mxu0 0.0
    %3282 = vmatpush.msra.mxu0 0.0
    %3283 = vmatpush.msra.mxu0 0.0
    %3284 = vmatpush.msra.mxu0 0.0
    %3285 = vmatpush.msra.mxu0 0.0
    %3286 = vmatpush.msra.mxu0 0.0
    %3287 = vmatpush.msra.mxu0 0.0
    %v3288 = vand.u32 %v3216, 4294901760
    %v3289 = vsub.f32 %v3216, %v3288
    %3290 = vmatpush.msra.mxu0 %v3289
    %v3291 = vand.u32 %v3219, 4294901760
    %v3292 = vsub.f32 %v3219, %v3291
    %3293 = vmatmul.f32.gmra.mxu0 %v3292
    %v3294 = vpop.f32.mrf.mxu0
    %v3295 = vadd.f32 %v3271, %v3294
    %3296 = vdwg.mxu0
    %3297 = vmatpush.msra.mxu0 0.0
    %3298 = vmatpush.msra.mxu0 0.0
    %3299 = vmatpush.msra.mxu0 0.0
    %3300 = vmatpush.msra.mxu0 0.0
    %3301 = vmatpush.msra.mxu0 0.0
    %3302 = vmatpush.msra.mxu0 0.0
    %3303 = vmatpush.msra.mxu0 0.0
    %3304 = vmatpush.msra.mxu0 0.0
    %3305 = vmatpush.msra.mxu0 0.0
    %3306 = vmatpush.msra.mxu0 0.0
    %3307 = vmatpush.msra.mxu0 0.0
    %3308 = vmatpush.msra.mxu0 0.0
    %3309 = vmatpush.msra.mxu0 0.0
    %3310 = vmatpush.msra.mxu0 0.0
    %3311 = vmatpush.msra.mxu0 0.0
    %v3312 = vand.u32 %v3216, 4294901760
    %3313 = vmatpush.msra.mxu0 %v3312
    %v3314 = vand.u32 %v3219, 4294901760
    %v3315 = vsub.f32 %v3219, %v3314
    %v3316 = vand.u32 %v3315, 4294901760
    %3317 = vmatmul.f32.gmra.mxu0 %v3316
    %v3318 = vpop.f32.mrf.mxu0
    %v3319 = vadd.f32 %v3295, %v3318
    %3320 = vdwg.mxu0
    %3321 = vmatpush.msra.mxu0 0.0
    %3322 = vmatpush.msra.mxu0 0.0
    %3323 = vmatpush.msra.mxu0 0.0
    %3324 = vmatpush.msra.mxu0 0.0
    %3325 = vmatpush.msra.mxu0 0.0
    %3326 = vmatpush.msra.mxu0 0.0
    %3327 = vmatpush.msra.mxu0 0.0
    %3328 = vmatpush.msra.mxu0 0.0
    %3329 = vmatpush.msra.mxu0 0.0
    %3330 = vmatpush.msra.mxu0 0.0
    %3331 = vmatpush.msra.mxu0 0.0
    %3332 = vmatpush.msra.mxu0 0.0
    %3333 = vmatpush.msra.mxu0 0.0
    %3334 = vmatpush.msra.mxu0 0.0
    %3335 = vmatpush.msra.mxu0 0.0
    %v3336 = vand.u32 %v3216, 4294901760
    %v3337 = vsub.f32 %v3216, %v3336
    %v3338 = vand.u32 %v3337, 4294901760
    %3339 = vmatpush.msra.mxu0 %v3338
    %v3340 = vand.u32 %v3219, 4294901760
    %3341 = vmatmul.f32.gmra.mxu0 %v3340
    %v3342 = vpop.f32.mrf.mxu0
    %v3343 = vadd.f32 %v3319, %v3342
    %3344 = vdwg.mxu0
    %3345 = vmatpush.msra.mxu0 0.0
    %3346 = vmatpush.msra.mxu0 0.0
    %3347 = vmatpush.msra.mxu0 0.0
    %3348 = vmatpush.msra.mxu0 0.0
    %3349 = vmatpush.msra.mxu0 0.0
    %3350 = vmatpush.msra.mxu0 0.0
    %3351 = vmatpush.msra.mxu0 0.0
    %3352 = vmatpush.msra.mxu0 0.0
    %3353 = vmatpush.msra.mxu0 0.0
    %3354 = vmatpush.msra.mxu0 0.0
    %3355 = vmatpush.msra.mxu0 0.0
    %3356 = vmatpush.msra.mxu0 0.0
    %3357 = vmatpush.msra.mxu0 0.0
    %3358 = vmatpush.msra.mxu0 0.0
    %3359 = vmatpush.msra.mxu0 0.0
    %v3360 = vand.u32 %v3216, 4294901760
    %3361 = vmatpush.msra.mxu0 %v3360
    %v3362 = vand.u32 %v3219, 4294901760
    %3363 = vmatmul.f32.gmra.mxu0 %v3362
    %v3364 = vpop.f32.mrf.mxu0
    %v3365 = vadd.f32 %v3343, %v3364
    %3366 = vdwg.mxu0
    %3367 = vmatpush.msra.mxu0 0.0
    %3368 = vmatpush.msra.mxu0 0.0
    %3369 = vmatpush.msra.mxu0 0.0
    %3370 = vmatpush.msra.mxu0 0.0
    %3371 = vmatpush.msra.mxu0 0.0
    %3372 = vmatpush.msra.mxu0 0.0
    %3373 = vmatpush.msra.mxu0 0.0
    %3374 = vmatpush.msra.mxu0 0.0
    %3375 = vmatpush.msra.mxu0 0.0
    %3376 = vmatpush.msra.mxu0 0.0
    %3377 = vmatpush.msra.mxu0 0.0
    %3378 = vmatpush.msra.mxu0 0.0
    %3379 = vmatpush.msra.mxu0 0.0
    %3380 = vmatpush.msra.mxu0 0.0
    %3381 = vmatpush.msra.mxu0 0.0
    %v3382 = vand.u32 %v3217, 4294901760
    %3383 = vmatpush.msra.mxu0 %v3382
    %v3384 = vand.u32 %v3219, 4294901760
    %v3385 = vsub.f32 %v3219, %v3384
    %v3386 = vand.u32 %v3385, 4294901760
    %v3387 = vsub.f32 %v3385, %v3386
    %v3388 = vand.u32 %v3387, 4294901760
    %3389 = vmatmul.f32.gmra.mxu0 %v3388
    %v3390 = vpop.f32.mrf.mxu0
    %v3391 = vadd.f32 0.0, %v3390
    %3392 = vdwg.mxu0
    %3393 = vmatpush.msra.mxu0 0.0
    %3394 = vmatpush.msra.mxu0 0.0
    %3395 = vmatpush.msra.mxu0 0.0
    %3396 = vmatpush.msra.mxu0 0.0
    %3397 = vmatpush.msra.mxu0 0.0
    %3398 = vmatpush.msra.mxu0 0.0
    %3399 = vmatpush.msra.mxu0 0.0
    %3400 = vmatpush.msra.mxu0 0.0
    %3401 = vmatpush.msra.mxu0 0.0
    %3402 = vmatpush.msra.mxu0 0.0
    %3403 = vmatpush.msra.mxu0 0.0
    %3404 = vmatpush.msra.mxu0 0.0
    %3405 = vmatpush.msra.mxu0 0.0
    %3406 = vmatpush.msra.mxu0 0.0
    %3407 = vmatpush.msra.mxu0 0.0
    %v3408 = vand.u32 %v3217, 4294901760
    %v3409 = vsub.f32 %v3217, %v3408
    %v3410 = vand.u32 %v3409, 4294901760
    %v3411 = vsub.f32 %v3409, %v3410
    %v3412 = vand.u32 %v3411, 4294901760
    %3413 = vmatpush.msra.mxu0 %v3412
    %v3414 = vand.u32 %v3219, 4294901760
    %3415 = vmatmul.f32.gmra.mxu0 %v3414
    %v3416 = vpop.f32.mrf.mxu0
    %v3417 = vadd.f32 %v3391, %v3416
    %3418 = vdwg.mxu0
    %3419 = vmatpush.msra.mxu0 0.0
    %3420 = vmatpush.msra.mxu0 0.0
    %3421 = vmatpush.msra.mxu0 0.0
    %3422 = vmatpush.msra.mxu0 0.0
    %3423 = vmatpush.msra.mxu0 0.0
    %3424 = vmatpush.msra.mxu0 0.0
    %3425 = vmatpush.msra.mxu0 0.0
    %3426 = vmatpush.msra.mxu0 0.0
    %3427 = vmatpush.msra.mxu0 0.0
    %3428 = vmatpush.msra.mxu0 0.0
    %3429 = vmatpush.msra.mxu0 0.0
    %3430 = vmatpush.msra.mxu0 0.0
    %3431 = vmatpush.msra.mxu0 0.0
    %3432 = vmatpush.msra.mxu0 0.0
    %3433 = vmatpush.msra.mxu0 0.0
    %v3434 = vand.u32 %v3217, 4294901760
    %v3435 = vsub.f32 %v3217, %v3434
    %3436 = vmatpush.msra.mxu0 %v3435
    %v3437 = vand.u32 %v3219, 4294901760
    %v3438 = vsub.f32 %v3219, %v3437
    %3439 = vmatmul.f32.gmra.mxu0 %v3438
    %v3440 = vpop.f32.mrf.mxu0
    %v3441 = vadd.f32 %v3417, %v3440
    %3442 = vdwg.mxu0
    %3443 = vmatpush.msra.mxu0 0.0
    %3444 = vmatpush.msra.mxu0 0.0
    %3445 = vmatpush.msra.mxu0 0.0
    %3446 = vmatpush.msra.mxu0 0.0
    %3447 = vmatpush.msra.mxu0 0.0
    %3448 = vmatpush.msra.mxu0 0.0
    %3449 = vmatpush.msra.mxu0 0.0
    %3450 = vmatpush.msra.mxu0 0.0
    %3451 = vmatpush.msra.mxu0 0.0
    %3452 = vmatpush.msra.mxu0 0.0
    %3453 = vmatpush.msra.mxu0 0.0
    %3454 = vmatpush.msra.mxu0 0.0
    %3455 = vmatpush.msra.mxu0 0.0
    %3456 = vmatpush.msra.mxu0 0.0
    %3457 = vmatpush.msra.mxu0 0.0
    %v3458 = vand.u32 %v3217, 4294901760
    %3459 = vmatpush.msra.mxu0 %v3458
    %v3460 = vand.u32 %v3219, 4294901760
    %v3461 = vsub.f32 %v3219, %v3460
    %v3462 = vand.u32 %v3461, 4294901760
    %3463 = vmatmul.f32.gmra.mxu0 %v3462
    %v3464 = vpop.f32.mrf.mxu0
    %v3465 = vadd.f32 %v3441, %v3464
    %3466 = vdwg.mxu0
    %3467 = vmatpush.msra.mxu0 0.0
    %3468 = vmatpush.msra.mxu0 0.0
    %3469 = vmatpush.msra.mxu0 0.0
    %3470 = vmatpush.msra.mxu0 0.0
    %3471 = vmatpush.msra.mxu0 0.0
    %3472 = vmatpush.msra.mxu0 0.0
    %3473 = vmatpush.msra.mxu0 0.0
    %3474 = vmatpush.msra.mxu0 0.0
    %3475 = vmatpush.msra.mxu0 0.0
    %3476 = vmatpush.msra.mxu0 0.0
    %3477 = vmatpush.msra.mxu0 0.0
    %3478 = vmatpush.msra.mxu0 0.0
    %3479 = vmatpush.msra.mxu0 0.0
    %3480 = vmatpush.msra.mxu0 0.0
    %3481 = vmatpush.msra.mxu0 0.0
    %v3482 = vand.u32 %v3217, 4294901760
    %v3483 = vsub.f32 %v3217, %v3482
    %v3484 = vand.u32 %v3483, 4294901760
    %3485 = vmatpush.msra.mxu0 %v3484
    %v3486 = vand.u32 %v3219, 4294901760
    %3487 = vmatmul.f32.gmra.mxu0 %v3486
    %v3488 = vpop.f32.mrf.mxu0
    %v3489 = vadd.f32 %v3465, %v3488
    %3490 = vdwg.mxu0
    %3491 = vmatpush.msra.mxu0 0.0
    %3492 = vmatpush.msra.mxu0 0.0
    %3493 = vmatpush.msra.mxu0 0.0
    %3494 = vmatpush.msra.mxu0 0.0
    %3495 = vmatpush.msra.mxu0 0.0
    %3496 = vmatpush.msra.mxu0 0.0
    %3497 = vmatpush.msra.mxu0 0.0
    %3498 = vmatpush.msra.mxu0 0.0
    %3499 = vmatpush.msra.mxu0 0.0
    %3500 = vmatpush.msra.mxu0 0.0
    %3501 = vmatpush.msra.mxu0 0.0
    %3502 = vmatpush.msra.mxu0 0.0
    %3503 = vmatpush.msra.mxu0 0.0
    %3504 = vmatpush.msra.mxu0 0.0
    %3505 = vmatpush.msra.mxu0 0.0
    %v3506 = vand.u32 %v3217, 4294901760
    %3507 = vmatpush.msra.mxu0 %v3506
    %v3508 = vand.u32 %v3219, 4294901760
    %3509 = vmatmul.f32.gmra.mxu0 %v3508
    %v3510 = vpop.f32.mrf.mxu0
    %v3511 = vadd.f32 %v3489, %v3510
    %3512 = vdwg.mxu0
    %v3513 = vadd.f32 %v141, %v3215
    %v3514 = vadd.f32 %v142, %v3215
    %v3515 = vadd.f32 %v3513, %v3365
    %v3516 = vadd.f32 %v3514, %v3511
    %v3517 = vtanh.pop %v3515
    %v3518 = vtanh.pop %v3516
    %v3519 = vld [vmem:[%s11] sm:$0xff]
    %v3520 = vld [vmem:[%s11 + $0x8] sm:$0xff]
    %v3521 = vld [vmem:[%s11 + $0x10] sm:$0xff]
    %v3522 = vld [vmem:[%s11 + $0x18] sm:$0xff]
    %v3523 = vld [vmem:[%s11 + $0x20] sm:$0xff]
    %v3524 = vld [vmem:[%s11 + $0x28] sm:$0xff]
    %v3525 = vld [vmem:[%s11 + $0x30] sm:$0xff]
    %v3526 = vld [vmem:[%s11 + $0x38] sm:$0xff]
    %v3527 = vld [vmem:[%s11 + $0x40] sm:$0xff]
    %v3528 = vld [vmem:[%s11 + $0x48] sm:$0xff]
    %v3529 = vld [vmem:[%s11 + $0x50] sm:$0xff]
    %v3530 = vld [vmem:[%s11 + $0x58] sm:$0xff]
    %v3531 = vld [vmem:[%s11 + $0x60] sm:$0xff]
    %v3532 = vld [vmem:[%s11 + $0x68] sm:$0xff]
    %v3533 = vld [vmem:[%s11 + $0x70] sm:$0xff]
    %v3534 = vld [vmem:[%s11 + $0x78] sm:$0xff]
    %v3535 = vld [vmem:[%s11 + $0x80] sm:$0xff]
    %v3536 = vld [vmem:[%s11 + $0x88] sm:$0xff]
    %v3537 = vld [vmem:[%s11 + $0x90] sm:$0xff]
    %v3538 = vld [vmem:[%s11 + $0x98] sm:$0xff]
    %v3539 = vld [vmem:[%s11 + $0xa0] sm:$0xff]
    %v3540 = vld [vmem:[%s11 + $0xa8] sm:$0xff]
    %v3541 = vld [vmem:[%s11 + $0xb0] sm:$0xff]
    %v3542 = vld [vmem:[%s11 + $0xb8] sm:$0xff]
    %v3543 = vld [vmem:[%s11 + $0xc0] sm:$0xff]
    %v3544 = vld [vmem:[%s11 + $0xc8] sm:$0xff]
    %v3545 = vld [vmem:[%s11 + $0xd0] sm:$0xff]
    %v3546 = vld [vmem:[%s11 + $0xd8] sm:$0xff]
    %v3547 = vld [vmem:[%s11 + $0xe0] sm:$0xff]
    %v3548 = vld [vmem:[%s11 + $0xe8] sm:$0xff]
    %v3549 = vld [vmem:[%s11 + $0xf0] sm:$0xff]
    %v3550 = vld [vmem:[%s11 + $0xf8] sm:$0xff]
    %v3551 = vld [vmem:[#allocation4] sm:$0x1]
    %v3553 = vperm.slane %v3551, 0
    %3554 = vset.pattern.permute.xlu0 0
    %3555 = vperm.xlu0 %3554, %v3553
    %v3556 = vpop.permute.xlu0 %3555
    %v3558 = vand.u32 %v3534, 4294901760
    %3559 = vmatpush.msra.mxu0 %v3558
    %v3560 = vand.u32 %v3533, 4294901760
    %3561 = vmatpush.msra.mxu0 %v3560
    %v3562 = vand.u32 %v3532, 4294901760
    %3563 = vmatpush.msra.mxu0 %v3562
    %v3564 = vand.u32 %v3531, 4294901760
    %3565 = vmatpush.msra.mxu0 %v3564
    %v3566 = vand.u32 %v3530, 4294901760
    %3567 = vmatpush.msra.mxu0 %v3566
    %v3568 = vand.u32 %v3529, 4294901760
    %3569 = vmatpush.msra.mxu0 %v3568
    %v3570 = vand.u32 %v3528, 4294901760
    %3571 = vmatpush.msra.mxu0 %v3570
    %v3572 = vand.u32 %v3527, 4294901760
    %3573 = vmatpush.msra.mxu0 %v3572
    %v3574 = vand.u32 %v3526, 4294901760
    %3575 = vmatpush.msra.mxu0 %v3574
    %v3576 = vand.u32 %v3525, 4294901760
    %3577 = vmatpush.msra.mxu0 %v3576
    %v3578 = vand.u32 %v3524, 4294901760
    %3579 = vmatpush.msra.mxu0 %v3578
    %v3580 = vand.u32 %v3523, 4294901760
    %3581 = vmatpush.msra.mxu0 %v3580
    %v3582 = vand.u32 %v3522, 4294901760
    %3583 = vmatpush.msra.mxu0 %v3582
    %v3584 = vand.u32 %v3521, 4294901760
    %3585 = vmatpush.msra.mxu0 %v3584
    %v3586 = vand.u32 %v3520, 4294901760
    %3587 = vmatpush.msra.mxu0 %v3586
    %v3588 = vand.u32 %v3519, 4294901760
    %3589 = vmatpush.msra.mxu0 %v3588
    %v3590 = vand.u32 %v3517, 4294901760
    %v3591 = vsub.f32 %v3517, %v3590
    %v3592 = vand.u32 %v3591, 4294901760
    %v3593 = vsub.f32 %v3591, %v3592
    %v3594 = vand.u32 %v3593, 4294901760
    %3595 = vmatmul.f32.gmra.mxu0 %v3594
    %v3596 = vpop.f32.mrf.mxu0
    %v3597 = vadd.f32 %v3556, %v3596
    %3598 = vdwg.mxu0
    %v3599 = vand.u32 %v3534, 4294901760
    %v3600 = vsub.f32 %v3534, %v3599
    %v3601 = vand.u32 %v3600, 4294901760
    %v3602 = vsub.f32 %v3600, %v3601
    %v3603 = vand.u32 %v3602, 4294901760
    %3604 = vmatpush.msra.mxu0 %v3603
    %v3605 = vand.u32 %v3533, 4294901760
    %v3606 = vsub.f32 %v3533, %v3605
    %v3607 = vand.u32 %v3606, 4294901760
    %v3608 = vsub.f32 %v3606, %v3607
    %v3609 = vand.u32 %v3608, 4294901760
    %3610 = vmatpush.msra.mxu0 %v3609
    %v3611 = vand.u32 %v3532, 4294901760
    %v3612 = vsub.f32 %v3532, %v3611
    %v3613 = vand.u32 %v3612, 4294901760
    %v3614 = vsub.f32 %v3612, %v3613
    %v3615 = vand.u32 %v3614, 4294901760
    %3616 = vmatpush.msra.mxu0 %v3615
    %v3617 = vand.u32 %v3531, 4294901760
    %v3618 = vsub.f32 %v3531, %v3617
    %v3619 = vand.u32 %v3618, 4294901760
    %v3620 = vsub.f32 %v3618, %v3619
    %v3621 = vand.u32 %v3620, 4294901760
    %3622 = vmatpush.msra.mxu0 %v3621
    %v3623 = vand.u32 %v3530, 4294901760
    %v3624 = vsub.f32 %v3530, %v3623
    %v3625 = vand.u32 %v3624, 4294901760
    %v3626 = vsub.f32 %v3624, %v3625
    %v3627 = vand.u32 %v3626, 4294901760
    %3628 = vmatpush.msra.mxu0 %v3627
    %v3629 = vand.u32 %v3529, 4294901760
    %v3630 = vsub.f32 %v3529, %v3629
    %v3631 = vand.u32 %v3630, 4294901760
    %v3632 = vsub.f32 %v3630, %v3631
    %v3633 = vand.u32 %v3632, 4294901760
    %3634 = vmatpush.msra.mxu0 %v3633
    %v3635 = vand.u32 %v3528, 4294901760
    %v3636 = vsub.f32 %v3528, %v3635
    %v3637 = vand.u32 %v3636, 4294901760
    %v3638 = vsub.f32 %v3636, %v3637
    %v3639 = vand.u32 %v3638, 4294901760
    %3640 = vmatpush.msra.mxu0 %v3639
    %v3641 = vand.u32 %v3527, 4294901760
    %v3642 = vsub.f32 %v3527, %v3641
    %v3643 = vand.u32 %v3642, 4294901760
    %v3644 = vsub.f32 %v3642, %v3643
    %v3645 = vand.u32 %v3644, 4294901760
    %3646 = vmatpush.msra.mxu0 %v3645
    %v3647 = vand.u32 %v3526, 4294901760
    %v3648 = vsub.f32 %v3526, %v3647
    %v3649 = vand.u32 %v3648, 4294901760
    %v3650 = vsub.f32 %v3648, %v3649
    %v3651 = vand.u32 %v3650, 4294901760
    %3652 = vmatpush.msra.mxu0 %v3651
    %v3653 = vand.u32 %v3525, 4294901760
    %v3654 = vsub.f32 %v3525, %v3653
    %v3655 = vand.u32 %v3654, 4294901760
    %v3656 = vsub.f32 %v3654, %v3655
    %v3657 = vand.u32 %v3656, 4294901760
    %3658 = vmatpush.msra.mxu0 %v3657
    %v3659 = vand.u32 %v3524, 4294901760
    %v3660 = vsub.f32 %v3524, %v3659
    %v3661 = vand.u32 %v3660, 4294901760
    %v3662 = vsub.f32 %v3660, %v3661
    %v3663 = vand.u32 %v3662, 4294901760
    %3664 = vmatpush.msra.mxu0 %v3663
    %v3665 = vand.u32 %v3523, 4294901760
    %v3666 = vsub.f32 %v3523, %v3665
    %v3667 = vand.u32 %v3666, 4294901760
    %v3668 = vsub.f32 %v3666, %v3667
    %v3669 = vand.u32 %v3668, 4294901760
    %3670 = vmatpush.msra.mxu0 %v3669
    %v3671 = vand.u32 %v3522, 4294901760
    %v3672 = vsub.f32 %v3522, %v3671
    %v3673 = vand.u32 %v3672, 4294901760
    %v3674 = vsub.f32 %v3672, %v3673
    %v3675 = vand.u32 %v3674, 4294901760
    %3676 = vmatpush.msra.mxu0 %v3675
    %v3677 = vand.u32 %v3521, 4294901760
    %v3678 = vsub.f32 %v3521, %v3677
    %v3679 = vand.u32 %v3678, 4294901760
    %v3680 = vsub.f32 %v3678, %v3679
    %v3681 = vand.u32 %v3680, 4294901760
    %3682 = vmatpush.msra.mxu0 %v3681
    %v3683 = vand.u32 %v3520, 4294901760
    %v3684 = vsub.f32 %v3520, %v3683
    %v3685 = vand.u32 %v3684, 4294901760
    %v3686 = vsub.f32 %v3684, %v3685
    %v3687 = vand.u32 %v3686, 4294901760
    %3688 = vmatpush.msra.mxu0 %v3687
    %v3689 = vand.u32 %v3519, 4294901760
    %v3690 = vsub.f32 %v3519, %v3689
    %v3691 = vand.u32 %v3690, 4294901760
    %v3692 = vsub.f32 %v3690, %v3691
    %v3693 = vand.u32 %v3692, 4294901760
    %3694 = vmatpush.msra.mxu0 %v3693
    %v3695 = vand.u32 %v3517, 4294901760
    %3696 = vmatmul.f32.gmra.mxu0 %v3695
    %v3697 = vpop.f32.mrf.mxu0
    %v3698 = vadd.f32 %v3597, %v3697
    %3699 = vdwg.mxu0
    %v3700 = vand.u32 %v3534, 4294901760
    %v3701 = vsub.f32 %v3534, %v3700
    %3702 = vmatpush.msra.mxu0 %v3701
    %v3703 = vand.u32 %v3533, 4294901760
    %v3704 = vsub.f32 %v3533, %v3703
    %3705 = vmatpush.msra.mxu0 %v3704
    %v3706 = vand.u32 %v3532, 4294901760
    %v3707 = vsub.f32 %v3532, %v3706
    %3708 = vmatpush.msra.mxu0 %v3707
    %v3709 = vand.u32 %v3531, 4294901760
    %v3710 = vsub.f32 %v3531, %v3709
    %3711 = vmatpush.msra.mxu0 %v3710
    %v3712 = vand.u32 %v3530, 4294901760
    %v3713 = vsub.f32 %v3530, %v3712
    %3714 = vmatpush.msra.mxu0 %v3713
    %v3715 = vand.u32 %v3529, 4294901760
    %v3716 = vsub.f32 %v3529, %v3715
    %3717 = vmatpush.msra.mxu0 %v3716
    %v3718 = vand.u32 %v3528, 4294901760
    %v3719 = vsub.f32 %v3528, %v3718
    %3720 = vmatpush.msra.mxu0 %v3719
    %v3721 = vand.u32 %v3527, 4294901760
    %v3722 = vsub.f32 %v3527, %v3721
    %3723 = vmatpush.msra.mxu0 %v3722
    %v3724 = vand.u32 %v3526, 4294901760
    %v3725 = vsub.f32 %v3526, %v3724
    %3726 = vmatpush.msra.mxu0 %v3725
    %v3727 = vand.u32 %v3525, 4294901760
    %v3728 = vsub.f32 %v3525, %v3727
    %3729 = vmatpush.msra.mxu0 %v3728
    %v3730 = vand.u32 %v3524, 4294901760
    %v3731 = vsub.f32 %v3524, %v3730
    %3732 = vmatpush.msra.mxu0 %v3731
    %v3733 = vand.u32 %v3523, 4294901760
    %v3734 = vsub.f32 %v3523, %v3733
    %3735 = vmatpush.msra.mxu0 %v3734
    %v3736 = vand.u32 %v3522, 4294901760
    %v3737 = vsub.f32 %v3522, %v3736
    %3738 = vmatpush.msra.mxu0 %v3737
    %v3739 = vand.u32 %v3521, 4294901760
    %v3740 = vsub.f32 %v3521, %v3739
    %3741 = vmatpush.msra.mxu0 %v3740
    %v3742 = vand.u32 %v3520, 4294901760
    %v3743 = vsub.f32 %v3520, %v3742
    %3744 = vmatpush.msra.mxu0 %v3743
    %v3745 = vand.u32 %v3519, 4294901760
    %v3746 = vsub.f32 %v3519, %v3745
    %3747 = vmatpush.msra.mxu0 %v3746
    %v3748 = vand.u32 %v3517, 4294901760
    %v3749 = vsub.f32 %v3517, %v3748
    %3750 = vmatmul.f32.gmra.mxu0 %v3749
    %v3751 = vpop.f32.mrf.mxu0
    %v3752 = vadd.f32 %v3698, %v3751
    %3753 = vdwg.mxu0
    %v3754 = vand.u32 %v3534, 4294901760
    %3755 = vmatpush.msra.mxu0 %v3754
    %v3756 = vand.u32 %v3533, 4294901760
    %3757 = vmatpush.msra.mxu0 %v3756
    %v3758 = vand.u32 %v3532, 4294901760
    %3759 = vmatpush.msra.mxu0 %v3758
    %v3760 = vand.u32 %v3531, 4294901760
    %3761 = vmatpush.msra.mxu0 %v3760
    %v3762 = vand.u32 %v3530, 4294901760
    %3763 = vmatpush.msra.mxu0 %v3762
    %v3764 = vand.u32 %v3529, 4294901760
    %3765 = vmatpush.msra.mxu0 %v3764
    %v3766 = vand.u32 %v3528, 4294901760
    %3767 = vmatpush.msra.mxu0 %v3766
    %v3768 = vand.u32 %v3527, 4294901760
    %3769 = vmatpush.msra.mxu0 %v3768
    %v3770 = vand.u32 %v3526, 4294901760
    %3771 = vmatpush.msra.mxu0 %v3770
    %v3772 = vand.u32 %v3525, 4294901760
    %3773 = vmatpush.msra.mxu0 %v3772
    %v3774 = vand.u32 %v3524, 4294901760
    %3775 = vmatpush.msra.mxu0 %v3774
    %v3776 = vand.u32 %v3523, 4294901760
    %3777 = vmatpush.msra.mxu0 %v3776
    %v3778 = vand.u32 %v3522, 4294901760
    %3779 = vmatpush.msra.mxu0 %v3778
    %v3780 = vand.u32 %v3521, 4294901760
    %3781 = vmatpush.msra.mxu0 %v3780
    %v3782 = vand.u32 %v3520, 4294901760
    %3783 = vmatpush.msra.mxu0 %v3782
    %v3784 = vand.u32 %v3519, 4294901760
    %3785 = vmatpush.msra.mxu0 %v3784
    %v3786 = vand.u32 %v3517, 4294901760
    %v3787 = vsub.f32 %v3517, %v3786
    %v3788 = vand.u32 %v3787, 4294901760
    %3789 = vmatmul.f32.gmra.mxu0 %v3788
    %v3790 = vpop.f32.mrf.mxu0
    %v3791 = vadd.f32 %v3752, %v3790
    %3792 = vdwg.mxu0
    %v3793 = vand.u32 %v3534, 4294901760
    %v3794 = vsub.f32 %v3534, %v3793
    %v3795 = vand.u32 %v3794, 4294901760
    %3796 = vmatpush.msra.mxu0 %v3795
    %v3797 = vand.u32 %v3533, 4294901760
    %v3798 = vsub.f32 %v3533, %v3797
    %v3799 = vand.u32 %v3798, 4294901760
    %3800 = vmatpush.msra.mxu0 %v3799
    %v3801 = vand.u32 %v3532, 4294901760
    %v3802 = vsub.f32 %v3532, %v3801
    %v3803 = vand.u32 %v3802, 4294901760
    %3804 = vmatpush.msra.mxu0 %v3803
    %v3805 = vand.u32 %v3531, 4294901760
    %v3806 = vsub.f32 %v3531, %v3805
    %v3807 = vand.u32 %v3806, 4294901760
    %3808 = vmatpush.msra.mxu0 %v3807
    %v3809 = vand.u32 %v3530, 4294901760
    %v3810 = vsub.f32 %v3530, %v3809
    %v3811 = vand.u32 %v3810, 4294901760
    %3812 = vmatpush.msra.mxu0 %v3811
    %v3813 = vand.u32 %v3529, 4294901760
    %v3814 = vsub.f32 %v3529, %v3813
    %v3815 = vand.u32 %v3814, 4294901760
    %3816 = vmatpush.msra.mxu0 %v3815
    %v3817 = vand.u32 %v3528, 4294901760
    %v3818 = vsub.f32 %v3528, %v3817
    %v3819 = vand.u32 %v3818, 4294901760
    %3820 = vmatpush.msra.mxu0 %v3819
    %v3821 = vand.u32 %v3527, 4294901760
    %v3822 = vsub.f32 %v3527, %v3821
    %v3823 = vand.u32 %v3822, 4294901760
    %3824 = vmatpush.msra.mxu0 %v3823
    %v3825 = vand.u32 %v3526, 4294901760
    %v3826 = vsub.f32 %v3526, %v3825
    %v3827 = vand.u32 %v3826, 4294901760
    %3828 = vmatpush.msra.mxu0 %v3827
    %v3829 = vand.u32 %v3525, 4294901760
    %v3830 = vsub.f32 %v3525, %v3829
    %v3831 = vand.u32 %v3830, 4294901760
    %3832 = vmatpush.msra.mxu0 %v3831
    %v3833 = vand.u32 %v3524, 4294901760
    %v3834 = vsub.f32 %v3524, %v3833
    %v3835 = vand.u32 %v3834, 4294901760
    %3836 = vmatpush.msra.mxu0 %v3835
    %v3837 = vand.u32 %v3523, 4294901760
    %v3838 = vsub.f32 %v3523, %v3837
    %v3839 = vand.u32 %v3838, 4294901760
    %3840 = vmatpush.msra.mxu0 %v3839
    %v3841 = vand.u32 %v3522, 4294901760
    %v3842 = vsub.f32 %v3522, %v3841
    %v3843 = vand.u32 %v3842, 4294901760
    %3844 = vmatpush.msra.mxu0 %v3843
    %v3845 = vand.u32 %v3521, 4294901760
    %v3846 = vsub.f32 %v3521, %v3845
    %v3847 = vand.u32 %v3846, 4294901760
    %3848 = vmatpush.msra.mxu0 %v3847
    %v3849 = vand.u32 %v3520, 4294901760
    %v3850 = vsub.f32 %v3520, %v3849
    %v3851 = vand.u32 %v3850, 4294901760
    %3852 = vmatpush.msra.mxu0 %v3851
    %v3853 = vand.u32 %v3519, 4294901760
    %v3854 = vsub.f32 %v3519, %v3853
    %v3855 = vand.u32 %v3854, 4294901760
    %3856 = vmatpush.msra.mxu0 %v3855
    %v3857 = vand.u32 %v3517, 4294901760
    %3858 = vmatmul.f32.gmra.mxu0 %v3857
    %v3859 = vpop.f32.mrf.mxu0
    %v3860 = vadd.f32 %v3791, %v3859
    %3861 = vdwg.mxu0
    %v3862 = vand.u32 %v3534, 4294901760
    %3863 = vmatpush.msra.mxu0 %v3862
    %v3864 = vand.u32 %v3533, 4294901760
    %3865 = vmatpush.msra.mxu0 %v3864
    %v3866 = vand.u32 %v3532, 4294901760
    %3867 = vmatpush.msra.mxu0 %v3866
    %v3868 = vand.u32 %v3531, 4294901760
    %3869 = vmatpush.msra.mxu0 %v3868
    %v3870 = vand.u32 %v3530, 4294901760
    %3871 = vmatpush.msra.mxu0 %v3870
    %v3872 = vand.u32 %v3529, 4294901760
    %3873 = vmatpush.msra.mxu0 %v3872
    %v3874 = vand.u32 %v3528, 4294901760
    %3875 = vmatpush.msra.mxu0 %v3874
    %v3876 = vand.u32 %v3527, 4294901760
    %3877 = vmatpush.msra.mxu0 %v3876
    %v3878 = vand.u32 %v3526, 4294901760
    %3879 = vmatpush.msra.mxu0 %v3878
    %v3880 = vand.u32 %v3525, 4294901760
    %3881 = vmatpush.msra.mxu0 %v3880
    %v3882 = vand.u32 %v3524, 4294901760
    %3883 = vmatpush.msra.mxu0 %v3882
    %v3884 = vand.u32 %v3523, 4294901760
    %3885 = vmatpush.msra.mxu0 %v3884
    %v3886 = vand.u32 %v3522, 4294901760
    %3887 = vmatpush.msra.mxu0 %v3886
    %v3888 = vand.u32 %v3521, 4294901760
    %3889 = vmatpush.msra.mxu0 %v3888
    %v3890 = vand.u32 %v3520, 4294901760
    %3891 = vmatpush.msra.mxu0 %v3890
    %v3892 = vand.u32 %v3519, 4294901760
    %3893 = vmatpush.msra.mxu0 %v3892
    %v3894 = vand.u32 %v3517, 4294901760
    %3895 = vmatmul.f32.gmra.mxu0 %v3894
    %v3896 = vpop.f32.mrf.mxu0
    %v3897 = vadd.f32 %v3860, %v3896
    %3898 = vdwg.mxu0
    %v3899 = vand.u32 %v3550, 4294901760
    %3900 = vmatpush.msra.mxu0 %v3899
    %v3901 = vand.u32 %v3549, 4294901760
    %3902 = vmatpush.msra.mxu0 %v3901
    %v3903 = vand.u32 %v3548, 4294901760
    %3904 = vmatpush.msra.mxu0 %v3903
    %v3905 = vand.u32 %v3547, 4294901760
    %3906 = vmatpush.msra.mxu0 %v3905
    %v3907 = vand.u32 %v3546, 4294901760
    %3908 = vmatpush.msra.mxu0 %v3907
    %v3909 = vand.u32 %v3545, 4294901760
    %3910 = vmatpush.msra.mxu0 %v3909
    %v3911 = vand.u32 %v3544, 4294901760
    %3912 = vmatpush.msra.mxu0 %v3911
    %v3913 = vand.u32 %v3543, 4294901760
    %3914 = vmatpush.msra.mxu0 %v3913
    %v3915 = vand.u32 %v3542, 4294901760
    %3916 = vmatpush.msra.mxu0 %v3915
    %v3917 = vand.u32 %v3541, 4294901760
    %3918 = vmatpush.msra.mxu0 %v3917
    %v3919 = vand.u32 %v3540, 4294901760
    %3920 = vmatpush.msra.mxu0 %v3919
    %v3921 = vand.u32 %v3539, 4294901760
    %3922 = vmatpush.msra.mxu0 %v3921
    %v3923 = vand.u32 %v3538, 4294901760
    %3924 = vmatpush.msra.mxu0 %v3923
    %v3925 = vand.u32 %v3537, 4294901760
    %3926 = vmatpush.msra.mxu0 %v3925
    %v3927 = vand.u32 %v3536, 4294901760
    %3928 = vmatpush.msra.mxu0 %v3927
    %v3929 = vand.u32 %v3535, 4294901760
    %3930 = vmatpush.msra.mxu0 %v3929
    %v3931 = vand.u32 %v3518, 4294901760
    %v3932 = vsub.f32 %v3518, %v3931
    %v3933 = vand.u32 %v3932, 4294901760
    %v3934 = vsub.f32 %v3932, %v3933
    %v3935 = vand.u32 %v3934, 4294901760
    %3936 = vmatmul.f32.gmra.mxu0 %v3935
    %v3937 = vpop.f32.mrf.mxu0
    %v3938 = vadd.f32 %v3897, %v3937
    %3939 = vdwg.mxu0
    %v3940 = vand.u32 %v3550, 4294901760
    %v3941 = vsub.f32 %v3550, %v3940
    %v3942 = vand.u32 %v3941, 4294901760
    %v3943 = vsub.f32 %v3941, %v3942
    %v3944 = vand.u32 %v3943, 4294901760
    %3945 = vmatpush.msra.mxu0 %v3944
    %v3946 = vand.u32 %v3549, 4294901760
    %v3947 = vsub.f32 %v3549, %v3946
    %v3948 = vand.u32 %v3947, 4294901760
    %v3949 = vsub.f32 %v3947, %v3948
    %v3950 = vand.u32 %v3949, 4294901760
    %3951 = vmatpush.msra.mxu0 %v3950
    %v3952 = vand.u32 %v3548, 4294901760
    %v3953 = vsub.f32 %v3548, %v3952
    %v3954 = vand.u32 %v3953, 4294901760
    %v3955 = vsub.f32 %v3953, %v3954
    %v3956 = vand.u32 %v3955, 4294901760
    %3957 = vmatpush.msra.mxu0 %v3956
    %v3958 = vand.u32 %v3547, 4294901760
    %v3959 = vsub.f32 %v3547, %v3958
    %v3960 = vand.u32 %v3959, 4294901760
    %v3961 = vsub.f32 %v3959, %v3960
    %v3962 = vand.u32 %v3961, 4294901760
    %3963 = vmatpush.msra.mxu0 %v3962
    %v3964 = vand.u32 %v3546, 4294901760
    %v3965 = vsub.f32 %v3546, %v3964
    %v3966 = vand.u32 %v3965, 4294901760
    %v3967 = vsub.f32 %v3965, %v3966
    %v3968 = vand.u32 %v3967, 4294901760
    %3969 = vmatpush.msra.mxu0 %v3968
    %v3970 = vand.u32 %v3545, 4294901760
    %v3971 = vsub.f32 %v3545, %v3970
    %v3972 = vand.u32 %v3971, 4294901760
    %v3973 = vsub.f32 %v3971, %v3972
    %v3974 = vand.u32 %v3973, 4294901760
    %3975 = vmatpush.msra.mxu0 %v3974
    %v3976 = vand.u32 %v3544, 4294901760
    %v3977 = vsub.f32 %v3544, %v3976
    %v3978 = vand.u32 %v3977, 4294901760
    %v3979 = vsub.f32 %v3977, %v3978
    %v3980 = vand.u32 %v3979, 4294901760
    %3981 = vmatpush.msra.mxu0 %v3980
    %v3982 = vand.u32 %v3543, 4294901760
    %v3983 = vsub.f32 %v3543, %v3982
    %v3984 = vand.u32 %v3983, 4294901760
    %v3985 = vsub.f32 %v3983, %v3984
    %v3986 = vand.u32 %v3985, 4294901760
    %3987 = vmatpush.msra.mxu0 %v3986
    %v3988 = vand.u32 %v3542, 4294901760
    %v3989 = vsub.f32 %v3542, %v3988
    %v3990 = vand.u32 %v3989, 4294901760
    %v3991 = vsub.f32 %v3989, %v3990
    %v3992 = vand.u32 %v3991, 4294901760
    %3993 = vmatpush.msra.mxu0 %v3992
    %v3994 = vand.u32 %v3541, 4294901760
    %v3995 = vsub.f32 %v3541, %v3994
    %v3996 = vand.u32 %v3995, 4294901760
    %v3997 = vsub.f32 %v3995, %v3996
    %v3998 = vand.u32 %v3997, 4294901760
    %3999 = vmatpush.msra.mxu0 %v3998
    %v4000 = vand.u32 %v3540, 4294901760
    %v4001 = vsub.f32 %v3540, %v4000
    %v4002 = vand.u32 %v4001, 4294901760
    %v4003 = vsub.f32 %v4001, %v4002
    %v4004 = vand.u32 %v4003, 4294901760
    %4005 = vmatpush.msra.mxu0 %v4004
    %v4006 = vand.u32 %v3539, 4294901760
    %v4007 = vsub.f32 %v3539, %v4006
    %v4008 = vand.u32 %v4007, 4294901760
    %v4009 = vsub.f32 %v4007, %v4008
    %v4010 = vand.u32 %v4009, 4294901760
    %4011 = vmatpush.msra.mxu0 %v4010
    %v4012 = vand.u32 %v3538, 4294901760
    %v4013 = vsub.f32 %v3538, %v4012
    %v4014 = vand.u32 %v4013, 4294901760
    %v4015 = vsub.f32 %v4013, %v4014
    %v4016 = vand.u32 %v4015, 4294901760
    %4017 = vmatpush.msra.mxu0 %v4016
    %v4018 = vand.u32 %v3537, 4294901760
    %v4019 = vsub.f32 %v3537, %v4018
    %v4020 = vand.u32 %v4019, 4294901760
    %v4021 = vsub.f32 %v4019, %v4020
    %v4022 = vand.u32 %v4021, 4294901760
    %4023 = vmatpush.msra.mxu0 %v4022
    %v4024 = vand.u32 %v3536, 4294901760
    %v4025 = vsub.f32 %v3536, %v4024
    %v4026 = vand.u32 %v4025, 4294901760
    %v4027 = vsub.f32 %v4025, %v4026
    %v4028 = vand.u32 %v4027, 4294901760
    %4029 = vmatpush.msra.mxu0 %v4028
    %v4030 = vand.u32 %v3535, 4294901760
    %v4031 = vsub.f32 %v3535, %v4030
    %v4032 = vand.u32 %v4031, 4294901760
    %v4033 = vsub.f32 %v4031, %v4032
    %v4034 = vand.u32 %v4033, 4294901760
    %4035 = vmatpush.msra.mxu0 %v4034
    %v4036 = vand.u32 %v3518, 4294901760
    %4037 = vmatmul.f32.gmra.mxu0 %v4036
    %v4038 = vpop.f32.mrf.mxu0
    %v4039 = vadd.f32 %v3938, %v4038
    %4040 = vdwg.mxu0
    %v4041 = vand.u32 %v3550, 4294901760
    %v4042 = vsub.f32 %v3550, %v4041
    %4043 = vmatpush.msra.mxu0 %v4042
    %v4044 = vand.u32 %v3549, 4294901760
    %v4045 = vsub.f32 %v3549, %v4044
    %4046 = vmatpush.msra.mxu0 %v4045
    %v4047 = vand.u32 %v3548, 4294901760
    %v4048 = vsub.f32 %v3548, %v4047
    %4049 = vmatpush.msra.mxu0 %v4048
    %v4050 = vand.u32 %v3547, 4294901760
    %v4051 = vsub.f32 %v3547, %v4050
    %4052 = vmatpush.msra.mxu0 %v4051
    %v4053 = vand.u32 %v3546, 4294901760
    %v4054 = vsub.f32 %v3546, %v4053
    %4055 = vmatpush.msra.mxu0 %v4054
    %v4056 = vand.u32 %v3545, 4294901760
    %v4057 = vsub.f32 %v3545, %v4056
    %4058 = vmatpush.msra.mxu0 %v4057
    %v4059 = vand.u32 %v3544, 4294901760
    %v4060 = vsub.f32 %v3544, %v4059
    %4061 = vmatpush.msra.mxu0 %v4060
    %v4062 = vand.u32 %v3543, 4294901760
    %v4063 = vsub.f32 %v3543, %v4062
    %4064 = vmatpush.msra.mxu0 %v4063
    %v4065 = vand.u32 %v3542, 4294901760
    %v4066 = vsub.f32 %v3542, %v4065
    %4067 = vmatpush.msra.mxu0 %v4066
    %v4068 = vand.u32 %v3541, 4294901760
    %v4069 = vsub.f32 %v3541, %v4068
    %4070 = vmatpush.msra.mxu0 %v4069
    %v4071 = vand.u32 %v3540, 4294901760
    %v4072 = vsub.f32 %v3540, %v4071
    %4073 = vmatpush.msra.mxu0 %v4072
    %v4074 = vand.u32 %v3539, 4294901760
    %v4075 = vsub.f32 %v3539, %v4074
    %4076 = vmatpush.msra.mxu0 %v4075
    %v4077 = vand.u32 %v3538, 4294901760
    %v4078 = vsub.f32 %v3538, %v4077
    %4079 = vmatpush.msra.mxu0 %v4078
    %v4080 = vand.u32 %v3537, 4294901760
    %v4081 = vsub.f32 %v3537, %v4080
    %4082 = vmatpush.msra.mxu0 %v4081
    %v4083 = vand.u32 %v3536, 4294901760
    %v4084 = vsub.f32 %v3536, %v4083
    %4085 = vmatpush.msra.mxu0 %v4084
    %v4086 = vand.u32 %v3535, 4294901760
    %v4087 = vsub.f32 %v3535, %v4086
    %4088 = vmatpush.msra.mxu0 %v4087
    %v4089 = vand.u32 %v3518, 4294901760
    %v4090 = vsub.f32 %v3518, %v4089
    %4091 = vmatmul.f32.gmra.mxu0 %v4090
    %v4092 = vpop.f32.mrf.mxu0
    %v4093 = vadd.f32 %v4039, %v4092
    %4094 = vdwg.mxu0
    %v4095 = vand.u32 %v3550, 4294901760
    %4096 = vmatpush.msra.mxu0 %v4095
    %v4097 = vand.u32 %v3549, 4294901760
    %4098 = vmatpush.msra.mxu0 %v4097
    %v4099 = vand.u32 %v3548, 4294901760
    %4100 = vmatpush.msra.mxu0 %v4099
    %v4101 = vand.u32 %v3547, 4294901760
    %4102 = vmatpush.msra.mxu0 %v4101
    %v4103 = vand.u32 %v3546, 4294901760
    %4104 = vmatpush.msra.mxu0 %v4103
    %v4105 = vand.u32 %v3545, 4294901760
    %4106 = vmatpush.msra.mxu0 %v4105
    %v4107 = vand.u32 %v3544, 4294901760
    %4108 = vmatpush.msra.mxu0 %v4107
    %v4109 = vand.u32 %v3543, 4294901760
    %4110 = vmatpush.msra.mxu0 %v4109
    %v4111 = vand.u32 %v3542, 4294901760
    %4112 = vmatpush.msra.mxu0 %v4111
    %v4113 = vand.u32 %v3541, 4294901760
    %4114 = vmatpush.msra.mxu0 %v4113
    %v4115 = vand.u32 %v3540, 4294901760
    %4116 = vmatpush.msra.mxu0 %v4115
    %v4117 = vand.u32 %v3539, 4294901760
    %4118 = vmatpush.msra.mxu0 %v4117
    %v4119 = vand.u32 %v3538, 4294901760
    %4120 = vmatpush.msra.mxu0 %v4119
    %v4121 = vand.u32 %v3537, 4294901760
    %4122 = vmatpush.msra.mxu0 %v4121
    %v4123 = vand.u32 %v3536, 4294901760
    %4124 = vmatpush.msra.mxu0 %v4123
    %v4125 = vand.u32 %v3535, 4294901760
    %4126 = vmatpush.msra.mxu0 %v4125
    %v4127 = vand.u32 %v3518, 4294901760
    %v4128 = vsub.f32 %v3518, %v4127
    %v4129 = vand.u32 %v4128, 4294901760
    %4130 = vmatmul.f32.gmra.mxu0 %v4129
    %v4131 = vpop.f32.mrf.mxu0
    %v4132 = vadd.f32 %v4093, %v4131
    %4133 = vdwg.mxu0
    %v4134 = vand.u32 %v3550, 4294901760
    %v4135 = vsub.f32 %v3550, %v4134
    %v4136 = vand.u32 %v4135, 4294901760
    %4137 = vmatpush.msra.mxu0 %v4136
    %v4138 = vand.u32 %v3549, 4294901760
    %v4139 = vsub.f32 %v3549, %v4138
    %v4140 = vand.u32 %v4139, 4294901760
    %4141 = vmatpush.msra.mxu0 %v4140
    %v4142 = vand.u32 %v3548, 4294901760
    %v4143 = vsub.f32 %v3548, %v4142
    %v4144 = vand.u32 %v4143, 4294901760
    %4145 = vmatpush.msra.mxu0 %v4144
    %v4146 = vand.u32 %v3547, 4294901760
    %v4147 = vsub.f32 %v3547, %v4146
    %v4148 = vand.u32 %v4147, 4294901760
    %4149 = vmatpush.msra.mxu0 %v4148
    %v4150 = vand.u32 %v3546, 4294901760
    %v4151 = vsub.f32 %v3546, %v4150
    %v4152 = vand.u32 %v4151, 4294901760
    %4153 = vmatpush.msra.mxu0 %v4152
    %v4154 = vand.u32 %v3545, 4294901760
    %v4155 = vsub.f32 %v3545, %v4154
    %v4156 = vand.u32 %v4155, 4294901760
    %4157 = vmatpush.msra.mxu0 %v4156
    %v4158 = vand.u32 %v3544, 4294901760
    %v4159 = vsub.f32 %v3544, %v4158
    %v4160 = vand.u32 %v4159, 4294901760
    %4161 = vmatpush.msra.mxu0 %v4160
    %v4162 = vand.u32 %v3543, 4294901760
    %v4163 = vsub.f32 %v3543, %v4162
    %v4164 = vand.u32 %v4163, 4294901760
    %4165 = vmatpush.msra.mxu0 %v4164
    %v4166 = vand.u32 %v3542, 4294901760
    %v4167 = vsub.f32 %v3542, %v4166
    %v4168 = vand.u32 %v4167, 4294901760
    %4169 = vmatpush.msra.mxu0 %v4168
    %v4170 = vand.u32 %v3541, 4294901760
    %v4171 = vsub.f32 %v3541, %v4170
    %v4172 = vand.u32 %v4171, 4294901760
    %4173 = vmatpush.msra.mxu0 %v4172
    %v4174 = vand.u32 %v3540, 4294901760
    %v4175 = vsub.f32 %v3540, %v4174
    %v4176 = vand.u32 %v4175, 4294901760
    %4177 = vmatpush.msra.mxu0 %v4176
    %v4178 = vand.u32 %v3539, 4294901760
    %v4179 = vsub.f32 %v3539, %v4178
    %v4180 = vand.u32 %v4179, 4294901760
    %4181 = vmatpush.msra.mxu0 %v4180
    %v4182 = vand.u32 %v3538, 4294901760
    %v4183 = vsub.f32 %v3538, %v4182
    %v4184 = vand.u32 %v4183, 4294901760
    %4185 = vmatpush.msra.mxu0 %v4184
    %v4186 = vand.u32 %v3537, 4294901760
    %v4187 = vsub.f32 %v3537, %v4186
    %v4188 = vand.u32 %v4187, 4294901760
    %4189 = vmatpush.msra.mxu0 %v4188
    %v4190 = vand.u32 %v3536, 4294901760
    %v4191 = vsub.f32 %v3536, %v4190
    %v4192 = vand.u32 %v4191, 4294901760
    %4193 = vmatpush.msra.mxu0 %v4192
    %v4194 = vand.u32 %v3535, 4294901760
    %v4195 = vsub.f32 %v3535, %v4194
    %v4196 = vand.u32 %v4195, 4294901760
    %4197 = vmatpush.msra.mxu0 %v4196
    %v4198 = vand.u32 %v3518, 4294901760
    %4199 = vmatmul.f32.gmra.mxu0 %v4198
    %v4200 = vpop.f32.mrf.mxu0
    %v4201 = vadd.f32 %v4132, %v4200
    %4202 = vdwg.mxu0
    %v4203 = vand.u32 %v3550, 4294901760
    %4204 = vmatpush.msra.mxu0 %v4203
    %v4205 = vand.u32 %v3549, 4294901760
    %4206 = vmatpush.msra.mxu0 %v4205
    %v4207 = vand.u32 %v3548, 4294901760
    %4208 = vmatpush.msra.mxu0 %v4207
    %v4209 = vand.u32 %v3547, 4294901760
    %4210 = vmatpush.msra.mxu0 %v4209
    %v4211 = vand.u32 %v3546, 4294901760
    %4212 = vmatpush.msra.mxu0 %v4211
    %v4213 = vand.u32 %v3545, 4294901760
    %4214 = vmatpush.msra.mxu0 %v4213
    %v4215 = vand.u32 %v3544, 4294901760
    %4216 = vmatpush.msra.mxu0 %v4215
    %v4217 = vand.u32 %v3543, 4294901760
    %4218 = vmatpush.msra.mxu0 %v4217
    %v4219 = vand.u32 %v3542, 4294901760
    %4220 = vmatpush.msra.mxu0 %v4219
    %v4221 = vand.u32 %v3541, 4294901760
    %4222 = vmatpush.msra.mxu0 %v4221
    %v4223 = vand.u32 %v3540, 4294901760
    %4224 = vmatpush.msra.mxu0 %v4223
    %v4225 = vand.u32 %v3539, 4294901760
    %4226 = vmatpush.msra.mxu0 %v4225
    %v4227 = vand.u32 %v3538, 4294901760
    %4228 = vmatpush.msra.mxu0 %v4227
    %v4229 = vand.u32 %v3537, 4294901760
    %4230 = vmatpush.msra.mxu0 %v4229
    %v4231 = vand.u32 %v3536, 4294901760
    %4232 = vmatpush.msra.mxu0 %v4231
    %v4233 = vand.u32 %v3535, 4294901760
    %4234 = vmatpush.msra.mxu0 %v4233
    %v4235 = vand.u32 %v3518, 4294901760
    %4236 = vmatmul.f32.gmra.mxu0 %v4235
    %v4237 = vpop.f32.mrf.mxu0
    %v4238 = vadd.f32 %v4201, %v4237
    %4239 = vdwg.mxu0
    %v4240 = vld [vmem:[%s13] sm:$0xff]
    %v4241 = vld [vmem:[%s13 + $0x8] sm:$0xff]
    %v4242 = vld [vmem:[%s13 + $0x10] sm:$0xff]
    %v4243 = vld [vmem:[%s13 + $0x18] sm:$0xff]
    %4245 = vrot.lane.b32.xlu0 %v3200, 32
    %v4246 = vpop.permute.xlu0 %4245
    %v4247 = vsel %vm171, %v4246, 0
    %4249 = vmatpush.msra.mxu0 0.0
    %4250 = vmatpush.msra.mxu0 0.0
    %4251 = vmatpush.msra.mxu0 0.0
    %4252 = vmatpush.msra.mxu0 0.0
    %4253 = vmatpush.msra.mxu0 0.0
    %4254 = vmatpush.msra.mxu0 0.0
    %4255 = vmatpush.msra.mxu0 0.0
    %4256 = vmatpush.msra.mxu0 0.0
    %4257 = vmatpush.msra.mxu0 0.0
    %4258 = vmatpush.msra.mxu0 0.0
    %4259 = vmatpush.msra.mxu0 0.0
    %4260 = vmatpush.msra.mxu0 0.0
    %v4261 = vand.u32 %v4243, 4294901760
    %4262 = vmatpush.msra.mxu0 %v4261
    %v4263 = vand.u32 %v4242, 4294901760
    %4264 = vmatpush.msra.mxu0 %v4263
    %v4265 = vand.u32 %v4241, 4294901760
    %4266 = vmatpush.msra.mxu0 %v4265
    %v4267 = vand.u32 %v4240, 4294901760
    %4268 = vmatpush.msra.mxu0 %v4267
    %v4269 = vand.u32 %v4247, 4294901760
    %v4270 = vsub.f32 %v4247, %v4269
    %v4271 = vand.u32 %v4270, 4294901760
    %v4272 = vsub.f32 %v4270, %v4271
    %v4273 = vand.u32 %v4272, 4294901760
    %4274 = vmatmul.f32.gmra.mxu0 %v4273
    %v4275 = vpop.f32.mrf.mxu0
    %v4276 = vadd.f32 0.0, %v4275
    %4277 = vdwg.mxu0
    %4278 = vmatpush.msra.mxu0 0.0
    %4279 = vmatpush.msra.mxu0 0.0
    %4280 = vmatpush.msra.mxu0 0.0
    %4281 = vmatpush.msra.mxu0 0.0
    %4282 = vmatpush.msra.mxu0 0.0
    %4283 = vmatpush.msra.mxu0 0.0
    %4284 = vmatpush.msra.mxu0 0.0
    %4285 = vmatpush.msra.mxu0 0.0
    %4286 = vmatpush.msra.mxu0 0.0
    %4287 = vmatpush.msra.mxu0 0.0
    %4288 = vmatpush.msra.mxu0 0.0
    %4289 = vmatpush.msra.mxu0 0.0
    %v4290 = vand.u32 %v4243, 4294901760
    %v4291 = vsub.f32 %v4243, %v4290
    %v4292 = vand.u32 %v4291, 4294901760
    %v4293 = vsub.f32 %v4291, %v4292
    %v4294 = vand.u32 %v4293, 4294901760
    %4295 = vmatpush.msra.mxu0 %v4294
    %v4296 = vand.u32 %v4242, 4294901760
    %v4297 = vsub.f32 %v4242, %v4296
    %v4298 = vand.u32 %v4297, 4294901760
    %v4299 = vsub.f32 %v4297, %v4298
    %v4300 = vand.u32 %v4299, 4294901760
    %4301 = vmatpush.msra.mxu0 %v4300
    %v4302 = vand.u32 %v4241, 4294901760
    %v4303 = vsub.f32 %v4241, %v4302
    %v4304 = vand.u32 %v4303, 4294901760
    %v4305 = vsub.f32 %v4303, %v4304
    %v4306 = vand.u32 %v4305, 4294901760
    %4307 = vmatpush.msra.mxu0 %v4306
    %v4308 = vand.u32 %v4240, 4294901760
    %v4309 = vsub.f32 %v4240, %v4308
    %v4310 = vand.u32 %v4309, 4294901760
    %v4311 = vsub.f32 %v4309, %v4310
    %v4312 = vand.u32 %v4311, 4294901760
    %4313 = vmatpush.msra.mxu0 %v4312
    %v4314 = vand.u32 %v4247, 4294901760
    %4315 = vmatmul.f32.gmra.mxu0 %v4314
    %v4316 = vpop.f32.mrf.mxu0
    %v4317 = vadd.f32 %v4276, %v4316
    %4318 = vdwg.mxu0
    %4319 = vmatpush.msra.mxu0 0.0
    %4320 = vmatpush.msra.mxu0 0.0
    %4321 = vmatpush.msra.mxu0 0.0
    %4322 = vmatpush.msra.mxu0 0.0
    %4323 = vmatpush.msra.mxu0 0.0
    %4324 = vmatpush.msra.mxu0 0.0
    %4325 = vmatpush.msra.mxu0 0.0
    %4326 = vmatpush.msra.mxu0 0.0
    %4327 = vmatpush.msra.mxu0 0.0
    %4328 = vmatpush.msra.mxu0 0.0
    %4329 = vmatpush.msra.mxu0 0.0
    %4330 = vmatpush.msra.mxu0 0.0
    %v4331 = vand.u32 %v4243, 4294901760
    %v4332 = vsub.f32 %v4243, %v4331
    %4333 = vmatpush.msra.mxu0 %v4332
    %v4334 = vand.u32 %v4242, 4294901760
    %v4335 = vsub.f32 %v4242, %v4334
    %4336 = vmatpush.msra.mxu0 %v4335
    %v4337 = vand.u32 %v4241, 4294901760
    %v4338 = vsub.f32 %v4241, %v4337
    %4339 = vmatpush.msra.mxu0 %v4338
    %v4340 = vand.u32 %v4240, 4294901760
    %v4341 = vsub.f32 %v4240, %v4340
    %4342 = vmatpush.msra.mxu0 %v4341
    %v4343 = vand.u32 %v4247, 4294901760
    %v4344 = vsub.f32 %v4247, %v4343
    %4345 = vmatmul.f32.gmra.mxu0 %v4344
    %v4346 = vpop.f32.mrf.mxu0
    %v4347 = vadd.f32 %v4317, %v4346
    %4348 = vdwg.mxu0
    %4349 = vmatpush.msra.mxu0 0.0
    %4350 = vmatpush.msra.mxu0 0.0
    %4351 = vmatpush.msra.mxu0 0.0
    %4352 = vmatpush.msra.mxu0 0.0
    %4353 = vmatpush.msra.mxu0 0.0
    %4354 = vmatpush.msra.mxu0 0.0
    %4355 = vmatpush.msra.mxu0 0.0
    %4356 = vmatpush.msra.mxu0 0.0
    %4357 = vmatpush.msra.mxu0 0.0
    %4358 = vmatpush.msra.mxu0 0.0
    %4359 = vmatpush.msra.mxu0 0.0
    %4360 = vmatpush.msra.mxu0 0.0
    %v4361 = vand.u32 %v4243, 4294901760
    %4362 = vmatpush.msra.mxu0 %v4361
    %v4363 = vand.u32 %v4242, 4294901760
    %4364 = vmatpush.msra.mxu0 %v4363
    %v4365 = vand.u32 %v4241, 4294901760
    %4366 = vmatpush.msra.mxu0 %v4365
    %v4367 = vand.u32 %v4240, 4294901760
    %4368 = vmatpush.msra.mxu0 %v4367
    %v4369 = vand.u32 %v4247, 4294901760
    %v4370 = vsub.f32 %v4247, %v4369
    %v4371 = vand.u32 %v4370, 4294901760
    %4372 = vmatmul.f32.gmra.mxu0 %v4371
    %v4373 = vpop.f32.mrf.mxu0
    %v4374 = vadd.f32 %v4347, %v4373
    %4375 = vdwg.mxu0
    %4376 = vmatpush.msra.mxu0 0.0
    %4377 = vmatpush.msra.mxu0 0.0
    %4378 = vmatpush.msra.mxu0 0.0
    %4379 = vmatpush.msra.mxu0 0.0
    %4380 = vmatpush.msra.mxu0 0.0
    %4381 = vmatpush.msra.mxu0 0.0
    %4382 = vmatpush.msra.mxu0 0.0
    %4383 = vmatpush.msra.mxu0 0.0
    %4384 = vmatpush.msra.mxu0 0.0
    %4385 = vmatpush.msra.mxu0 0.0
    %4386 = vmatpush.msra.mxu0 0.0
    %4387 = vmatpush.msra.mxu0 0.0
    %v4388 = vand.u32 %v4243, 4294901760
    %v4389 = vsub.f32 %v4243, %v4388
    %v4390 = vand.u32 %v4389, 4294901760
    %4391 = vmatpush.msra.mxu0 %v4390
    %v4392 = vand.u32 %v4242, 4294901760
    %v4393 = vsub.f32 %v4242, %v4392
    %v4394 = vand.u32 %v4393, 4294901760
    %4395 = vmatpush.msra.mxu0 %v4394
    %v4396 = vand.u32 %v4241, 4294901760
    %v4397 = vsub.f32 %v4241, %v4396
    %v4398 = vand.u32 %v4397, 4294901760
    %4399 = vmatpush.msra.mxu0 %v4398
    %v4400 = vand.u32 %v4240, 4294901760
    %v4401 = vsub.f32 %v4240, %v4400
    %v4402 = vand.u32 %v4401, 4294901760
    %4403 = vmatpush.msra.mxu0 %v4402
    %v4404 = vand.u32 %v4247, 4294901760
    %4405 = vmatmul.f32.gmra.mxu0 %v4404
    %v4406 = vpop.f32.mrf.mxu0
    %v4407 = vadd.f32 %v4374, %v4406
    %4408 = vdwg.mxu0
    %4409 = vmatpush.msra.mxu0 0.0
    %4410 = vmatpush.msra.mxu0 0.0
    %4411 = vmatpush.msra.mxu0 0.0
    %4412 = vmatpush.msra.mxu0 0.0
    %4413 = vmatpush.msra.mxu0 0.0
    %4414 = vmatpush.msra.mxu0 0.0
    %4415 = vmatpush.msra.mxu0 0.0
    %4416 = vmatpush.msra.mxu0 0.0
    %4417 = vmatpush.msra.mxu0 0.0
    %4418 = vmatpush.msra.mxu0 0.0
    %4419 = vmatpush.msra.mxu0 0.0
    %4420 = vmatpush.msra.mxu0 0.0
    %v4421 = vand.u32 %v4243, 4294901760
    %4422 = vmatpush.msra.mxu0 %v4421
    %v4423 = vand.u32 %v4242, 4294901760
    %4424 = vmatpush.msra.mxu0 %v4423
    %v4425 = vand.u32 %v4241, 4294901760
    %4426 = vmatpush.msra.mxu0 %v4425
    %v4427 = vand.u32 %v4240, 4294901760
    %4428 = vmatpush.msra.mxu0 %v4427
    %v4429 = vand.u32 %v4247, 4294901760
    %4430 = vmatmul.f32.gmra.mxu0 %v4429
    %v4431 = vpop.f32.mrf.mxu0
    %v4432 = vadd.f32 %v4407, %v4431
    %4433 = vdwg.mxu0
    %4435 = vrot.lane.b32.xlu0 %v4432, 32
    %v4436 = vpop.permute.xlu0 %4435
    %v4438 = vadd.f32 %v3008, %v4436
    %v4439 = vtanh.pop %v4438
    %v4440 = vld [vmem:[%s14] sm:$0x1]
    %v4442 = vperm.slane %v4440, 0
    %4443 = vrot.lane.b32.xlu0 %v4442, 32
    %v4444 = vpop.permute.xlu0 %4443
    %v4446 = vmul.f32 %v4439, %v4444
    %4448 = vrot.lane.b32.xlu0 %v4446, 96
    %v4449 = vpop.permute.xlu0 %4448
    %v4451 = vsel %vm171, %v4449, 0.0
    %4452 = vadd.xlane.f32.xlu0 %v4451
    %v4453 = vpop.xlane.xlu0 %4452
    %v4454 = vld [vmem:[#allocation5] sm:$0x1]
    %v4456 = vperm.slane %v4454, 0
    %v4458 = vadd.f32 %v4453, %v4456
    %v4459 = vsel %vm152, %v4238, -inf
    %4460 = vmax.xlane.f32.xlu0 %v4459
    %v4461 = vpop.xlane.xlu0 %4460
    %v4462 = vmax.f32 %v4461, %v4458
    %4464 = vset.pattern.permute.xlu0 0
    %4465 = vperm.xlu0 %4464, %v4462
    %v4466 = vpop.permute.xlu0 %4465
    %v4468 = vsub.f32 %v4238, %v4466
    %v4469 = vmul.f32 %v4468, 1.442695
    %v4470 = vpow.pop %v4469
    %v4471 = vmul.f32 %v4470, %v151
    %v4472 = vsel %vm152, %v4471, 0.0
    %4473 = vadd.xlane.f32.xlu0 %v4472
    %v4474 = vpop.xlane.xlu0 %4473
    %v4475 = vrcp.pop %v4474
    %v4476 = vmul.f32 %v4474, %v4475
    %v4477 = vsub.f32 1.0, %v4476
    %v4478 = vmul.f32 %v4475, %v4477
    %v4479 = vadd.f32 %v4475, %v4478
    %vm4480 = vweird.f32 %v4474
    %vm4481 = vweird.f32 %v4475
    %vm4482 = vmor %vm4480, %vm4481
    %v4483 = vsel %vm4482, %v4475, %v4479
    %v4484 = vand.u32 2147483647, %v4474
    %vm4485 = vcmp.eq.f32.partialorder %v4484, 8.507059e+37
    %v4486 = vand.u32 %v4474, 2147483648
    %v4487 = vor.u32 1.1754944e-38, %v4486
    %v4488 = vsel %vm4485, %v4487, %v4483
    %v4489 = vmul.f32 %v4471, %v4488
    %v4490 = vmul.f32 %v4474, %v2116
    %v4491 = vsub.f32 %v4458, %v4462
    %v4492 = vmul.f32 %v4491, 1.442695
    %v4493 = vpow.pop %v4492
    %v4494 = vadd.f32 %v4490, %v4493
    %v4495 = vrcp.pop %v4494
    %v4496 = vmul.f32 %v4494, %v4495
    %v4497 = vsub.f32 1.0, %v4496
    %v4498 = vmul.f32 %v4495, %v4497
    %v4499 = vadd.f32 %v4495, %v4498
    %vm4500 = vweird.f32 %v4494
    %vm4501 = vweird.f32 %v4495
    %vm4502 = vmor %vm4500, %vm4501
    %v4503 = vsel %vm4502, %v4495, %v4499
    %v4504 = vand.u32 2147483647, %v4494
    %vm4505 = vcmp.eq.f32.partialorder %v4504, 8.507059e+37
    %v4506 = vand.u32 %v4494, 2147483648
    %v4507 = vor.u32 1.1754944e-38, %v4506
    %v4508 = vsel %vm4505, %v4507, %v4503
    %v4509 = vmul.f32 %v4493, %v4508
    %v4510 = vadd.f32 %v2137, %v4489
    %v4511 = vperm.slane %v4489, 0
    %v4512 = vlaneseq
    %v4513 = vshrl.u32 %v4512, 7
    %4515 = vset.pattern.permute.xlu0 %v4513
    %4516 = vperm.xlu0 %4515, %v4511
    %v4517 = vpop.permute.xlu0 %4516
    %v4518 = vperm.slane %v4489, 1
    %v4519 = vlaneseq
    %v4520 = vshrl.u32 %v4519, 7
    %4522 = vset.pattern.permute.xlu0 %v4520
    %4523 = vperm.xlu0 %4522, %v4518
    %v4524 = vpop.permute.xlu0 %4523
    %v4525 = vperm.slane %v4489, 2
    %v4526 = vlaneseq
    %v4527 = vshrl.u32 %v4526, 7
    %4529 = vset.pattern.permute.xlu0 %v4527
    %4530 = vperm.xlu0 %4529, %v4525
    %v4531 = vpop.permute.xlu0 %4530
    %v4532 = vperm.slane %v4489, 3
    %v4533 = vlaneseq
    %v4534 = vshrl.u32 %v4533, 7
    %4536 = vset.pattern.permute.xlu0 %v4534
    %4537 = vperm.xlu0 %4536, %v4532
    %v4538 = vpop.permute.xlu0 %4537
    %v4539 = vperm.slane %v4489, 4
    %v4540 = vlaneseq
    %v4541 = vshrl.u32 %v4540, 7
    %4543 = vset.pattern.permute.xlu0 %v4541
    %4544 = vperm.xlu0 %4543, %v4539
    %v4545 = vpop.permute.xlu0 %4544
    %v4546 = vperm.slane %v4489, 5
    %v4547 = vlaneseq
    %v4548 = vshrl.u32 %v4547, 7
    %4550 = vset.pattern.permute.xlu0 %v4548
    %4551 = vperm.xlu0 %4550, %v4546
    %v4552 = vpop.permute.xlu0 %4551
    %v4553 = vperm.slane %v4489, 6
    %v4554 = vlaneseq
    %v4555 = vshrl.u32 %v4554, 7
    %4557 = vset.pattern.permute.xlu0 %v4555
    %4558 = vperm.xlu0 %4557, %v4553
    %v4559 = vpop.permute.xlu0 %4558
    %v4560 = vperm.slane %v4489, 7
    %v4561 = vlaneseq
    %v4562 = vshrl.u32 %v4561, 7
    %4564 = vset.pattern.permute.xlu0 %v4562
    %4565 = vperm.xlu0 %4564, %v4560
    %v4566 = vpop.permute.xlu0 %4565
    %v4567 = vmul.f32 %v143, %v4517
    %v4568 = vmul.f32 %v144, %v4524
    %v4569 = vmul.f32 %v145, %v4531
    %v4570 = vmul.f32 %v146, %v4538
    %v4571 = vmul.f32 %v147, %v4545
    %v4572 = vmul.f32 %v148, %v4552
    %v4573 = vmul.f32 %v149, %v4559
    %v4574 = vmul.f32 %v150, %v4566
    %v4575 = vsel %vm171, %v4567, 0.0
    %v4576 = vrot.slane %v4575, 4
    %v4577 = vadd.f32 %v4575, %v4576
    %v4578 = vrot.slane %v4577, 2
    %v4579 = vadd.f32 %v4577, %v4578
    %v4580 = vrot.slane %v4579, 1
    %v4581 = vadd.f32 %v4579, %v4580
    %v4582 = vsel %vm171, %v4568, 0.0
    %v4583 = vrot.slane %v4582, 4
    %v4584 = vadd.f32 %v4582, %v4583
    %v4585 = vrot.slane %v4584, 2
    %v4586 = vadd.f32 %v4584, %v4585
    %v4587 = vrot.slane %v4586, 1
    %v4588 = vadd.f32 %v4586, %v4587
    %v4589 = vsel %vm171, %v4569, 0.0
    %v4590 = vrot.slane %v4589, 4
    %v4591 = vadd.f32 %v4589, %v4590
    %v4592 = vrot.slane %v4591, 2
    %v4593 = vadd.f32 %v4591, %v4592
    %v4594 = vrot.slane %v4593, 1
    %v4595 = vadd.f32 %v4593, %v4594
    %v4596 = vsel %vm171, %v4570, 0.0
    %v4597 = vrot.slane %v4596, 4
    %v4598 = vadd.f32 %v4596, %v4597
    %v4599 = vrot.slane %v4598, 2
    %v4600 = vadd.f32 %v4598, %v4599
    %v4601 = vrot.slane %v4600, 1
    %v4602 = vadd.f32 %v4600, %v4601
    %v4603 = vsel %vm171, %v4571, 0.0
    %v4604 = vrot.slane %v4603, 4
    %v4605 = vadd.f32 %v4603, %v4604
    %v4606 = vrot.slane %v4605, 2
    %v4607 = vadd.f32 %v4605, %v4606
    %v4608 = vrot.slane %v4607, 1
    %v4609 = vadd.f32 %v4607, %v4608
    %v4610 = vsel %vm171, %v4572, 0.0
    %v4611 = vrot.slane %v4610, 4
    %v4612 = vadd.f32 %v4610, %v4611
    %v4613 = vrot.slane %v4612, 2
    %v4614 = vadd.f32 %v4612, %v4613
    %v4615 = vrot.slane %v4614, 1
    %v4616 = vadd.f32 %v4614, %v4615
    %v4617 = vsel %vm171, %v4573, 0.0
    %v4618 = vrot.slane %v4617, 4
    %v4619 = vadd.f32 %v4617, %v4618
    %v4620 = vrot.slane %v4619, 2
    %v4621 = vadd.f32 %v4619, %v4620
    %v4622 = vrot.slane %v4621, 1
    %v4623 = vadd.f32 %v4621, %v4622
    %v4624 = vsel %vm171, %v4574, 0.0
    %v4625 = vrot.slane %v4624, 4
    %v4626 = vadd.f32 %v4624, %v4625
    %v4627 = vrot.slane %v4626, 2
    %v4628 = vadd.f32 %v4626, %v4627
    %v4629 = vrot.slane %v4628, 1
    %v4630 = vadd.f32 %v4628, %v4629
    %4632 = vset.pattern.permute.xlu0 0
    %4633 = vperm.xlu0 %4632, %v4509
    %v4634 = vpop.permute.xlu0 %4633
    %v4636 = vmul.f32 %v4634, %v3200
    %v4637 = vsub.f32 1.0, %v4509
    %4639 = vset.pattern.permute.xlu0 0
    %4640 = vperm.xlu0 %4639, %v4637
    %v4641 = vpop.permute.xlu0 %4640
    %v4651 = vsel %vm2278, %v4588, %v4581
    %v4652 = vsel %vm2280, %v4595, %v4651
    %v4653 = vsel %vm2282, %v4602, %v4652
    %v4654 = vsel %vm2284, %v4609, %v4653
    %v4655 = vsel %vm2286, %v4616, %v4654
    %v4656 = vsel %vm2288, %v4623, %v4655
    %v4657 = vsel %vm2290, %v4630, %v4656
    %v4659 = vmul.f32 %v4641, %v4657
    %4661 = vrot.lane.b32.xlu0 %v4659, 96
    %v4662 = vpop.permute.xlu0 %4661
    %v4664 = vadd.f32 %v4636, %v4662
    %v4665 = vld [vmem:[#allocation14] sm:$0xff]
    %v4666 = vld [vmem:[#allocation14 + $0x8] sm:$0xff]
    %v4667 = vld [vmem:[#allocation14 + $0x10] sm:$0xff]
    %v4668 = vld [vmem:[#allocation14 + $0x18] sm:$0xff]
    %4670 = vrot.lane.b32.xlu0 %v4664, 32
    %v4671 = vpop.permute.xlu0 %4670
    %v4672 = vsel %vm171, %v4671, 0
    %4674 = vmatpush.msra.mxu0 0.0
    %4675 = vmatpush.msra.mxu0 0.0
    %4676 = vmatpush.msra.mxu0 0.0
    %4677 = vmatpush.msra.mxu0 0.0
    %4678 = vmatpush.msra.mxu0 0.0
    %4679 = vmatpush.msra.mxu0 0.0
    %4680 = vmatpush.msra.mxu0 0.0
    %4681 = vmatpush.msra.mxu0 0.0
    %4682 = vmatpush.msra.mxu0 0.0
    %4683 = vmatpush.msra.mxu0 0.0
    %4684 = vmatpush.msra.mxu0 0.0
    %4685 = vmatpush.msra.mxu0 0.0
    %v4686 = vand.u32 %v4668, 4294901760
    %4687 = vmatpush.msra.mxu0 %v4686
    %v4688 = vand.u32 %v4667, 4294901760
    %4689 = vmatpush.msra.mxu0 %v4688
    %v4690 = vand.u32 %v4666, 4294901760
    %4691 = vmatpush.msra.mxu0 %v4690
    %v4692 = vand.u32 %v4665, 4294901760
    %4693 = vmatpush.msra.mxu0 %v4692
    %v4694 = vand.u32 %v4672, 4294901760
    %v4695 = vsub.f32 %v4672, %v4694
    %v4696 = vand.u32 %v4695, 4294901760
    %v4697 = vsub.f32 %v4695, %v4696
    %v4698 = vand.u32 %v4697, 4294901760
    %4699 = vmatmul.f32.gmra.mxu0 %v4698
    %v4700 = vpop.f32.mrf.mxu0
    %v4701 = vadd.f32 0.0, %v4700
    %4702 = vdwg.mxu0
    %4703 = vmatpush.msra.mxu0 0.0
    %4704 = vmatpush.msra.mxu0 0.0
    %4705 = vmatpush.msra.mxu0 0.0
    %4706 = vmatpush.msra.mxu0 0.0
    %4707 = vmatpush.msra.mxu0 0.0
    %4708 = vmatpush.msra.mxu0 0.0
    %4709 = vmatpush.msra.mxu0 0.0
    %4710 = vmatpush.msra.mxu0 0.0
    %4711 = vmatpush.msra.mxu0 0.0
    %4712 = vmatpush.msra.mxu0 0.0
    %4713 = vmatpush.msra.mxu0 0.0
    %4714 = vmatpush.msra.mxu0 0.0
    %v4715 = vand.u32 %v4668, 4294901760
    %v4716 = vsub.f32 %v4668, %v4715
    %v4717 = vand.u32 %v4716, 4294901760
    %v4718 = vsub.f32 %v4716, %v4717
    %v4719 = vand.u32 %v4718, 4294901760
    %4720 = vmatpush.msra.mxu0 %v4719
    %v4721 = vand.u32 %v4667, 4294901760
    %v4722 = vsub.f32 %v4667, %v4721
    %v4723 = vand.u32 %v4722, 4294901760
    %v4724 = vsub.f32 %v4722, %v4723
    %v4725 = vand.u32 %v4724, 4294901760
    %4726 = vmatpush.msra.mxu0 %v4725
    %v4727 = vand.u32 %v4666, 4294901760
    %v4728 = vsub.f32 %v4666, %v4727
    %v4729 = vand.u32 %v4728, 4294901760
    %v4730 = vsub.f32 %v4728, %v4729
    %v4731 = vand.u32 %v4730, 4294901760
    %4732 = vmatpush.msra.mxu0 %v4731
    %v4733 = vand.u32 %v4665, 4294901760
    %v4734 = vsub.f32 %v4665, %v4733
    %v4735 = vand.u32 %v4734, 4294901760
    %v4736 = vsub.f32 %v4734, %v4735
    %v4737 = vand.u32 %v4736, 4294901760
    %4738 = vmatpush.msra.mxu0 %v4737
    %v4739 = vand.u32 %v4672, 4294901760
    %4740 = vmatmul.f32.gmra.mxu0 %v4739
    %v4741 = vpop.f32.mrf.mxu0
    %v4742 = vadd.f32 %v4701, %v4741
    %4743 = vdwg.mxu0
    %4744 = vmatpush.msra.mxu0 0.0
    %4745 = vmatpush.msra.mxu0 0.0
    %4746 = vmatpush.msra.mxu0 0.0
    %4747 = vmatpush.msra.mxu0 0.0
    %4748 = vmatpush.msra.mxu0 0.0
    %4749 = vmatpush.msra.mxu0 0.0
    %4750 = vmatpush.msra.mxu0 0.0
    %4751 = vmatpush.msra.mxu0 0.0
    %4752 = vmatpush.msra.mxu0 0.0
    %4753 = vmatpush.msra.mxu0 0.0
    %4754 = vmatpush.msra.mxu0 0.0
    %4755 = vmatpush.msra.mxu0 0.0
    %v4756 = vand.u32 %v4668, 4294901760
    %v4757 = vsub.f32 %v4668, %v4756
    %4758 = vmatpush.msra.mxu0 %v4757
    %v4759 = vand.u32 %v4667, 4294901760
    %v4760 = vsub.f32 %v4667, %v4759
    %4761 = vmatpush.msra.mxu0 %v4760
    %v4762 = vand.u32 %v4666, 4294901760
    %v4763 = vsub.f32 %v4666, %v4762
    %4764 = vmatpush.msra.mxu0 %v4763
    %v4765 = vand.u32 %v4665, 4294901760
    %v4766 = vsub.f32 %v4665, %v4765
    %4767 = vmatpush.msra.mxu0 %v4766
    %v4768 = vand.u32 %v4672, 4294901760
    %v4769 = vsub.f32 %v4672, %v4768
    %4770 = vmatmul.f32.gmra.mxu0 %v4769
    %v4771 = vpop.f32.mrf.mxu0
    %v4772 = vadd.f32 %v4742, %v4771
    %4773 = vdwg.mxu0
    %4774 = vmatpush.msra.mxu0 0.0
    %4775 = vmatpush.msra.mxu0 0.0
    %4776 = vmatpush.msra.mxu0 0.0
    %4777 = vmatpush.msra.mxu0 0.0
    %4778 = vmatpush.msra.mxu0 0.0
    %4779 = vmatpush.msra.mxu0 0.0
    %4780 = vmatpush.msra.mxu0 0.0
    %4781 = vmatpush.msra.mxu0 0.0
    %4782 = vmatpush.msra.mxu0 0.0
    %4783 = vmatpush.msra.mxu0 0.0
    %4784 = vmatpush.msra.mxu0 0.0
    %4785 = vmatpush.msra.mxu0 0.0
    %v4786 = vand.u32 %v4668, 4294901760
    %4787 = vmatpush.msra.mxu0 %v4786
    %v4788 = vand.u32 %v4667, 4294901760
    %4789 = vmatpush.msra.mxu0 %v4788
    %v4790 = vand.u32 %v4666, 4294901760
    %4791 = vmatpush.msra.mxu0 %v4790
    %v4792 = vand.u32 %v4665, 4294901760
    %4793 = vmatpush.msra.mxu0 %v4792
    %v4794 = vand.u32 %v4672, 4294901760
    %v4795 = vsub.f32 %v4672, %v4794
    %v4796 = vand.u32 %v4795, 4294901760
    %4797 = vmatmul.f32.gmra.mxu0 %v4796
    %v4798 = vpop.f32.mrf.mxu0
    %v4799 = vadd.f32 %v4772, %v4798
    %4800 = vdwg.mxu0
    %4801 = vmatpush.msra.mxu0 0.0
    %4802 = vmatpush.msra.mxu0 0.0
    %4803 = vmatpush.msra.mxu0 0.0
    %4804 = vmatpush.msra.mxu0 0.0
    %4805 = vmatpush.msra.mxu0 0.0
    %4806 = vmatpush.msra.mxu0 0.0
    %4807 = vmatpush.msra.mxu0 0.0
    %4808 = vmatpush.msra.mxu0 0.0
    %4809 = vmatpush.msra.mxu0 0.0
    %4810 = vmatpush.msra.mxu0 0.0
    %4811 = vmatpush.msra.mxu0 0.0
    %4812 = vmatpush.msra.mxu0 0.0
    %v4813 = vand.u32 %v4668, 4294901760
    %v4814 = vsub.f32 %v4668, %v4813
    %v4815 = vand.u32 %v4814, 4294901760
    %4816 = vmatpush.msra.mxu0 %v4815
    %v4817 = vand.u32 %v4667, 4294901760
    %v4818 = vsub.f32 %v4667, %v4817
    %v4819 = vand.u32 %v4818, 4294901760
    %4820 = vmatpush.msra.mxu0 %v4819
    %v4821 = vand.u32 %v4666, 4294901760
    %v4822 = vsub.f32 %v4666, %v4821
    %v4823 = vand.u32 %v4822, 4294901760
    %4824 = vmatpush.msra.mxu0 %v4823
    %v4825 = vand.u32 %v4665, 4294901760
    %v4826 = vsub.f32 %v4665, %v4825
    %v4827 = vand.u32 %v4826, 4294901760
    %4828 = vmatpush.msra.mxu0 %v4827
    %v4829 = vand.u32 %v4672, 4294901760
    %4830 = vmatmul.f32.gmra.mxu0 %v4829
    %v4831 = vpop.f32.mrf.mxu0
    %v4832 = vadd.f32 %v4799, %v4831
    %4833 = vdwg.mxu0
    %4834 = vmatpush.msra.mxu0 0.0
    %4835 = vmatpush.msra.mxu0 0.0
    %4836 = vmatpush.msra.mxu0 0.0
    %4837 = vmatpush.msra.mxu0 0.0
    %4838 = vmatpush.msra.mxu0 0.0
    %4839 = vmatpush.msra.mxu0 0.0
    %4840 = vmatpush.msra.mxu0 0.0
    %4841 = vmatpush.msra.mxu0 0.0
    %4842 = vmatpush.msra.mxu0 0.0
    %4843 = vmatpush.msra.mxu0 0.0
    %4844 = vmatpush.msra.mxu0 0.0
    %4845 = vmatpush.msra.mxu0 0.0
    %v4846 = vand.u32 %v4668, 4294901760
    %4847 = vmatpush.msra.mxu0 %v4846
    %v4848 = vand.u32 %v4667, 4294901760
    %4849 = vmatpush.msra.mxu0 %v4848
    %v4850 = vand.u32 %v4666, 4294901760
    %4851 = vmatpush.msra.mxu0 %v4850
    %v4852 = vand.u32 %v4665, 4294901760
    %4853 = vmatpush.msra.mxu0 %v4852
    %v4854 = vand.u32 %v4672, 4294901760
    %4855 = vmatmul.f32.gmra.mxu0 %v4854
    %v4856 = vpop.f32.mrf.mxu0
    %v4857 = vadd.f32 %v4832, %v4856
    %4858 = vdwg.mxu0
    %4860 = vrot.lane.b32.xlu0 %v4857, 64
    %v4861 = vpop.permute.xlu0 %4860
    %v4863 = vadd.f32 %v3201, %v4861
    %v4864 = vxor.u32 %v4863, 2147483648
    %v4865 = vmul.f32 %v4864, 1.442695
    %v4866 = vpow.pop %v4865
    %v4867 = vadd.f32 %v4866, 1.0
    %v4868 = vrcp.pop %v4867
    %v4869 = vmul.f32 %v4867, %v4868
    %v4870 = vsub.f32 1.0, %v4869
    %v4871 = vmul.f32 %v4868, %v4870
    %v4872 = vadd.f32 %v4868, %v4871
    %vm4873 = vweird.f32 %v4867
    %vm4874 = vweird.f32 %v4868
    %vm4875 = vmor %vm4873, %vm4874
    %v4876 = vsel %vm4875, %v4868, %v4872
    %v4877 = vand.u32 2147483647, %v4867
    %vm4878 = vcmp.eq.f32.partialorder %v4877, 8.507059e+37
    %v4879 = vand.u32 %v4867, 2147483648
    %v4880 = vor.u32 1.1754944e-38, %v4879
    %v4881 = vsel %vm4878, %v4880, %v4876
    %v4882 = vmul.f32 1.0, %v4881
    %4884 = vrot.lane.b32.xlu0 %v3202, 64
    %v4885 = vpop.permute.xlu0 %4884
    %v4887 = vmul.f32 %v4882, %v4885
    %v4888 = vadd.f32 %v4857, %v4887
    %v4889 = vtanh.pop %v4888
    %4890 = vrot.lane.b32.xlu0 %v2811, 64
    %v4891 = vpop.permute.xlu0 %4890
    %v4893 = vmul.f32 %v4882, %v4891
    %v4894 = vsub.f32 1.0, %v4882
    %4896 = vrot.lane.b32.xlu0 %v4889, 32
    %v4897 = vpop.permute.xlu0 %4896
    %v4899 = vmul.f32 %v4894, %v4897
    %v4900 = vadd.f32 %v4893, %v4899
    %v4901 = vmul.f32 %v2797, %v4900
    %v4902 = vmul.f32 %v2804, %v2811
    %4904 = vrot.lane.b32.xlu0 %v4902, 64
    %v4905 = vpop.permute.xlu0 %4904
    %v4907 = vadd.f32 %v4901, %v4905
    %4909 = vrot.lane.b32.xlu0 %v4907, 32
    %v4910 = vpop.permute.xlu0 %4909
    %4912 = vrot.lane.b32.xlu0 %v4664, 64
    %v4913 = vpop.permute.xlu0 %4912
    %4916 = vrot.lane.b32.xlu0 %v4489, 64
    %v4917 = vpop.permute.xlu0 %4916
    %v4919 = vsel %vm171, %v4910, %v4913
    %v4920 = vsel %vm825, %v4919, %v4917
    %v4921 = vsel %vm2555, %v4920, 0.0
    %s4922 = scalar_lea.vmem [#allocation15], 8
    %4923 = vst [vmem:[%s4922] sm:$0xff] %v4921
    %s4924 = scalar_lea.vmem %s0, 32
    %v4925 = vld [vmem:[%s4924] sm:$0xff]
    %v4926 = vld [vmem:[%s4924 + $0x8] sm:$0xff]
    %v4927 = vld [vmem:[%s6] sm:$0xff]
    %v4928 = vld [vmem:[%s6 + $0x8] sm:$0xff]
    %v4929 = vld [vmem:[%s6 + $0x10] sm:$0xff]
    %v4930 = vld [vmem:[%s6 + $0x18] sm:$0xff]
    %v4931 = vsel %vm171, %v4910, 0
    %4933 = vmatpush.msra.mxu0 0.0
    %4934 = vmatpush.msra.mxu0 0.0
    %4935 = vmatpush.msra.mxu0 0.0
    %4936 = vmatpush.msra.mxu0 0.0
    %4937 = vmatpush.msra.mxu0 0.0
    %4938 = vmatpush.msra.mxu0 0.0
    %4939 = vmatpush.msra.mxu0 0.0
    %4940 = vmatpush.msra.mxu0 0.0
    %4941 = vmatpush.msra.mxu0 0.0
    %4942 = vmatpush.msra.mxu0 0.0
    %4943 = vmatpush.msra.mxu0 0.0
    %4944 = vmatpush.msra.mxu0 0.0
    %v4945 = vand.u32 %v4930, 4294901760
    %4946 = vmatpush.msra.mxu0 %v4945
    %v4947 = vand.u32 %v4929, 4294901760
    %4948 = vmatpush.msra.mxu0 %v4947
    %v4949 = vand.u32 %v4928, 4294901760
    %4950 = vmatpush.msra.mxu0 %v4949
    %v4951 = vand.u32 %v4927, 4294901760
    %4952 = vmatpush.msra.mxu0 %v4951
    %v4953 = vand.u32 %v4931, 4294901760
    %v4954 = vsub.f32 %v4931, %v4953
    %v4955 = vand.u32 %v4954, 4294901760
    %v4956 = vsub.f32 %v4954, %v4955
    %v4957 = vand.u32 %v4956, 4294901760
    %4958 = vmatmul.f32.gmra.mxu0 %v4957
    %v4959 = vpop.f32.mrf.mxu0
    %v4960 = vadd.f32 0.0, %v4959
    %4961 = vdwg.mxu0
    %4962 = vmatpush.msra.mxu0 0.0
    %4963 = vmatpush.msra.mxu0 0.0
    %4964 = vmatpush.msra.mxu0 0.0
    %4965 = vmatpush.msra.mxu0 0.0
    %4966 = vmatpush.msra.mxu0 0.0
    %4967 = vmatpush.msra.mxu0 0.0
    %4968 = vmatpush.msra.mxu0 0.0
    %4969 = vmatpush.msra.mxu0 0.0
    %4970 = vmatpush.msra.mxu0 0.0
    %4971 = vmatpush.msra.mxu0 0.0
    %4972 = vmatpush.msra.mxu0 0.0
    %4973 = vmatpush.msra.mxu0 0.0
    %v4974 = vand.u32 %v4930, 4294901760
    %v4975 = vsub.f32 %v4930, %v4974
    %v4976 = vand.u32 %v4975, 4294901760
    %v4977 = vsub.f32 %v4975, %v4976
    %v4978 = vand.u32 %v4977, 4294901760
    %4979 = vmatpush.msra.mxu0 %v4978
    %v4980 = vand.u32 %v4929, 4294901760
    %v4981 = vsub.f32 %v4929, %v4980
    %v4982 = vand.u32 %v4981, 4294901760
    %v4983 = vsub.f32 %v4981, %v4982
    %v4984 = vand.u32 %v4983, 4294901760
    %4985 = vmatpush.msra.mxu0 %v4984
    %v4986 = vand.u32 %v4928, 4294901760
    %v4987 = vsub.f32 %v4928, %v4986
    %v4988 = vand.u32 %v4987, 4294901760
    %v4989 = vsub.f32 %v4987, %v4988
    %v4990 = vand.u32 %v4989, 4294901760
    %4991 = vmatpush.msra.mxu0 %v4990
    %v4992 = vand.u32 %v4927, 4294901760
    %v4993 = vsub.f32 %v4927, %v4992
    %v4994 = vand.u32 %v4993, 4294901760
    %v4995 = vsub.f32 %v4993, %v4994
    %v4996 = vand.u32 %v4995, 4294901760
    %4997 = vmatpush.msra.mxu0 %v4996
    %v4998 = vand.u32 %v4931, 4294901760
    %4999 = vmatmul.f32.gmra.mxu0 %v4998
    %v5000 = vpop.f32.mrf.mxu0
    %v5001 = vadd.f32 %v4960, %v5000
    %5002 = vdwg.mxu0
    %5003 = vmatpush.msra.mxu0 0.0
    %5004 = vmatpush.msra.mxu0 0.0
    %5005 = vmatpush.msra.mxu0 0.0
    %5006 = vmatpush.msra.mxu0 0.0
    %5007 = vmatpush.msra.mxu0 0.0
    %5008 = vmatpush.msra.mxu0 0.0
    %5009 = vmatpush.msra.mxu0 0.0
    %5010 = vmatpush.msra.mxu0 0.0
    %5011 = vmatpush.msra.mxu0 0.0
    %5012 = vmatpush.msra.mxu0 0.0
    %5013 = vmatpush.msra.mxu0 0.0
    %5014 = vmatpush.msra.mxu0 0.0
    %v5015 = vand.u32 %v4930, 4294901760
    %v5016 = vsub.f32 %v4930, %v5015
    %5017 = vmatpush.msra.mxu0 %v5016
    %v5018 = vand.u32 %v4929, 4294901760
    %v5019 = vsub.f32 %v4929, %v5018
    %5020 = vmatpush.msra.mxu0 %v5019
    %v5021 = vand.u32 %v4928, 4294901760
    %v5022 = vsub.f32 %v4928, %v5021
    %5023 = vmatpush.msra.mxu0 %v5022
    %v5024 = vand.u32 %v4927, 4294901760
    %v5025 = vsub.f32 %v4927, %v5024
    %5026 = vmatpush.msra.mxu0 %v5025
    %v5027 = vand.u32 %v4931, 4294901760
    %v5028 = vsub.f32 %v4931, %v5027
    %5029 = vmatmul.f32.gmra.mxu0 %v5028
    %v5030 = vpop.f32.mrf.mxu0
    %v5031 = vadd.f32 %v5001, %v5030
    %5032 = vdwg.mxu0
    %5033 = vmatpush.msra.mxu0 0.0
    %5034 = vmatpush.msra.mxu0 0.0
    %5035 = vmatpush.msra.mxu0 0.0
    %5036 = vmatpush.msra.mxu0 0.0
    %5037 = vmatpush.msra.mxu0 0.0
    %5038 = vmatpush.msra.mxu0 0.0
    %5039 = vmatpush.msra.mxu0 0.0
    %5040 = vmatpush.msra.mxu0 0.0
    %5041 = vmatpush.msra.mxu0 0.0
    %5042 = vmatpush.msra.mxu0 0.0
    %5043 = vmatpush.msra.mxu0 0.0
    %5044 = vmatpush.msra.mxu0 0.0
    %v5045 = vand.u32 %v4930, 4294901760
    %5046 = vmatpush.msra.mxu0 %v5045
    %v5047 = vand.u32 %v4929, 4294901760
    %5048 = vmatpush.msra.mxu0 %v5047
    %v5049 = vand.u32 %v4928, 4294901760
    %5050 = vmatpush.msra.mxu0 %v5049
    %v5051 = vand.u32 %v4927, 4294901760
    %5052 = vmatpush.msra.mxu0 %v5051
    %v5053 = vand.u32 %v4931, 4294901760
    %v5054 = vsub.f32 %v4931, %v5053
    %v5055 = vand.u32 %v5054, 4294901760
    %5056 = vmatmul.f32.gmra.mxu0 %v5055
    %v5057 = vpop.f32.mrf.mxu0
    %v5058 = vadd.f32 %v5031, %v5057
    %5059 = vdwg.mxu0
    %5060 = vmatpush.msra.mxu0 0.0
    %5061 = vmatpush.msra.mxu0 0.0
    %5062 = vmatpush.msra.mxu0 0.0
    %5063 = vmatpush.msra.mxu0 0.0
    %5064 = vmatpush.msra.mxu0 0.0
    %5065 = vmatpush.msra.mxu0 0.0
    %5066 = vmatpush.msra.mxu0 0.0
    %5067 = vmatpush.msra.mxu0 0.0
    %5068 = vmatpush.msra.mxu0 0.0
    %5069 = vmatpush.msra.mxu0 0.0
    %5070 = vmatpush.msra.mxu0 0.0
    %5071 = vmatpush.msra.mxu0 0.0
    %v5072 = vand.u32 %v4930, 4294901760
    %v5073 = vsub.f32 %v4930, %v5072
    %v5074 = vand.u32 %v5073, 4294901760
    %5075 = vmatpush.msra.mxu0 %v5074
    %v5076 = vand.u32 %v4929, 4294901760
    %v5077 = vsub.f32 %v4929, %v5076
    %v5078 = vand.u32 %v5077, 4294901760
    %5079 = vmatpush.msra.mxu0 %v5078
    %v5080 = vand.u32 %v4928, 4294901760
    %v5081 = vsub.f32 %v4928, %v5080
    %v5082 = vand.u32 %v5081, 4294901760
    %5083 = vmatpush.msra.mxu0 %v5082
    %v5084 = vand.u32 %v4927, 4294901760
    %v5085 = vsub.f32 %v4927, %v5084
    %v5086 = vand.u32 %v5085, 4294901760
    %5087 = vmatpush.msra.mxu0 %v5086
    %v5088 = vand.u32 %v4931, 4294901760
    %5089 = vmatmul.f32.gmra.mxu0 %v5088
    %v5090 = vpop.f32.mrf.mxu0
    %v5091 = vadd.f32 %v5058, %v5090
    %5092 = vdwg.mxu0
    %5093 = vmatpush.msra.mxu0 0.0
    %5094 = vmatpush.msra.mxu0 0.0
    %5095 = vmatpush.msra.mxu0 0.0
    %5096 = vmatpush.msra.mxu0 0.0
    %5097 = vmatpush.msra.mxu0 0.0
    %5098 = vmatpush.msra.mxu0 0.0
    %5099 = vmatpush.msra.mxu0 0.0
    %5100 = vmatpush.msra.mxu0 0.0
    %5101 = vmatpush.msra.mxu0 0.0
    %5102 = vmatpush.msra.mxu0 0.0
    %5103 = vmatpush.msra.mxu0 0.0
    %5104 = vmatpush.msra.mxu0 0.0
    %v5105 = vand.u32 %v4930, 4294901760
    %5106 = vmatpush.msra.mxu0 %v5105
    %v5107 = vand.u32 %v4929, 4294901760
    %5108 = vmatpush.msra.mxu0 %v5107
    %v5109 = vand.u32 %v4928, 4294901760
    %5110 = vmatpush.msra.mxu0 %v5109
    %v5111 = vand.u32 %v4927, 4294901760
    %5112 = vmatpush.msra.mxu0 %v5111
    %v5113 = vand.u32 %v4931, 4294901760
    %5114 = vmatmul.f32.gmra.mxu0 %v5113
    %v5115 = vpop.f32.mrf.mxu0
    %v5116 = vadd.f32 %v5091, %v5115
    %5117 = vdwg.mxu0
    %v5118 = vadd.f32 %v5116, %v4925
    %v5119 = vxor.u32 %v5118, 2147483648
    %v5120 = vmul.f32 %v5119, 1.442695
    %v5121 = vpow.pop %v5120
    %v5122 = vadd.f32 %v5121, 1.0
    %v5123 = vrcp.pop %v5122
    %v5124 = vmul.f32 %v5122, %v5123
    %v5125 = vsub.f32 1.0, %v5124
    %v5126 = vmul.f32 %v5123, %v5125
    %v5127 = vadd.f32 %v5123, %v5126
    %vm5128 = vweird.f32 %v5122
    %vm5129 = vweird.f32 %v5123
    %vm5130 = vmor %vm5128, %vm5129
    %v5131 = vsel %vm5130, %v5123, %v5127
    %v5132 = vand.u32 2147483647, %v5122
    %vm5133 = vcmp.eq.f32.partialorder %v5132, 8.507059e+37
    %v5134 = vand.u32 %v5122, 2147483648
    %v5135 = vor.u32 1.1754944e-38, %v5134
    %v5136 = vsel %vm5133, %v5135, %v5131
    %v5137 = vmul.f32 1.0, %v5136
    %5139 = vrot.lane.b32.xlu0 %v5116, 64
    %v5140 = vpop.permute.xlu0 %5139
    %v5142 = vmul.f32 %v5137, %v5140
    %5144 = vrot.lane.b32.xlu0 %v4925, 64
    %v5145 = vpop.permute.xlu0 %5144
    %v5147 = vadd.f32 %v5142, %v5145
    %v5148 = vtanh.pop %v5147
    %5149 = vrot.lane.b32.xlu0 %v4907, 64
    %v5150 = vpop.permute.xlu0 %5149
    %v5152 = vmul.f32 %v5137, %v5150
    %v5153 = vsub.f32 1.0, %v5137
    %5155 = vrot.lane.b32.xlu0 %v5148, 32
    %v5156 = vpop.permute.xlu0 %5155
    %v5158 = vmul.f32 %v5153, %v5156
    %v5159 = vadd.f32 %v5152, %v5158
    %5161 = vset.pattern.permute.xlu0 0
    %5162 = vperm.xlu0 %5161, %v4926
    %v5163 = vpop.permute.xlu0 %5162
    %v5165 = vmul.f32 %v5163, %v5159
    %v5166 = vsub.f32 1.0, %v4926
    %5168 = vset.pattern.permute.xlu0 0
    %5169 = vperm.xlu0 %5168, %v5166
    %v5170 = vpop.permute.xlu0 %5169
    %v5172 = vmul.f32 %v5170, %v4907
    %5174 = vrot.lane.b32.xlu0 %v5172, 64
    %v5175 = vpop.permute.xlu0 %5174
    %v5177 = vadd.f32 %v5165, %v5175
    %v5178 = vld [vmem:[%s7] sm:$0xff]
    %v5179 = vld [vmem:[%s7 + $0x8] sm:$0xff]
    %v5180 = vld [vmem:[%s7 + $0x10] sm:$0xff]
    %v5181 = vld [vmem:[%s7 + $0x18] sm:$0xff]
    %v5182 = vld [vmem:[%s7 + $0x20] sm:$0xff]
    %v5183 = vld [vmem:[%s7 + $0x28] sm:$0xff]
    %v5184 = vld [vmem:[%s7 + $0x30] sm:$0xff]
    %v5185 = vld [vmem:[%s7 + $0x38] sm:$0xff]
    %5187 = vrot.lane.b32.xlu0 %v5177, 96
    %v5188 = vpop.permute.xlu0 %5187
    %v5189 = vsel %vm171, %v5188, 0
    %5191 = vmatpush.msra.mxu0 0.0
    %5192 = vmatpush.msra.mxu0 0.0
    %5193 = vmatpush.msra.mxu0 0.0
    %5194 = vmatpush.msra.mxu0 0.0
    %5195 = vmatpush.msra.mxu0 0.0
    %5196 = vmatpush.msra.mxu0 0.0
    %5197 = vmatpush.msra.mxu0 0.0
    %5198 = vmatpush.msra.mxu0 0.0
    %5199 = vmatpush.msra.mxu0 0.0
    %5200 = vmatpush.msra.mxu0 0.0
    %5201 = vmatpush.msra.mxu0 0.0
    %5202 = vmatpush.msra.mxu0 0.0
    %v5203 = vand.u32 %v5184, 4294901760
    %5204 = vmatpush.msra.mxu0 %v5203
    %v5205 = vand.u32 %v5182, 4294901760
    %5206 = vmatpush.msra.mxu0 %v5205
    %v5207 = vand.u32 %v5180, 4294901760
    %5208 = vmatpush.msra.mxu0 %v5207
    %v5209 = vand.u32 %v5178, 4294901760
    %5210 = vmatpush.msra.mxu0 %v5209
    %v5211 = vand.u32 %v5189, 4294901760
    %v5212 = vsub.f32 %v5189, %v5211
    %v5213 = vand.u32 %v5212, 4294901760
    %v5214 = vsub.f32 %v5212, %v5213
    %v5215 = vand.u32 %v5214, 4294901760
    %5216 = vmatmul.f32.gmra.mxu0 %v5215
    %v5217 = vpop.f32.mrf.mxu0
    %v5218 = vadd.f32 0.0, %v5217
    %5219 = vdwg.mxu0
    %5220 = vmatpush.msra.mxu0 0.0
    %5221 = vmatpush.msra.mxu0 0.0
    %5222 = vmatpush.msra.mxu0 0.0
    %5223 = vmatpush.msra.mxu0 0.0
    %5224 = vmatpush.msra.mxu0 0.0
    %5225 = vmatpush.msra.mxu0 0.0
    %5226 = vmatpush.msra.mxu0 0.0
    %5227 = vmatpush.msra.mxu0 0.0
    %5228 = vmatpush.msra.mxu0 0.0
    %5229 = vmatpush.msra.mxu0 0.0
    %5230 = vmatpush.msra.mxu0 0.0
    %5231 = vmatpush.msra.mxu0 0.0
    %v5232 = vand.u32 %v5184, 4294901760
    %v5233 = vsub.f32 %v5184, %v5232
    %v5234 = vand.u32 %v5233, 4294901760
    %v5235 = vsub.f32 %v5233, %v5234
    %v5236 = vand.u32 %v5235, 4294901760
    %5237 = vmatpush.msra.mxu0 %v5236
    %v5238 = vand.u32 %v5182, 4294901760
    %v5239 = vsub.f32 %v5182, %v5238
    %v5240 = vand.u32 %v5239, 4294901760
    %v5241 = vsub.f32 %v5239, %v5240
    %v5242 = vand.u32 %v5241, 4294901760
    %5243 = vmatpush.msra.mxu0 %v5242
    %v5244 = vand.u32 %v5180, 4294901760
    %v5245 = vsub.f32 %v5180, %v5244
    %v5246 = vand.u32 %v5245, 4294901760
    %v5247 = vsub.f32 %v5245, %v5246
    %v5248 = vand.u32 %v5247, 4294901760
    %5249 = vmatpush.msra.mxu0 %v5248
    %v5250 = vand.u32 %v5178, 4294901760
    %v5251 = vsub.f32 %v5178, %v5250
    %v5252 = vand.u32 %v5251, 4294901760
    %v5253 = vsub.f32 %v5251, %v5252
    %v5254 = vand.u32 %v5253, 4294901760
    %5255 = vmatpush.msra.mxu0 %v5254
    %v5256 = vand.u32 %v5189, 4294901760
    %5257 = vmatmul.f32.gmra.mxu0 %v5256
    %v5258 = vpop.f32.mrf.mxu0
    %v5259 = vadd.f32 %v5218, %v5258
    %5260 = vdwg.mxu0
    %5261 = vmatpush.msra.mxu0 0.0
    %5262 = vmatpush.msra.mxu0 0.0
    %5263 = vmatpush.msra.mxu0 0.0
    %5264 = vmatpush.msra.mxu0 0.0
    %5265 = vmatpush.msra.mxu0 0.0
    %5266 = vmatpush.msra.mxu0 0.0
    %5267 = vmatpush.msra.mxu0 0.0
    %5268 = vmatpush.msra.mxu0 0.0
    %5269 = vmatpush.msra.mxu0 0.0
    %5270 = vmatpush.msra.mxu0 0.0
    %5271 = vmatpush.msra.mxu0 0.0
    %5272 = vmatpush.msra.mxu0 0.0
    %v5273 = vand.u32 %v5184, 4294901760
    %v5274 = vsub.f32 %v5184, %v5273
    %5275 = vmatpush.msra.mxu0 %v5274
    %v5276 = vand.u32 %v5182, 4294901760
    %v5277 = vsub.f32 %v5182, %v5276
    %5278 = vmatpush.msra.mxu0 %v5277
    %v5279 = vand.u32 %v5180, 4294901760
    %v5280 = vsub.f32 %v5180, %v5279
    %5281 = vmatpush.msra.mxu0 %v5280
    %v5282 = vand.u32 %v5178, 4294901760
    %v5283 = vsub.f32 %v5178, %v5282
    %5284 = vmatpush.msra.mxu0 %v5283
    %v5285 = vand.u32 %v5189, 4294901760
    %v5286 = vsub.f32 %v5189, %v5285
    %5287 = vmatmul.f32.gmra.mxu0 %v5286
    %v5288 = vpop.f32.mrf.mxu0
    %v5289 = vadd.f32 %v5259, %v5288
    %5290 = vdwg.mxu0
    %5291 = vmatpush.msra.mxu0 0.0
    %5292 = vmatpush.msra.mxu0 0.0
    %5293 = vmatpush.msra.mxu0 0.0
    %5294 = vmatpush.msra.mxu0 0.0
    %5295 = vmatpush.msra.mxu0 0.0
    %5296 = vmatpush.msra.mxu0 0.0
    %5297 = vmatpush.msra.mxu0 0.0
    %5298 = vmatpush.msra.mxu0 0.0
    %5299 = vmatpush.msra.mxu0 0.0
    %5300 = vmatpush.msra.mxu0 0.0
    %5301 = vmatpush.msra.mxu0 0.0
    %5302 = vmatpush.msra.mxu0 0.0
    %v5303 = vand.u32 %v5184, 4294901760
    %5304 = vmatpush.msra.mxu0 %v5303
    %v5305 = vand.u32 %v5182, 4294901760
    %5306 = vmatpush.msra.mxu0 %v5305
    %v5307 = vand.u32 %v5180, 4294901760
    %5308 = vmatpush.msra.mxu0 %v5307
    %v5309 = vand.u32 %v5178, 4294901760
    %5310 = vmatpush.msra.mxu0 %v5309
    %v5311 = vand.u32 %v5189, 4294901760
    %v5312 = vsub.f32 %v5189, %v5311
    %v5313 = vand.u32 %v5312, 4294901760
    %5314 = vmatmul.f32.gmra.mxu0 %v5313
    %v5315 = vpop.f32.mrf.mxu0
    %v5316 = vadd.f32 %v5289, %v5315
    %5317 = vdwg.mxu0
    %5318 = vmatpush.msra.mxu0 0.0
    %5319 = vmatpush.msra.mxu0 0.0
    %5320 = vmatpush.msra.mxu0 0.0
    %5321 = vmatpush.msra.mxu0 0.0
    %5322 = vmatpush.msra.mxu0 0.0
    %5323 = vmatpush.msra.mxu0 0.0
    %5324 = vmatpush.msra.mxu0 0.0
    %5325 = vmatpush.msra.mxu0 0.0
    %5326 = vmatpush.msra.mxu0 0.0
    %5327 = vmatpush.msra.mxu0 0.0
    %5328 = vmatpush.msra.mxu0 0.0
    %5329 = vmatpush.msra.mxu0 0.0
    %v5330 = vand.u32 %v5184, 4294901760
    %v5331 = vsub.f32 %v5184, %v5330
    %v5332 = vand.u32 %v5331, 4294901760
    %5333 = vmatpush.msra.mxu0 %v5332
    %v5334 = vand.u32 %v5182, 4294901760
    %v5335 = vsub.f32 %v5182, %v5334
    %v5336 = vand.u32 %v5335, 4294901760
    %5337 = vmatpush.msra.mxu0 %v5336
    %v5338 = vand.u32 %v5180, 4294901760
    %v5339 = vsub.f32 %v5180, %v5338
    %v5340 = vand.u32 %v5339, 4294901760
    %5341 = vmatpush.msra.mxu0 %v5340
    %v5342 = vand.u32 %v5178, 4294901760
    %v5343 = vsub.f32 %v5178, %v5342
    %v5344 = vand.u32 %v5343, 4294901760
    %5345 = vmatpush.msra.mxu0 %v5344
    %v5346 = vand.u32 %v5189, 4294901760
    %5347 = vmatmul.f32.gmra.mxu0 %v5346
    %v5348 = vpop.f32.mrf.mxu0
    %v5349 = vadd.f32 %v5316, %v5348
    %5350 = vdwg.mxu0
    %5351 = vmatpush.msra.mxu0 0.0
    %5352 = vmatpush.msra.mxu0 0.0
    %5353 = vmatpush.msra.mxu0 0.0
    %5354 = vmatpush.msra.mxu0 0.0
    %5355 = vmatpush.msra.mxu0 0.0
    %5356 = vmatpush.msra.mxu0 0.0
    %5357 = vmatpush.msra.mxu0 0.0
    %5358 = vmatpush.msra.mxu0 0.0
    %5359 = vmatpush.msra.mxu0 0.0
    %5360 = vmatpush.msra.mxu0 0.0
    %5361 = vmatpush.msra.mxu0 0.0
    %5362 = vmatpush.msra.mxu0 0.0
    %v5363 = vand.u32 %v5184, 4294901760
    %5364 = vmatpush.msra.mxu0 %v5363
    %v5365 = vand.u32 %v5182, 4294901760
    %5366 = vmatpush.msra.mxu0 %v5365
    %v5367 = vand.u32 %v5180, 4294901760
    %5368 = vmatpush.msra.mxu0 %v5367
    %v5369 = vand.u32 %v5178, 4294901760
    %5370 = vmatpush.msra.mxu0 %v5369
    %v5371 = vand.u32 %v5189, 4294901760
    %5372 = vmatmul.f32.gmra.mxu0 %v5371
    %v5373 = vpop.f32.mrf.mxu0
    %v5374 = vadd.f32 %v5349, %v5373
    %5375 = vdwg.mxu0
    %5376 = vmatpush.msra.mxu0 0.0
    %5377 = vmatpush.msra.mxu0 0.0
    %5378 = vmatpush.msra.mxu0 0.0
    %5379 = vmatpush.msra.mxu0 0.0
    %5380 = vmatpush.msra.mxu0 0.0
    %5381 = vmatpush.msra.mxu0 0.0
    %5382 = vmatpush.msra.mxu0 0.0
    %5383 = vmatpush.msra.mxu0 0.0
    %5384 = vmatpush.msra.mxu0 0.0
    %5385 = vmatpush.msra.mxu0 0.0
    %5386 = vmatpush.msra.mxu0 0.0
    %5387 = vmatpush.msra.mxu0 0.0
    %v5388 = vand.u32 %v5185, 4294901760
    %5389 = vmatpush.msra.mxu0 %v5388
    %v5390 = vand.u32 %v5183, 4294901760
    %5391 = vmatpush.msra.mxu0 %v5390
    %v5392 = vand.u32 %v5181, 4294901760
    %5393 = vmatpush.msra.mxu0 %v5392
    %v5394 = vand.u32 %v5179, 4294901760
    %5395 = vmatpush.msra.mxu0 %v5394
    %v5396 = vand.u32 %v5189, 4294901760
    %v5397 = vsub.f32 %v5189, %v5396
    %v5398 = vand.u32 %v5397, 4294901760
    %v5399 = vsub.f32 %v5397, %v5398
    %v5400 = vand.u32 %v5399, 4294901760
    %5401 = vmatmul.f32.gmra.mxu0 %v5400
    %v5402 = vpop.f32.mrf.mxu0
    %v5403 = vadd.f32 0.0, %v5402
    %5404 = vdwg.mxu0
    %5405 = vmatpush.msra.mxu0 0.0
    %5406 = vmatpush.msra.mxu0 0.0
    %5407 = vmatpush.msra.mxu0 0.0
    %5408 = vmatpush.msra.mxu0 0.0
    %5409 = vmatpush.msra.mxu0 0.0
    %5410 = vmatpush.msra.mxu0 0.0
    %5411 = vmatpush.msra.mxu0 0.0
    %5412 = vmatpush.msra.mxu0 0.0
    %5413 = vmatpush.msra.mxu0 0.0
    %5414 = vmatpush.msra.mxu0 0.0
    %5415 = vmatpush.msra.mxu0 0.0
    %5416 = vmatpush.msra.mxu0 0.0
    %v5417 = vand.u32 %v5185, 4294901760
    %v5418 = vsub.f32 %v5185, %v5417
    %v5419 = vand.u32 %v5418, 4294901760
    %v5420 = vsub.f32 %v5418, %v5419
    %v5421 = vand.u32 %v5420, 4294901760
    %5422 = vmatpush.msra.mxu0 %v5421
    %v5423 = vand.u32 %v5183, 4294901760
    %v5424 = vsub.f32 %v5183, %v5423
    %v5425 = vand.u32 %v5424, 4294901760
    %v5426 = vsub.f32 %v5424, %v5425
    %v5427 = vand.u32 %v5426, 4294901760
    %5428 = vmatpush.msra.mxu0 %v5427
    %v5429 = vand.u32 %v5181, 4294901760
    %v5430 = vsub.f32 %v5181, %v5429
    %v5431 = vand.u32 %v5430, 4294901760
    %v5432 = vsub.f32 %v5430, %v5431
    %v5433 = vand.u32 %v5432, 4294901760
    %5434 = vmatpush.msra.mxu0 %v5433
    %v5435 = vand.u32 %v5179, 4294901760
    %v5436 = vsub.f32 %v5179, %v5435
    %v5437 = vand.u32 %v5436, 4294901760
    %v5438 = vsub.f32 %v5436, %v5437
    %v5439 = vand.u32 %v5438, 4294901760
    %5440 = vmatpush.msra.mxu0 %v5439
    %v5441 = vand.u32 %v5189, 4294901760
    %5442 = vmatmul.f32.gmra.mxu0 %v5441
    %v5443 = vpop.f32.mrf.mxu0
    %v5444 = vadd.f32 %v5403, %v5443
    %5445 = vdwg.mxu0
    %5446 = vmatpush.msra.mxu0 0.0
    %5447 = vmatpush.msra.mxu0 0.0
    %5448 = vmatpush.msra.mxu0 0.0
    %5449 = vmatpush.msra.mxu0 0.0
    %5450 = vmatpush.msra.mxu0 0.0
    %5451 = vmatpush.msra.mxu0 0.0
    %5452 = vmatpush.msra.mxu0 0.0
    %5453 = vmatpush.msra.mxu0 0.0
    %5454 = vmatpush.msra.mxu0 0.0
    %5455 = vmatpush.msra.mxu0 0.0
    %5456 = vmatpush.msra.mxu0 0.0
    %5457 = vmatpush.msra.mxu0 0.0
    %v5458 = vand.u32 %v5185, 4294901760
    %v5459 = vsub.f32 %v5185, %v5458
    %5460 = vmatpush.msra.mxu0 %v5459
    %v5461 = vand.u32 %v5183, 4294901760
    %v5462 = vsub.f32 %v5183, %v5461
    %5463 = vmatpush.msra.mxu0 %v5462
    %v5464 = vand.u32 %v5181, 4294901760
    %v5465 = vsub.f32 %v5181, %v5464
    %5466 = vmatpush.msra.mxu0 %v5465
    %v5467 = vand.u32 %v5179, 4294901760
    %v5468 = vsub.f32 %v5179, %v5467
    %5469 = vmatpush.msra.mxu0 %v5468
    %v5470 = vand.u32 %v5189, 4294901760
    %v5471 = vsub.f32 %v5189, %v5470
    %5472 = vmatmul.f32.gmra.mxu0 %v5471
    %v5473 = vpop.f32.mrf.mxu0
    %v5474 = vadd.f32 %v5444, %v5473
    %5475 = vdwg.mxu0
    %5476 = vmatpush.msra.mxu0 0.0
    %5477 = vmatpush.msra.mxu0 0.0
    %5478 = vmatpush.msra.mxu0 0.0
    %5479 = vmatpush.msra.mxu0 0.0
    %5480 = vmatpush.msra.mxu0 0.0
    %5481 = vmatpush.msra.mxu0 0.0
    %5482 = vmatpush.msra.mxu0 0.0
    %5483 = vmatpush.msra.mxu0 0.0
    %5484 = vmatpush.msra.mxu0 0.0
    %5485 = vmatpush.msra.mxu0 0.0
    %5486 = vmatpush.msra.mxu0 0.0
    %5487 = vmatpush.msra.mxu0 0.0
    %v5488 = vand.u32 %v5185, 4294901760
    %5489 = vmatpush.msra.mxu0 %v5488
    %v5490 = vand.u32 %v5183, 4294901760
    %5491 = vmatpush.msra.mxu0 %v5490
    %v5492 = vand.u32 %v5181, 4294901760
    %5493 = vmatpush.msra.mxu0 %v5492
    %v5494 = vand.u32 %v5179, 4294901760
    %5495 = vmatpush.msra.mxu0 %v5494
    %v5496 = vand.u32 %v5189, 4294901760
    %v5497 = vsub.f32 %v5189, %v5496
    %v5498 = vand.u32 %v5497, 4294901760
    %5499 = vmatmul.f32.gmra.mxu0 %v5498
    %v5500 = vpop.f32.mrf.mxu0
    %v5501 = vadd.f32 %v5474, %v5500
    %5502 = vdwg.mxu0
    %5503 = vmatpush.msra.mxu0 0.0
    %5504 = vmatpush.msra.mxu0 0.0
    %5505 = vmatpush.msra.mxu0 0.0
    %5506 = vmatpush.msra.mxu0 0.0
    %5507 = vmatpush.msra.mxu0 0.0
    %5508 = vmatpush.msra.mxu0 0.0
    %5509 = vmatpush.msra.mxu0 0.0
    %5510 = vmatpush.msra.mxu0 0.0
    %5511 = vmatpush.msra.mxu0 0.0
    %5512 = vmatpush.msra.mxu0 0.0
    %5513 = vmatpush.msra.mxu0 0.0
    %5514 = vmatpush.msra.mxu0 0.0
    %v5515 = vand.u32 %v5185, 4294901760
    %v5516 = vsub.f32 %v5185, %v5515
    %v5517 = vand.u32 %v5516, 4294901760
    %5518 = vmatpush.msra.mxu0 %v5517
    %v5519 = vand.u32 %v5183, 4294901760
    %v5520 = vsub.f32 %v5183, %v5519
    %v5521 = vand.u32 %v5520, 4294901760
    %5522 = vmatpush.msra.mxu0 %v5521
    %v5523 = vand.u32 %v5181, 4294901760
    %v5524 = vsub.f32 %v5181, %v5523
    %v5525 = vand.u32 %v5524, 4294901760
    %5526 = vmatpush.msra.mxu0 %v5525
    %v5527 = vand.u32 %v5179, 4294901760
    %v5528 = vsub.f32 %v5179, %v5527
    %v5529 = vand.u32 %v5528, 4294901760
    %5530 = vmatpush.msra.mxu0 %v5529
    %v5531 = vand.u32 %v5189, 4294901760
    %5532 = vmatmul.f32.gmra.mxu0 %v5531
    %v5533 = vpop.f32.mrf.mxu0
    %v5534 = vadd.f32 %v5501, %v5533
    %5535 = vdwg.mxu0
    %5536 = vmatpush.msra.mxu0 0.0
    %5537 = vmatpush.msra.mxu0 0.0
    %5538 = vmatpush.msra.mxu0 0.0
    %5539 = vmatpush.msra.mxu0 0.0
    %5540 = vmatpush.msra.mxu0 0.0
    %5541 = vmatpush.msra.mxu0 0.0
    %5542 = vmatpush.msra.mxu0 0.0
    %5543 = vmatpush.msra.mxu0 0.0
    %5544 = vmatpush.msra.mxu0 0.0
    %5545 = vmatpush.msra.mxu0 0.0
    %5546 = vmatpush.msra.mxu0 0.0
    %5547 = vmatpush.msra.mxu0 0.0
    %v5548 = vand.u32 %v5185, 4294901760
    %5549 = vmatpush.msra.mxu0 %v5548
    %v5550 = vand.u32 %v5183, 4294901760
    %5551 = vmatpush.msra.mxu0 %v5550
    %v5552 = vand.u32 %v5181, 4294901760
    %5553 = vmatpush.msra.mxu0 %v5552
    %v5554 = vand.u32 %v5179, 4294901760
    %5555 = vmatpush.msra.mxu0 %v5554
    %v5556 = vand.u32 %v5189, 4294901760
    %5557 = vmatmul.f32.gmra.mxu0 %v5556
    %v5558 = vpop.f32.mrf.mxu0
    %v5559 = vadd.f32 %v5534, %v5558
    %5560 = vdwg.mxu0
    %v5561 = vtanh.pop %v5374
    %5563 = vrot.lane.b32.xlu0 %v5561, 96
    %v5564 = vpop.permute.xlu0 %5563
    %v5566 = vmul.f32 %v5137, %v5564
    %v5567 = vadd.f32 %v5374, %v810
    %v5568 = vadd.f32 %v5559, %v161
    %5570 = vrot.lane.b32.xlu0 %v5374, 96
    %v5571 = vpop.permute.xlu0 %5570
    %5573 = vrot.lane.b32.xlu0 %v5374, 32
    %v5574 = vpop.permute.xlu0 %5573
    %5576 = vrot.lane.b32.xlu0 %v5374, 64
    %v5577 = vpop.permute.xlu0 %5576
    %v5579 = vsel %vm171, %v5571, %v5374
    %v5580 = vsel %vm825, %v5579, %v5574
    %v5581 = vsel %vm827, %v5580, %v5577
    %v5582 = vld [vmem:[#allocation12] sm:$0xff]
    %v5583 = vld [vmem:[#allocation12 + $0x8] sm:$0xff]
    %v5585 = vsel %vm152, %v4510, 0
    %5587 = vmatpush.msra.mxu0 0.0
    %5588 = vmatpush.msra.mxu0 0.0
    %5589 = vmatpush.msra.mxu0 0.0
    %5590 = vmatpush.msra.mxu0 0.0
    %5591 = vmatpush.msra.mxu0 0.0
    %5592 = vmatpush.msra.mxu0 0.0
    %5593 = vmatpush.msra.mxu0 0.0
    %5594 = vmatpush.msra.mxu0 0.0
    %5595 = vmatpush.msra.mxu0 0.0
    %5596 = vmatpush.msra.mxu0 0.0
    %5597 = vmatpush.msra.mxu0 0.0
    %5598 = vmatpush.msra.mxu0 0.0
    %5599 = vmatpush.msra.mxu0 0.0
    %5600 = vmatpush.msra.mxu0 0.0
    %5601 = vmatpush.msra.mxu0 0.0
    %v5602 = vand.u32 %v5582, 4294901760
    %5603 = vmatpush.msra.mxu0 %v5602
    %v5604 = vand.u32 %v5585, 4294901760
    %v5605 = vsub.f32 %v5585, %v5604
    %v5606 = vand.u32 %v5605, 4294901760
    %v5607 = vsub.f32 %v5605, %v5606
    %v5608 = vand.u32 %v5607, 4294901760
    %5609 = vmatmul.f32.gmra.mxu0 %v5608
    %v5610 = vpop.f32.mrf.mxu0
    %v5611 = vadd.f32 0.0, %v5610
    %5612 = vdwg.mxu0
    %5613 = vmatpush.msra.mxu0 0.0
    %5614 = vmatpush.msra.mxu0 0.0
    %5615 = vmatpush.msra.mxu0 0.0
    %5616 = vmatpush.msra.mxu0 0.0
    %5617 = vmatpush.msra.mxu0 0.0
    %5618 = vmatpush.msra.mxu0 0.0
    %5619 = vmatpush.msra.mxu0 0.0
    %5620 = vmatpush.msra.mxu0 0.0
    %5621 = vmatpush.msra.mxu0 0.0
    %5622 = vmatpush.msra.mxu0 0.0
    %5623 = vmatpush.msra.mxu0 0.0
    %5624 = vmatpush.msra.mxu0 0.0
    %5625 = vmatpush.msra.mxu0 0.0
    %5626 = vmatpush.msra.mxu0 0.0
    %5627 = vmatpush.msra.mxu0 0.0
    %v5628 = vand.u32 %v5582, 4294901760
    %v5629 = vsub.f32 %v5582, %v5628
    %v5630 = vand.u32 %v5629, 4294901760
    %v5631 = vsub.f32 %v5629, %v5630
    %v5632 = vand.u32 %v5631, 4294901760
    %5633 = vmatpush.msra.mxu0 %v5632
    %v5634 = vand.u32 %v5585, 4294901760
    %5635 = vmatmul.f32.gmra.mxu0 %v5634
    %v5636 = vpop.f32.mrf.mxu0
    %v5637 = vadd.f32 %v5611, %v5636
    %5638 = vdwg.mxu0
    %5639 = vmatpush.msra.mxu0 0.0
    %5640 = vmatpush.msra.mxu0 0.0
    %5641 = vmatpush.msra.mxu0 0.0
    %5642 = vmatpush.msra.mxu0 0.0
    %5643 = vmatpush.msra.mxu0 0.0
    %5644 = vmatpush.msra.mxu0 0.0
    %5645 = vmatpush.msra.mxu0 0.0
    %5646 = vmatpush.msra.mxu0 0.0
    %5647 = vmatpush.msra.mxu0 0.0
    %5648 = vmatpush.msra.mxu0 0.0
    %5649 = vmatpush.msra.mxu0 0.0
    %5650 = vmatpush.msra.mxu0 0.0
    %5651 = vmatpush.msra.mxu0 0.0
    %5652 = vmatpush.msra.mxu0 0.0
    %5653 = vmatpush.msra.mxu0 0.0
    %v5654 = vand.u32 %v5582, 4294901760
    %v5655 = vsub.f32 %v5582, %v5654
    %5656 = vmatpush.msra.mxu0 %v5655
    %v5657 = vand.u32 %v5585, 4294901760
    %v5658 = vsub.f32 %v5585, %v5657
    %5659 = vmatmul.f32.gmra.mxu0 %v5658
    %v5660 = vpop.f32.mrf.mxu0
    %v5661 = vadd.f32 %v5637, %v5660
    %5662 = vdwg.mxu0
    %5663 = vmatpush.msra.mxu0 0.0
    %5664 = vmatpush.msra.mxu0 0.0
    %5665 = vmatpush.msra.mxu0 0.0
    %5666 = vmatpush.msra.mxu0 0.0
    %5667 = vmatpush.msra.mxu0 0.0
    %5668 = vmatpush.msra.mxu0 0.0
    %5669 = vmatpush.msra.mxu0 0.0
    %5670 = vmatpush.msra.mxu0 0.0
    %5671 = vmatpush.msra.mxu0 0.0
    %5672 = vmatpush.msra.mxu0 0.0
    %5673 = vmatpush.msra.mxu0 0.0
    %5674 = vmatpush.msra.mxu0 0.0
    %5675 = vmatpush.msra.mxu0 0.0
    %5676 = vmatpush.msra.mxu0 0.0
    %5677 = vmatpush.msra.mxu0 0.0
    %v5678 = vand.u32 %v5582, 4294901760
    %5679 = vmatpush.msra.mxu0 %v5678
    %v5680 = vand.u32 %v5585, 4294901760
    %v5681 = vsub.f32 %v5585, %v5680
    %v5682 = vand.u32 %v5681, 4294901760
    %5683 = vmatmul.f32.gmra.mxu0 %v5682
    %v5684 = vpop.f32.mrf.mxu0
    %v5685 = vadd.f32 %v5661, %v5684
    %5686 = vdwg.mxu0
    %5687 = vmatpush.msra.mxu0 0.0
    %5688 = vmatpush.msra.mxu0 0.0
    %5689 = vmatpush.msra.mxu0 0.0
    %5690 = vmatpush.msra.mxu0 0.0
    %5691 = vmatpush.msra.mxu0 0.0
    %5692 = vmatpush.msra.mxu0 0.0
    %5693 = vmatpush.msra.mxu0 0.0
    %5694 = vmatpush.msra.mxu0 0.0
    %5695 = vmatpush.msra.mxu0 0.0
    %5696 = vmatpush.msra.mxu0 0.0
    %5697 = vmatpush.msra.mxu0 0.0
    %5698 = vmatpush.msra.mxu0 0.0
    %5699 = vmatpush.msra.mxu0 0.0
    %5700 = vmatpush.msra.mxu0 0.0
    %5701 = vmatpush.msra.mxu0 0.0
    %v5702 = vand.u32 %v5582, 4294901760
    %v5703 = vsub.f32 %v5582, %v5702
    %v5704 = vand.u32 %v5703, 4294901760
    %5705 = vmatpush.msra.mxu0 %v5704
    %v5706 = vand.u32 %v5585, 4294901760
    %5707 = vmatmul.f32.gmra.mxu0 %v5706
    %v5708 = vpop.f32.mrf.mxu0
    %v5709 = vadd.f32 %v5685, %v5708
    %5710 = vdwg.mxu0
    %5711 = vmatpush.msra.mxu0 0.0
    %5712 = vmatpush.msra.mxu0 0.0
    %5713 = vmatpush.msra.mxu0 0.0
    %5714 = vmatpush.msra.mxu0 0.0
    %5715 = vmatpush.msra.mxu0 0.0
    %5716 = vmatpush.msra.mxu0 0.0
    %5717 = vmatpush.msra.mxu0 0.0
    %5718 = vmatpush.msra.mxu0 0.0
    %5719 = vmatpush.msra.mxu0 0.0
    %5720 = vmatpush.msra.mxu0 0.0
    %5721 = vmatpush.msra.mxu0 0.0
    %5722 = vmatpush.msra.mxu0 0.0
    %5723 = vmatpush.msra.mxu0 0.0
    %5724 = vmatpush.msra.mxu0 0.0
    %5725 = vmatpush.msra.mxu0 0.0
    %v5726 = vand.u32 %v5582, 4294901760
    %5727 = vmatpush.msra.mxu0 %v5726
    %v5728 = vand.u32 %v5585, 4294901760
    %5729 = vmatmul.f32.gmra.mxu0 %v5728
    %v5730 = vpop.f32.mrf.mxu0
    %v5731 = vadd.f32 %v5709, %v5730
    %5732 = vdwg.mxu0
    %5733 = vmatpush.msra.mxu0 0.0
    %5734 = vmatpush.msra.mxu0 0.0
    %5735 = vmatpush.msra.mxu0 0.0
    %5736 = vmatpush.msra.mxu0 0.0
    %5737 = vmatpush.msra.mxu0 0.0
    %5738 = vmatpush.msra.mxu0 0.0
    %5739 = vmatpush.msra.mxu0 0.0
    %5740 = vmatpush.msra.mxu0 0.0
    %5741 = vmatpush.msra.mxu0 0.0
    %5742 = vmatpush.msra.mxu0 0.0
    %5743 = vmatpush.msra.mxu0 0.0
    %5744 = vmatpush.msra.mxu0 0.0
    %5745 = vmatpush.msra.mxu0 0.0
    %5746 = vmatpush.msra.mxu0 0.0
    %5747 = vmatpush.msra.mxu0 0.0
    %v5748 = vand.u32 %v5583, 4294901760
    %5749 = vmatpush.msra.mxu0 %v5748
    %v5750 = vand.u32 %v5585, 4294901760
    %v5751 = vsub.f32 %v5585, %v5750
    %v5752 = vand.u32 %v5751, 4294901760
    %v5753 = vsub.f32 %v5751, %v5752
    %v5754 = vand.u32 %v5753, 4294901760
    %5755 = vmatmul.f32.gmra.mxu0 %v5754
    %v5756 = vpop.f32.mrf.mxu0
    %v5757 = vadd.f32 0.0, %v5756
    %5758 = vdwg.mxu0
    %5759 = vmatpush.msra.mxu0 0.0
    %5760 = vmatpush.msra.mxu0 0.0
    %5761 = vmatpush.msra.mxu0 0.0
    %5762 = vmatpush.msra.mxu0 0.0
    %5763 = vmatpush.msra.mxu0 0.0
    %5764 = vmatpush.msra.mxu0 0.0
    %5765 = vmatpush.msra.mxu0 0.0
    %5766 = vmatpush.msra.mxu0 0.0
    %5767 = vmatpush.msra.mxu0 0.0
    %5768 = vmatpush.msra.mxu0 0.0
    %5769 = vmatpush.msra.mxu0 0.0
    %5770 = vmatpush.msra.mxu0 0.0
    %5771 = vmatpush.msra.mxu0 0.0
    %5772 = vmatpush.msra.mxu0 0.0
    %5773 = vmatpush.msra.mxu0 0.0
    %v5774 = vand.u32 %v5583, 4294901760
    %v5775 = vsub.f32 %v5583, %v5774
    %v5776 = vand.u32 %v5775, 4294901760
    %v5777 = vsub.f32 %v5775, %v5776
    %v5778 = vand.u32 %v5777, 4294901760
    %5779 = vmatpush.msra.mxu0 %v5778
    %v5780 = vand.u32 %v5585, 4294901760
    %5781 = vmatmul.f32.gmra.mxu0 %v5780
    %v5782 = vpop.f32.mrf.mxu0
    %v5783 = vadd.f32 %v5757, %v5782
    %5784 = vdwg.mxu0
    %5785 = vmatpush.msra.mxu0 0.0
    %5786 = vmatpush.msra.mxu0 0.0
    %5787 = vmatpush.msra.mxu0 0.0
    %5788 = vmatpush.msra.mxu0 0.0
    %5789 = vmatpush.msra.mxu0 0.0
    %5790 = vmatpush.msra.mxu0 0.0
    %5791 = vmatpush.msra.mxu0 0.0
    %5792 = vmatpush.msra.mxu0 0.0
    %5793 = vmatpush.msra.mxu0 0.0
    %5794 = vmatpush.msra.mxu0 0.0
    %5795 = vmatpush.msra.mxu0 0.0
    %5796 = vmatpush.msra.mxu0 0.0
    %5797 = vmatpush.msra.mxu0 0.0
    %5798 = vmatpush.msra.mxu0 0.0
    %5799 = vmatpush.msra.mxu0 0.0
    %v5800 = vand.u32 %v5583, 4294901760
    %v5801 = vsub.f32 %v5583, %v5800
    %5802 = vmatpush.msra.mxu0 %v5801
    %v5803 = vand.u32 %v5585, 4294901760
    %v5804 = vsub.f32 %v5585, %v5803
    %5805 = vmatmul.f32.gmra.mxu0 %v5804
    %v5806 = vpop.f32.mrf.mxu0
    %v5807 = vadd.f32 %v5783, %v5806
    %5808 = vdwg.mxu0
    %5809 = vmatpush.msra.mxu0 0.0
    %5810 = vmatpush.msra.mxu0 0.0
    %5811 = vmatpush.msra.mxu0 0.0
    %5812 = vmatpush.msra.mxu0 0.0
    %5813 = vmatpush.msra.mxu0 0.0
    %5814 = vmatpush.msra.mxu0 0.0
    %5815 = vmatpush.msra.mxu0 0.0
    %5816 = vmatpush.msra.mxu0 0.0
    %5817 = vmatpush.msra.mxu0 0.0
    %5818 = vmatpush.msra.mxu0 0.0
    %5819 = vmatpush.msra.mxu0 0.0
    %5820 = vmatpush.msra.mxu0 0.0
    %5821 = vmatpush.msra.mxu0 0.0
    %5822 = vmatpush.msra.mxu0 0.0
    %5823 = vmatpush.msra.mxu0 0.0
    %v5824 = vand.u32 %v5583, 4294901760
    %5825 = vmatpush.msra.mxu0 %v5824
    %v5826 = vand.u32 %v5585, 4294901760
    %v5827 = vsub.f32 %v5585, %v5826
    %v5828 = vand.u32 %v5827, 4294901760
    %5829 = vmatmul.f32.gmra.mxu0 %v5828
    %v5830 = vpop.f32.mrf.mxu0
    %v5831 = vadd.f32 %v5807, %v5830
    %5832 = vdwg.mxu0
    %5833 = vmatpush.msra.mxu0 0.0
    %5834 = vmatpush.msra.mxu0 0.0
    %5835 = vmatpush.msra.mxu0 0.0
    %5836 = vmatpush.msra.mxu0 0.0
    %5837 = vmatpush.msra.mxu0 0.0
    %5838 = vmatpush.msra.mxu0 0.0
    %5839 = vmatpush.msra.mxu0 0.0
    %5840 = vmatpush.msra.mxu0 0.0
    %5841 = vmatpush.msra.mxu0 0.0
    %5842 = vmatpush.msra.mxu0 0.0
    %5843 = vmatpush.msra.mxu0 0.0
    %5844 = vmatpush.msra.mxu0 0.0
    %5845 = vmatpush.msra.mxu0 0.0
    %5846 = vmatpush.msra.mxu0 0.0
    %5847 = vmatpush.msra.mxu0 0.0
    %v5848 = vand.u32 %v5583, 4294901760
    %v5849 = vsub.f32 %v5583, %v5848
    %v5850 = vand.u32 %v5849, 4294901760
    %5851 = vmatpush.msra.mxu0 %v5850
    %v5852 = vand.u32 %v5585, 4294901760
    %5853 = vmatmul.f32.gmra.mxu0 %v5852
    %v5854 = vpop.f32.mrf.mxu0
    %v5855 = vadd.f32 %v5831, %v5854
    %5856 = vdwg.mxu0
    %5857 = vmatpush.msra.mxu0 0.0
    %5858 = vmatpush.msra.mxu0 0.0
    %5859 = vmatpush.msra.mxu0 0.0
    %5860 = vmatpush.msra.mxu0 0.0
    %5861 = vmatpush.msra.mxu0 0.0
    %5862 = vmatpush.msra.mxu0 0.0
    %5863 = vmatpush.msra.mxu0 0.0
    %5864 = vmatpush.msra.mxu0 0.0
    %5865 = vmatpush.msra.mxu0 0.0
    %5866 = vmatpush.msra.mxu0 0.0
    %5867 = vmatpush.msra.mxu0 0.0
    %5868 = vmatpush.msra.mxu0 0.0
    %5869 = vmatpush.msra.mxu0 0.0
    %5870 = vmatpush.msra.mxu0 0.0
    %5871 = vmatpush.msra.mxu0 0.0
    %v5872 = vand.u32 %v5583, 4294901760
    %5873 = vmatpush.msra.mxu0 %v5872
    %v5874 = vand.u32 %v5585, 4294901760
    %5875 = vmatmul.f32.gmra.mxu0 %v5874
    %v5876 = vpop.f32.mrf.mxu0
    %v5877 = vadd.f32 %v5855, %v5876
    %5878 = vdwg.mxu0
    %v5879 = vadd.f32 %v141, %v5581
    %v5880 = vadd.f32 %v142, %v5581
    %v5881 = vadd.f32 %v5879, %v5731
    %v5882 = vadd.f32 %v5880, %v5877
    %v5883 = vtanh.pop %v5881
    %v5884 = vtanh.pop %v5882
    %v5885 = vld [vmem:[%s11] sm:$0xff]
    %v5886 = vld [vmem:[%s11 + $0x8] sm:$0xff]
    %v5887 = vld [vmem:[%s11 + $0x10] sm:$0xff]
    %v5888 = vld [vmem:[%s11 + $0x18] sm:$0xff]
    %v5889 = vld [vmem:[%s11 + $0x20] sm:$0xff]
    %v5890 = vld [vmem:[%s11 + $0x28] sm:$0xff]
    %v5891 = vld [vmem:[%s11 + $0x30] sm:$0xff]
    %v5892 = vld [vmem:[%s11 + $0x38] sm:$0xff]
    %v5893 = vld [vmem:[%s11 + $0x40] sm:$0xff]
    %v5894 = vld [vmem:[%s11 + $0x48] sm:$0xff]
    %v5895 = vld [vmem:[%s11 + $0x50] sm:$0xff]
    %v5896 = vld [vmem:[%s11 + $0x58] sm:$0xff]
    %v5897 = vld [vmem:[%s11 + $0x60] sm:$0xff]
    %v5898 = vld [vmem:[%s11 + $0x68] sm:$0xff]
    %v5899 = vld [vmem:[%s11 + $0x70] sm:$0xff]
    %v5900 = vld [vmem:[%s11 + $0x78] sm:$0xff]
    %v5901 = vld [vmem:[%s11 + $0x80] sm:$0xff]
    %v5902 = vld [vmem:[%s11 + $0x88] sm:$0xff]
    %v5903 = vld [vmem:[%s11 + $0x90] sm:$0xff]
    %v5904 = vld [vmem:[%s11 + $0x98] sm:$0xff]
    %v5905 = vld [vmem:[%s11 + $0xa0] sm:$0xff]
    %v5906 = vld [vmem:[%s11 + $0xa8] sm:$0xff]
    %v5907 = vld [vmem:[%s11 + $0xb0] sm:$0xff]
    %v5908 = vld [vmem:[%s11 + $0xb8] sm:$0xff]
    %v5909 = vld [vmem:[%s11 + $0xc0] sm:$0xff]
    %v5910 = vld [vmem:[%s11 + $0xc8] sm:$0xff]
    %v5911 = vld [vmem:[%s11 + $0xd0] sm:$0xff]
    %v5912 = vld [vmem:[%s11 + $0xd8] sm:$0xff]
    %v5913 = vld [vmem:[%s11 + $0xe0] sm:$0xff]
    %v5914 = vld [vmem:[%s11 + $0xe8] sm:$0xff]
    %v5915 = vld [vmem:[%s11 + $0xf0] sm:$0xff]
    %v5916 = vld [vmem:[%s11 + $0xf8] sm:$0xff]
    %v5917 = vld [vmem:[#allocation4] sm:$0x1]
    %v5919 = vperm.slane %v5917, 0
    %5920 = vset.pattern.permute.xlu0 0
    %5921 = vperm.xlu0 %5920, %v5919
    %v5922 = vpop.permute.xlu0 %5921
    %v5924 = vand.u32 %v5900, 4294901760
    %5925 = vmatpush.msra.mxu0 %v5924
    %v5926 = vand.u32 %v5899, 4294901760
    %5927 = vmatpush.msra.mxu0 %v5926
    %v5928 = vand.u32 %v5898, 4294901760
    %5929 = vmatpush.msra.mxu0 %v5928
    %v5930 = vand.u32 %v5897, 4294901760
    %5931 = vmatpush.msra.mxu0 %v5930
    %v5932 = vand.u32 %v5896, 4294901760
    %5933 = vmatpush.msra.mxu0 %v5932
    %v5934 = vand.u32 %v5895, 4294901760
    %5935 = vmatpush.msra.mxu0 %v5934
    %v5936 = vand.u32 %v5894, 4294901760
    %5937 = vmatpush.msra.mxu0 %v5936
    %v5938 = vand.u32 %v5893, 4294901760
    %5939 = vmatpush.msra.mxu0 %v5938
    %v5940 = vand.u32 %v5892, 4294901760
    %5941 = vmatpush.msra.mxu0 %v5940
    %v5942 = vand.u32 %v5891, 4294901760
    %5943 = vmatpush.msra.mxu0 %v5942
    %v5944 = vand.u32 %v5890, 4294901760
    %5945 = vmatpush.msra.mxu0 %v5944
    %v5946 = vand.u32 %v5889, 4294901760
    %5947 = vmatpush.msra.mxu0 %v5946
    %v5948 = vand.u32 %v5888, 4294901760
    %5949 = vmatpush.msra.mxu0 %v5948
    %v5950 = vand.u32 %v5887, 4294901760
    %5951 = vmatpush.msra.mxu0 %v5950
    %v5952 = vand.u32 %v5886, 4294901760
    %5953 = vmatpush.msra.mxu0 %v5952
    %v5954 = vand.u32 %v5885, 4294901760
    %5955 = vmatpush.msra.mxu0 %v5954
    %v5956 = vand.u32 %v5883, 4294901760
    %v5957 = vsub.f32 %v5883, %v5956
    %v5958 = vand.u32 %v5957, 4294901760
    %v5959 = vsub.f32 %v5957, %v5958
    %v5960 = vand.u32 %v5959, 4294901760
    %5961 = vmatmul.f32.gmra.mxu0 %v5960
    %v5962 = vpop.f32.mrf.mxu0
    %v5963 = vadd.f32 %v5922, %v5962
    %5964 = vdwg.mxu0
    %v5965 = vand.u32 %v5900, 4294901760
    %v5966 = vsub.f32 %v5900, %v5965
    %v5967 = vand.u32 %v5966, 4294901760
    %v5968 = vsub.f32 %v5966, %v5967
    %v5969 = vand.u32 %v5968, 4294901760
    %5970 = vmatpush.msra.mxu0 %v5969
    %v5971 = vand.u32 %v5899, 4294901760
    %v5972 = vsub.f32 %v5899, %v5971
    %v5973 = vand.u32 %v5972, 4294901760
    %v5974 = vsub.f32 %v5972, %v5973
    %v5975 = vand.u32 %v5974, 4294901760
    %5976 = vmatpush.msra.mxu0 %v5975
    %v5977 = vand.u32 %v5898, 4294901760
    %v5978 = vsub.f32 %v5898, %v5977
    %v5979 = vand.u32 %v5978, 4294901760
    %v5980 = vsub.f32 %v5978, %v5979
    %v5981 = vand.u32 %v5980, 4294901760
    %5982 = vmatpush.msra.mxu0 %v5981
    %v5983 = vand.u32 %v5897, 4294901760
    %v5984 = vsub.f32 %v5897, %v5983
    %v5985 = vand.u32 %v5984, 4294901760
    %v5986 = vsub.f32 %v5984, %v5985
    %v5987 = vand.u32 %v5986, 4294901760
    %5988 = vmatpush.msra.mxu0 %v5987
    %v5989 = vand.u32 %v5896, 4294901760
    %v5990 = vsub.f32 %v5896, %v5989
    %v5991 = vand.u32 %v5990, 4294901760
    %v5992 = vsub.f32 %v5990, %v5991
    %v5993 = vand.u32 %v5992, 4294901760
    %5994 = vmatpush.msra.mxu0 %v5993
    %v5995 = vand.u32 %v5895, 4294901760
    %v5996 = vsub.f32 %v5895, %v5995
    %v5997 = vand.u32 %v5996, 4294901760
    %v5998 = vsub.f32 %v5996, %v5997
    %v5999 = vand.u32 %v5998, 4294901760
    %6000 = vmatpush.msra.mxu0 %v5999
    %v6001 = vand.u32 %v5894, 4294901760
    %v6002 = vsub.f32 %v5894, %v6001
    %v6003 = vand.u32 %v6002, 4294901760
    %v6004 = vsub.f32 %v6002, %v6003
    %v6005 = vand.u32 %v6004, 4294901760
    %6006 = vmatpush.msra.mxu0 %v6005
    %v6007 = vand.u32 %v5893, 4294901760
    %v6008 = vsub.f32 %v5893, %v6007
    %v6009 = vand.u32 %v6008, 4294901760
    %v6010 = vsub.f32 %v6008, %v6009
    %v6011 = vand.u32 %v6010, 4294901760
    %6012 = vmatpush.msra.mxu0 %v6011
    %v6013 = vand.u32 %v5892, 4294901760
    %v6014 = vsub.f32 %v5892, %v6013
    %v6015 = vand.u32 %v6014, 4294901760
    %v6016 = vsub.f32 %v6014, %v6015
    %v6017 = vand.u32 %v6016, 4294901760
    %6018 = vmatpush.msra.mxu0 %v6017
    %v6019 = vand.u32 %v5891, 4294901760
    %v6020 = vsub.f32 %v5891, %v6019
    %v6021 = vand.u32 %v6020, 4294901760
    %v6022 = vsub.f32 %v6020, %v6021
    %v6023 = vand.u32 %v6022, 4294901760
    %6024 = vmatpush.msra.mxu0 %v6023
    %v6025 = vand.u32 %v5890, 4294901760
    %v6026 = vsub.f32 %v5890, %v6025
    %v6027 = vand.u32 %v6026, 4294901760
    %v6028 = vsub.f32 %v6026, %v6027
    %v6029 = vand.u32 %v6028, 4294901760
    %6030 = vmatpush.msra.mxu0 %v6029
    %v6031 = vand.u32 %v5889, 4294901760
    %v6032 = vsub.f32 %v5889, %v6031
    %v6033 = vand.u32 %v6032, 4294901760
    %v6034 = vsub.f32 %v6032, %v6033
    %v6035 = vand.u32 %v6034, 4294901760
    %6036 = vmatpush.msra.mxu0 %v6035
    %v6037 = vand.u32 %v5888, 4294901760
    %v6038 = vsub.f32 %v5888, %v6037
    %v6039 = vand.u32 %v6038, 4294901760
    %v6040 = vsub.f32 %v6038, %v6039
    %v6041 = vand.u32 %v6040, 4294901760
    %6042 = vmatpush.msra.mxu0 %v6041
    %v6043 = vand.u32 %v5887, 4294901760
    %v6044 = vsub.f32 %v5887, %v6043
    %v6045 = vand.u32 %v6044, 4294901760
    %v6046 = vsub.f32 %v6044, %v6045
    %v6047 = vand.u32 %v6046, 4294901760
    %6048 = vmatpush.msra.mxu0 %v6047
    %v6049 = vand.u32 %v5886, 4294901760
    %v6050 = vsub.f32 %v5886, %v6049
    %v6051 = vand.u32 %v6050, 4294901760
    %v6052 = vsub.f32 %v6050, %v6051
    %v6053 = vand.u32 %v6052, 4294901760
    %6054 = vmatpush.msra.mxu0 %v6053
    %v6055 = vand.u32 %v5885, 4294901760
    %v6056 = vsub.f32 %v5885, %v6055
    %v6057 = vand.u32 %v6056, 4294901760
    %v6058 = vsub.f32 %v6056, %v6057
    %v6059 = vand.u32 %v6058, 4294901760
    %6060 = vmatpush.msra.mxu0 %v6059
    %v6061 = vand.u32 %v5883, 4294901760
    %6062 = vmatmul.f32.gmra.mxu0 %v6061
    %v6063 = vpop.f32.mrf.mxu0
    %v6064 = vadd.f32 %v5963, %v6063
    %6065 = vdwg.mxu0
    %v6066 = vand.u32 %v5900, 4294901760
    %v6067 = vsub.f32 %v5900, %v6066
    %6068 = vmatpush.msra.mxu0 %v6067
    %v6069 = vand.u32 %v5899, 4294901760
    %v6070 = vsub.f32 %v5899, %v6069
    %6071 = vmatpush.msra.mxu0 %v6070
    %v6072 = vand.u32 %v5898, 4294901760
    %v6073 = vsub.f32 %v5898, %v6072
    %6074 = vmatpush.msra.mxu0 %v6073
    %v6075 = vand.u32 %v5897, 4294901760
    %v6076 = vsub.f32 %v5897, %v6075
    %6077 = vmatpush.msra.mxu0 %v6076
    %v6078 = vand.u32 %v5896, 4294901760
    %v6079 = vsub.f32 %v5896, %v6078
    %6080 = vmatpush.msra.mxu0 %v6079
    %v6081 = vand.u32 %v5895, 4294901760
    %v6082 = vsub.f32 %v5895, %v6081
    %6083 = vmatpush.msra.mxu0 %v6082
    %v6084 = vand.u32 %v5894, 4294901760
    %v6085 = vsub.f32 %v5894, %v6084
    %6086 = vmatpush.msra.mxu0 %v6085
    %v6087 = vand.u32 %v5893, 4294901760
    %v6088 = vsub.f32 %v5893, %v6087
    %6089 = vmatpush.msra.mxu0 %v6088
    %v6090 = vand.u32 %v5892, 4294901760
    %v6091 = vsub.f32 %v5892, %v6090
    %6092 = vmatpush.msra.mxu0 %v6091
    %v6093 = vand.u32 %v5891, 4294901760
    %v6094 = vsub.f32 %v5891, %v6093
    %6095 = vmatpush.msra.mxu0 %v6094
    %v6096 = vand.u32 %v5890, 4294901760
    %v6097 = vsub.f32 %v5890, %v6096
    %6098 = vmatpush.msra.mxu0 %v6097
    %v6099 = vand.u32 %v5889, 4294901760
    %v6100 = vsub.f32 %v5889, %v6099
    %6101 = vmatpush.msra.mxu0 %v6100
    %v6102 = vand.u32 %v5888, 4294901760
    %v6103 = vsub.f32 %v5888, %v6102
    %6104 = vmatpush.msra.mxu0 %v6103
    %v6105 = vand.u32 %v5887, 4294901760
    %v6106 = vsub.f32 %v5887, %v6105
    %6107 = vmatpush.msra.mxu0 %v6106
    %v6108 = vand.u32 %v5886, 4294901760
    %v6109 = vsub.f32 %v5886, %v6108
    %6110 = vmatpush.msra.mxu0 %v6109
    %v6111 = vand.u32 %v5885, 4294901760
    %v6112 = vsub.f32 %v5885, %v6111
    %6113 = vmatpush.msra.mxu0 %v6112
    %v6114 = vand.u32 %v5883, 4294901760
    %v6115 = vsub.f32 %v5883, %v6114
    %6116 = vmatmul.f32.gmra.mxu0 %v6115
    %v6117 = vpop.f32.mrf.mxu0
    %v6118 = vadd.f32 %v6064, %v6117
    %6119 = vdwg.mxu0
    %v6120 = vand.u32 %v5900, 4294901760
    %6121 = vmatpush.msra.mxu0 %v6120
    %v6122 = vand.u32 %v5899, 4294901760
    %6123 = vmatpush.msra.mxu0 %v6122
    %v6124 = vand.u32 %v5898, 4294901760
    %6125 = vmatpush.msra.mxu0 %v6124
    %v6126 = vand.u32 %v5897, 4294901760
    %6127 = vmatpush.msra.mxu0 %v6126
    %v6128 = vand.u32 %v5896, 4294901760
    %6129 = vmatpush.msra.mxu0 %v6128
    %v6130 = vand.u32 %v5895, 4294901760
    %6131 = vmatpush.msra.mxu0 %v6130
    %v6132 = vand.u32 %v5894, 4294901760
    %6133 = vmatpush.msra.mxu0 %v6132
    %v6134 = vand.u32 %v5893, 4294901760
    %6135 = vmatpush.msra.mxu0 %v6134
    %v6136 = vand.u32 %v5892, 4294901760
    %6137 = vmatpush.msra.mxu0 %v6136
    %v6138 = vand.u32 %v5891, 4294901760
    %6139 = vmatpush.msra.mxu0 %v6138
    %v6140 = vand.u32 %v5890, 4294901760
    %6141 = vmatpush.msra.mxu0 %v6140
    %v6142 = vand.u32 %v5889, 4294901760
    %6143 = vmatpush.msra.mxu0 %v6142
    %v6144 = vand.u32 %v5888, 4294901760
    %6145 = vmatpush.msra.mxu0 %v6144
    %v6146 = vand.u32 %v5887, 4294901760
    %6147 = vmatpush.msra.mxu0 %v6146
    %v6148 = vand.u32 %v5886, 4294901760
    %6149 = vmatpush.msra.mxu0 %v6148
    %v6150 = vand.u32 %v5885, 4294901760
    %6151 = vmatpush.msra.mxu0 %v6150
    %v6152 = vand.u32 %v5883, 4294901760
    %v6153 = vsub.f32 %v5883, %v6152
    %v6154 = vand.u32 %v6153, 4294901760
    %6155 = vmatmul.f32.gmra.mxu0 %v6154
    %v6156 = vpop.f32.mrf.mxu0
    %v6157 = vadd.f32 %v6118, %v6156
    %6158 = vdwg.mxu0
    %v6159 = vand.u32 %v5900, 4294901760
    %v6160 = vsub.f32 %v5900, %v6159
    %v6161 = vand.u32 %v6160, 4294901760
    %6162 = vmatpush.msra.mxu0 %v6161
    %v6163 = vand.u32 %v5899, 4294901760
    %v6164 = vsub.f32 %v5899, %v6163
    %v6165 = vand.u32 %v6164, 4294901760
    %6166 = vmatpush.msra.mxu0 %v6165
    %v6167 = vand.u32 %v5898, 4294901760
    %v6168 = vsub.f32 %v5898, %v6167
    %v6169 = vand.u32 %v6168, 4294901760
    %6170 = vmatpush.msra.mxu0 %v6169
    %v6171 = vand.u32 %v5897, 4294901760
    %v6172 = vsub.f32 %v5897, %v6171
    %v6173 = vand.u32 %v6172, 4294901760
    %6174 = vmatpush.msra.mxu0 %v6173
    %v6175 = vand.u32 %v5896, 4294901760
    %v6176 = vsub.f32 %v5896, %v6175
    %v6177 = vand.u32 %v6176, 4294901760
    %6178 = vmatpush.msra.mxu0 %v6177
    %v6179 = vand.u32 %v5895, 4294901760
    %v6180 = vsub.f32 %v5895, %v6179
    %v6181 = vand.u32 %v6180, 4294901760
    %6182 = vmatpush.msra.mxu0 %v6181
    %v6183 = vand.u32 %v5894, 4294901760
    %v6184 = vsub.f32 %v5894, %v6183
    %v6185 = vand.u32 %v6184, 4294901760
    %6186 = vmatpush.msra.mxu0 %v6185
    %v6187 = vand.u32 %v5893, 4294901760
    %v6188 = vsub.f32 %v5893, %v6187
    %v6189 = vand.u32 %v6188, 4294901760
    %6190 = vmatpush.msra.mxu0 %v6189
    %v6191 = vand.u32 %v5892, 4294901760
    %v6192 = vsub.f32 %v5892, %v6191
    %v6193 = vand.u32 %v6192, 4294901760
    %6194 = vmatpush.msra.mxu0 %v6193
    %v6195 = vand.u32 %v5891, 4294901760
    %v6196 = vsub.f32 %v5891, %v6195
    %v6197 = vand.u32 %v6196, 4294901760
    %6198 = vmatpush.msra.mxu0 %v6197
    %v6199 = vand.u32 %v5890, 4294901760
    %v6200 = vsub.f32 %v5890, %v6199
    %v6201 = vand.u32 %v6200, 4294901760
    %6202 = vmatpush.msra.mxu0 %v6201
    %v6203 = vand.u32 %v5889, 4294901760
    %v6204 = vsub.f32 %v5889, %v6203
    %v6205 = vand.u32 %v6204, 4294901760
    %6206 = vmatpush.msra.mxu0 %v6205
    %v6207 = vand.u32 %v5888, 4294901760
    %v6208 = vsub.f32 %v5888, %v6207
    %v6209 = vand.u32 %v6208, 4294901760
    %6210 = vmatpush.msra.mxu0 %v6209
    %v6211 = vand.u32 %v5887, 4294901760
    %v6212 = vsub.f32 %v5887, %v6211
    %v6213 = vand.u32 %v6212, 4294901760
    %6214 = vmatpush.msra.mxu0 %v6213
    %v6215 = vand.u32 %v5886, 4294901760
    %v6216 = vsub.f32 %v5886, %v6215
    %v6217 = vand.u32 %v6216, 4294901760
    %6218 = vmatpush.msra.mxu0 %v6217
    %v6219 = vand.u32 %v5885, 4294901760
    %v6220 = vsub.f32 %v5885, %v6219
    %v6221 = vand.u32 %v6220, 4294901760
    %6222 = vmatpush.msra.mxu0 %v6221
    %v6223 = vand.u32 %v5883, 4294901760
    %6224 = vmatmul.f32.gmra.mxu0 %v6223
    %v6225 = vpop.f32.mrf.mxu0
    %v6226 = vadd.f32 %v6157, %v6225
    %6227 = vdwg.mxu0
    %v6228 = vand.u32 %v5900, 4294901760
    %6229 = vmatpush.msra.mxu0 %v6228
    %v6230 = vand.u32 %v5899, 4294901760
    %6231 = vmatpush.msra.mxu0 %v6230
    %v6232 = vand.u32 %v5898, 4294901760
    %6233 = vmatpush.msra.mxu0 %v6232
    %v6234 = vand.u32 %v5897, 4294901760
    %6235 = vmatpush.msra.mxu0 %v6234
    %v6236 = vand.u32 %v5896, 4294901760
    %6237 = vmatpush.msra.mxu0 %v6236
    %v6238 = vand.u32 %v5895, 4294901760
    %6239 = vmatpush.msra.mxu0 %v6238
    %v6240 = vand.u32 %v5894, 4294901760
    %6241 = vmatpush.msra.mxu0 %v6240
    %v6242 = vand.u32 %v5893, 4294901760
    %6243 = vmatpush.msra.mxu0 %v6242
    %v6244 = vand.u32 %v5892, 4294901760
    %6245 = vmatpush.msra.mxu0 %v6244
    %v6246 = vand.u32 %v5891, 4294901760
    %6247 = vmatpush.msra.mxu0 %v6246
    %v6248 = vand.u32 %v5890, 4294901760
    %6249 = vmatpush.msra.mxu0 %v6248
    %v6250 = vand.u32 %v5889, 4294901760
    %6251 = vmatpush.msra.mxu0 %v6250
    %v6252 = vand.u32 %v5888, 4294901760
    %6253 = vmatpush.msra.mxu0 %v6252
    %v6254 = vand.u32 %v5887, 4294901760
    %6255 = vmatpush.msra.mxu0 %v6254
    %v6256 = vand.u32 %v5886, 4294901760
    %6257 = vmatpush.msra.mxu0 %v6256
    %v6258 = vand.u32 %v5885, 4294901760
    %6259 = vmatpush.msra.mxu0 %v6258
    %v6260 = vand.u32 %v5883, 4294901760
    %6261 = vmatmul.f32.gmra.mxu0 %v6260
    %v6262 = vpop.f32.mrf.mxu0
    %v6263 = vadd.f32 %v6226, %v6262
    %6264 = vdwg.mxu0
    %v6265 = vand.u32 %v5916, 4294901760
    %6266 = vmatpush.msra.mxu0 %v6265
    %v6267 = vand.u32 %v5915, 4294901760
    %6268 = vmatpush.msra.mxu0 %v6267
    %v6269 = vand.u32 %v5914, 4294901760
    %6270 = vmatpush.msra.mxu0 %v6269
    %v6271 = vand.u32 %v5913, 4294901760
    %6272 = vmatpush.msra.mxu0 %v6271
    %v6273 = vand.u32 %v5912, 4294901760
    %6274 = vmatpush.msra.mxu0 %v6273
    %v6275 = vand.u32 %v5911, 4294901760
    %6276 = vmatpush.msra.mxu0 %v6275
    %v6277 = vand.u32 %v5910, 4294901760
    %6278 = vmatpush.msra.mxu0 %v6277
    %v6279 = vand.u32 %v5909, 4294901760
    %6280 = vmatpush.msra.mxu0 %v6279
    %v6281 = vand.u32 %v5908, 4294901760
    %6282 = vmatpush.msra.mxu0 %v6281
    %v6283 = vand.u32 %v5907, 4294901760
    %6284 = vmatpush.msra.mxu0 %v6283
    %v6285 = vand.u32 %v5906, 4294901760
    %6286 = vmatpush.msra.mxu0 %v6285
    %v6287 = vand.u32 %v5905, 4294901760
    %6288 = vmatpush.msra.mxu0 %v6287
    %v6289 = vand.u32 %v5904, 4294901760
    %6290 = vmatpush.msra.mxu0 %v6289
    %v6291 = vand.u32 %v5903, 4294901760
    %6292 = vmatpush.msra.mxu0 %v6291
    %v6293 = vand.u32 %v5902, 4294901760
    %6294 = vmatpush.msra.mxu0 %v6293
    %v6295 = vand.u32 %v5901, 4294901760
    %6296 = vmatpush.msra.mxu0 %v6295
    %v6297 = vand.u32 %v5884, 4294901760
    %v6298 = vsub.f32 %v5884, %v6297
    %v6299 = vand.u32 %v6298, 4294901760
    %v6300 = vsub.f32 %v6298, %v6299
    %v6301 = vand.u32 %v6300, 4294901760
    %6302 = vmatmul.f32.gmra.mxu0 %v6301
    %v6303 = vpop.f32.mrf.mxu0
    %v6304 = vadd.f32 %v6263, %v6303
    %6305 = vdwg.mxu0
    %v6306 = vand.u32 %v5916, 4294901760
    %v6307 = vsub.f32 %v5916, %v6306
    %v6308 = vand.u32 %v6307, 4294901760
    %v6309 = vsub.f32 %v6307, %v6308
    %v6310 = vand.u32 %v6309, 4294901760
    %6311 = vmatpush.msra.mxu0 %v6310
    %v6312 = vand.u32 %v5915, 4294901760
    %v6313 = vsub.f32 %v5915, %v6312
    %v6314 = vand.u32 %v6313, 4294901760
    %v6315 = vsub.f32 %v6313, %v6314
    %v6316 = vand.u32 %v6315, 4294901760
    %6317 = vmatpush.msra.mxu0 %v6316
    %v6318 = vand.u32 %v5914, 4294901760
    %v6319 = vsub.f32 %v5914, %v6318
    %v6320 = vand.u32 %v6319, 4294901760
    %v6321 = vsub.f32 %v6319, %v6320
    %v6322 = vand.u32 %v6321, 4294901760
    %6323 = vmatpush.msra.mxu0 %v6322
    %v6324 = vand.u32 %v5913, 4294901760
    %v6325 = vsub.f32 %v5913, %v6324
    %v6326 = vand.u32 %v6325, 4294901760
    %v6327 = vsub.f32 %v6325, %v6326
    %v6328 = vand.u32 %v6327, 4294901760
    %6329 = vmatpush.msra.mxu0 %v6328
    %v6330 = vand.u32 %v5912, 4294901760
    %v6331 = vsub.f32 %v5912, %v6330
    %v6332 = vand.u32 %v6331, 4294901760
    %v6333 = vsub.f32 %v6331, %v6332
    %v6334 = vand.u32 %v6333, 4294901760
    %6335 = vmatpush.msra.mxu0 %v6334
    %v6336 = vand.u32 %v5911, 4294901760
    %v6337 = vsub.f32 %v5911, %v6336
    %v6338 = vand.u32 %v6337, 4294901760
    %v6339 = vsub.f32 %v6337, %v6338
    %v6340 = vand.u32 %v6339, 4294901760
    %6341 = vmatpush.msra.mxu0 %v6340
    %v6342 = vand.u32 %v5910, 4294901760
    %v6343 = vsub.f32 %v5910, %v6342
    %v6344 = vand.u32 %v6343, 4294901760
    %v6345 = vsub.f32 %v6343, %v6344
    %v6346 = vand.u32 %v6345, 4294901760
    %6347 = vmatpush.msra.mxu0 %v6346
    %v6348 = vand.u32 %v5909, 4294901760
    %v6349 = vsub.f32 %v5909, %v6348
    %v6350 = vand.u32 %v6349, 4294901760
    %v6351 = vsub.f32 %v6349, %v6350
    %v6352 = vand.u32 %v6351, 4294901760
    %6353 = vmatpush.msra.mxu0 %v6352
    %v6354 = vand.u32 %v5908, 4294901760
    %v6355 = vsub.f32 %v5908, %v6354
    %v6356 = vand.u32 %v6355, 4294901760
    %v6357 = vsub.f32 %v6355, %v6356
    %v6358 = vand.u32 %v6357, 4294901760
    %6359 = vmatpush.msra.mxu0 %v6358
    %v6360 = vand.u32 %v5907, 4294901760
    %v6361 = vsub.f32 %v5907, %v6360
    %v6362 = vand.u32 %v6361, 4294901760
    %v6363 = vsub.f32 %v6361, %v6362
    %v6364 = vand.u32 %v6363, 4294901760
    %6365 = vmatpush.msra.mxu0 %v6364
    %v6366 = vand.u32 %v5906, 4294901760
    %v6367 = vsub.f32 %v5906, %v6366
    %v6368 = vand.u32 %v6367, 4294901760
    %v6369 = vsub.f32 %v6367, %v6368
    %v6370 = vand.u32 %v6369, 4294901760
    %6371 = vmatpush.msra.mxu0 %v6370
    %v6372 = vand.u32 %v5905, 4294901760
    %v6373 = vsub.f32 %v5905, %v6372
    %v6374 = vand.u32 %v6373, 4294901760
    %v6375 = vsub.f32 %v6373, %v6374
    %v6376 = vand.u32 %v6375, 4294901760
    %6377 = vmatpush.msra.mxu0 %v6376
    %v6378 = vand.u32 %v5904, 4294901760
    %v6379 = vsub.f32 %v5904, %v6378
    %v6380 = vand.u32 %v6379, 4294901760
    %v6381 = vsub.f32 %v6379, %v6380
    %v6382 = vand.u32 %v6381, 4294901760
    %6383 = vmatpush.msra.mxu0 %v6382
    %v6384 = vand.u32 %v5903, 4294901760
    %v6385 = vsub.f32 %v5903, %v6384
    %v6386 = vand.u32 %v6385, 4294901760
    %v6387 = vsub.f32 %v6385, %v6386
    %v6388 = vand.u32 %v6387, 4294901760
    %6389 = vmatpush.msra.mxu0 %v6388
    %v6390 = vand.u32 %v5902, 4294901760
    %v6391 = vsub.f32 %v5902, %v6390
    %v6392 = vand.u32 %v6391, 4294901760
    %v6393 = vsub.f32 %v6391, %v6392
    %v6394 = vand.u32 %v6393, 4294901760
    %6395 = vmatpush.msra.mxu0 %v6394
    %v6396 = vand.u32 %v5901, 4294901760
    %v6397 = vsub.f32 %v5901, %v6396
    %v6398 = vand.u32 %v6397, 4294901760
    %v6399 = vsub.f32 %v6397, %v6398
    %v6400 = vand.u32 %v6399, 4294901760
    %6401 = vmatpush.msra.mxu0 %v6400
    %v6402 = vand.u32 %v5884, 4294901760
    %6403 = vmatmul.f32.gmra.mxu0 %v6402
    %v6404 = vpop.f32.mrf.mxu0
    %v6405 = vadd.f32 %v6304, %v6404
    %6406 = vdwg.mxu0
    %v6407 = vand.u32 %v5916, 4294901760
    %v6408 = vsub.f32 %v5916, %v6407
    %6409 = vmatpush.msra.mxu0 %v6408
    %v6410 = vand.u32 %v5915, 4294901760
    %v6411 = vsub.f32 %v5915, %v6410
    %6412 = vmatpush.msra.mxu0 %v6411
    %v6413 = vand.u32 %v5914, 4294901760
    %v6414 = vsub.f32 %v5914, %v6413
    %6415 = vmatpush.msra.mxu0 %v6414
    %v6416 = vand.u32 %v5913, 4294901760
    %v6417 = vsub.f32 %v5913, %v6416
    %6418 = vmatpush.msra.mxu0 %v6417
    %v6419 = vand.u32 %v5912, 4294901760
    %v6420 = vsub.f32 %v5912, %v6419
    %6421 = vmatpush.msra.mxu0 %v6420
    %v6422 = vand.u32 %v5911, 4294901760
    %v6423 = vsub.f32 %v5911, %v6422
    %6424 = vmatpush.msra.mxu0 %v6423
    %v6425 = vand.u32 %v5910, 4294901760
    %v6426 = vsub.f32 %v5910, %v6425
    %6427 = vmatpush.msra.mxu0 %v6426
    %v6428 = vand.u32 %v5909, 4294901760
    %v6429 = vsub.f32 %v5909, %v6428
    %6430 = vmatpush.msra.mxu0 %v6429
    %v6431 = vand.u32 %v5908, 4294901760
    %v6432 = vsub.f32 %v5908, %v6431
    %6433 = vmatpush.msra.mxu0 %v6432
    %v6434 = vand.u32 %v5907, 4294901760
    %v6435 = vsub.f32 %v5907, %v6434
    %6436 = vmatpush.msra.mxu0 %v6435
    %v6437 = vand.u32 %v5906, 4294901760
    %v6438 = vsub.f32 %v5906, %v6437
    %6439 = vmatpush.msra.mxu0 %v6438
    %v6440 = vand.u32 %v5905, 4294901760
    %v6441 = vsub.f32 %v5905, %v6440
    %6442 = vmatpush.msra.mxu0 %v6441
    %v6443 = vand.u32 %v5904, 4294901760
    %v6444 = vsub.f32 %v5904, %v6443
    %6445 = vmatpush.msra.mxu0 %v6444
    %v6446 = vand.u32 %v5903, 4294901760
    %v6447 = vsub.f32 %v5903, %v6446
    %6448 = vmatpush.msra.mxu0 %v6447
    %v6449 = vand.u32 %v5902, 4294901760
    %v6450 = vsub.f32 %v5902, %v6449
    %6451 = vmatpush.msra.mxu0 %v6450
    %v6452 = vand.u32 %v5901, 4294901760
    %v6453 = vsub.f32 %v5901, %v6452
    %6454 = vmatpush.msra.mxu0 %v6453
    %v6455 = vand.u32 %v5884, 4294901760
    %v6456 = vsub.f32 %v5884, %v6455
    %6457 = vmatmul.f32.gmra.mxu0 %v6456
    %v6458 = vpop.f32.mrf.mxu0
    %v6459 = vadd.f32 %v6405, %v6458
    %6460 = vdwg.mxu0
    %v6461 = vand.u32 %v5916, 4294901760
    %6462 = vmatpush.msra.mxu0 %v6461
    %v6463 = vand.u32 %v5915, 4294901760
    %6464 = vmatpush.msra.mxu0 %v6463
    %v6465 = vand.u32 %v5914, 4294901760
    %6466 = vmatpush.msra.mxu0 %v6465
    %v6467 = vand.u32 %v5913, 4294901760
    %6468 = vmatpush.msra.mxu0 %v6467
    %v6469 = vand.u32 %v5912, 4294901760
    %6470 = vmatpush.msra.mxu0 %v6469
    %v6471 = vand.u32 %v5911, 4294901760
    %6472 = vmatpush.msra.mxu0 %v6471
    %v6473 = vand.u32 %v5910, 4294901760
    %6474 = vmatpush.msra.mxu0 %v6473
    %v6475 = vand.u32 %v5909, 4294901760
    %6476 = vmatpush.msra.mxu0 %v6475
    %v6477 = vand.u32 %v5908, 4294901760
    %6478 = vmatpush.msra.mxu0 %v6477
    %v6479 = vand.u32 %v5907, 4294901760
    %6480 = vmatpush.msra.mxu0 %v6479
    %v6481 = vand.u32 %v5906, 4294901760
    %6482 = vmatpush.msra.mxu0 %v6481
    %v6483 = vand.u32 %v5905, 4294901760
    %6484 = vmatpush.msra.mxu0 %v6483
    %v6485 = vand.u32 %v5904, 4294901760
    %6486 = vmatpush.msra.mxu0 %v6485
    %v6487 = vand.u32 %v5903, 4294901760
    %6488 = vmatpush.msra.mxu0 %v6487
    %v6489 = vand.u32 %v5902, 4294901760
    %6490 = vmatpush.msra.mxu0 %v6489
    %v6491 = vand.u32 %v5901, 4294901760
    %6492 = vmatpush.msra.mxu0 %v6491
    %v6493 = vand.u32 %v5884, 4294901760
    %v6494 = vsub.f32 %v5884, %v6493
    %v6495 = vand.u32 %v6494, 4294901760
    %6496 = vmatmul.f32.gmra.mxu0 %v6495
    %v6497 = vpop.f32.mrf.mxu0
    %v6498 = vadd.f32 %v6459, %v6497
    %6499 = vdwg.mxu0
    %v6500 = vand.u32 %v5916, 4294901760
    %v6501 = vsub.f32 %v5916, %v6500
    %v6502 = vand.u32 %v6501, 4294901760
    %6503 = vmatpush.msra.mxu0 %v6502
    %v6504 = vand.u32 %v5915, 4294901760
    %v6505 = vsub.f32 %v5915, %v6504
    %v6506 = vand.u32 %v6505, 4294901760
    %6507 = vmatpush.msra.mxu0 %v6506
    %v6508 = vand.u32 %v5914, 4294901760
    %v6509 = vsub.f32 %v5914, %v6508
    %v6510 = vand.u32 %v6509, 4294901760
    %6511 = vmatpush.msra.mxu0 %v6510
    %v6512 = vand.u32 %v5913, 4294901760
    %v6513 = vsub.f32 %v5913, %v6512
    %v6514 = vand.u32 %v6513, 4294901760
    %6515 = vmatpush.msra.mxu0 %v6514
    %v6516 = vand.u32 %v5912, 4294901760
    %v6517 = vsub.f32 %v5912, %v6516
    %v6518 = vand.u32 %v6517, 4294901760
    %6519 = vmatpush.msra.mxu0 %v6518
    %v6520 = vand.u32 %v5911, 4294901760
    %v6521 = vsub.f32 %v5911, %v6520
    %v6522 = vand.u32 %v6521, 4294901760
    %6523 = vmatpush.msra.mxu0 %v6522
    %v6524 = vand.u32 %v5910, 4294901760
    %v6525 = vsub.f32 %v5910, %v6524
    %v6526 = vand.u32 %v6525, 4294901760
    %6527 = vmatpush.msra.mxu0 %v6526
    %v6528 = vand.u32 %v5909, 4294901760
    %v6529 = vsub.f32 %v5909, %v6528
    %v6530 = vand.u32 %v6529, 4294901760
    %6531 = vmatpush.msra.mxu0 %v6530
    %v6532 = vand.u32 %v5908, 4294901760
    %v6533 = vsub.f32 %v5908, %v6532
    %v6534 = vand.u32 %v6533, 4294901760
    %6535 = vmatpush.msra.mxu0 %v6534
    %v6536 = vand.u32 %v5907, 4294901760
    %v6537 = vsub.f32 %v5907, %v6536
    %v6538 = vand.u32 %v6537, 4294901760
    %6539 = vmatpush.msra.mxu0 %v6538
    %v6540 = vand.u32 %v5906, 4294901760
    %v6541 = vsub.f32 %v5906, %v6540
    %v6542 = vand.u32 %v6541, 4294901760
    %6543 = vmatpush.msra.mxu0 %v6542
    %v6544 = vand.u32 %v5905, 4294901760
    %v6545 = vsub.f32 %v5905, %v6544
    %v6546 = vand.u32 %v6545, 4294901760
    %6547 = vmatpush.msra.mxu0 %v6546
    %v6548 = vand.u32 %v5904, 4294901760
    %v6549 = vsub.f32 %v5904, %v6548
    %v6550 = vand.u32 %v6549, 4294901760
    %6551 = vmatpush.msra.mxu0 %v6550
    %v6552 = vand.u32 %v5903, 4294901760
    %v6553 = vsub.f32 %v5903, %v6552
    %v6554 = vand.u32 %v6553, 4294901760
    %6555 = vmatpush.msra.mxu0 %v6554
    %v6556 = vand.u32 %v5902, 4294901760
    %v6557 = vsub.f32 %v5902, %v6556
    %v6558 = vand.u32 %v6557, 4294901760
    %6559 = vmatpush.msra.mxu0 %v6558
    %v6560 = vand.u32 %v5901, 4294901760
    %v6561 = vsub.f32 %v5901, %v6560
    %v6562 = vand.u32 %v6561, 4294901760
    %6563 = vmatpush.msra.mxu0 %v6562
    %v6564 = vand.u32 %v5884, 4294901760
    %6565 = vmatmul.f32.gmra.mxu0 %v6564
    %v6566 = vpop.f32.mrf.mxu0
    %v6567 = vadd.f32 %v6498, %v6566
    %6568 = vdwg.mxu0
    %v6569 = vand.u32 %v5916, 4294901760
    %6570 = vmatpush.msra.mxu0 %v6569
    %v6571 = vand.u32 %v5915, 4294901760
    %6572 = vmatpush.msra.mxu0 %v6571
    %v6573 = vand.u32 %v5914, 4294901760
    %6574 = vmatpush.msra.mxu0 %v6573
    %v6575 = vand.u32 %v5913, 4294901760
    %6576 = vmatpush.msra.mxu0 %v6575
    %v6577 = vand.u32 %v5912, 4294901760
    %6578 = vmatpush.msra.mxu0 %v6577
    %v6579 = vand.u32 %v5911, 4294901760
    %6580 = vmatpush.msra.mxu0 %v6579
    %v6581 = vand.u32 %v5910, 4294901760
    %6582 = vmatpush.msra.mxu0 %v6581
    %v6583 = vand.u32 %v5909, 4294901760
    %6584 = vmatpush.msra.mxu0 %v6583
    %v6585 = vand.u32 %v5908, 4294901760
    %6586 = vmatpush.msra.mxu0 %v6585
    %v6587 = vand.u32 %v5907, 4294901760
    %6588 = vmatpush.msra.mxu0 %v6587
    %v6589 = vand.u32 %v5906, 4294901760
    %6590 = vmatpush.msra.mxu0 %v6589
    %v6591 = vand.u32 %v5905, 4294901760
    %6592 = vmatpush.msra.mxu0 %v6591
    %v6593 = vand.u32 %v5904, 4294901760
    %6594 = vmatpush.msra.mxu0 %v6593
    %v6595 = vand.u32 %v5903, 4294901760
    %6596 = vmatpush.msra.mxu0 %v6595
    %v6597 = vand.u32 %v5902, 4294901760
    %6598 = vmatpush.msra.mxu0 %v6597
    %v6599 = vand.u32 %v5901, 4294901760
    %6600 = vmatpush.msra.mxu0 %v6599
    %v6601 = vand.u32 %v5884, 4294901760
    %6602 = vmatmul.f32.gmra.mxu0 %v6601
    %v6603 = vpop.f32.mrf.mxu0
    %v6604 = vadd.f32 %v6567, %v6603
    %6605 = vdwg.mxu0
    %v6606 = vld [vmem:[%s13] sm:$0xff]
    %v6607 = vld [vmem:[%s13 + $0x8] sm:$0xff]
    %v6608 = vld [vmem:[%s13 + $0x10] sm:$0xff]
    %v6609 = vld [vmem:[%s13 + $0x18] sm:$0xff]
    %6611 = vrot.lane.b32.xlu0 %v5566, 32
    %v6612 = vpop.permute.xlu0 %6611
    %v6613 = vsel %vm171, %v6612, 0
    %6615 = vmatpush.msra.mxu0 0.0
    %6616 = vmatpush.msra.mxu0 0.0
    %6617 = vmatpush.msra.mxu0 0.0
    %6618 = vmatpush.msra.mxu0 0.0
    %6619 = vmatpush.msra.mxu0 0.0
    %6620 = vmatpush.msra.mxu0 0.0
    %6621 = vmatpush.msra.mxu0 0.0
    %6622 = vmatpush.msra.mxu0 0.0
    %6623 = vmatpush.msra.mxu0 0.0
    %6624 = vmatpush.msra.mxu0 0.0
    %6625 = vmatpush.msra.mxu0 0.0
    %6626 = vmatpush.msra.mxu0 0.0
    %v6627 = vand.u32 %v6609, 4294901760
    %6628 = vmatpush.msra.mxu0 %v6627
    %v6629 = vand.u32 %v6608, 4294901760
    %6630 = vmatpush.msra.mxu0 %v6629
    %v6631 = vand.u32 %v6607, 4294901760
    %6632 = vmatpush.msra.mxu0 %v6631
    %v6633 = vand.u32 %v6606, 4294901760
    %6634 = vmatpush.msra.mxu0 %v6633
    %v6635 = vand.u32 %v6613, 4294901760
    %v6636 = vsub.f32 %v6613, %v6635
    %v6637 = vand.u32 %v6636, 4294901760
    %v6638 = vsub.f32 %v6636, %v6637
    %v6639 = vand.u32 %v6638, 4294901760
    %6640 = vmatmul.f32.gmra.mxu0 %v6639
    %v6641 = vpop.f32.mrf.mxu0
    %v6642 = vadd.f32 0.0, %v6641
    %6643 = vdwg.mxu0
    %6644 = vmatpush.msra.mxu0 0.0
    %6645 = vmatpush.msra.mxu0 0.0
    %6646 = vmatpush.msra.mxu0 0.0
    %6647 = vmatpush.msra.mxu0 0.0
    %6648 = vmatpush.msra.mxu0 0.0
    %6649 = vmatpush.msra.mxu0 0.0
    %6650 = vmatpush.msra.mxu0 0.0
    %6651 = vmatpush.msra.mxu0 0.0
    %6652 = vmatpush.msra.mxu0 0.0
    %6653 = vmatpush.msra.mxu0 0.0
    %6654 = vmatpush.msra.mxu0 0.0
    %6655 = vmatpush.msra.mxu0 0.0
    %v6656 = vand.u32 %v6609, 4294901760
    %v6657 = vsub.f32 %v6609, %v6656
    %v6658 = vand.u32 %v6657, 4294901760
    %v6659 = vsub.f32 %v6657, %v6658
    %v6660 = vand.u32 %v6659, 4294901760
    %6661 = vmatpush.msra.mxu0 %v6660
    %v6662 = vand.u32 %v6608, 4294901760
    %v6663 = vsub.f32 %v6608, %v6662
    %v6664 = vand.u32 %v6663, 4294901760
    %v6665 = vsub.f32 %v6663, %v6664
    %v6666 = vand.u32 %v6665, 4294901760
    %6667 = vmatpush.msra.mxu0 %v6666
    %v6668 = vand.u32 %v6607, 4294901760
    %v6669 = vsub.f32 %v6607, %v6668
    %v6670 = vand.u32 %v6669, 4294901760
    %v6671 = vsub.f32 %v6669, %v6670
    %v6672 = vand.u32 %v6671, 4294901760
    %6673 = vmatpush.msra.mxu0 %v6672
    %v6674 = vand.u32 %v6606, 4294901760
    %v6675 = vsub.f32 %v6606, %v6674
    %v6676 = vand.u32 %v6675, 4294901760
    %v6677 = vsub.f32 %v6675, %v6676
    %v6678 = vand.u32 %v6677, 4294901760
    %6679 = vmatpush.msra.mxu0 %v6678
    %v6680 = vand.u32 %v6613, 4294901760
    %6681 = vmatmul.f32.gmra.mxu0 %v6680
    %v6682 = vpop.f32.mrf.mxu0
    %v6683 = vadd.f32 %v6642, %v6682
    %6684 = vdwg.mxu0
    %6685 = vmatpush.msra.mxu0 0.0
    %6686 = vmatpush.msra.mxu0 0.0
    %6687 = vmatpush.msra.mxu0 0.0
    %6688 = vmatpush.msra.mxu0 0.0
    %6689 = vmatpush.msra.mxu0 0.0
    %6690 = vmatpush.msra.mxu0 0.0
    %6691 = vmatpush.msra.mxu0 0.0
    %6692 = vmatpush.msra.mxu0 0.0
    %6693 = vmatpush.msra.mxu0 0.0
    %6694 = vmatpush.msra.mxu0 0.0
    %6695 = vmatpush.msra.mxu0 0.0
    %6696 = vmatpush.msra.mxu0 0.0
    %v6697 = vand.u32 %v6609, 4294901760
    %v6698 = vsub.f32 %v6609, %v6697
    %6699 = vmatpush.msra.mxu0 %v6698
    %v6700 = vand.u32 %v6608, 4294901760
    %v6701 = vsub.f32 %v6608, %v6700
    %6702 = vmatpush.msra.mxu0 %v6701
    %v6703 = vand.u32 %v6607, 4294901760
    %v6704 = vsub.f32 %v6607, %v6703
    %6705 = vmatpush.msra.mxu0 %v6704
    %v6706 = vand.u32 %v6606, 4294901760
    %v6707 = vsub.f32 %v6606, %v6706
    %6708 = vmatpush.msra.mxu0 %v6707
    %v6709 = vand.u32 %v6613, 4294901760
    %v6710 = vsub.f32 %v6613, %v6709
    %6711 = vmatmul.f32.gmra.mxu0 %v6710
    %v6712 = vpop.f32.mrf.mxu0
    %v6713 = vadd.f32 %v6683, %v6712
    %6714 = vdwg.mxu0
    %6715 = vmatpush.msra.mxu0 0.0
    %6716 = vmatpush.msra.mxu0 0.0
    %6717 = vmatpush.msra.mxu0 0.0
    %6718 = vmatpush.msra.mxu0 0.0
    %6719 = vmatpush.msra.mxu0 0.0
    %6720 = vmatpush.msra.mxu0 0.0
    %6721 = vmatpush.msra.mxu0 0.0
    %6722 = vmatpush.msra.mxu0 0.0
    %6723 = vmatpush.msra.mxu0 0.0
    %6724 = vmatpush.msra.mxu0 0.0
    %6725 = vmatpush.msra.mxu0 0.0
    %6726 = vmatpush.msra.mxu0 0.0
    %v6727 = vand.u32 %v6609, 4294901760
    %6728 = vmatpush.msra.mxu0 %v6727
    %v6729 = vand.u32 %v6608, 4294901760
    %6730 = vmatpush.msra.mxu0 %v6729
    %v6731 = vand.u32 %v6607, 4294901760
    %6732 = vmatpush.msra.mxu0 %v6731
    %v6733 = vand.u32 %v6606, 4294901760
    %6734 = vmatpush.msra.mxu0 %v6733
    %v6735 = vand.u32 %v6613, 4294901760
    %v6736 = vsub.f32 %v6613, %v6735
    %v6737 = vand.u32 %v6736, 4294901760
    %6738 = vmatmul.f32.gmra.mxu0 %v6737
    %v6739 = vpop.f32.mrf.mxu0
    %v6740 = vadd.f32 %v6713, %v6739
    %6741 = vdwg.mxu0
    %6742 = vmatpush.msra.mxu0 0.0
    %6743 = vmatpush.msra.mxu0 0.0
    %6744 = vmatpush.msra.mxu0 0.0
    %6745 = vmatpush.msra.mxu0 0.0
    %6746 = vmatpush.msra.mxu0 0.0
    %6747 = vmatpush.msra.mxu0 0.0
    %6748 = vmatpush.msra.mxu0 0.0
    %6749 = vmatpush.msra.mxu0 0.0
    %6750 = vmatpush.msra.mxu0 0.0
    %6751 = vmatpush.msra.mxu0 0.0
    %6752 = vmatpush.msra.mxu0 0.0
    %6753 = vmatpush.msra.mxu0 0.0
    %v6754 = vand.u32 %v6609, 4294901760
    %v6755 = vsub.f32 %v6609, %v6754
    %v6756 = vand.u32 %v6755, 4294901760
    %6757 = vmatpush.msra.mxu0 %v6756
    %v6758 = vand.u32 %v6608, 4294901760
    %v6759 = vsub.f32 %v6608, %v6758
    %v6760 = vand.u32 %v6759, 4294901760
    %6761 = vmatpush.msra.mxu0 %v6760
    %v6762 = vand.u32 %v6607, 4294901760
    %v6763 = vsub.f32 %v6607, %v6762
    %v6764 = vand.u32 %v6763, 4294901760
    %6765 = vmatpush.msra.mxu0 %v6764
    %v6766 = vand.u32 %v6606, 4294901760
    %v6767 = vsub.f32 %v6606, %v6766
    %v6768 = vand.u32 %v6767, 4294901760
    %6769 = vmatpush.msra.mxu0 %v6768
    %v6770 = vand.u32 %v6613, 4294901760
    %6771 = vmatmul.f32.gmra.mxu0 %v6770
    %v6772 = vpop.f32.mrf.mxu0
    %v6773 = vadd.f32 %v6740, %v6772
    %6774 = vdwg.mxu0
    %6775 = vmatpush.msra.mxu0 0.0
    %6776 = vmatpush.msra.mxu0 0.0
    %6777 = vmatpush.msra.mxu0 0.0
    %6778 = vmatpush.msra.mxu0 0.0
    %6779 = vmatpush.msra.mxu0 0.0
    %6780 = vmatpush.msra.mxu0 0.0
    %6781 = vmatpush.msra.mxu0 0.0
    %6782 = vmatpush.msra.mxu0 0.0
    %6783 = vmatpush.msra.mxu0 0.0
    %6784 = vmatpush.msra.mxu0 0.0
    %6785 = vmatpush.msra.mxu0 0.0
    %6786 = vmatpush.msra.mxu0 0.0
    %v6787 = vand.u32 %v6609, 4294901760
    %6788 = vmatpush.msra.mxu0 %v6787
    %v6789 = vand.u32 %v6608, 4294901760
    %6790 = vmatpush.msra.mxu0 %v6789
    %v6791 = vand.u32 %v6607, 4294901760
    %6792 = vmatpush.msra.mxu0 %v6791
    %v6793 = vand.u32 %v6606, 4294901760
    %6794 = vmatpush.msra.mxu0 %v6793
    %v6795 = vand.u32 %v6613, 4294901760
    %6796 = vmatmul.f32.gmra.mxu0 %v6795
    %v6797 = vpop.f32.mrf.mxu0
    %v6798 = vadd.f32 %v6773, %v6797
    %6799 = vdwg.mxu0
    %6801 = vrot.lane.b32.xlu0 %v6798, 32
    %v6802 = vpop.permute.xlu0 %6801
    %v6804 = vadd.f32 %v5374, %v6802
    %v6805 = vtanh.pop %v6804
    %v6806 = vld [vmem:[%s14] sm:$0x1]
    %v6808 = vperm.slane %v6806, 0
    %6809 = vrot.lane.b32.xlu0 %v6808, 32
    %v6810 = vpop.permute.xlu0 %6809
    %v6812 = vmul.f32 %v6805, %v6810
    %6814 = vrot.lane.b32.xlu0 %v6812, 96
    %v6815 = vpop.permute.xlu0 %6814
    %v6817 = vsel %vm171, %v6815, 0.0
    %6818 = vadd.xlane.f32.xlu0 %v6817
    %v6819 = vpop.xlane.xlu0 %6818
    %v6820 = vld [vmem:[#allocation5] sm:$0x1]
    %v6822 = vperm.slane %v6820, 0
    %v6824 = vadd.f32 %v6819, %v6822
    %v6825 = vsel %vm152, %v6604, -inf
    %6826 = vmax.xlane.f32.xlu0 %v6825
    %v6827 = vpop.xlane.xlu0 %6826
    %v6828 = vmax.f32 %v6827, %v6824
    %6830 = vset.pattern.permute.xlu0 0
    %6831 = vperm.xlu0 %6830, %v6828
    %v6832 = vpop.permute.xlu0 %6831
    %v6834 = vsub.f32 %v6604, %v6832
    %v6835 = vmul.f32 %v6834, 1.442695
    %v6836 = vpow.pop %v6835
    %v6837 = vmul.f32 %v6836, %v151
    %v6838 = vsel %vm152, %v6837, 0.0
    %6839 = vadd.xlane.f32.xlu0 %v6838
    %v6840 = vpop.xlane.xlu0 %6839
    %v6841 = vrcp.pop %v6840
    %v6842 = vmul.f32 %v6840, %v6841
    %v6843 = vsub.f32 1.0, %v6842
    %v6844 = vmul.f32 %v6841, %v6843
    %v6845 = vadd.f32 %v6841, %v6844
    %vm6846 = vweird.f32 %v6840
    %vm6847 = vweird.f32 %v6841
    %vm6848 = vmor %vm6846, %vm6847
    %v6849 = vsel %vm6848, %v6841, %v6845
    %v6850 = vand.u32 2147483647, %v6840
    %vm6851 = vcmp.eq.f32.partialorder %v6850, 8.507059e+37
    %v6852 = vand.u32 %v6840, 2147483648
    %v6853 = vor.u32 1.1754944e-38, %v6852
    %v6854 = vsel %vm6851, %v6853, %v6849
    %v6855 = vmul.f32 %v6837, %v6854
    %v6856 = vmul.f32 %v6840, %v2116
    %v6857 = vsub.f32 %v6824, %v6828
    %v6858 = vmul.f32 %v6857, 1.442695
    %v6859 = vpow.pop %v6858
    %v6860 = vadd.f32 %v6856, %v6859
    %v6861 = vrcp.pop %v6860
    %v6862 = vmul.f32 %v6860, %v6861
    %v6863 = vsub.f32 1.0, %v6862
    %v6864 = vmul.f32 %v6861, %v6863
    %v6865 = vadd.f32 %v6861, %v6864
    %vm6866 = vweird.f32 %v6860
    %vm6867 = vweird.f32 %v6861
    %vm6868 = vmor %vm6866, %vm6867
    %v6869 = vsel %vm6868, %v6861, %v6865
    %v6870 = vand.u32 2147483647, %v6860
    %vm6871 = vcmp.eq.f32.partialorder %v6870, 8.507059e+37
    %v6872 = vand.u32 %v6860, 2147483648
    %v6873 = vor.u32 1.1754944e-38, %v6872
    %v6874 = vsel %vm6871, %v6873, %v6869
    %v6875 = vmul.f32 %v6859, %v6874
    %v6876 = vadd.f32 %v4510, %v6855
    %v6877 = vperm.slane %v6855, 0
    %v6878 = vlaneseq
    %v6879 = vshrl.u32 %v6878, 7
    %6881 = vset.pattern.permute.xlu0 %v6879
    %6882 = vperm.xlu0 %6881, %v6877
    %v6883 = vpop.permute.xlu0 %6882
    %v6884 = vperm.slane %v6855, 1
    %v6885 = vlaneseq
    %v6886 = vshrl.u32 %v6885, 7
    %6888 = vset.pattern.permute.xlu0 %v6886
    %6889 = vperm.xlu0 %6888, %v6884
    %v6890 = vpop.permute.xlu0 %6889
    %v6891 = vperm.slane %v6855, 2
    %v6892 = vlaneseq
    %v6893 = vshrl.u32 %v6892, 7
    %6895 = vset.pattern.permute.xlu0 %v6893
    %6896 = vperm.xlu0 %6895, %v6891
    %v6897 = vpop.permute.xlu0 %6896
    %v6898 = vperm.slane %v6855, 3
    %v6899 = vlaneseq
    %v6900 = vshrl.u32 %v6899, 7
    %6902 = vset.pattern.permute.xlu0 %v6900
    %6903 = vperm.xlu0 %6902, %v6898
    %v6904 = vpop.permute.xlu0 %6903
    %v6905 = vperm.slane %v6855, 4
    %v6906 = vlaneseq
    %v6907 = vshrl.u32 %v6906, 7
    %6909 = vset.pattern.permute.xlu0 %v6907
    %6910 = vperm.xlu0 %6909, %v6905
    %v6911 = vpop.permute.xlu0 %6910
    %v6912 = vperm.slane %v6855, 5
    %v6913 = vlaneseq
    %v6914 = vshrl.u32 %v6913, 7
    %6916 = vset.pattern.permute.xlu0 %v6914
    %6917 = vperm.xlu0 %6916, %v6912
    %v6918 = vpop.permute.xlu0 %6917
    %v6919 = vperm.slane %v6855, 6
    %v6920 = vlaneseq
    %v6921 = vshrl.u32 %v6920, 7
    %6923 = vset.pattern.permute.xlu0 %v6921
    %6924 = vperm.xlu0 %6923, %v6919
    %v6925 = vpop.permute.xlu0 %6924
    %v6926 = vperm.slane %v6855, 7
    %v6927 = vlaneseq
    %v6928 = vshrl.u32 %v6927, 7
    %6930 = vset.pattern.permute.xlu0 %v6928
    %6931 = vperm.xlu0 %6930, %v6926
    %v6932 = vpop.permute.xlu0 %6931
    %v6933 = vmul.f32 %v143, %v6883
    %v6934 = vmul.f32 %v144, %v6890
    %v6935 = vmul.f32 %v145, %v6897
    %v6936 = vmul.f32 %v146, %v6904
    %v6937 = vmul.f32 %v147, %v6911
    %v6938 = vmul.f32 %v148, %v6918
    %v6939 = vmul.f32 %v149, %v6925
    %v6940 = vmul.f32 %v150, %v6932
    %v6941 = vsel %vm171, %v6933, 0.0
    %v6942 = vrot.slane %v6941, 4
    %v6943 = vadd.f32 %v6941, %v6942
    %v6944 = vrot.slane %v6943, 2
    %v6945 = vadd.f32 %v6943, %v6944
    %v6946 = vrot.slane %v6945, 1
    %v6947 = vadd.f32 %v6945, %v6946
    %v6948 = vsel %vm171, %v6934, 0.0
    %v6949 = vrot.slane %v6948, 4
    %v6950 = vadd.f32 %v6948, %v6949
    %v6951 = vrot.slane %v6950, 2
    %v6952 = vadd.f32 %v6950, %v6951
    %v6953 = vrot.slane %v6952, 1
    %v6954 = vadd.f32 %v6952, %v6953
    %v6955 = vsel %vm171, %v6935, 0.0
    %v6956 = vrot.slane %v6955, 4
    %v6957 = vadd.f32 %v6955, %v6956
    %v6958 = vrot.slane %v6957, 2
    %v6959 = vadd.f32 %v6957, %v6958
    %v6960 = vrot.slane %v6959, 1
    %v6961 = vadd.f32 %v6959, %v6960
    %v6962 = vsel %vm171, %v6936, 0.0
    %v6963 = vrot.slane %v6962, 4
    %v6964 = vadd.f32 %v6962, %v6963
    %v6965 = vrot.slane %v6964, 2
    %v6966 = vadd.f32 %v6964, %v6965
    %v6967 = vrot.slane %v6966, 1
    %v6968 = vadd.f32 %v6966, %v6967
    %v6969 = vsel %vm171, %v6937, 0.0
    %v6970 = vrot.slane %v6969, 4
    %v6971 = vadd.f32 %v6969, %v6970
    %v6972 = vrot.slane %v6971, 2
    %v6973 = vadd.f32 %v6971, %v6972
    %v6974 = vrot.slane %v6973, 1
    %v6975 = vadd.f32 %v6973, %v6974
    %v6976 = vsel %vm171, %v6938, 0.0
    %v6977 = vrot.slane %v6976, 4
    %v6978 = vadd.f32 %v6976, %v6977
    %v6979 = vrot.slane %v6978, 2
    %v6980 = vadd.f32 %v6978, %v6979
    %v6981 = vrot.slane %v6980, 1
    %v6982 = vadd.f32 %v6980, %v6981
    %v6983 = vsel %vm171, %v6939, 0.0
    %v6984 = vrot.slane %v6983, 4
    %v6985 = vadd.f32 %v6983, %v6984
    %v6986 = vrot.slane %v6985, 2
    %v6987 = vadd.f32 %v6985, %v6986
    %v6988 = vrot.slane %v6987, 1
    %v6989 = vadd.f32 %v6987, %v6988
    %v6990 = vsel %vm171, %v6940, 0.0
    %v6991 = vrot.slane %v6990, 4
    %v6992 = vadd.f32 %v6990, %v6991
    %v6993 = vrot.slane %v6992, 2
    %v6994 = vadd.f32 %v6992, %v6993
    %v6995 = vrot.slane %v6994, 1
    %v6996 = vadd.f32 %v6994, %v6995
    %6998 = vset.pattern.permute.xlu0 0
    %6999 = vperm.xlu0 %6998, %v6875
    %v7000 = vpop.permute.xlu0 %6999
    %v7002 = vmul.f32 %v7000, %v5566
    %v7003 = vsub.f32 1.0, %v6875
    %7005 = vset.pattern.permute.xlu0 0
    %7006 = vperm.xlu0 %7005, %v7003
    %v7007 = vpop.permute.xlu0 %7006
    %v7017 = vsel %vm2278, %v6954, %v6947
    %v7018 = vsel %vm2280, %v6961, %v7017
    %v7019 = vsel %vm2282, %v6968, %v7018
    %v7020 = vsel %vm2284, %v6975, %v7019
    %v7021 = vsel %vm2286, %v6982, %v7020
    %v7022 = vsel %vm2288, %v6989, %v7021
    %v7023 = vsel %vm2290, %v6996, %v7022
    %v7025 = vmul.f32 %v7007, %v7023
    %7027 = vrot.lane.b32.xlu0 %v7025, 96
    %v7028 = vpop.permute.xlu0 %7027
    %v7030 = vadd.f32 %v7002, %v7028
    %v7031 = vld [vmem:[#allocation14] sm:$0xff]
    %v7032 = vld [vmem:[#allocation14 + $0x8] sm:$0xff]
    %v7033 = vld [vmem:[#allocation14 + $0x10] sm:$0xff]
    %v7034 = vld [vmem:[#allocation14 + $0x18] sm:$0xff]
    %7036 = vrot.lane.b32.xlu0 %v7030, 32
    %v7037 = vpop.permute.xlu0 %7036
    %v7038 = vsel %vm171, %v7037, 0
    %7040 = vmatpush.msra.mxu0 0.0
    %7041 = vmatpush.msra.mxu0 0.0
    %7042 = vmatpush.msra.mxu0 0.0
    %7043 = vmatpush.msra.mxu0 0.0
    %7044 = vmatpush.msra.mxu0 0.0
    %7045 = vmatpush.msra.mxu0 0.0
    %7046 = vmatpush.msra.mxu0 0.0
    %7047 = vmatpush.msra.mxu0 0.0
    %7048 = vmatpush.msra.mxu0 0.0
    %7049 = vmatpush.msra.mxu0 0.0
    %7050 = vmatpush.msra.mxu0 0.0
    %7051 = vmatpush.msra.mxu0 0.0
    %v7052 = vand.u32 %v7034, 4294901760
    %7053 = vmatpush.msra.mxu0 %v7052
    %v7054 = vand.u32 %v7033, 4294901760
    %7055 = vmatpush.msra.mxu0 %v7054
    %v7056 = vand.u32 %v7032, 4294901760
    %7057 = vmatpush.msra.mxu0 %v7056
    %v7058 = vand.u32 %v7031, 4294901760
    %7059 = vmatpush.msra.mxu0 %v7058
    %v7060 = vand.u32 %v7038, 4294901760
    %v7061 = vsub.f32 %v7038, %v7060
    %v7062 = vand.u32 %v7061, 4294901760
    %v7063 = vsub.f32 %v7061, %v7062
    %v7064 = vand.u32 %v7063, 4294901760
    %7065 = vmatmul.f32.gmra.mxu0 %v7064
    %v7066 = vpop.f32.mrf.mxu0
    %v7067 = vadd.f32 0.0, %v7066
    %7068 = vdwg.mxu0
    %7069 = vmatpush.msra.mxu0 0.0
    %7070 = vmatpush.msra.mxu0 0.0
    %7071 = vmatpush.msra.mxu0 0.0
    %7072 = vmatpush.msra.mxu0 0.0
    %7073 = vmatpush.msra.mxu0 0.0
    %7074 = vmatpush.msra.mxu0 0.0
    %7075 = vmatpush.msra.mxu0 0.0
    %7076 = vmatpush.msra.mxu0 0.0
    %7077 = vmatpush.msra.mxu0 0.0
    %7078 = vmatpush.msra.mxu0 0.0
    %7079 = vmatpush.msra.mxu0 0.0
    %7080 = vmatpush.msra.mxu0 0.0
    %v7081 = vand.u32 %v7034, 4294901760
    %v7082 = vsub.f32 %v7034, %v7081
    %v7083 = vand.u32 %v7082, 4294901760
    %v7084 = vsub.f32 %v7082, %v7083
    %v7085 = vand.u32 %v7084, 4294901760
    %7086 = vmatpush.msra.mxu0 %v7085
    %v7087 = vand.u32 %v7033, 4294901760
    %v7088 = vsub.f32 %v7033, %v7087
    %v7089 = vand.u32 %v7088, 4294901760
    %v7090 = vsub.f32 %v7088, %v7089
    %v7091 = vand.u32 %v7090, 4294901760
    %7092 = vmatpush.msra.mxu0 %v7091
    %v7093 = vand.u32 %v7032, 4294901760
    %v7094 = vsub.f32 %v7032, %v7093
    %v7095 = vand.u32 %v7094, 4294901760
    %v7096 = vsub.f32 %v7094, %v7095
    %v7097 = vand.u32 %v7096, 4294901760
    %7098 = vmatpush.msra.mxu0 %v7097
    %v7099 = vand.u32 %v7031, 4294901760
    %v7100 = vsub.f32 %v7031, %v7099
    %v7101 = vand.u32 %v7100, 4294901760
    %v7102 = vsub.f32 %v7100, %v7101
    %v7103 = vand.u32 %v7102, 4294901760
    %7104 = vmatpush.msra.mxu0 %v7103
    %v7105 = vand.u32 %v7038, 4294901760
    %7106 = vmatmul.f32.gmra.mxu0 %v7105
    %v7107 = vpop.f32.mrf.mxu0
    %v7108 = vadd.f32 %v7067, %v7107
    %7109 = vdwg.mxu0
    %7110 = vmatpush.msra.mxu0 0.0
    %7111 = vmatpush.msra.mxu0 0.0
    %7112 = vmatpush.msra.mxu0 0.0
    %7113 = vmatpush.msra.mxu0 0.0
    %7114 = vmatpush.msra.mxu0 0.0
    %7115 = vmatpush.msra.mxu0 0.0
    %7116 = vmatpush.msra.mxu0 0.0
    %7117 = vmatpush.msra.mxu0 0.0
    %7118 = vmatpush.msra.mxu0 0.0
    %7119 = vmatpush.msra.mxu0 0.0
    %7120 = vmatpush.msra.mxu0 0.0
    %7121 = vmatpush.msra.mxu0 0.0
    %v7122 = vand.u32 %v7034, 4294901760
    %v7123 = vsub.f32 %v7034, %v7122
    %7124 = vmatpush.msra.mxu0 %v7123
    %v7125 = vand.u32 %v7033, 4294901760
    %v7126 = vsub.f32 %v7033, %v7125
    %7127 = vmatpush.msra.mxu0 %v7126
    %v7128 = vand.u32 %v7032, 4294901760
    %v7129 = vsub.f32 %v7032, %v7128
    %7130 = vmatpush.msra.mxu0 %v7129
    %v7131 = vand.u32 %v7031, 4294901760
    %v7132 = vsub.f32 %v7031, %v7131
    %7133 = vmatpush.msra.mxu0 %v7132
    %v7134 = vand.u32 %v7038, 4294901760
    %v7135 = vsub.f32 %v7038, %v7134
    %7136 = vmatmul.f32.gmra.mxu0 %v7135
    %v7137 = vpop.f32.mrf.mxu0
    %v7138 = vadd.f32 %v7108, %v7137
    %7139 = vdwg.mxu0
    %7140 = vmatpush.msra.mxu0 0.0
    %7141 = vmatpush.msra.mxu0 0.0
    %7142 = vmatpush.msra.mxu0 0.0
    %7143 = vmatpush.msra.mxu0 0.0
    %7144 = vmatpush.msra.mxu0 0.0
    %7145 = vmatpush.msra.mxu0 0.0
    %7146 = vmatpush.msra.mxu0 0.0
    %7147 = vmatpush.msra.mxu0 0.0
    %7148 = vmatpush.msra.mxu0 0.0
    %7149 = vmatpush.msra.mxu0 0.0
    %7150 = vmatpush.msra.mxu0 0.0
    %7151 = vmatpush.msra.mxu0 0.0
    %v7152 = vand.u32 %v7034, 4294901760
    %7153 = vmatpush.msra.mxu0 %v7152
    %v7154 = vand.u32 %v7033, 4294901760
    %7155 = vmatpush.msra.mxu0 %v7154
    %v7156 = vand.u32 %v7032, 4294901760
    %7157 = vmatpush.msra.mxu0 %v7156
    %v7158 = vand.u32 %v7031, 4294901760
    %7159 = vmatpush.msra.mxu0 %v7158
    %v7160 = vand.u32 %v7038, 4294901760
    %v7161 = vsub.f32 %v7038, %v7160
    %v7162 = vand.u32 %v7161, 4294901760
    %7163 = vmatmul.f32.gmra.mxu0 %v7162
    %v7164 = vpop.f32.mrf.mxu0
    %v7165 = vadd.f32 %v7138, %v7164
    %7166 = vdwg.mxu0
    %7167 = vmatpush.msra.mxu0 0.0
    %7168 = vmatpush.msra.mxu0 0.0
    %7169 = vmatpush.msra.mxu0 0.0
    %7170 = vmatpush.msra.mxu0 0.0
    %7171 = vmatpush.msra.mxu0 0.0
    %7172 = vmatpush.msra.mxu0 0.0
    %7173 = vmatpush.msra.mxu0 0.0
    %7174 = vmatpush.msra.mxu0 0.0
    %7175 = vmatpush.msra.mxu0 0.0
    %7176 = vmatpush.msra.mxu0 0.0
    %7177 = vmatpush.msra.mxu0 0.0
    %7178 = vmatpush.msra.mxu0 0.0
    %v7179 = vand.u32 %v7034, 4294901760
    %v7180 = vsub.f32 %v7034, %v7179
    %v7181 = vand.u32 %v7180, 4294901760
    %7182 = vmatpush.msra.mxu0 %v7181
    %v7183 = vand.u32 %v7033, 4294901760
    %v7184 = vsub.f32 %v7033, %v7183
    %v7185 = vand.u32 %v7184, 4294901760
    %7186 = vmatpush.msra.mxu0 %v7185
    %v7187 = vand.u32 %v7032, 4294901760
    %v7188 = vsub.f32 %v7032, %v7187
    %v7189 = vand.u32 %v7188, 4294901760
    %7190 = vmatpush.msra.mxu0 %v7189
    %v7191 = vand.u32 %v7031, 4294901760
    %v7192 = vsub.f32 %v7031, %v7191
    %v7193 = vand.u32 %v7192, 4294901760
    %7194 = vmatpush.msra.mxu0 %v7193
    %v7195 = vand.u32 %v7038, 4294901760
    %7196 = vmatmul.f32.gmra.mxu0 %v7195
    %v7197 = vpop.f32.mrf.mxu0
    %v7198 = vadd.f32 %v7165, %v7197
    %7199 = vdwg.mxu0
    %7200 = vmatpush.msra.mxu0 0.0
    %7201 = vmatpush.msra.mxu0 0.0
    %7202 = vmatpush.msra.mxu0 0.0
    %7203 = vmatpush.msra.mxu0 0.0
    %7204 = vmatpush.msra.mxu0 0.0
    %7205 = vmatpush.msra.mxu0 0.0
    %7206 = vmatpush.msra.mxu0 0.0
    %7207 = vmatpush.msra.mxu0 0.0
    %7208 = vmatpush.msra.mxu0 0.0
    %7209 = vmatpush.msra.mxu0 0.0
    %7210 = vmatpush.msra.mxu0 0.0
    %7211 = vmatpush.msra.mxu0 0.0
    %v7212 = vand.u32 %v7034, 4294901760
    %7213 = vmatpush.msra.mxu0 %v7212
    %v7214 = vand.u32 %v7033, 4294901760
    %7215 = vmatpush.msra.mxu0 %v7214
    %v7216 = vand.u32 %v7032, 4294901760
    %7217 = vmatpush.msra.mxu0 %v7216
    %v7218 = vand.u32 %v7031, 4294901760
    %7219 = vmatpush.msra.mxu0 %v7218
    %v7220 = vand.u32 %v7038, 4294901760
    %7221 = vmatmul.f32.gmra.mxu0 %v7220
    %v7222 = vpop.f32.mrf.mxu0
    %v7223 = vadd.f32 %v7198, %v7222
    %7224 = vdwg.mxu0
    %7226 = vrot.lane.b32.xlu0 %v7223, 64
    %v7227 = vpop.permute.xlu0 %7226
    %v7229 = vadd.f32 %v5567, %v7227
    %v7230 = vxor.u32 %v7229, 2147483648
    %v7231 = vmul.f32 %v7230, 1.442695
    %v7232 = vpow.pop %v7231
    %v7233 = vadd.f32 %v7232, 1.0
    %v7234 = vrcp.pop %v7233
    %v7235 = vmul.f32 %v7233, %v7234
    %v7236 = vsub.f32 1.0, %v7235
    %v7237 = vmul.f32 %v7234, %v7236
    %v7238 = vadd.f32 %v7234, %v7237
    %vm7239 = vweird.f32 %v7233
    %vm7240 = vweird.f32 %v7234
    %vm7241 = vmor %vm7239, %vm7240
    %v7242 = vsel %vm7241, %v7234, %v7238
    %v7243 = vand.u32 2147483647, %v7233
    %vm7244 = vcmp.eq.f32.partialorder %v7243, 8.507059e+37
    %v7245 = vand.u32 %v7233, 2147483648
    %v7246 = vor.u32 1.1754944e-38, %v7245
    %v7247 = vsel %vm7244, %v7246, %v7242
    %v7248 = vmul.f32 1.0, %v7247
    %7250 = vrot.lane.b32.xlu0 %v5568, 64
    %v7251 = vpop.permute.xlu0 %7250
    %v7253 = vmul.f32 %v7248, %v7251
    %v7254 = vadd.f32 %v7223, %v7253
    %v7255 = vtanh.pop %v7254
    %7256 = vrot.lane.b32.xlu0 %v5177, 64
    %v7257 = vpop.permute.xlu0 %7256
    %v7259 = vmul.f32 %v7248, %v7257
    %v7260 = vsub.f32 1.0, %v7248
    %7262 = vrot.lane.b32.xlu0 %v7255, 32
    %v7263 = vpop.permute.xlu0 %7262
    %v7265 = vmul.f32 %v7260, %v7263
    %v7266 = vadd.f32 %v7259, %v7265
    %v7267 = vmul.f32 %v5163, %v7266
    %v7268 = vmul.f32 %v5170, %v5177
    %7270 = vrot.lane.b32.xlu0 %v7268, 64
    %v7271 = vpop.permute.xlu0 %7270
    %v7273 = vadd.f32 %v7267, %v7271
    %7275 = vrot.lane.b32.xlu0 %v7273, 32
    %v7276 = vpop.permute.xlu0 %7275
    %7278 = vrot.lane.b32.xlu0 %v7030, 64
    %v7279 = vpop.permute.xlu0 %7278
    %7282 = vrot.lane.b32.xlu0 %v6855, 64
    %v7283 = vpop.permute.xlu0 %7282
    %v7285 = vsel %vm171, %v7276, %v7279
    %v7286 = vsel %vm825, %v7285, %v7283
    %v7287 = vsel %vm2555, %v7286, 0.0
    %s7288 = scalar_lea.vmem [#allocation15], 16
    %7289 = vst [vmem:[%s7288] sm:$0xff] %v7287
    %s7290 = scalar_lea.vmem %s0, 48
    %v7291 = vld [vmem:[%s7290] sm:$0xff]
    %v7292 = vld [vmem:[%s7290 + $0x8] sm:$0xff]
    %v7293 = vld [vmem:[%s6] sm:$0xff]
    %v7294 = vld [vmem:[%s6 + $0x8] sm:$0xff]
    %v7295 = vld [vmem:[%s6 + $0x10] sm:$0xff]
    %v7296 = vld [vmem:[%s6 + $0x18] sm:$0xff]
    %v7297 = vsel %vm171, %v7276, 0
    %7299 = vmatpush.msra.mxu0 0.0
    %7300 = vmatpush.msra.mxu0 0.0
    %7301 = vmatpush.msra.mxu0 0.0
    %7302 = vmatpush.msra.mxu0 0.0
    %7303 = vmatpush.msra.mxu0 0.0
    %7304 = vmatpush.msra.mxu0 0.0
    %7305 = vmatpush.msra.mxu0 0.0
    %7306 = vmatpush.msra.mxu0 0.0
    %7307 = vmatpush.msra.mxu0 0.0
    %7308 = vmatpush.msra.mxu0 0.0
    %7309 = vmatpush.msra.mxu0 0.0
    %7310 = vmatpush.msra.mxu0 0.0
    %v7311 = vand.u32 %v7296, 4294901760
    %7312 = vmatpush.msra.mxu0 %v7311
    %v7313 = vand.u32 %v7295, 4294901760
    %7314 = vmatpush.msra.mxu0 %v7313
    %v7315 = vand.u32 %v7294, 4294901760
    %7316 = vmatpush.msra.mxu0 %v7315
    %v7317 = vand.u32 %v7293, 4294901760
    %7318 = vmatpush.msra.mxu0 %v7317
    %v7319 = vand.u32 %v7297, 4294901760
    %v7320 = vsub.f32 %v7297, %v7319
    %v7321 = vand.u32 %v7320, 4294901760
    %v7322 = vsub.f32 %v7320, %v7321
    %v7323 = vand.u32 %v7322, 4294901760
    %7324 = vmatmul.f32.gmra.mxu0 %v7323
    %v7325 = vpop.f32.mrf.mxu0
    %v7326 = vadd.f32 0.0, %v7325
    %7327 = vdwg.mxu0
    %7328 = vmatpush.msra.mxu0 0.0
    %7329 = vmatpush.msra.mxu0 0.0
    %7330 = vmatpush.msra.mxu0 0.0
    %7331 = vmatpush.msra.mxu0 0.0
    %7332 = vmatpush.msra.mxu0 0.0
    %7333 = vmatpush.msra.mxu0 0.0
    %7334 = vmatpush.msra.mxu0 0.0
    %7335 = vmatpush.msra.mxu0 0.0
    %7336 = vmatpush.msra.mxu0 0.0
    %7337 = vmatpush.msra.mxu0 0.0
    %7338 = vmatpush.msra.mxu0 0.0
    %7339 = vmatpush.msra.mxu0 0.0
    %v7340 = vand.u32 %v7296, 4294901760
    %v7341 = vsub.f32 %v7296, %v7340
    %v7342 = vand.u32 %v7341, 4294901760
    %v7343 = vsub.f32 %v7341, %v7342
    %v7344 = vand.u32 %v7343, 4294901760
    %7345 = vmatpush.msra.mxu0 %v7344
    %v7346 = vand.u32 %v7295, 4294901760
    %v7347 = vsub.f32 %v7295, %v7346
    %v7348 = vand.u32 %v7347, 4294901760
    %v7349 = vsub.f32 %v7347, %v7348
    %v7350 = vand.u32 %v7349, 4294901760
    %7351 = vmatpush.msra.mxu0 %v7350
    %v7352 = vand.u32 %v7294, 4294901760
    %v7353 = vsub.f32 %v7294, %v7352
    %v7354 = vand.u32 %v7353, 4294901760
    %v7355 = vsub.f32 %v7353, %v7354
    %v7356 = vand.u32 %v7355, 4294901760
    %7357 = vmatpush.msra.mxu0 %v7356
    %v7358 = vand.u32 %v7293, 4294901760
    %v7359 = vsub.f32 %v7293, %v7358
    %v7360 = vand.u32 %v7359, 4294901760
    %v7361 = vsub.f32 %v7359, %v7360
    %v7362 = vand.u32 %v7361, 4294901760
    %7363 = vmatpush.msra.mxu0 %v7362
    %v7364 = vand.u32 %v7297, 4294901760
    %7365 = vmatmul.f32.gmra.mxu0 %v7364
    %v7366 = vpop.f32.mrf.mxu0
    %v7367 = vadd.f32 %v7326, %v7366
    %7368 = vdwg.mxu0
    %7369 = vmatpush.msra.mxu0 0.0
    %7370 = vmatpush.msra.mxu0 0.0
    %7371 = vmatpush.msra.mxu0 0.0
    %7372 = vmatpush.msra.mxu0 0.0
    %7373 = vmatpush.msra.mxu0 0.0
    %7374 = vmatpush.msra.mxu0 0.0
    %7375 = vmatpush.msra.mxu0 0.0
    %7376 = vmatpush.msra.mxu0 0.0
    %7377 = vmatpush.msra.mxu0 0.0
    %7378 = vmatpush.msra.mxu0 0.0
    %7379 = vmatpush.msra.mxu0 0.0
    %7380 = vmatpush.msra.mxu0 0.0
    %v7381 = vand.u32 %v7296, 4294901760
    %v7382 = vsub.f32 %v7296, %v7381
    %7383 = vmatpush.msra.mxu0 %v7382
    %v7384 = vand.u32 %v7295, 4294901760
    %v7385 = vsub.f32 %v7295, %v7384
    %7386 = vmatpush.msra.mxu0 %v7385
    %v7387 = vand.u32 %v7294, 4294901760
    %v7388 = vsub.f32 %v7294, %v7387
    %7389 = vmatpush.msra.mxu0 %v7388
    %v7390 = vand.u32 %v7293, 4294901760
    %v7391 = vsub.f32 %v7293, %v7390
    %7392 = vmatpush.msra.mxu0 %v7391
    %v7393 = vand.u32 %v7297, 4294901760
    %v7394 = vsub.f32 %v7297, %v7393
    %7395 = vmatmul.f32.gmra.mxu0 %v7394
    %v7396 = vpop.f32.mrf.mxu0
    %v7397 = vadd.f32 %v7367, %v7396
    %7398 = vdwg.mxu0
    %7399 = vmatpush.msra.mxu0 0.0
    %7400 = vmatpush.msra.mxu0 0.0
    %7401 = vmatpush.msra.mxu0 0.0
    %7402 = vmatpush.msra.mxu0 0.0
    %7403 = vmatpush.msra.mxu0 0.0
    %7404 = vmatpush.msra.mxu0 0.0
    %7405 = vmatpush.msra.mxu0 0.0
    %7406 = vmatpush.msra.mxu0 0.0
    %7407 = vmatpush.msra.mxu0 0.0
    %7408 = vmatpush.msra.mxu0 0.0
    %7409 = vmatpush.msra.mxu0 0.0
    %7410 = vmatpush.msra.mxu0 0.0
    %v7411 = vand.u32 %v7296, 4294901760
    %7412 = vmatpush.msra.mxu0 %v7411
    %v7413 = vand.u32 %v7295, 4294901760
    %7414 = vmatpush.msra.mxu0 %v7413
    %v7415 = vand.u32 %v7294, 4294901760
    %7416 = vmatpush.msra.mxu0 %v7415
    %v7417 = vand.u32 %v7293, 4294901760
    %7418 = vmatpush.msra.mxu0 %v7417
    %v7419 = vand.u32 %v7297, 4294901760
    %v7420 = vsub.f32 %v7297, %v7419
    %v7421 = vand.u32 %v7420, 4294901760
    %7422 = vmatmul.f32.gmra.mxu0 %v7421
    %v7423 = vpop.f32.mrf.mxu0
    %v7424 = vadd.f32 %v7397, %v7423
    %7425 = vdwg.mxu0
    %7426 = vmatpush.msra.mxu0 0.0
    %7427 = vmatpush.msra.mxu0 0.0
    %7428 = vmatpush.msra.mxu0 0.0
    %7429 = vmatpush.msra.mxu0 0.0
    %7430 = vmatpush.msra.mxu0 0.0
    %7431 = vmatpush.msra.mxu0 0.0
    %7432 = vmatpush.msra.mxu0 0.0
    %7433 = vmatpush.msra.mxu0 0.0
    %7434 = vmatpush.msra.mxu0 0.0
    %7435 = vmatpush.msra.mxu0 0.0
    %7436 = vmatpush.msra.mxu0 0.0
    %7437 = vmatpush.msra.mxu0 0.0
    %v7438 = vand.u32 %v7296, 4294901760
    %v7439 = vsub.f32 %v7296, %v7438
    %v7440 = vand.u32 %v7439, 4294901760
    %7441 = vmatpush.msra.mxu0 %v7440
    %v7442 = vand.u32 %v7295, 4294901760
    %v7443 = vsub.f32 %v7295, %v7442
    %v7444 = vand.u32 %v7443, 4294901760
    %7445 = vmatpush.msra.mxu0 %v7444
    %v7446 = vand.u32 %v7294, 4294901760
    %v7447 = vsub.f32 %v7294, %v7446
    %v7448 = vand.u32 %v7447, 4294901760
    %7449 = vmatpush.msra.mxu0 %v7448
    %v7450 = vand.u32 %v7293, 4294901760
    %v7451 = vsub.f32 %v7293, %v7450
    %v7452 = vand.u32 %v7451, 4294901760
    %7453 = vmatpush.msra.mxu0 %v7452
    %v7454 = vand.u32 %v7297, 4294901760
    %7455 = vmatmul.f32.gmra.mxu0 %v7454
    %v7456 = vpop.f32.mrf.mxu0
    %v7457 = vadd.f32 %v7424, %v7456
    %7458 = vdwg.mxu0
    %7459 = vmatpush.msra.mxu0 0.0
    %7460 = vmatpush.msra.mxu0 0.0
    %7461 = vmatpush.msra.mxu0 0.0
    %7462 = vmatpush.msra.mxu0 0.0
    %7463 = vmatpush.msra.mxu0 0.0
    %7464 = vmatpush.msra.mxu0 0.0
    %7465 = vmatpush.msra.mxu0 0.0
    %7466 = vmatpush.msra.mxu0 0.0
    %7467 = vmatpush.msra.mxu0 0.0
    %7468 = vmatpush.msra.mxu0 0.0
    %7469 = vmatpush.msra.mxu0 0.0
    %7470 = vmatpush.msra.mxu0 0.0
    %v7471 = vand.u32 %v7296, 4294901760
    %7472 = vmatpush.msra.mxu0 %v7471
    %v7473 = vand.u32 %v7295, 4294901760
    %7474 = vmatpush.msra.mxu0 %v7473
    %v7475 = vand.u32 %v7294, 4294901760
    %7476 = vmatpush.msra.mxu0 %v7475
    %v7477 = vand.u32 %v7293, 4294901760
    %7478 = vmatpush.msra.mxu0 %v7477
    %v7479 = vand.u32 %v7297, 4294901760
    %7480 = vmatmul.f32.gmra.mxu0 %v7479
    %v7481 = vpop.f32.mrf.mxu0
    %v7482 = vadd.f32 %v7457, %v7481
    %7483 = vdwg.mxu0
    %v7484 = vadd.f32 %v7482, %v7291
    %v7485 = vxor.u32 %v7484, 2147483648
    %v7486 = vmul.f32 %v7485, 1.442695
    %v7487 = vpow.pop %v7486
    %v7488 = vadd.f32 %v7487, 1.0
    %v7489 = vrcp.pop %v7488
    %v7490 = vmul.f32 %v7488, %v7489
    %v7491 = vsub.f32 1.0, %v7490
    %v7492 = vmul.f32 %v7489, %v7491
    %v7493 = vadd.f32 %v7489, %v7492
    %vm7494 = vweird.f32 %v7488
    %vm7495 = vweird.f32 %v7489
    %vm7496 = vmor %vm7494, %vm7495
    %v7497 = vsel %vm7496, %v7489, %v7493
    %v7498 = vand.u32 2147483647, %v7488
    %vm7499 = vcmp.eq.f32.partialorder %v7498, 8.507059e+37
    %v7500 = vand.u32 %v7488, 2147483648
    %v7501 = vor.u32 1.1754944e-38, %v7500
    %v7502 = vsel %vm7499, %v7501, %v7497
    %v7503 = vmul.f32 1.0, %v7502
    %7505 = vrot.lane.b32.xlu0 %v7482, 64
    %v7506 = vpop.permute.xlu0 %7505
    %v7508 = vmul.f32 %v7503, %v7506
    %7510 = vrot.lane.b32.xlu0 %v7291, 64
    %v7511 = vpop.permute.xlu0 %7510
    %v7513 = vadd.f32 %v7508, %v7511
    %v7514 = vtanh.pop %v7513
    %7515 = vrot.lane.b32.xlu0 %v7273, 64
    %v7516 = vpop.permute.xlu0 %7515
    %v7518 = vmul.f32 %v7503, %v7516
    %v7519 = vsub.f32 1.0, %v7503
    %7521 = vrot.lane.b32.xlu0 %v7514, 32
    %v7522 = vpop.permute.xlu0 %7521
    %v7524 = vmul.f32 %v7519, %v7522
    %v7525 = vadd.f32 %v7518, %v7524
    %7527 = vset.pattern.permute.xlu0 0
    %7528 = vperm.xlu0 %7527, %v7292
    %v7529 = vpop.permute.xlu0 %7528
    %v7531 = vmul.f32 %v7529, %v7525
    %v7532 = vsub.f32 1.0, %v7292
    %7534 = vset.pattern.permute.xlu0 0
    %7535 = vperm.xlu0 %7534, %v7532
    %v7536 = vpop.permute.xlu0 %7535
    %v7538 = vmul.f32 %v7536, %v7273
    %7540 = vrot.lane.b32.xlu0 %v7538, 64
    %v7541 = vpop.permute.xlu0 %7540
    %v7543 = vadd.f32 %v7531, %v7541
    %v7544 = vld [vmem:[%s7] sm:$0xff]
    %v7545 = vld [vmem:[%s7 + $0x8] sm:$0xff]
    %v7546 = vld [vmem:[%s7 + $0x10] sm:$0xff]
    %v7547 = vld [vmem:[%s7 + $0x18] sm:$0xff]
    %v7548 = vld [vmem:[%s7 + $0x20] sm:$0xff]
    %v7549 = vld [vmem:[%s7 + $0x28] sm:$0xff]
    %v7550 = vld [vmem:[%s7 + $0x30] sm:$0xff]
    %v7551 = vld [vmem:[%s7 + $0x38] sm:$0xff]
    %7553 = vrot.lane.b32.xlu0 %v7543, 96
    %v7554 = vpop.permute.xlu0 %7553
    %v7555 = vsel %vm171, %v7554, 0
    %7557 = vmatpush.msra.mxu0 0.0
    %7558 = vmatpush.msra.mxu0 0.0
    %7559 = vmatpush.msra.mxu0 0.0
    %7560 = vmatpush.msra.mxu0 0.0
    %7561 = vmatpush.msra.mxu0 0.0
    %7562 = vmatpush.msra.mxu0 0.0
    %7563 = vmatpush.msra.mxu0 0.0
    %7564 = vmatpush.msra.mxu0 0.0
    %7565 = vmatpush.msra.mxu0 0.0
    %7566 = vmatpush.msra.mxu0 0.0
    %7567 = vmatpush.msra.mxu0 0.0
    %7568 = vmatpush.msra.mxu0 0.0
    %v7569 = vand.u32 %v7550, 4294901760
    %7570 = vmatpush.msra.mxu0 %v7569
    %v7571 = vand.u32 %v7548, 4294901760
    %7572 = vmatpush.msra.mxu0 %v7571
    %v7573 = vand.u32 %v7546, 4294901760
    %7574 = vmatpush.msra.mxu0 %v7573
    %v7575 = vand.u32 %v7544, 4294901760
    %7576 = vmatpush.msra.mxu0 %v7575
    %v7577 = vand.u32 %v7555, 4294901760
    %v7578 = vsub.f32 %v7555, %v7577
    %v7579 = vand.u32 %v7578, 4294901760
    %v7580 = vsub.f32 %v7578, %v7579
    %v7581 = vand.u32 %v7580, 4294901760
    %7582 = vmatmul.f32.gmra.mxu0 %v7581
    %v7583 = vpop.f32.mrf.mxu0
    %v7584 = vadd.f32 0.0, %v7583
    %7585 = vdwg.mxu0
    %7586 = vmatpush.msra.mxu0 0.0
    %7587 = vmatpush.msra.mxu0 0.0
    %7588 = vmatpush.msra.mxu0 0.0
    %7589 = vmatpush.msra.mxu0 0.0
    %7590 = vmatpush.msra.mxu0 0.0
    %7591 = vmatpush.msra.mxu0 0.0
    %7592 = vmatpush.msra.mxu0 0.0
    %7593 = vmatpush.msra.mxu0 0.0
    %7594 = vmatpush.msra.mxu0 0.0
    %7595 = vmatpush.msra.mxu0 0.0
    %7596 = vmatpush.msra.mxu0 0.0
    %7597 = vmatpush.msra.mxu0 0.0
    %v7598 = vand.u32 %v7550, 4294901760
    %v7599 = vsub.f32 %v7550, %v7598
    %v7600 = vand.u32 %v7599, 4294901760
    %v7601 = vsub.f32 %v7599, %v7600
    %v7602 = vand.u32 %v7601, 4294901760
    %7603 = vmatpush.msra.mxu0 %v7602
    %v7604 = vand.u32 %v7548, 4294901760
    %v7605 = vsub.f32 %v7548, %v7604
    %v7606 = vand.u32 %v7605, 4294901760
    %v7607 = vsub.f32 %v7605, %v7606
    %v7608 = vand.u32 %v7607, 4294901760
    %7609 = vmatpush.msra.mxu0 %v7608
    %v7610 = vand.u32 %v7546, 4294901760
    %v7611 = vsub.f32 %v7546, %v7610
    %v7612 = vand.u32 %v7611, 4294901760
    %v7613 = vsub.f32 %v7611, %v7612
    %v7614 = vand.u32 %v7613, 4294901760
    %7615 = vmatpush.msra.mxu0 %v7614
    %v7616 = vand.u32 %v7544, 4294901760
    %v7617 = vsub.f32 %v7544, %v7616
    %v7618 = vand.u32 %v7617, 4294901760
    %v7619 = vsub.f32 %v7617, %v7618
    %v7620 = vand.u32 %v7619, 4294901760
    %7621 = vmatpush.msra.mxu0 %v7620
    %v7622 = vand.u32 %v7555, 4294901760
    %7623 = vmatmul.f32.gmra.mxu0 %v7622
    %v7624 = vpop.f32.mrf.mxu0
    %v7625 = vadd.f32 %v7584, %v7624
    %7626 = vdwg.mxu0
    %7627 = vmatpush.msra.mxu0 0.0
    %7628 = vmatpush.msra.mxu0 0.0
    %7629 = vmatpush.msra.mxu0 0.0
    %7630 = vmatpush.msra.mxu0 0.0
    %7631 = vmatpush.msra.mxu0 0.0
    %7632 = vmatpush.msra.mxu0 0.0
    %7633 = vmatpush.msra.mxu0 0.0
    %7634 = vmatpush.msra.mxu0 0.0
    %7635 = vmatpush.msra.mxu0 0.0
    %7636 = vmatpush.msra.mxu0 0.0
    %7637 = vmatpush.msra.mxu0 0.0
    %7638 = vmatpush.msra.mxu0 0.0
    %v7639 = vand.u32 %v7550, 4294901760
    %v7640 = vsub.f32 %v7550, %v7639
    %7641 = vmatpush.msra.mxu0 %v7640
    %v7642 = vand.u32 %v7548, 4294901760
    %v7643 = vsub.f32 %v7548, %v7642
    %7644 = vmatpush.msra.mxu0 %v7643
    %v7645 = vand.u32 %v7546, 4294901760
    %v7646 = vsub.f32 %v7546, %v7645
    %7647 = vmatpush.msra.mxu0 %v7646
    %v7648 = vand.u32 %v7544, 4294901760
    %v7649 = vsub.f32 %v7544, %v7648
    %7650 = vmatpush.msra.mxu0 %v7649
    %v7651 = vand.u32 %v7555, 4294901760
    %v7652 = vsub.f32 %v7555, %v7651
    %7653 = vmatmul.f32.gmra.mxu0 %v7652
    %v7654 = vpop.f32.mrf.mxu0
    %v7655 = vadd.f32 %v7625, %v7654
    %7656 = vdwg.mxu0
    %7657 = vmatpush.msra.mxu0 0.0
    %7658 = vmatpush.msra.mxu0 0.0
    %7659 = vmatpush.msra.mxu0 0.0
    %7660 = vmatpush.msra.mxu0 0.0
    %7661 = vmatpush.msra.mxu0 0.0
    %7662 = vmatpush.msra.mxu0 0.0
    %7663 = vmatpush.msra.mxu0 0.0
    %7664 = vmatpush.msra.mxu0 0.0
    %7665 = vmatpush.msra.mxu0 0.0
    %7666 = vmatpush.msra.mxu0 0.0
    %7667 = vmatpush.msra.mxu0 0.0
    %7668 = vmatpush.msra.mxu0 0.0
    %v7669 = vand.u32 %v7550, 4294901760
    %7670 = vmatpush.msra.mxu0 %v7669
    %v7671 = vand.u32 %v7548, 4294901760
    %7672 = vmatpush.msra.mxu0 %v7671
    %v7673 = vand.u32 %v7546, 4294901760
    %7674 = vmatpush.msra.mxu0 %v7673
    %v7675 = vand.u32 %v7544, 4294901760
    %7676 = vmatpush.msra.mxu0 %v7675
    %v7677 = vand.u32 %v7555, 4294901760
    %v7678 = vsub.f32 %v7555, %v7677
    %v7679 = vand.u32 %v7678, 4294901760
    %7680 = vmatmul.f32.gmra.mxu0 %v7679
    %v7681 = vpop.f32.mrf.mxu0
    %v7682 = vadd.f32 %v7655, %v7681
    %7683 = vdwg.mxu0
    %7684 = vmatpush.msra.mxu0 0.0
    %7685 = vmatpush.msra.mxu0 0.0
    %7686 = vmatpush.msra.mxu0 0.0
    %7687 = vmatpush.msra.mxu0 0.0
    %7688 = vmatpush.msra.mxu0 0.0
    %7689 = vmatpush.msra.mxu0 0.0
    %7690 = vmatpush.msra.mxu0 0.0
    %7691 = vmatpush.msra.mxu0 0.0
    %7692 = vmatpush.msra.mxu0 0.0
    %7693 = vmatpush.msra.mxu0 0.0
    %7694 = vmatpush.msra.mxu0 0.0
    %7695 = vmatpush.msra.mxu0 0.0
    %v7696 = vand.u32 %v7550, 4294901760
    %v7697 = vsub.f32 %v7550, %v7696
    %v7698 = vand.u32 %v7697, 4294901760
    %7699 = vmatpush.msra.mxu0 %v7698
    %v7700 = vand.u32 %v7548, 4294901760
    %v7701 = vsub.f32 %v7548, %v7700
    %v7702 = vand.u32 %v7701, 4294901760
    %7703 = vmatpush.msra.mxu0 %v7702
    %v7704 = vand.u32 %v7546, 4294901760
    %v7705 = vsub.f32 %v7546, %v7704
    %v7706 = vand.u32 %v7705, 4294901760
    %7707 = vmatpush.msra.mxu0 %v7706
    %v7708 = vand.u32 %v7544, 4294901760
    %v7709 = vsub.f32 %v7544, %v7708
    %v7710 = vand.u32 %v7709, 4294901760
    %7711 = vmatpush.msra.mxu0 %v7710
    %v7712 = vand.u32 %v7555, 4294901760
    %7713 = vmatmul.f32.gmra.mxu0 %v7712
    %v7714 = vpop.f32.mrf.mxu0
    %v7715 = vadd.f32 %v7682, %v7714
    %7716 = vdwg.mxu0
    %7717 = vmatpush.msra.mxu0 0.0
    %7718 = vmatpush.msra.mxu0 0.0
    %7719 = vmatpush.msra.mxu0 0.0
    %7720 = vmatpush.msra.mxu0 0.0
    %7721 = vmatpush.msra.mxu0 0.0
    %7722 = vmatpush.msra.mxu0 0.0
    %7723 = vmatpush.msra.mxu0 0.0
    %7724 = vmatpush.msra.mxu0 0.0
    %7725 = vmatpush.msra.mxu0 0.0
    %7726 = vmatpush.msra.mxu0 0.0
    %7727 = vmatpush.msra.mxu0 0.0
    %7728 = vmatpush.msra.mxu0 0.0
    %v7729 = vand.u32 %v7550, 4294901760
    %7730 = vmatpush.msra.mxu0 %v7729
    %v7731 = vand.u32 %v7548, 4294901760
    %7732 = vmatpush.msra.mxu0 %v7731
    %v7733 = vand.u32 %v7546, 4294901760
    %7734 = vmatpush.msra.mxu0 %v7733
    %v7735 = vand.u32 %v7544, 4294901760
    %7736 = vmatpush.msra.mxu0 %v7735
    %v7737 = vand.u32 %v7555, 4294901760
    %7738 = vmatmul.f32.gmra.mxu0 %v7737
    %v7739 = vpop.f32.mrf.mxu0
    %v7740 = vadd.f32 %v7715, %v7739
    %7741 = vdwg.mxu0
    %7742 = vmatpush.msra.mxu0 0.0
    %7743 = vmatpush.msra.mxu0 0.0
    %7744 = vmatpush.msra.mxu0 0.0
    %7745 = vmatpush.msra.mxu0 0.0
    %7746 = vmatpush.msra.mxu0 0.0
    %7747 = vmatpush.msra.mxu0 0.0
    %7748 = vmatpush.msra.mxu0 0.0
    %7749 = vmatpush.msra.mxu0 0.0
    %7750 = vmatpush.msra.mxu0 0.0
    %7751 = vmatpush.msra.mxu0 0.0
    %7752 = vmatpush.msra.mxu0 0.0
    %7753 = vmatpush.msra.mxu0 0.0
    %v7754 = vand.u32 %v7551, 4294901760
    %7755 = vmatpush.msra.mxu0 %v7754
    %v7756 = vand.u32 %v7549, 4294901760
    %7757 = vmatpush.msra.mxu0 %v7756
    %v7758 = vand.u32 %v7547, 4294901760
    %7759 = vmatpush.msra.mxu0 %v7758
    %v7760 = vand.u32 %v7545, 4294901760
    %7761 = vmatpush.msra.mxu0 %v7760
    %v7762 = vand.u32 %v7555, 4294901760
    %v7763 = vsub.f32 %v7555, %v7762
    %v7764 = vand.u32 %v7763, 4294901760
    %v7765 = vsub.f32 %v7763, %v7764
    %v7766 = vand.u32 %v7765, 4294901760
    %7767 = vmatmul.f32.gmra.mxu0 %v7766
    %v7768 = vpop.f32.mrf.mxu0
    %v7769 = vadd.f32 0.0, %v7768
    %7770 = vdwg.mxu0
    %7771 = vmatpush.msra.mxu0 0.0
    %7772 = vmatpush.msra.mxu0 0.0
    %7773 = vmatpush.msra.mxu0 0.0
    %7774 = vmatpush.msra.mxu0 0.0
    %7775 = vmatpush.msra.mxu0 0.0
    %7776 = vmatpush.msra.mxu0 0.0
    %7777 = vmatpush.msra.mxu0 0.0
    %7778 = vmatpush.msra.mxu0 0.0
    %7779 = vmatpush.msra.mxu0 0.0
    %7780 = vmatpush.msra.mxu0 0.0
    %7781 = vmatpush.msra.mxu0 0.0
    %7782 = vmatpush.msra.mxu0 0.0
    %v7783 = vand.u32 %v7551, 4294901760
    %v7784 = vsub.f32 %v7551, %v7783
    %v7785 = vand.u32 %v7784, 4294901760
    %v7786 = vsub.f32 %v7784, %v7785
    %v7787 = vand.u32 %v7786, 4294901760
    %7788 = vmatpush.msra.mxu0 %v7787
    %v7789 = vand.u32 %v7549, 4294901760
    %v7790 = vsub.f32 %v7549, %v7789
    %v7791 = vand.u32 %v7790, 4294901760
    %v7792 = vsub.f32 %v7790, %v7791
    %v7793 = vand.u32 %v7792, 4294901760
    %7794 = vmatpush.msra.mxu0 %v7793
    %v7795 = vand.u32 %v7547, 4294901760
    %v7796 = vsub.f32 %v7547, %v7795
    %v7797 = vand.u32 %v7796, 4294901760
    %v7798 = vsub.f32 %v7796, %v7797
    %v7799 = vand.u32 %v7798, 4294901760
    %7800 = vmatpush.msra.mxu0 %v7799
    %v7801 = vand.u32 %v7545, 4294901760
    %v7802 = vsub.f32 %v7545, %v7801
    %v7803 = vand.u32 %v7802, 4294901760
    %v7804 = vsub.f32 %v7802, %v7803
    %v7805 = vand.u32 %v7804, 4294901760
    %7806 = vmatpush.msra.mxu0 %v7805
    %v7807 = vand.u32 %v7555, 4294901760
    %7808 = vmatmul.f32.gmra.mxu0 %v7807
    %v7809 = vpop.f32.mrf.mxu0
    %v7810 = vadd.f32 %v7769, %v7809
    %7811 = vdwg.mxu0
    %7812 = vmatpush.msra.mxu0 0.0
    %7813 = vmatpush.msra.mxu0 0.0
    %7814 = vmatpush.msra.mxu0 0.0
    %7815 = vmatpush.msra.mxu0 0.0
    %7816 = vmatpush.msra.mxu0 0.0
    %7817 = vmatpush.msra.mxu0 0.0
    %7818 = vmatpush.msra.mxu0 0.0
    %7819 = vmatpush.msra.mxu0 0.0
    %7820 = vmatpush.msra.mxu0 0.0
    %7821 = vmatpush.msra.mxu0 0.0
    %7822 = vmatpush.msra.mxu0 0.0
    %7823 = vmatpush.msra.mxu0 0.0
    %v7824 = vand.u32 %v7551, 4294901760
    %v7825 = vsub.f32 %v7551, %v7824
    %7826 = vmatpush.msra.mxu0 %v7825
    %v7827 = vand.u32 %v7549, 4294901760
    %v7828 = vsub.f32 %v7549, %v7827
    %7829 = vmatpush.msra.mxu0 %v7828
    %v7830 = vand.u32 %v7547, 4294901760
    %v7831 = vsub.f32 %v7547, %v7830
    %7832 = vmatpush.msra.mxu0 %v7831
    %v7833 = vand.u32 %v7545, 4294901760
    %v7834 = vsub.f32 %v7545, %v7833
    %7835 = vmatpush.msra.mxu0 %v7834
    %v7836 = vand.u32 %v7555, 4294901760
    %v7837 = vsub.f32 %v7555, %v7836
    %7838 = vmatmul.f32.gmra.mxu0 %v7837
    %v7839 = vpop.f32.mrf.mxu0
    %v7840 = vadd.f32 %v7810, %v7839
    %7841 = vdwg.mxu0
    %7842 = vmatpush.msra.mxu0 0.0
    %7843 = vmatpush.msra.mxu0 0.0
    %7844 = vmatpush.msra.mxu0 0.0
    %7845 = vmatpush.msra.mxu0 0.0
    %7846 = vmatpush.msra.mxu0 0.0
    %7847 = vmatpush.msra.mxu0 0.0
    %7848 = vmatpush.msra.mxu0 0.0
    %7849 = vmatpush.msra.mxu0 0.0
    %7850 = vmatpush.msra.mxu0 0.0
    %7851 = vmatpush.msra.mxu0 0.0
    %7852 = vmatpush.msra.mxu0 0.0
    %7853 = vmatpush.msra.mxu0 0.0
    %v7854 = vand.u32 %v7551, 4294901760
    %7855 = vmatpush.msra.mxu0 %v7854
    %v7856 = vand.u32 %v7549, 4294901760
    %7857 = vmatpush.msra.mxu0 %v7856
    %v7858 = vand.u32 %v7547, 4294901760
    %7859 = vmatpush.msra.mxu0 %v7858
    %v7860 = vand.u32 %v7545, 4294901760
    %7861 = vmatpush.msra.mxu0 %v7860
    %v7862 = vand.u32 %v7555, 4294901760
    %v7863 = vsub.f32 %v7555, %v7862
    %v7864 = vand.u32 %v7863, 4294901760
    %7865 = vmatmul.f32.gmra.mxu0 %v7864
    %v7866 = vpop.f32.mrf.mxu0
    %v7867 = vadd.f32 %v7840, %v7866
    %7868 = vdwg.mxu0
    %7869 = vmatpush.msra.mxu0 0.0
    %7870 = vmatpush.msra.mxu0 0.0
    %7871 = vmatpush.msra.mxu0 0.0
    %7872 = vmatpush.msra.mxu0 0.0
    %7873 = vmatpush.msra.mxu0 0.0
    %7874 = vmatpush.msra.mxu0 0.0
    %7875 = vmatpush.msra.mxu0 0.0
    %7876 = vmatpush.msra.mxu0 0.0
    %7877 = vmatpush.msra.mxu0 0.0
    %7878 = vmatpush.msra.mxu0 0.0
    %7879 = vmatpush.msra.mxu0 0.0
    %7880 = vmatpush.msra.mxu0 0.0
    %v7881 = vand.u32 %v7551, 4294901760
    %v7882 = vsub.f32 %v7551, %v7881
    %v7883 = vand.u32 %v7882, 4294901760
    %7884 = vmatpush.msra.mxu0 %v7883
    %v7885 = vand.u32 %v7549, 4294901760
    %v7886 = vsub.f32 %v7549, %v7885
    %v7887 = vand.u32 %v7886, 4294901760
    %7888 = vmatpush.msra.mxu0 %v7887
    %v7889 = vand.u32 %v7547, 4294901760
    %v7890 = vsub.f32 %v7547, %v7889
    %v7891 = vand.u32 %v7890, 4294901760
    %7892 = vmatpush.msra.mxu0 %v7891
    %v7893 = vand.u32 %v7545, 4294901760
    %v7894 = vsub.f32 %v7545, %v7893
    %v7895 = vand.u32 %v7894, 4294901760
    %7896 = vmatpush.msra.mxu0 %v7895
    %v7897 = vand.u32 %v7555, 4294901760
    %7898 = vmatmul.f32.gmra.mxu0 %v7897
    %v7899 = vpop.f32.mrf.mxu0
    %v7900 = vadd.f32 %v7867, %v7899
    %7901 = vdwg.mxu0
    %7902 = vmatpush.msra.mxu0 0.0
    %7903 = vmatpush.msra.mxu0 0.0
    %7904 = vmatpush.msra.mxu0 0.0
    %7905 = vmatpush.msra.mxu0 0.0
    %7906 = vmatpush.msra.mxu0 0.0
    %7907 = vmatpush.msra.mxu0 0.0
    %7908 = vmatpush.msra.mxu0 0.0
    %7909 = vmatpush.msra.mxu0 0.0
    %7910 = vmatpush.msra.mxu0 0.0
    %7911 = vmatpush.msra.mxu0 0.0
    %7912 = vmatpush.msra.mxu0 0.0
    %7913 = vmatpush.msra.mxu0 0.0
    %v7914 = vand.u32 %v7551, 4294901760
    %7915 = vmatpush.msra.mxu0 %v7914
    %v7916 = vand.u32 %v7549, 4294901760
    %7917 = vmatpush.msra.mxu0 %v7916
    %v7918 = vand.u32 %v7547, 4294901760
    %7919 = vmatpush.msra.mxu0 %v7918
    %v7920 = vand.u32 %v7545, 4294901760
    %7921 = vmatpush.msra.mxu0 %v7920
    %v7922 = vand.u32 %v7555, 4294901760
    %7923 = vmatmul.f32.gmra.mxu0 %v7922
    %v7924 = vpop.f32.mrf.mxu0
    %v7925 = vadd.f32 %v7900, %v7924
    %7926 = vdwg.mxu0
    %v7927 = vtanh.pop %v7740
    %7929 = vrot.lane.b32.xlu0 %v7927, 96
    %v7930 = vpop.permute.xlu0 %7929
    %v7932 = vmul.f32 %v7503, %v7930
    %v7933 = vadd.f32 %v7740, %v810
    %v7934 = vadd.f32 %v7925, %v161
    %7936 = vrot.lane.b32.xlu0 %v7740, 96
    %v7937 = vpop.permute.xlu0 %7936
    %7939 = vrot.lane.b32.xlu0 %v7740, 32
    %v7940 = vpop.permute.xlu0 %7939
    %7942 = vrot.lane.b32.xlu0 %v7740, 64
    %v7943 = vpop.permute.xlu0 %7942
    %v7945 = vsel %vm171, %v7937, %v7740
    %v7946 = vsel %vm825, %v7945, %v7940
    %v7947 = vsel %vm827, %v7946, %v7943
    %v7948 = vld [vmem:[#allocation12] sm:$0xff]
    %v7949 = vld [vmem:[#allocation12 + $0x8] sm:$0xff]
    %v7951 = vsel %vm152, %v6876, 0
    %7953 = vmatpush.msra.mxu0 0.0
    %7954 = vmatpush.msra.mxu0 0.0
    %7955 = vmatpush.msra.mxu0 0.0
    %7956 = vmatpush.msra.mxu0 0.0
    %7957 = vmatpush.msra.mxu0 0.0
    %7958 = vmatpush.msra.mxu0 0.0
    %7959 = vmatpush.msra.mxu0 0.0
    %7960 = vmatpush.msra.mxu0 0.0
    %7961 = vmatpush.msra.mxu0 0.0
    %7962 = vmatpush.msra.mxu0 0.0
    %7963 = vmatpush.msra.mxu0 0.0
    %7964 = vmatpush.msra.mxu0 0.0
    %7965 = vmatpush.msra.mxu0 0.0
    %7966 = vmatpush.msra.mxu0 0.0
    %7967 = vmatpush.msra.mxu0 0.0
    %v7968 = vand.u32 %v7948, 4294901760
    %7969 = vmatpush.msra.mxu0 %v7968
    %v7970 = vand.u32 %v7951, 4294901760
    %v7971 = vsub.f32 %v7951, %v7970
    %v7972 = vand.u32 %v7971, 4294901760
    %v7973 = vsub.f32 %v7971, %v7972
    %v7974 = vand.u32 %v7973, 4294901760
    %7975 = vmatmul.f32.gmra.mxu0 %v7974
    %v7976 = vpop.f32.mrf.mxu0
    %v7977 = vadd.f32 0.0, %v7976
    %7978 = vdwg.mxu0
    %7979 = vmatpush.msra.mxu0 0.0
    %7980 = vmatpush.msra.mxu0 0.0
    %7981 = vmatpush.msra.mxu0 0.0
    %7982 = vmatpush.msra.mxu0 0.0
    %7983 = vmatpush.msra.mxu0 0.0
    %7984 = vmatpush.msra.mxu0 0.0
    %7985 = vmatpush.msra.mxu0 0.0
    %7986 = vmatpush.msra.mxu0 0.0
    %7987 = vmatpush.msra.mxu0 0.0
    %7988 = vmatpush.msra.mxu0 0.0
    %7989 = vmatpush.msra.mxu0 0.0
    %7990 = vmatpush.msra.mxu0 0.0
    %7991 = vmatpush.msra.mxu0 0.0
    %7992 = vmatpush.msra.mxu0 0.0
    %7993 = vmatpush.msra.mxu0 0.0
    %v7994 = vand.u32 %v7948, 4294901760
    %v7995 = vsub.f32 %v7948, %v7994
    %v7996 = vand.u32 %v7995, 4294901760
    %v7997 = vsub.f32 %v7995, %v7996
    %v7998 = vand.u32 %v7997, 4294901760
    %7999 = vmatpush.msra.mxu0 %v7998
    %v8000 = vand.u32 %v7951, 4294901760
    %8001 = vmatmul.f32.gmra.mxu0 %v8000
    %v8002 = vpop.f32.mrf.mxu0
    %v8003 = vadd.f32 %v7977, %v8002
    %8004 = vdwg.mxu0
    %8005 = vmatpush.msra.mxu0 0.0
    %8006 = vmatpush.msra.mxu0 0.0
    %8007 = vmatpush.msra.mxu0 0.0
    %8008 = vmatpush.msra.mxu0 0.0
    %8009 = vmatpush.msra.mxu0 0.0
    %8010 = vmatpush.msra.mxu0 0.0
    %8011 = vmatpush.msra.mxu0 0.0
    %8012 = vmatpush.msra.mxu0 0.0
    %8013 = vmatpush.msra.mxu0 0.0
    %8014 = vmatpush.msra.mxu0 0.0
    %8015 = vmatpush.msra.mxu0 0.0
    %8016 = vmatpush.msra.mxu0 0.0
    %8017 = vmatpush.msra.mxu0 0.0
    %8018 = vmatpush.msra.mxu0 0.0
    %8019 = vmatpush.msra.mxu0 0.0
    %v8020 = vand.u32 %v7948, 4294901760
    %v8021 = vsub.f32 %v7948, %v8020
    %8022 = vmatpush.msra.mxu0 %v8021
    %v8023 = vand.u32 %v7951, 4294901760
    %v8024 = vsub.f32 %v7951, %v8023
    %8025 = vmatmul.f32.gmra.mxu0 %v8024
    %v8026 = vpop.f32.mrf.mxu0
    %v8027 = vadd.f32 %v8003, %v8026
    %8028 = vdwg.mxu0
    %8029 = vmatpush.msra.mxu0 0.0
    %8030 = vmatpush.msra.mxu0 0.0
    %8031 = vmatpush.msra.mxu0 0.0
    %8032 = vmatpush.msra.mxu0 0.0
    %8033 = vmatpush.msra.mxu0 0.0
    %8034 = vmatpush.msra.mxu0 0.0
    %8035 = vmatpush.msra.mxu0 0.0
    %8036 = vmatpush.msra.mxu0 0.0
    %8037 = vmatpush.msra.mxu0 0.0
    %8038 = vmatpush.msra.mxu0 0.0
    %8039 = vmatpush.msra.mxu0 0.0
    %8040 = vmatpush.msra.mxu0 0.0
    %8041 = vmatpush.msra.mxu0 0.0
    %8042 = vmatpush.msra.mxu0 0.0
    %8043 = vmatpush.msra.mxu0 0.0
    %v8044 = vand.u32 %v7948, 4294901760
    %8045 = vmatpush.msra.mxu0 %v8044
    %v8046 = vand.u32 %v7951, 4294901760
    %v8047 = vsub.f32 %v7951, %v8046
    %v8048 = vand.u32 %v8047, 4294901760
    %8049 = vmatmul.f32.gmra.mxu0 %v8048
    %v8050 = vpop.f32.mrf.mxu0
    %v8051 = vadd.f32 %v8027, %v8050
    %8052 = vdwg.mxu0
    %8053 = vmatpush.msra.mxu0 0.0
    %8054 = vmatpush.msra.mxu0 0.0
    %8055 = vmatpush.msra.mxu0 0.0
    %8056 = vmatpush.msra.mxu0 0.0
    %8057 = vmatpush.msra.mxu0 0.0
    %8058 = vmatpush.msra.mxu0 0.0
    %8059 = vmatpush.msra.mxu0 0.0
    %8060 = vmatpush.msra.mxu0 0.0
    %8061 = vmatpush.msra.mxu0 0.0
    %8062 = vmatpush.msra.mxu0 0.0
    %8063 = vmatpush.msra.mxu0 0.0
    %8064 = vmatpush.msra.mxu0 0.0
    %8065 = vmatpush.msra.mxu0 0.0
    %8066 = vmatpush.msra.mxu0 0.0
    %8067 = vmatpush.msra.mxu0 0.0
    %v8068 = vand.u32 %v7948, 4294901760
    %v8069 = vsub.f32 %v7948, %v8068
    %v8070 = vand.u32 %v8069, 4294901760
    %8071 = vmatpush.msra.mxu0 %v8070
    %v8072 = vand.u32 %v7951, 4294901760
    %8073 = vmatmul.f32.gmra.mxu0 %v8072
    %v8074 = vpop.f32.mrf.mxu0
    %v8075 = vadd.f32 %v8051, %v8074
    %8076 = vdwg.mxu0
    %8077 = vmatpush.msra.mxu0 0.0
    %8078 = vmatpush.msra.mxu0 0.0
    %8079 = vmatpush.msra.mxu0 0.0
    %8080 = vmatpush.msra.mxu0 0.0
    %8081 = vmatpush.msra.mxu0 0.0
    %8082 = vmatpush.msra.mxu0 0.0
    %8083 = vmatpush.msra.mxu0 0.0
    %8084 = vmatpush.msra.mxu0 0.0
    %8085 = vmatpush.msra.mxu0 0.0
    %8086 = vmatpush.msra.mxu0 0.0
    %8087 = vmatpush.msra.mxu0 0.0
    %8088 = vmatpush.msra.mxu0 0.0
    %8089 = vmatpush.msra.mxu0 0.0
    %8090 = vmatpush.msra.mxu0 0.0
    %8091 = vmatpush.msra.mxu0 0.0
    %v8092 = vand.u32 %v7948, 4294901760
    %8093 = vmatpush.msra.mxu0 %v8092
    %v8094 = vand.u32 %v7951, 4294901760
    %8095 = vmatmul.f32.gmra.mxu0 %v8094
    %v8096 = vpop.f32.mrf.mxu0
    %v8097 = vadd.f32 %v8075, %v8096
    %8098 = vdwg.mxu0
    %8099 = vmatpush.msra.mxu0 0.0
    %8100 = vmatpush.msra.mxu0 0.0
    %8101 = vmatpush.msra.mxu0 0.0
    %8102 = vmatpush.msra.mxu0 0.0
    %8103 = vmatpush.msra.mxu0 0.0
    %8104 = vmatpush.msra.mxu0 0.0
    %8105 = vmatpush.msra.mxu0 0.0
    %8106 = vmatpush.msra.mxu0 0.0
    %8107 = vmatpush.msra.mxu0 0.0
    %8108 = vmatpush.msra.mxu0 0.0
    %8109 = vmatpush.msra.mxu0 0.0
    %8110 = vmatpush.msra.mxu0 0.0
    %8111 = vmatpush.msra.mxu0 0.0
    %8112 = vmatpush.msra.mxu0 0.0
    %8113 = vmatpush.msra.mxu0 0.0
    %v8114 = vand.u32 %v7949, 4294901760
    %8115 = vmatpush.msra.mxu0 %v8114
    %v8116 = vand.u32 %v7951, 4294901760
    %v8117 = vsub.f32 %v7951, %v8116
    %v8118 = vand.u32 %v8117, 4294901760
    %v8119 = vsub.f32 %v8117, %v8118
    %v8120 = vand.u32 %v8119, 4294901760
    %8121 = vmatmul.f32.gmra.mxu0 %v8120
    %v8122 = vpop.f32.mrf.mxu0
    %v8123 = vadd.f32 0.0, %v8122
    %8124 = vdwg.mxu0
    %8125 = vmatpush.msra.mxu0 0.0
    %8126 = vmatpush.msra.mxu0 0.0
    %8127 = vmatpush.msra.mxu0 0.0
    %8128 = vmatpush.msra.mxu0 0.0
    %8129 = vmatpush.msra.mxu0 0.0
    %8130 = vmatpush.msra.mxu0 0.0
    %8131 = vmatpush.msra.mxu0 0.0
    %8132 = vmatpush.msra.mxu0 0.0
    %8133 = vmatpush.msra.mxu0 0.0
    %8134 = vmatpush.msra.mxu0 0.0
    %8135 = vmatpush.msra.mxu0 0.0
    %8136 = vmatpush.msra.mxu0 0.0
    %8137 = vmatpush.msra.mxu0 0.0
    %8138 = vmatpush.msra.mxu0 0.0
    %8139 = vmatpush.msra.mxu0 0.0
    %v8140 = vand.u32 %v7949, 4294901760
    %v8141 = vsub.f32 %v7949, %v8140
    %v8142 = vand.u32 %v8141, 4294901760
    %v8143 = vsub.f32 %v8141, %v8142
    %v8144 = vand.u32 %v8143, 4294901760
    %8145 = vmatpush.msra.mxu0 %v8144
    %v8146 = vand.u32 %v7951, 4294901760
    %8147 = vmatmul.f32.gmra.mxu0 %v8146
    %v8148 = vpop.f32.mrf.mxu0
    %v8149 = vadd.f32 %v8123, %v8148
    %8150 = vdwg.mxu0
    %8151 = vmatpush.msra.mxu0 0.0
    %8152 = vmatpush.msra.mxu0 0.0
    %8153 = vmatpush.msra.mxu0 0.0
    %8154 = vmatpush.msra.mxu0 0.0
    %8155 = vmatpush.msra.mxu0 0.0
    %8156 = vmatpush.msra.mxu0 0.0
    %8157 = vmatpush.msra.mxu0 0.0
    %8158 = vmatpush.msra.mxu0 0.0
    %8159 = vmatpush.msra.mxu0 0.0
    %8160 = vmatpush.msra.mxu0 0.0
    %8161 = vmatpush.msra.mxu0 0.0
    %8162 = vmatpush.msra.mxu0 0.0
    %8163 = vmatpush.msra.mxu0 0.0
    %8164 = vmatpush.msra.mxu0 0.0
    %8165 = vmatpush.msra.mxu0 0.0
    %v8166 = vand.u32 %v7949, 4294901760
    %v8167 = vsub.f32 %v7949, %v8166
    %8168 = vmatpush.msra.mxu0 %v8167
    %v8169 = vand.u32 %v7951, 4294901760
    %v8170 = vsub.f32 %v7951, %v8169
    %8171 = vmatmul.f32.gmra.mxu0 %v8170
    %v8172 = vpop.f32.mrf.mxu0
    %v8173 = vadd.f32 %v8149, %v8172
    %8174 = vdwg.mxu0
    %8175 = vmatpush.msra.mxu0 0.0
    %8176 = vmatpush.msra.mxu0 0.0
    %8177 = vmatpush.msra.mxu0 0.0
    %8178 = vmatpush.msra.mxu0 0.0
    %8179 = vmatpush.msra.mxu0 0.0
    %8180 = vmatpush.msra.mxu0 0.0
    %8181 = vmatpush.msra.mxu0 0.0
    %8182 = vmatpush.msra.mxu0 0.0
    %8183 = vmatpush.msra.mxu0 0.0
    %8184 = vmatpush.msra.mxu0 0.0
    %8185 = vmatpush.msra.mxu0 0.0
    %8186 = vmatpush.msra.mxu0 0.0
    %8187 = vmatpush.msra.mxu0 0.0
    %8188 = vmatpush.msra.mxu0 0.0
    %8189 = vmatpush.msra.mxu0 0.0
    %v8190 = vand.u32 %v7949, 4294901760
    %8191 = vmatpush.msra.mxu0 %v8190
    %v8192 = vand.u32 %v7951, 4294901760
    %v8193 = vsub.f32 %v7951, %v8192
    %v8194 = vand.u32 %v8193, 4294901760
    %8195 = vmatmul.f32.gmra.mxu0 %v8194
    %v8196 = vpop.f32.mrf.mxu0
    %v8197 = vadd.f32 %v8173, %v8196
    %8198 = vdwg.mxu0
    %8199 = vmatpush.msra.mxu0 0.0
    %8200 = vmatpush.msra.mxu0 0.0
    %8201 = vmatpush.msra.mxu0 0.0
    %8202 = vmatpush.msra.mxu0 0.0
    %8203 = vmatpush.msra.mxu0 0.0
    %8204 = vmatpush.msra.mxu0 0.0
    %8205 = vmatpush.msra.mxu0 0.0
    %8206 = vmatpush.msra.mxu0 0.0
    %8207 = vmatpush.msra.mxu0 0.0
    %8208 = vmatpush.msra.mxu0 0.0
    %8209 = vmatpush.msra.mxu0 0.0
    %8210 = vmatpush.msra.mxu0 0.0
    %8211 = vmatpush.msra.mxu0 0.0
    %8212 = vmatpush.msra.mxu0 0.0
    %8213 = vmatpush.msra.mxu0 0.0
    %v8214 = vand.u32 %v7949, 4294901760
    %v8215 = vsub.f32 %v7949, %v8214
    %v8216 = vand.u32 %v8215, 4294901760
    %8217 = vmatpush.msra.mxu0 %v8216
    %v8218 = vand.u32 %v7951, 4294901760
    %8219 = vmatmul.f32.gmra.mxu0 %v8218
    %v8220 = vpop.f32.mrf.mxu0
    %v8221 = vadd.f32 %v8197, %v8220
    %8222 = vdwg.mxu0
    %8223 = vmatpush.msra.mxu0 0.0
    %8224 = vmatpush.msra.mxu0 0.0
    %8225 = vmatpush.msra.mxu0 0.0
    %8226 = vmatpush.msra.mxu0 0.0
    %8227 = vmatpush.msra.mxu0 0.0
    %8228 = vmatpush.msra.mxu0 0.0
    %8229 = vmatpush.msra.mxu0 0.0
    %8230 = vmatpush.msra.mxu0 0.0
    %8231 = vmatpush.msra.mxu0 0.0
    %8232 = vmatpush.msra.mxu0 0.0
    %8233 = vmatpush.msra.mxu0 0.0
    %8234 = vmatpush.msra.mxu0 0.0
    %8235 = vmatpush.msra.mxu0 0.0
    %8236 = vmatpush.msra.mxu0 0.0
    %8237 = vmatpush.msra.mxu0 0.0
    %v8238 = vand.u32 %v7949, 4294901760
    %8239 = vmatpush.msra.mxu0 %v8238
    %v8240 = vand.u32 %v7951, 4294901760
    %8241 = vmatmul.f32.gmra.mxu0 %v8240
    %v8242 = vpop.f32.mrf.mxu0
    %v8243 = vadd.f32 %v8221, %v8242
    %8244 = vdwg.mxu0
    %v8245 = vadd.f32 %v141, %v7947
    %v8246 = vadd.f32 %v142, %v7947
    %v8247 = vadd.f32 %v8245, %v8097
    %v8248 = vadd.f32 %v8246, %v8243
    %v8249 = vtanh.pop %v8247
    %v8250 = vtanh.pop %v8248
    %v8251 = vld [vmem:[%s11] sm:$0xff]
    %v8252 = vld [vmem:[%s11 + $0x8] sm:$0xff]
    %v8253 = vld [vmem:[%s11 + $0x10] sm:$0xff]
    %v8254 = vld [vmem:[%s11 + $0x18] sm:$0xff]
    %v8255 = vld [vmem:[%s11 + $0x20] sm:$0xff]
    %v8256 = vld [vmem:[%s11 + $0x28] sm:$0xff]
    %v8257 = vld [vmem:[%s11 + $0x30] sm:$0xff]
    %v8258 = vld [vmem:[%s11 + $0x38] sm:$0xff]
    %v8259 = vld [vmem:[%s11 + $0x40] sm:$0xff]
    %v8260 = vld [vmem:[%s11 + $0x48] sm:$0xff]
    %v8261 = vld [vmem:[%s11 + $0x50] sm:$0xff]
    %v8262 = vld [vmem:[%s11 + $0x58] sm:$0xff]
    %v8263 = vld [vmem:[%s11 + $0x60] sm:$0xff]
    %v8264 = vld [vmem:[%s11 + $0x68] sm:$0xff]
    %v8265 = vld [vmem:[%s11 + $0x70] sm:$0xff]
    %v8266 = vld [vmem:[%s11 + $0x78] sm:$0xff]
    %v8267 = vld [vmem:[%s11 + $0x80] sm:$0xff]
    %v8268 = vld [vmem:[%s11 + $0x88] sm:$0xff]
    %v8269 = vld [vmem:[%s11 + $0x90] sm:$0xff]
    %v8270 = vld [vmem:[%s11 + $0x98] sm:$0xff]
    %v8271 = vld [vmem:[%s11 + $0xa0] sm:$0xff]
    %v8272 = vld [vmem:[%s11 + $0xa8] sm:$0xff]
    %v8273 = vld [vmem:[%s11 + $0xb0] sm:$0xff]
    %v8274 = vld [vmem:[%s11 + $0xb8] sm:$0xff]
    %v8275 = vld [vmem:[%s11 + $0xc0] sm:$0xff]
    %v8276 = vld [vmem:[%s11 + $0xc8] sm:$0xff]
    %v8277 = vld [vmem:[%s11 + $0xd0] sm:$0xff]
    %v8278 = vld [vmem:[%s11 + $0xd8] sm:$0xff]
    %v8279 = vld [vmem:[%s11 + $0xe0] sm:$0xff]
    %v8280 = vld [vmem:[%s11 + $0xe8] sm:$0xff]
    %v8281 = vld [vmem:[%s11 + $0xf0] sm:$0xff]
    %v8282 = vld [vmem:[%s11 + $0xf8] sm:$0xff]
    %v8283 = vld [vmem:[#allocation4] sm:$0x1]
    %v8285 = vperm.slane %v8283, 0
    %8286 = vset.pattern.permute.xlu0 0
    %8287 = vperm.xlu0 %8286, %v8285
    %v8288 = vpop.permute.xlu0 %8287
    %v8290 = vand.u32 %v8266, 4294901760
    %8291 = vmatpush.msra.mxu0 %v8290
    %v8292 = vand.u32 %v8265, 4294901760
    %8293 = vmatpush.msra.mxu0 %v8292
    %v8294 = vand.u32 %v8264, 4294901760
    %8295 = vmatpush.msra.mxu0 %v8294
    %v8296 = vand.u32 %v8263, 4294901760
    %8297 = vmatpush.msra.mxu0 %v8296
    %v8298 = vand.u32 %v8262, 4294901760
    %8299 = vmatpush.msra.mxu0 %v8298
    %v8300 = vand.u32 %v8261, 4294901760
    %8301 = vmatpush.msra.mxu0 %v8300
    %v8302 = vand.u32 %v8260, 4294901760
    %8303 = vmatpush.msra.mxu0 %v8302
    %v8304 = vand.u32 %v8259, 4294901760
    %8305 = vmatpush.msra.mxu0 %v8304
    %v8306 = vand.u32 %v8258, 4294901760
    %8307 = vmatpush.msra.mxu0 %v8306
    %v8308 = vand.u32 %v8257, 4294901760
    %8309 = vmatpush.msra.mxu0 %v8308
    %v8310 = vand.u32 %v8256, 4294901760
    %8311 = vmatpush.msra.mxu0 %v8310
    %v8312 = vand.u32 %v8255, 4294901760
    %8313 = vmatpush.msra.mxu0 %v8312
    %v8314 = vand.u32 %v8254, 4294901760
    %8315 = vmatpush.msra.mxu0 %v8314
    %v8316 = vand.u32 %v8253, 4294901760
    %8317 = vmatpush.msra.mxu0 %v8316
    %v8318 = vand.u32 %v8252, 4294901760
    %8319 = vmatpush.msra.mxu0 %v8318
    %v8320 = vand.u32 %v8251, 4294901760
    %8321 = vmatpush.msra.mxu0 %v8320
    %v8322 = vand.u32 %v8249, 4294901760
    %v8323 = vsub.f32 %v8249, %v8322
    %v8324 = vand.u32 %v8323, 4294901760
    %v8325 = vsub.f32 %v8323, %v8324
    %v8326 = vand.u32 %v8325, 4294901760
    %8327 = vmatmul.f32.gmra.mxu0 %v8326
    %v8328 = vpop.f32.mrf.mxu0
    %v8329 = vadd.f32 %v8288, %v8328
    %8330 = vdwg.mxu0
    %v8331 = vand.u32 %v8266, 4294901760
    %v8332 = vsub.f32 %v8266, %v8331
    %v8333 = vand.u32 %v8332, 4294901760
    %v8334 = vsub.f32 %v8332, %v8333
    %v8335 = vand.u32 %v8334, 4294901760
    %8336 = vmatpush.msra.mxu0 %v8335
    %v8337 = vand.u32 %v8265, 4294901760
    %v8338 = vsub.f32 %v8265, %v8337
    %v8339 = vand.u32 %v8338, 4294901760
    %v8340 = vsub.f32 %v8338, %v8339
    %v8341 = vand.u32 %v8340, 4294901760
    %8342 = vmatpush.msra.mxu0 %v8341
    %v8343 = vand.u32 %v8264, 4294901760
    %v8344 = vsub.f32 %v8264, %v8343
    %v8345 = vand.u32 %v8344, 4294901760
    %v8346 = vsub.f32 %v8344, %v8345
    %v8347 = vand.u32 %v8346, 4294901760
    %8348 = vmatpush.msra.mxu0 %v8347
    %v8349 = vand.u32 %v8263, 4294901760
    %v8350 = vsub.f32 %v8263, %v8349
    %v8351 = vand.u32 %v8350, 4294901760
    %v8352 = vsub.f32 %v8350, %v8351
    %v8353 = vand.u32 %v8352, 4294901760
    %8354 = vmatpush.msra.mxu0 %v8353
    %v8355 = vand.u32 %v8262, 4294901760
    %v8356 = vsub.f32 %v8262, %v8355
    %v8357 = vand.u32 %v8356, 4294901760
    %v8358 = vsub.f32 %v8356, %v8357
    %v8359 = vand.u32 %v8358, 4294901760
    %8360 = vmatpush.msra.mxu0 %v8359
    %v8361 = vand.u32 %v8261, 4294901760
    %v8362 = vsub.f32 %v8261, %v8361
    %v8363 = vand.u32 %v8362, 4294901760
    %v8364 = vsub.f32 %v8362, %v8363
    %v8365 = vand.u32 %v8364, 4294901760
    %8366 = vmatpush.msra.mxu0 %v8365
    %v8367 = vand.u32 %v8260, 4294901760
    %v8368 = vsub.f32 %v8260, %v8367
    %v8369 = vand.u32 %v8368, 4294901760
    %v8370 = vsub.f32 %v8368, %v8369
    %v8371 = vand.u32 %v8370, 4294901760
    %8372 = vmatpush.msra.mxu0 %v8371
    %v8373 = vand.u32 %v8259, 4294901760
    %v8374 = vsub.f32 %v8259, %v8373
    %v8375 = vand.u32 %v8374, 4294901760
    %v8376 = vsub.f32 %v8374, %v8375
    %v8377 = vand.u32 %v8376, 4294901760
    %8378 = vmatpush.msra.mxu0 %v8377
    %v8379 = vand.u32 %v8258, 4294901760
    %v8380 = vsub.f32 %v8258, %v8379
    %v8381 = vand.u32 %v8380, 4294901760
    %v8382 = vsub.f32 %v8380, %v8381
    %v8383 = vand.u32 %v8382, 4294901760
    %8384 = vmatpush.msra.mxu0 %v8383
    %v8385 = vand.u32 %v8257, 4294901760
    %v8386 = vsub.f32 %v8257, %v8385
    %v8387 = vand.u32 %v8386, 4294901760
    %v8388 = vsub.f32 %v8386, %v8387
    %v8389 = vand.u32 %v8388, 4294901760
    %8390 = vmatpush.msra.mxu0 %v8389
    %v8391 = vand.u32 %v8256, 4294901760
    %v8392 = vsub.f32 %v8256, %v8391
    %v8393 = vand.u32 %v8392, 4294901760
    %v8394 = vsub.f32 %v8392, %v8393
    %v8395 = vand.u32 %v8394, 4294901760
    %8396 = vmatpush.msra.mxu0 %v8395
    %v8397 = vand.u32 %v8255, 4294901760
    %v8398 = vsub.f32 %v8255, %v8397
    %v8399 = vand.u32 %v8398, 4294901760
    %v8400 = vsub.f32 %v8398, %v8399
    %v8401 = vand.u32 %v8400, 4294901760
    %8402 = vmatpush.msra.mxu0 %v8401
    %v8403 = vand.u32 %v8254, 4294901760
    %v8404 = vsub.f32 %v8254, %v8403
    %v8405 = vand.u32 %v8404, 4294901760
    %v8406 = vsub.f32 %v8404, %v8405
    %v8407 = vand.u32 %v8406, 4294901760
    %8408 = vmatpush.msra.mxu0 %v8407
    %v8409 = vand.u32 %v8253, 4294901760
    %v8410 = vsub.f32 %v8253, %v8409
    %v8411 = vand.u32 %v8410, 4294901760
    %v8412 = vsub.f32 %v8410, %v8411
    %v8413 = vand.u32 %v8412, 4294901760
    %8414 = vmatpush.msra.mxu0 %v8413
    %v8415 = vand.u32 %v8252, 4294901760
    %v8416 = vsub.f32 %v8252, %v8415
    %v8417 = vand.u32 %v8416, 4294901760
    %v8418 = vsub.f32 %v8416, %v8417
    %v8419 = vand.u32 %v8418, 4294901760
    %8420 = vmatpush.msra.mxu0 %v8419
    %v8421 = vand.u32 %v8251, 4294901760
    %v8422 = vsub.f32 %v8251, %v8421
    %v8423 = vand.u32 %v8422, 4294901760
    %v8424 = vsub.f32 %v8422, %v8423
    %v8425 = vand.u32 %v8424, 4294901760
    %8426 = vmatpush.msra.mxu0 %v8425
    %v8427 = vand.u32 %v8249, 4294901760
    %8428 = vmatmul.f32.gmra.mxu0 %v8427
    %v8429 = vpop.f32.mrf.mxu0
    %v8430 = vadd.f32 %v8329, %v8429
    %8431 = vdwg.mxu0
    %v8432 = vand.u32 %v8266, 4294901760
    %v8433 = vsub.f32 %v8266, %v8432
    %8434 = vmatpush.msra.mxu0 %v8433
    %v8435 = vand.u32 %v8265, 4294901760
    %v8436 = vsub.f32 %v8265, %v8435
    %8437 = vmatpush.msra.mxu0 %v8436
    %v8438 = vand.u32 %v8264, 4294901760
    %v8439 = vsub.f32 %v8264, %v8438
    %8440 = vmatpush.msra.mxu0 %v8439
    %v8441 = vand.u32 %v8263, 4294901760
    %v8442 = vsub.f32 %v8263, %v8441
    %8443 = vmatpush.msra.mxu0 %v8442
    %v8444 = vand.u32 %v8262, 4294901760
    %v8445 = vsub.f32 %v8262, %v8444
    %8446 = vmatpush.msra.mxu0 %v8445
    %v8447 = vand.u32 %v8261, 4294901760
    %v8448 = vsub.f32 %v8261, %v8447
    %8449 = vmatpush.msra.mxu0 %v8448
    %v8450 = vand.u32 %v8260, 4294901760
    %v8451 = vsub.f32 %v8260, %v8450
    %8452 = vmatpush.msra.mxu0 %v8451
    %v8453 = vand.u32 %v8259, 4294901760
    %v8454 = vsub.f32 %v8259, %v8453
    %8455 = vmatpush.msra.mxu0 %v8454
    %v8456 = vand.u32 %v8258, 4294901760
    %v8457 = vsub.f32 %v8258, %v8456
    %8458 = vmatpush.msra.mxu0 %v8457
    %v8459 = vand.u32 %v8257, 4294901760
    %v8460 = vsub.f32 %v8257, %v8459
    %8461 = vmatpush.msra.mxu0 %v8460
    %v8462 = vand.u32 %v8256, 4294901760
    %v8463 = vsub.f32 %v8256, %v8462
    %8464 = vmatpush.msra.mxu0 %v8463
    %v8465 = vand.u32 %v8255, 4294901760
    %v8466 = vsub.f32 %v8255, %v8465
    %8467 = vmatpush.msra.mxu0 %v8466
    %v8468 = vand.u32 %v8254, 4294901760
    %v8469 = vsub.f32 %v8254, %v8468
    %8470 = vmatpush.msra.mxu0 %v8469
    %v8471 = vand.u32 %v8253, 4294901760
    %v8472 = vsub.f32 %v8253, %v8471
    %8473 = vmatpush.msra.mxu0 %v8472
    %v8474 = vand.u32 %v8252, 4294901760
    %v8475 = vsub.f32 %v8252, %v8474
    %8476 = vmatpush.msra.mxu0 %v8475
    %v8477 = vand.u32 %v8251, 4294901760
    %v8478 = vsub.f32 %v8251, %v8477
    %8479 = vmatpush.msra.mxu0 %v8478
    %v8480 = vand.u32 %v8249, 4294901760
    %v8481 = vsub.f32 %v8249, %v8480
    %8482 = vmatmul.f32.gmra.mxu0 %v8481
    %v8483 = vpop.f32.mrf.mxu0
    %v8484 = vadd.f32 %v8430, %v8483
    %8485 = vdwg.mxu0
    %v8486 = vand.u32 %v8266, 4294901760
    %8487 = vmatpush.msra.mxu0 %v8486
    %v8488 = vand.u32 %v8265, 4294901760
    %8489 = vmatpush.msra.mxu0 %v8488
    %v8490 = vand.u32 %v8264, 4294901760
    %8491 = vmatpush.msra.mxu0 %v8490
    %v8492 = vand.u32 %v8263, 4294901760
    %8493 = vmatpush.msra.mxu0 %v8492
    %v8494 = vand.u32 %v8262, 4294901760
    %8495 = vmatpush.msra.mxu0 %v8494
    %v8496 = vand.u32 %v8261, 4294901760
    %8497 = vmatpush.msra.mxu0 %v8496
    %v8498 = vand.u32 %v8260, 4294901760
    %8499 = vmatpush.msra.mxu0 %v8498
    %v8500 = vand.u32 %v8259, 4294901760
    %8501 = vmatpush.msra.mxu0 %v8500
    %v8502 = vand.u32 %v8258, 4294901760
    %8503 = vmatpush.msra.mxu0 %v8502
    %v8504 = vand.u32 %v8257, 4294901760
    %8505 = vmatpush.msra.mxu0 %v8504
    %v8506 = vand.u32 %v8256, 4294901760
    %8507 = vmatpush.msra.mxu0 %v8506
    %v8508 = vand.u32 %v8255, 4294901760
    %8509 = vmatpush.msra.mxu0 %v8508
    %v8510 = vand.u32 %v8254, 4294901760
    %8511 = vmatpush.msra.mxu0 %v8510
    %v8512 = vand.u32 %v8253, 4294901760
    %8513 = vmatpush.msra.mxu0 %v8512
    %v8514 = vand.u32 %v8252, 4294901760
    %8515 = vmatpush.msra.mxu0 %v8514
    %v8516 = vand.u32 %v8251, 4294901760
    %8517 = vmatpush.msra.mxu0 %v8516
    %v8518 = vand.u32 %v8249, 4294901760
    %v8519 = vsub.f32 %v8249, %v8518
    %v8520 = vand.u32 %v8519, 4294901760
    %8521 = vmatmul.f32.gmra.mxu0 %v8520
    %v8522 = vpop.f32.mrf.mxu0
    %v8523 = vadd.f32 %v8484, %v8522
    %8524 = vdwg.mxu0
    %v8525 = vand.u32 %v8266, 4294901760
    %v8526 = vsub.f32 %v8266, %v8525
    %v8527 = vand.u32 %v8526, 4294901760
    %8528 = vmatpush.msra.mxu0 %v8527
    %v8529 = vand.u32 %v8265, 4294901760
    %v8530 = vsub.f32 %v8265, %v8529
    %v8531 = vand.u32 %v8530, 4294901760
    %8532 = vmatpush.msra.mxu0 %v8531
    %v8533 = vand.u32 %v8264, 4294901760
    %v8534 = vsub.f32 %v8264, %v8533
    %v8535 = vand.u32 %v8534, 4294901760
    %8536 = vmatpush.msra.mxu0 %v8535
    %v8537 = vand.u32 %v8263, 4294901760
    %v8538 = vsub.f32 %v8263, %v8537
    %v8539 = vand.u32 %v8538, 4294901760
    %8540 = vmatpush.msra.mxu0 %v8539
    %v8541 = vand.u32 %v8262, 4294901760
    %v8542 = vsub.f32 %v8262, %v8541
    %v8543 = vand.u32 %v8542, 4294901760
    %8544 = vmatpush.msra.mxu0 %v8543
    %v8545 = vand.u32 %v8261, 4294901760
    %v8546 = vsub.f32 %v8261, %v8545
    %v8547 = vand.u32 %v8546, 4294901760
    %8548 = vmatpush.msra.mxu0 %v8547
    %v8549 = vand.u32 %v8260, 4294901760
    %v8550 = vsub.f32 %v8260, %v8549
    %v8551 = vand.u32 %v8550, 4294901760
    %8552 = vmatpush.msra.mxu0 %v8551
    %v8553 = vand.u32 %v8259, 4294901760
    %v8554 = vsub.f32 %v8259, %v8553
    %v8555 = vand.u32 %v8554, 4294901760
    %8556 = vmatpush.msra.mxu0 %v8555
    %v8557 = vand.u32 %v8258, 4294901760
    %v8558 = vsub.f32 %v8258, %v8557
    %v8559 = vand.u32 %v8558, 4294901760
    %8560 = vmatpush.msra.mxu0 %v8559
    %v8561 = vand.u32 %v8257, 4294901760
    %v8562 = vsub.f32 %v8257, %v8561
    %v8563 = vand.u32 %v8562, 4294901760
    %8564 = vmatpush.msra.mxu0 %v8563
    %v8565 = vand.u32 %v8256, 4294901760
    %v8566 = vsub.f32 %v8256, %v8565
    %v8567 = vand.u32 %v8566, 4294901760
    %8568 = vmatpush.msra.mxu0 %v8567
    %v8569 = vand.u32 %v8255, 4294901760
    %v8570 = vsub.f32 %v8255, %v8569
    %v8571 = vand.u32 %v8570, 4294901760
    %8572 = vmatpush.msra.mxu0 %v8571
    %v8573 = vand.u32 %v8254, 4294901760
    %v8574 = vsub.f32 %v8254, %v8573
    %v8575 = vand.u32 %v8574, 4294901760
    %8576 = vmatpush.msra.mxu0 %v8575
    %v8577 = vand.u32 %v8253, 4294901760
    %v8578 = vsub.f32 %v8253, %v8577
    %v8579 = vand.u32 %v8578, 4294901760
    %8580 = vmatpush.msra.mxu0 %v8579
    %v8581 = vand.u32 %v8252, 4294901760
    %v8582 = vsub.f32 %v8252, %v8581
    %v8583 = vand.u32 %v8582, 4294901760
    %8584 = vmatpush.msra.mxu0 %v8583
    %v8585 = vand.u32 %v8251, 4294901760
    %v8586 = vsub.f32 %v8251, %v8585
    %v8587 = vand.u32 %v8586, 4294901760
    %8588 = vmatpush.msra.mxu0 %v8587
    %v8589 = vand.u32 %v8249, 4294901760
    %8590 = vmatmul.f32.gmra.mxu0 %v8589
    %v8591 = vpop.f32.mrf.mxu0
    %v8592 = vadd.f32 %v8523, %v8591
    %8593 = vdwg.mxu0
    %v8594 = vand.u32 %v8266, 4294901760
    %8595 = vmatpush.msra.mxu0 %v8594
    %v8596 = vand.u32 %v8265, 4294901760
    %8597 = vmatpush.msra.mxu0 %v8596
    %v8598 = vand.u32 %v8264, 4294901760
    %8599 = vmatpush.msra.mxu0 %v8598
    %v8600 = vand.u32 %v8263, 4294901760
    %8601 = vmatpush.msra.mxu0 %v8600
    %v8602 = vand.u32 %v8262, 4294901760
    %8603 = vmatpush.msra.mxu0 %v8602
    %v8604 = vand.u32 %v8261, 4294901760
    %8605 = vmatpush.msra.mxu0 %v8604
    %v8606 = vand.u32 %v8260, 4294901760
    %8607 = vmatpush.msra.mxu0 %v8606
    %v8608 = vand.u32 %v8259, 4294901760
    %8609 = vmatpush.msra.mxu0 %v8608
    %v8610 = vand.u32 %v8258, 4294901760
    %8611 = vmatpush.msra.mxu0 %v8610
    %v8612 = vand.u32 %v8257, 4294901760
    %8613 = vmatpush.msra.mxu0 %v8612
    %v8614 = vand.u32 %v8256, 4294901760
    %8615 = vmatpush.msra.mxu0 %v8614
    %v8616 = vand.u32 %v8255, 4294901760
    %8617 = vmatpush.msra.mxu0 %v8616
    %v8618 = vand.u32 %v8254, 4294901760
    %8619 = vmatpush.msra.mxu0 %v8618
    %v8620 = vand.u32 %v8253, 4294901760
    %8621 = vmatpush.msra.mxu0 %v8620
    %v8622 = vand.u32 %v8252, 4294901760
    %8623 = vmatpush.msra.mxu0 %v8622
    %v8624 = vand.u32 %v8251, 4294901760
    %8625 = vmatpush.msra.mxu0 %v8624
    %v8626 = vand.u32 %v8249, 4294901760
    %8627 = vmatmul.f32.gmra.mxu0 %v8626
    %v8628 = vpop.f32.mrf.mxu0
    %v8629 = vadd.f32 %v8592, %v8628
    %8630 = vdwg.mxu0
    %v8631 = vand.u32 %v8282, 4294901760
    %8632 = vmatpush.msra.mxu0 %v8631
    %v8633 = vand.u32 %v8281, 4294901760
    %8634 = vmatpush.msra.mxu0 %v8633
    %v8635 = vand.u32 %v8280, 4294901760
    %8636 = vmatpush.msra.mxu0 %v8635
    %v8637 = vand.u32 %v8279, 4294901760
    %8638 = vmatpush.msra.mxu0 %v8637
    %v8639 = vand.u32 %v8278, 4294901760
    %8640 = vmatpush.msra.mxu0 %v8639
    %v8641 = vand.u32 %v8277, 4294901760
    %8642 = vmatpush.msra.mxu0 %v8641
    %v8643 = vand.u32 %v8276, 4294901760
    %8644 = vmatpush.msra.mxu0 %v8643
    %v8645 = vand.u32 %v8275, 4294901760
    %8646 = vmatpush.msra.mxu0 %v8645
    %v8647 = vand.u32 %v8274, 4294901760
    %8648 = vmatpush.msra.mxu0 %v8647
    %v8649 = vand.u32 %v8273, 4294901760
    %8650 = vmatpush.msra.mxu0 %v8649
    %v8651 = vand.u32 %v8272, 4294901760
    %8652 = vmatpush.msra.mxu0 %v8651
    %v8653 = vand.u32 %v8271, 4294901760
    %8654 = vmatpush.msra.mxu0 %v8653
    %v8655 = vand.u32 %v8270, 4294901760
    %8656 = vmatpush.msra.mxu0 %v8655
    %v8657 = vand.u32 %v8269, 4294901760
    %8658 = vmatpush.msra.mxu0 %v8657
    %v8659 = vand.u32 %v8268, 4294901760
    %8660 = vmatpush.msra.mxu0 %v8659
    %v8661 = vand.u32 %v8267, 4294901760
    %8662 = vmatpush.msra.mxu0 %v8661
    %v8663 = vand.u32 %v8250, 4294901760
    %v8664 = vsub.f32 %v8250, %v8663
    %v8665 = vand.u32 %v8664, 4294901760
    %v8666 = vsub.f32 %v8664, %v8665
    %v8667 = vand.u32 %v8666, 4294901760
    %8668 = vmatmul.f32.gmra.mxu0 %v8667
    %v8669 = vpop.f32.mrf.mxu0
    %v8670 = vadd.f32 %v8629, %v8669
    %8671 = vdwg.mxu0
    %v8672 = vand.u32 %v8282, 4294901760
    %v8673 = vsub.f32 %v8282, %v8672
    %v8674 = vand.u32 %v8673, 4294901760
    %v8675 = vsub.f32 %v8673, %v8674
    %v8676 = vand.u32 %v8675, 4294901760
    %8677 = vmatpush.msra.mxu0 %v8676
    %v8678 = vand.u32 %v8281, 4294901760
    %v8679 = vsub.f32 %v8281, %v8678
    %v8680 = vand.u32 %v8679, 4294901760
    %v8681 = vsub.f32 %v8679, %v8680
    %v8682 = vand.u32 %v8681, 4294901760
    %8683 = vmatpush.msra.mxu0 %v8682
    %v8684 = vand.u32 %v8280, 4294901760
    %v8685 = vsub.f32 %v8280, %v8684
    %v8686 = vand.u32 %v8685, 4294901760
    %v8687 = vsub.f32 %v8685, %v8686
    %v8688 = vand.u32 %v8687, 4294901760
    %8689 = vmatpush.msra.mxu0 %v8688
    %v8690 = vand.u32 %v8279, 4294901760
    %v8691 = vsub.f32 %v8279, %v8690
    %v8692 = vand.u32 %v8691, 4294901760
    %v8693 = vsub.f32 %v8691, %v8692
    %v8694 = vand.u32 %v8693, 4294901760
    %8695 = vmatpush.msra.mxu0 %v8694
    %v8696 = vand.u32 %v8278, 4294901760
    %v8697 = vsub.f32 %v8278, %v8696
    %v8698 = vand.u32 %v8697, 4294901760
    %v8699 = vsub.f32 %v8697, %v8698
    %v8700 = vand.u32 %v8699, 4294901760
    %8701 = vmatpush.msra.mxu0 %v8700
    %v8702 = vand.u32 %v8277, 4294901760
    %v8703 = vsub.f32 %v8277, %v8702
    %v8704 = vand.u32 %v8703, 4294901760
    %v8705 = vsub.f32 %v8703, %v8704
    %v8706 = vand.u32 %v8705, 4294901760
    %8707 = vmatpush.msra.mxu0 %v8706
    %v8708 = vand.u32 %v8276, 4294901760
    %v8709 = vsub.f32 %v8276, %v8708
    %v8710 = vand.u32 %v8709, 4294901760
    %v8711 = vsub.f32 %v8709, %v8710
    %v8712 = vand.u32 %v8711, 4294901760
    %8713 = vmatpush.msra.mxu0 %v8712
    %v8714 = vand.u32 %v8275, 4294901760
    %v8715 = vsub.f32 %v8275, %v8714
    %v8716 = vand.u32 %v8715, 4294901760
    %v8717 = vsub.f32 %v8715, %v8716
    %v8718 = vand.u32 %v8717, 4294901760
    %8719 = vmatpush.msra.mxu0 %v8718
    %v8720 = vand.u32 %v8274, 4294901760
    %v8721 = vsub.f32 %v8274, %v8720
    %v8722 = vand.u32 %v8721, 4294901760
    %v8723 = vsub.f32 %v8721, %v8722
    %v8724 = vand.u32 %v8723, 4294901760
    %8725 = vmatpush.msra.mxu0 %v8724
    %v8726 = vand.u32 %v8273, 4294901760
    %v8727 = vsub.f32 %v8273, %v8726
    %v8728 = vand.u32 %v8727, 4294901760
    %v8729 = vsub.f32 %v8727, %v8728
    %v8730 = vand.u32 %v8729, 4294901760
    %8731 = vmatpush.msra.mxu0 %v8730
    %v8732 = vand.u32 %v8272, 4294901760
    %v8733 = vsub.f32 %v8272, %v8732
    %v8734 = vand.u32 %v8733, 4294901760
    %v8735 = vsub.f32 %v8733, %v8734
    %v8736 = vand.u32 %v8735, 4294901760
    %8737 = vmatpush.msra.mxu0 %v8736
    %v8738 = vand.u32 %v8271, 4294901760
    %v8739 = vsub.f32 %v8271, %v8738
    %v8740 = vand.u32 %v8739, 4294901760
    %v8741 = vsub.f32 %v8739, %v8740
    %v8742 = vand.u32 %v8741, 4294901760
    %8743 = vmatpush.msra.mxu0 %v8742
    %v8744 = vand.u32 %v8270, 4294901760
    %v8745 = vsub.f32 %v8270, %v8744
    %v8746 = vand.u32 %v8745, 4294901760
    %v8747 = vsub.f32 %v8745, %v8746
    %v8748 = vand.u32 %v8747, 4294901760
    %8749 = vmatpush.msra.mxu0 %v8748
    %v8750 = vand.u32 %v8269, 4294901760
    %v8751 = vsub.f32 %v8269, %v8750
    %v8752 = vand.u32 %v8751, 4294901760
    %v8753 = vsub.f32 %v8751, %v8752
    %v8754 = vand.u32 %v8753, 4294901760
    %8755 = vmatpush.msra.mxu0 %v8754
    %v8756 = vand.u32 %v8268, 4294901760
    %v8757 = vsub.f32 %v8268, %v8756
    %v8758 = vand.u32 %v8757, 4294901760
    %v8759 = vsub.f32 %v8757, %v8758
    %v8760 = vand.u32 %v8759, 4294901760
    %8761 = vmatpush.msra.mxu0 %v8760
    %v8762 = vand.u32 %v8267, 4294901760
    %v8763 = vsub.f32 %v8267, %v8762
    %v8764 = vand.u32 %v8763, 4294901760
    %v8765 = vsub.f32 %v8763, %v8764
    %v8766 = vand.u32 %v8765, 4294901760
    %8767 = vmatpush.msra.mxu0 %v8766
    %v8768 = vand.u32 %v8250, 4294901760
    %8769 = vmatmul.f32.gmra.mxu0 %v8768
    %v8770 = vpop.f32.mrf.mxu0
    %v8771 = vadd.f32 %v8670, %v8770
    %8772 = vdwg.mxu0
    %v8773 = vand.u32 %v8282, 4294901760
    %v8774 = vsub.f32 %v8282, %v8773
    %8775 = vmatpush.msra.mxu0 %v8774
    %v8776 = vand.u32 %v8281, 4294901760
    %v8777 = vsub.f32 %v8281, %v8776
    %8778 = vmatpush.msra.mxu0 %v8777
    %v8779 = vand.u32 %v8280, 4294901760
    %v8780 = vsub.f32 %v8280, %v8779
    %8781 = vmatpush.msra.mxu0 %v8780
    %v8782 = vand.u32 %v8279, 4294901760
    %v8783 = vsub.f32 %v8279, %v8782
    %8784 = vmatpush.msra.mxu0 %v8783
    %v8785 = vand.u32 %v8278, 4294901760
    %v8786 = vsub.f32 %v8278, %v8785
    %8787 = vmatpush.msra.mxu0 %v8786
    %v8788 = vand.u32 %v8277, 4294901760
    %v8789 = vsub.f32 %v8277, %v8788
    %8790 = vmatpush.msra.mxu0 %v8789
    %v8791 = vand.u32 %v8276, 4294901760
    %v8792 = vsub.f32 %v8276, %v8791
    %8793 = vmatpush.msra.mxu0 %v8792
    %v8794 = vand.u32 %v8275, 4294901760
    %v8795 = vsub.f32 %v8275, %v8794
    %8796 = vmatpush.msra.mxu0 %v8795
    %v8797 = vand.u32 %v8274, 4294901760
    %v8798 = vsub.f32 %v8274, %v8797
    %8799 = vmatpush.msra.mxu0 %v8798
    %v8800 = vand.u32 %v8273, 4294901760
    %v8801 = vsub.f32 %v8273, %v8800
    %8802 = vmatpush.msra.mxu0 %v8801
    %v8803 = vand.u32 %v8272, 4294901760
    %v8804 = vsub.f32 %v8272, %v8803
    %8805 = vmatpush.msra.mxu0 %v8804
    %v8806 = vand.u32 %v8271, 4294901760
    %v8807 = vsub.f32 %v8271, %v8806
    %8808 = vmatpush.msra.mxu0 %v8807
    %v8809 = vand.u32 %v8270, 4294901760
    %v8810 = vsub.f32 %v8270, %v8809
    %8811 = vmatpush.msra.mxu0 %v8810
    %v8812 = vand.u32 %v8269, 4294901760
    %v8813 = vsub.f32 %v8269, %v8812
    %8814 = vmatpush.msra.mxu0 %v8813
    %v8815 = vand.u32 %v8268, 4294901760
    %v8816 = vsub.f32 %v8268, %v8815
    %8817 = vmatpush.msra.mxu0 %v8816
    %v8818 = vand.u32 %v8267, 4294901760
    %v8819 = vsub.f32 %v8267, %v8818
    %8820 = vmatpush.msra.mxu0 %v8819
    %v8821 = vand.u32 %v8250, 4294901760
    %v8822 = vsub.f32 %v8250, %v8821
    %8823 = vmatmul.f32.gmra.mxu0 %v8822
    %v8824 = vpop.f32.mrf.mxu0
    %v8825 = vadd.f32 %v8771, %v8824
    %8826 = vdwg.mxu0
    %v8827 = vand.u32 %v8282, 4294901760
    %8828 = vmatpush.msra.mxu0 %v8827
    %v8829 = vand.u32 %v8281, 4294901760
    %8830 = vmatpush.msra.mxu0 %v8829
    %v8831 = vand.u32 %v8280, 4294901760
    %8832 = vmatpush.msra.mxu0 %v8831
    %v8833 = vand.u32 %v8279, 4294901760
    %8834 = vmatpush.msra.mxu0 %v8833
    %v8835 = vand.u32 %v8278, 4294901760
    %8836 = vmatpush.msra.mxu0 %v8835
    %v8837 = vand.u32 %v8277, 4294901760
    %8838 = vmatpush.msra.mxu0 %v8837
    %v8839 = vand.u32 %v8276, 4294901760
    %8840 = vmatpush.msra.mxu0 %v8839
    %v8841 = vand.u32 %v8275, 4294901760
    %8842 = vmatpush.msra.mxu0 %v8841
    %v8843 = vand.u32 %v8274, 4294901760
    %8844 = vmatpush.msra.mxu0 %v8843
    %v8845 = vand.u32 %v8273, 4294901760
    %8846 = vmatpush.msra.mxu0 %v8845
    %v8847 = vand.u32 %v8272, 4294901760
    %8848 = vmatpush.msra.mxu0 %v8847
    %v8849 = vand.u32 %v8271, 4294901760
    %8850 = vmatpush.msra.mxu0 %v8849
    %v8851 = vand.u32 %v8270, 4294901760
    %8852 = vmatpush.msra.mxu0 %v8851
    %v8853 = vand.u32 %v8269, 4294901760
    %8854 = vmatpush.msra.mxu0 %v8853
    %v8855 = vand.u32 %v8268, 4294901760
    %8856 = vmatpush.msra.mxu0 %v8855
    %v8857 = vand.u32 %v8267, 4294901760
    %8858 = vmatpush.msra.mxu0 %v8857
    %v8859 = vand.u32 %v8250, 4294901760
    %v8860 = vsub.f32 %v8250, %v8859
    %v8861 = vand.u32 %v8860, 4294901760
    %8862 = vmatmul.f32.gmra.mxu0 %v8861
    %v8863 = vpop.f32.mrf.mxu0
    %v8864 = vadd.f32 %v8825, %v8863
    %8865 = vdwg.mxu0
    %v8866 = vand.u32 %v8282, 4294901760
    %v8867 = vsub.f32 %v8282, %v8866
    %v8868 = vand.u32 %v8867, 4294901760
    %8869 = vmatpush.msra.mxu0 %v8868
    %v8870 = vand.u32 %v8281, 4294901760
    %v8871 = vsub.f32 %v8281, %v8870
    %v8872 = vand.u32 %v8871, 4294901760
    %8873 = vmatpush.msra.mxu0 %v8872
    %v8874 = vand.u32 %v8280, 4294901760
    %v8875 = vsub.f32 %v8280, %v8874
    %v8876 = vand.u32 %v8875, 4294901760
    %8877 = vmatpush.msra.mxu0 %v8876
    %v8878 = vand.u32 %v8279, 4294901760
    %v8879 = vsub.f32 %v8279, %v8878
    %v8880 = vand.u32 %v8879, 4294901760
    %8881 = vmatpush.msra.mxu0 %v8880
    %v8882 = vand.u32 %v8278, 4294901760
    %v8883 = vsub.f32 %v8278, %v8882
    %v8884 = vand.u32 %v8883, 4294901760
    %8885 = vmatpush.msra.mxu0 %v8884
    %v8886 = vand.u32 %v8277, 4294901760
    %v8887 = vsub.f32 %v8277, %v8886
    %v8888 = vand.u32 %v8887, 4294901760
    %8889 = vmatpush.msra.mxu0 %v8888
    %v8890 = vand.u32 %v8276, 4294901760
    %v8891 = vsub.f32 %v8276, %v8890
    %v8892 = vand.u32 %v8891, 4294901760
    %8893 = vmatpush.msra.mxu0 %v8892
    %v8894 = vand.u32 %v8275, 4294901760
    %v8895 = vsub.f32 %v8275, %v8894
    %v8896 = vand.u32 %v8895, 4294901760
    %8897 = vmatpush.msra.mxu0 %v8896
    %v8898 = vand.u32 %v8274, 4294901760
    %v8899 = vsub.f32 %v8274, %v8898
    %v8900 = vand.u32 %v8899, 4294901760
    %8901 = vmatpush.msra.mxu0 %v8900
    %v8902 = vand.u32 %v8273, 4294901760
    %v8903 = vsub.f32 %v8273, %v8902
    %v8904 = vand.u32 %v8903, 4294901760
    %8905 = vmatpush.msra.mxu0 %v8904
    %v8906 = vand.u32 %v8272, 4294901760
    %v8907 = vsub.f32 %v8272, %v8906
    %v8908 = vand.u32 %v8907, 4294901760
    %8909 = vmatpush.msra.mxu0 %v8908
    %v8910 = vand.u32 %v8271, 4294901760
    %v8911 = vsub.f32 %v8271, %v8910
    %v8912 = vand.u32 %v8911, 4294901760
    %8913 = vmatpush.msra.mxu0 %v8912
    %v8914 = vand.u32 %v8270, 4294901760
    %v8915 = vsub.f32 %v8270, %v8914
    %v8916 = vand.u32 %v8915, 4294901760
    %8917 = vmatpush.msra.mxu0 %v8916
    %v8918 = vand.u32 %v8269, 4294901760
    %v8919 = vsub.f32 %v8269, %v8918
    %v8920 = vand.u32 %v8919, 4294901760
    %8921 = vmatpush.msra.mxu0 %v8920
    %v8922 = vand.u32 %v8268, 4294901760
    %v8923 = vsub.f32 %v8268, %v8922
    %v8924 = vand.u32 %v8923, 4294901760
    %8925 = vmatpush.msra.mxu0 %v8924
    %v8926 = vand.u32 %v8267, 4294901760
    %v8927 = vsub.f32 %v8267, %v8926
    %v8928 = vand.u32 %v8927, 4294901760
    %8929 = vmatpush.msra.mxu0 %v8928
    %v8930 = vand.u32 %v8250, 4294901760
    %8931 = vmatmul.f32.gmra.mxu0 %v8930
    %v8932 = vpop.f32.mrf.mxu0
    %v8933 = vadd.f32 %v8864, %v8932
    %8934 = vdwg.mxu0
    %v8935 = vand.u32 %v8282, 4294901760
    %8936 = vmatpush.msra.mxu0 %v8935
    %v8937 = vand.u32 %v8281, 4294901760
    %8938 = vmatpush.msra.mxu0 %v8937
    %v8939 = vand.u32 %v8280, 4294901760
    %8940 = vmatpush.msra.mxu0 %v8939
    %v8941 = vand.u32 %v8279, 4294901760
    %8942 = vmatpush.msra.mxu0 %v8941
    %v8943 = vand.u32 %v8278, 4294901760
    %8944 = vmatpush.msra.mxu0 %v8943
    %v8945 = vand.u32 %v8277, 4294901760
    %8946 = vmatpush.msra.mxu0 %v8945
    %v8947 = vand.u32 %v8276, 4294901760
    %8948 = vmatpush.msra.mxu0 %v8947
    %v8949 = vand.u32 %v8275, 4294901760
    %8950 = vmatpush.msra.mxu0 %v8949
    %v8951 = vand.u32 %v8274, 4294901760
    %8952 = vmatpush.msra.mxu0 %v8951
    %v8953 = vand.u32 %v8273, 4294901760
    %8954 = vmatpush.msra.mxu0 %v8953
    %v8955 = vand.u32 %v8272, 4294901760
    %8956 = vmatpush.msra.mxu0 %v8955
    %v8957 = vand.u32 %v8271, 4294901760
    %8958 = vmatpush.msra.mxu0 %v8957
    %v8959 = vand.u32 %v8270, 4294901760
    %8960 = vmatpush.msra.mxu0 %v8959
    %v8961 = vand.u32 %v8269, 4294901760
    %8962 = vmatpush.msra.mxu0 %v8961
    %v8963 = vand.u32 %v8268, 4294901760
    %8964 = vmatpush.msra.mxu0 %v8963
    %v8965 = vand.u32 %v8267, 4294901760
    %8966 = vmatpush.msra.mxu0 %v8965
    %v8967 = vand.u32 %v8250, 4294901760
    %8968 = vmatmul.f32.gmra.mxu0 %v8967
    %v8969 = vpop.f32.mrf.mxu0
    %v8970 = vadd.f32 %v8933, %v8969
    %8971 = vdwg.mxu0
    %v8972 = vld [vmem:[%s13] sm:$0xff]
    %v8973 = vld [vmem:[%s13 + $0x8] sm:$0xff]
    %v8974 = vld [vmem:[%s13 + $0x10] sm:$0xff]
    %v8975 = vld [vmem:[%s13 + $0x18] sm:$0xff]
    %8977 = vrot.lane.b32.xlu0 %v7932, 32
    %v8978 = vpop.permute.xlu0 %8977
    %v8979 = vsel %vm171, %v8978, 0
    %8981 = vmatpush.msra.mxu0 0.0
    %8982 = vmatpush.msra.mxu0 0.0
    %8983 = vmatpush.msra.mxu0 0.0
    %8984 = vmatpush.msra.mxu0 0.0
    %8985 = vmatpush.msra.mxu0 0.0
    %8986 = vmatpush.msra.mxu0 0.0
    %8987 = vmatpush.msra.mxu0 0.0
    %8988 = vmatpush.msra.mxu0 0.0
    %8989 = vmatpush.msra.mxu0 0.0
    %8990 = vmatpush.msra.mxu0 0.0
    %8991 = vmatpush.msra.mxu0 0.0
    %8992 = vmatpush.msra.mxu0 0.0
    %v8993 = vand.u32 %v8975, 4294901760
    %8994 = vmatpush.msra.mxu0 %v8993
    %v8995 = vand.u32 %v8974, 4294901760
    %8996 = vmatpush.msra.mxu0 %v8995
    %v8997 = vand.u32 %v8973, 4294901760
    %8998 = vmatpush.msra.mxu0 %v8997
    %v8999 = vand.u32 %v8972, 4294901760
    %9000 = vmatpush.msra.mxu0 %v8999
    %v9001 = vand.u32 %v8979, 4294901760
    %v9002 = vsub.f32 %v8979, %v9001
    %v9003 = vand.u32 %v9002, 4294901760
    %v9004 = vsub.f32 %v9002, %v9003
    %v9005 = vand.u32 %v9004, 4294901760
    %9006 = vmatmul.f32.gmra.mxu0 %v9005
    %v9007 = vpop.f32.mrf.mxu0
    %v9008 = vadd.f32 0.0, %v9007
    %9009 = vdwg.mxu0
    %9010 = vmatpush.msra.mxu0 0.0
    %9011 = vmatpush.msra.mxu0 0.0
    %9012 = vmatpush.msra.mxu0 0.0
    %9013 = vmatpush.msra.mxu0 0.0
    %9014 = vmatpush.msra.mxu0 0.0
    %9015 = vmatpush.msra.mxu0 0.0
    %9016 = vmatpush.msra.mxu0 0.0
    %9017 = vmatpush.msra.mxu0 0.0
    %9018 = vmatpush.msra.mxu0 0.0
    %9019 = vmatpush.msra.mxu0 0.0
    %9020 = vmatpush.msra.mxu0 0.0
    %9021 = vmatpush.msra.mxu0 0.0
    %v9022 = vand.u32 %v8975, 4294901760
    %v9023 = vsub.f32 %v8975, %v9022
    %v9024 = vand.u32 %v9023, 4294901760
    %v9025 = vsub.f32 %v9023, %v9024
    %v9026 = vand.u32 %v9025, 4294901760
    %9027 = vmatpush.msra.mxu0 %v9026
    %v9028 = vand.u32 %v8974, 4294901760
    %v9029 = vsub.f32 %v8974, %v9028
    %v9030 = vand.u32 %v9029, 4294901760
    %v9031 = vsub.f32 %v9029, %v9030
    %v9032 = vand.u32 %v9031, 4294901760
    %9033 = vmatpush.msra.mxu0 %v9032
    %v9034 = vand.u32 %v8973, 4294901760
    %v9035 = vsub.f32 %v8973, %v9034
    %v9036 = vand.u32 %v9035, 4294901760
    %v9037 = vsub.f32 %v9035, %v9036
    %v9038 = vand.u32 %v9037, 4294901760
    %9039 = vmatpush.msra.mxu0 %v9038
    %v9040 = vand.u32 %v8972, 4294901760
    %v9041 = vsub.f32 %v8972, %v9040
    %v9042 = vand.u32 %v9041, 4294901760
    %v9043 = vsub.f32 %v9041, %v9042
    %v9044 = vand.u32 %v9043, 4294901760
    %9045 = vmatpush.msra.mxu0 %v9044
    %v9046 = vand.u32 %v8979, 4294901760
    %9047 = vmatmul.f32.gmra.mxu0 %v9046
    %v9048 = vpop.f32.mrf.mxu0
    %v9049 = vadd.f32 %v9008, %v9048
    %9050 = vdwg.mxu0
    %9051 = vmatpush.msra.mxu0 0.0
    %9052 = vmatpush.msra.mxu0 0.0
    %9053 = vmatpush.msra.mxu0 0.0
    %9054 = vmatpush.msra.mxu0 0.0
    %9055 = vmatpush.msra.mxu0 0.0
    %9056 = vmatpush.msra.mxu0 0.0
    %9057 = vmatpush.msra.mxu0 0.0
    %9058 = vmatpush.msra.mxu0 0.0
    %9059 = vmatpush.msra.mxu0 0.0
    %9060 = vmatpush.msra.mxu0 0.0
    %9061 = vmatpush.msra.mxu0 0.0
    %9062 = vmatpush.msra.mxu0 0.0
    %v9063 = vand.u32 %v8975, 4294901760
    %v9064 = vsub.f32 %v8975, %v9063
    %9065 = vmatpush.msra.mxu0 %v9064
    %v9066 = vand.u32 %v8974, 4294901760
    %v9067 = vsub.f32 %v8974, %v9066
    %9068 = vmatpush.msra.mxu0 %v9067
    %v9069 = vand.u32 %v8973, 4294901760
    %v9070 = vsub.f32 %v8973, %v9069
    %9071 = vmatpush.msra.mxu0 %v9070
    %v9072 = vand.u32 %v8972, 4294901760
    %v9073 = vsub.f32 %v8972, %v9072
    %9074 = vmatpush.msra.mxu0 %v9073
    %v9075 = vand.u32 %v8979, 4294901760
    %v9076 = vsub.f32 %v8979, %v9075
    %9077 = vmatmul.f32.gmra.mxu0 %v9076
    %v9078 = vpop.f32.mrf.mxu0
    %v9079 = vadd.f32 %v9049, %v9078
    %9080 = vdwg.mxu0
    %9081 = vmatpush.msra.mxu0 0.0
    %9082 = vmatpush.msra.mxu0 0.0
    %9083 = vmatpush.msra.mxu0 0.0
    %9084 = vmatpush.msra.mxu0 0.0
    %9085 = vmatpush.msra.mxu0 0.0
    %9086 = vmatpush.msra.mxu0 0.0
    %9087 = vmatpush.msra.mxu0 0.0
    %9088 = vmatpush.msra.mxu0 0.0
    %9089 = vmatpush.msra.mxu0 0.0
    %9090 = vmatpush.msra.mxu0 0.0
    %9091 = vmatpush.msra.mxu0 0.0
    %9092 = vmatpush.msra.mxu0 0.0
    %v9093 = vand.u32 %v8975, 4294901760
    %9094 = vmatpush.msra.mxu0 %v9093
    %v9095 = vand.u32 %v8974, 4294901760
    %9096 = vmatpush.msra.mxu0 %v9095
    %v9097 = vand.u32 %v8973, 4294901760
    %9098 = vmatpush.msra.mxu0 %v9097
    %v9099 = vand.u32 %v8972, 4294901760
    %9100 = vmatpush.msra.mxu0 %v9099
    %v9101 = vand.u32 %v8979, 4294901760
    %v9102 = vsub.f32 %v8979, %v9101
    %v9103 = vand.u32 %v9102, 4294901760
    %9104 = vmatmul.f32.gmra.mxu0 %v9103
    %v9105 = vpop.f32.mrf.mxu0
    %v9106 = vadd.f32 %v9079, %v9105
    %9107 = vdwg.mxu0
    %9108 = vmatpush.msra.mxu0 0.0
    %9109 = vmatpush.msra.mxu0 0.0
    %9110 = vmatpush.msra.mxu0 0.0
    %9111 = vmatpush.msra.mxu0 0.0
    %9112 = vmatpush.msra.mxu0 0.0
    %9113 = vmatpush.msra.mxu0 0.0
    %9114 = vmatpush.msra.mxu0 0.0
    %9115 = vmatpush.msra.mxu0 0.0
    %9116 = vmatpush.msra.mxu0 0.0
    %9117 = vmatpush.msra.mxu0 0.0
    %9118 = vmatpush.msra.mxu0 0.0
    %9119 = vmatpush.msra.mxu0 0.0
    %v9120 = vand.u32 %v8975, 4294901760
    %v9121 = vsub.f32 %v8975, %v9120
    %v9122 = vand.u32 %v9121, 4294901760
    %9123 = vmatpush.msra.mxu0 %v9122
    %v9124 = vand.u32 %v8974, 4294901760
    %v9125 = vsub.f32 %v8974, %v9124
    %v9126 = vand.u32 %v9125, 4294901760
    %9127 = vmatpush.msra.mxu0 %v9126
    %v9128 = vand.u32 %v8973, 4294901760
    %v9129 = vsub.f32 %v8973, %v9128
    %v9130 = vand.u32 %v9129, 4294901760
    %9131 = vmatpush.msra.mxu0 %v9130
    %v9132 = vand.u32 %v8972, 4294901760
    %v9133 = vsub.f32 %v8972, %v9132
    %v9134 = vand.u32 %v9133, 4294901760
    %9135 = vmatpush.msra.mxu0 %v9134
    %v9136 = vand.u32 %v8979, 4294901760
    %9137 = vmatmul.f32.gmra.mxu0 %v9136
    %v9138 = vpop.f32.mrf.mxu0
    %v9139 = vadd.f32 %v9106, %v9138
    %9140 = vdwg.mxu0
    %9141 = vmatpush.msra.mxu0 0.0
    %9142 = vmatpush.msra.mxu0 0.0
    %9143 = vmatpush.msra.mxu0 0.0
    %9144 = vmatpush.msra.mxu0 0.0
    %9145 = vmatpush.msra.mxu0 0.0
    %9146 = vmatpush.msra.mxu0 0.0
    %9147 = vmatpush.msra.mxu0 0.0
    %9148 = vmatpush.msra.mxu0 0.0
    %9149 = vmatpush.msra.mxu0 0.0
    %9150 = vmatpush.msra.mxu0 0.0
    %9151 = vmatpush.msra.mxu0 0.0
    %9152 = vmatpush.msra.mxu0 0.0
    %v9153 = vand.u32 %v8975, 4294901760
    %9154 = vmatpush.msra.mxu0 %v9153
    %v9155 = vand.u32 %v8974, 4294901760
    %9156 = vmatpush.msra.mxu0 %v9155
    %v9157 = vand.u32 %v8973, 4294901760
    %9158 = vmatpush.msra.mxu0 %v9157
    %v9159 = vand.u32 %v8972, 4294901760
    %9160 = vmatpush.msra.mxu0 %v9159
    %v9161 = vand.u32 %v8979, 4294901760
    %9162 = vmatmul.f32.gmra.mxu0 %v9161
    %v9163 = vpop.f32.mrf.mxu0
    %v9164 = vadd.f32 %v9139, %v9163
    %9165 = vdwg.mxu0
    %9167 = vrot.lane.b32.xlu0 %v9164, 32
    %v9168 = vpop.permute.xlu0 %9167
    %v9170 = vadd.f32 %v7740, %v9168
    %v9171 = vtanh.pop %v9170
    %v9172 = vld [vmem:[%s14] sm:$0x1]
    %v9174 = vperm.slane %v9172, 0
    %9175 = vrot.lane.b32.xlu0 %v9174, 32
    %v9176 = vpop.permute.xlu0 %9175
    %v9178 = vmul.f32 %v9171, %v9176
    %9180 = vrot.lane.b32.xlu0 %v9178, 96
    %v9181 = vpop.permute.xlu0 %9180
    %v9183 = vsel %vm171, %v9181, 0.0
    %9184 = vadd.xlane.f32.xlu0 %v9183
    %v9185 = vpop.xlane.xlu0 %9184
    %v9186 = vld [vmem:[#allocation5] sm:$0x1]
    %v9188 = vperm.slane %v9186, 0
    %v9190 = vadd.f32 %v9185, %v9188
    %v9191 = vsel %vm152, %v8970, -inf
    %9192 = vmax.xlane.f32.xlu0 %v9191
    %v9193 = vpop.xlane.xlu0 %9192
    %v9194 = vmax.f32 %v9193, %v9190
    %9196 = vset.pattern.permute.xlu0 0
    %9197 = vperm.xlu0 %9196, %v9194
    %v9198 = vpop.permute.xlu0 %9197
    %v9200 = vsub.f32 %v8970, %v9198
    %v9201 = vmul.f32 %v9200, 1.442695
    %v9202 = vpow.pop %v9201
    %v9203 = vmul.f32 %v9202, %v151
    %v9204 = vsel %vm152, %v9203, 0.0
    %9205 = vadd.xlane.f32.xlu0 %v9204
    %v9206 = vpop.xlane.xlu0 %9205
    %v9207 = vrcp.pop %v9206
    %v9208 = vmul.f32 %v9206, %v9207
    %v9209 = vsub.f32 1.0, %v9208
    %v9210 = vmul.f32 %v9207, %v9209
    %v9211 = vadd.f32 %v9207, %v9210
    %vm9212 = vweird.f32 %v9206
    %vm9213 = vweird.f32 %v9207
    %vm9214 = vmor %vm9212, %vm9213
    %v9215 = vsel %vm9214, %v9207, %v9211
    %v9216 = vand.u32 2147483647, %v9206
    %vm9217 = vcmp.eq.f32.partialorder %v9216, 8.507059e+37
    %v9218 = vand.u32 %v9206, 2147483648
    %v9219 = vor.u32 1.1754944e-38, %v9218
    %v9220 = vsel %vm9217, %v9219, %v9215
    %v9221 = vmul.f32 %v9203, %v9220
    %v9222 = vmul.f32 %v9206, %v2116
    %v9223 = vsub.f32 %v9190, %v9194
    %v9224 = vmul.f32 %v9223, 1.442695
    %v9225 = vpow.pop %v9224
    %v9226 = vadd.f32 %v9222, %v9225
    %v9227 = vrcp.pop %v9226
    %v9228 = vmul.f32 %v9226, %v9227
    %v9229 = vsub.f32 1.0, %v9228
    %v9230 = vmul.f32 %v9227, %v9229
    %v9231 = vadd.f32 %v9227, %v9230
    %vm9232 = vweird.f32 %v9226
    %vm9233 = vweird.f32 %v9227
    %vm9234 = vmor %vm9232, %vm9233
    %v9235 = vsel %vm9234, %v9227, %v9231
    %v9236 = vand.u32 2147483647, %v9226
    %vm9237 = vcmp.eq.f32.partialorder %v9236, 8.507059e+37
    %v9238 = vand.u32 %v9226, 2147483648
    %v9239 = vor.u32 1.1754944e-38, %v9238
    %v9240 = vsel %vm9237, %v9239, %v9235
    %v9241 = vmul.f32 %v9225, %v9240
    %v9242 = vadd.f32 %v6876, %v9221
    %v9243 = vperm.slane %v9221, 0
    %v9244 = vlaneseq
    %v9245 = vshrl.u32 %v9244, 7
    %9247 = vset.pattern.permute.xlu0 %v9245
    %9248 = vperm.xlu0 %9247, %v9243
    %v9249 = vpop.permute.xlu0 %9248
    %v9250 = vperm.slane %v9221, 1
    %v9251 = vlaneseq
    %v9252 = vshrl.u32 %v9251, 7
    %9254 = vset.pattern.permute.xlu0 %v9252
    %9255 = vperm.xlu0 %9254, %v9250
    %v9256 = vpop.permute.xlu0 %9255
    %v9257 = vperm.slane %v9221, 2
    %v9258 = vlaneseq
    %v9259 = vshrl.u32 %v9258, 7
    %9261 = vset.pattern.permute.xlu0 %v9259
    %9262 = vperm.xlu0 %9261, %v9257
    %v9263 = vpop.permute.xlu0 %9262
    %v9264 = vperm.slane %v9221, 3
    %v9265 = vlaneseq
    %v9266 = vshrl.u32 %v9265, 7
    %9268 = vset.pattern.permute.xlu0 %v9266
    %9269 = vperm.xlu0 %9268, %v9264
    %v9270 = vpop.permute.xlu0 %9269
    %v9271 = vperm.slane %v9221, 4
    %v9272 = vlaneseq
    %v9273 = vshrl.u32 %v9272, 7
    %9275 = vset.pattern.permute.xlu0 %v9273
    %9276 = vperm.xlu0 %9275, %v9271
    %v9277 = vpop.permute.xlu0 %9276
    %v9278 = vperm.slane %v9221, 5
    %v9279 = vlaneseq
    %v9280 = vshrl.u32 %v9279, 7
    %9282 = vset.pattern.permute.xlu0 %v9280
    %9283 = vperm.xlu0 %9282, %v9278
    %v9284 = vpop.permute.xlu0 %9283
    %v9285 = vperm.slane %v9221, 6
    %v9286 = vlaneseq
    %v9287 = vshrl.u32 %v9286, 7
    %9289 = vset.pattern.permute.xlu0 %v9287
    %9290 = vperm.xlu0 %9289, %v9285
    %v9291 = vpop.permute.xlu0 %9290
    %v9292 = vperm.slane %v9221, 7
    %v9293 = vlaneseq
    %v9294 = vshrl.u32 %v9293, 7
    %9296 = vset.pattern.permute.xlu0 %v9294
    %9297 = vperm.xlu0 %9296, %v9292
    %v9298 = vpop.permute.xlu0 %9297
    %v9299 = vmul.f32 %v143, %v9249
    %v9300 = vmul.f32 %v144, %v9256
    %v9301 = vmul.f32 %v145, %v9263
    %v9302 = vmul.f32 %v146, %v9270
    %v9303 = vmul.f32 %v147, %v9277
    %v9304 = vmul.f32 %v148, %v9284
    %v9305 = vmul.f32 %v149, %v9291
    %v9306 = vmul.f32 %v150, %v9298
    %v9307 = vsel %vm171, %v9299, 0.0
    %v9308 = vrot.slane %v9307, 4
    %v9309 = vadd.f32 %v9307, %v9308
    %v9310 = vrot.slane %v9309, 2
    %v9311 = vadd.f32 %v9309, %v9310
    %v9312 = vrot.slane %v9311, 1
    %v9313 = vadd.f32 %v9311, %v9312
    %v9314 = vsel %vm171, %v9300, 0.0
    %v9315 = vrot.slane %v9314, 4
    %v9316 = vadd.f32 %v9314, %v9315
    %v9317 = vrot.slane %v9316, 2
    %v9318 = vadd.f32 %v9316, %v9317
    %v9319 = vrot.slane %v9318, 1
    %v9320 = vadd.f32 %v9318, %v9319
    %v9321 = vsel %vm171, %v9301, 0.0
    %v9322 = vrot.slane %v9321, 4
    %v9323 = vadd.f32 %v9321, %v9322
    %v9324 = vrot.slane %v9323, 2
    %v9325 = vadd.f32 %v9323, %v9324
    %v9326 = vrot.slane %v9325, 1
    %v9327 = vadd.f32 %v9325, %v9326
    %v9328 = vsel %vm171, %v9302, 0.0
    %v9329 = vrot.slane %v9328, 4
    %v9330 = vadd.f32 %v9328, %v9329
    %v9331 = vrot.slane %v9330, 2
    %v9332 = vadd.f32 %v9330, %v9331
    %v9333 = vrot.slane %v9332, 1
    %v9334 = vadd.f32 %v9332, %v9333
    %v9335 = vsel %vm171, %v9303, 0.0
    %v9336 = vrot.slane %v9335, 4
    %v9337 = vadd.f32 %v9335, %v9336
    %v9338 = vrot.slane %v9337, 2
    %v9339 = vadd.f32 %v9337, %v9338
    %v9340 = vrot.slane %v9339, 1
    %v9341 = vadd.f32 %v9339, %v9340
    %v9342 = vsel %vm171, %v9304, 0.0
    %v9343 = vrot.slane %v9342, 4
    %v9344 = vadd.f32 %v9342, %v9343
    %v9345 = vrot.slane %v9344, 2
    %v9346 = vadd.f32 %v9344, %v9345
    %v9347 = vrot.slane %v9346, 1
    %v9348 = vadd.f32 %v9346, %v9347
    %v9349 = vsel %vm171, %v9305, 0.0
    %v9350 = vrot.slane %v9349, 4
    %v9351 = vadd.f32 %v9349, %v9350
    %v9352 = vrot.slane %v9351, 2
    %v9353 = vadd.f32 %v9351, %v9352
    %v9354 = vrot.slane %v9353, 1
    %v9355 = vadd.f32 %v9353, %v9354
    %v9356 = vsel %vm171, %v9306, 0.0
    %v9357 = vrot.slane %v9356, 4
    %v9358 = vadd.f32 %v9356, %v9357
    %v9359 = vrot.slane %v9358, 2
    %v9360 = vadd.f32 %v9358, %v9359
    %v9361 = vrot.slane %v9360, 1
    %v9362 = vadd.f32 %v9360, %v9361
    %9364 = vset.pattern.permute.xlu0 0
    %9365 = vperm.xlu0 %9364, %v9241
    %v9366 = vpop.permute.xlu0 %9365
    %v9368 = vmul.f32 %v9366, %v7932
    %v9369 = vsub.f32 1.0, %v9241
    %9371 = vset.pattern.permute.xlu0 0
    %9372 = vperm.xlu0 %9371, %v9369
    %v9373 = vpop.permute.xlu0 %9372
    %v9383 = vsel %vm2278, %v9320, %v9313
    %v9384 = vsel %vm2280, %v9327, %v9383
    %v9385 = vsel %vm2282, %v9334, %v9384
    %v9386 = vsel %vm2284, %v9341, %v9385
    %v9387 = vsel %vm2286, %v9348, %v9386
    %v9388 = vsel %vm2288, %v9355, %v9387
    %v9389 = vsel %vm2290, %v9362, %v9388
    %v9391 = vmul.f32 %v9373, %v9389
    %9393 = vrot.lane.b32.xlu0 %v9391, 96
    %v9394 = vpop.permute.xlu0 %9393
    %v9396 = vadd.f32 %v9368, %v9394
    %v9397 = vld [vmem:[#allocation14] sm:$0xff]
    %v9398 = vld [vmem:[#allocation14 + $0x8] sm:$0xff]
    %v9399 = vld [vmem:[#allocation14 + $0x10] sm:$0xff]
    %v9400 = vld [vmem:[#allocation14 + $0x18] sm:$0xff]
    %9402 = vrot.lane.b32.xlu0 %v9396, 32
    %v9403 = vpop.permute.xlu0 %9402
    %v9404 = vsel %vm171, %v9403, 0
    %9406 = vmatpush.msra.mxu0 0.0
    %9407 = vmatpush.msra.mxu0 0.0
    %9408 = vmatpush.msra.mxu0 0.0
    %9409 = vmatpush.msra.mxu0 0.0
    %9410 = vmatpush.msra.mxu0 0.0
    %9411 = vmatpush.msra.mxu0 0.0
    %9412 = vmatpush.msra.mxu0 0.0
    %9413 = vmatpush.msra.mxu0 0.0
    %9414 = vmatpush.msra.mxu0 0.0
    %9415 = vmatpush.msra.mxu0 0.0
    %9416 = vmatpush.msra.mxu0 0.0
    %9417 = vmatpush.msra.mxu0 0.0
    %v9418 = vand.u32 %v9400, 4294901760
    %9419 = vmatpush.msra.mxu0 %v9418
    %v9420 = vand.u32 %v9399, 4294901760
    %9421 = vmatpush.msra.mxu0 %v9420
    %v9422 = vand.u32 %v9398, 4294901760
    %9423 = vmatpush.msra.mxu0 %v9422
    %v9424 = vand.u32 %v9397, 4294901760
    %9425 = vmatpush.msra.mxu0 %v9424
    %v9426 = vand.u32 %v9404, 4294901760
    %v9427 = vsub.f32 %v9404, %v9426
    %v9428 = vand.u32 %v9427, 4294901760
    %v9429 = vsub.f32 %v9427, %v9428
    %v9430 = vand.u32 %v9429, 4294901760
    %9431 = vmatmul.f32.gmra.mxu0 %v9430
    %v9432 = vpop.f32.mrf.mxu0
    %v9433 = vadd.f32 0.0, %v9432
    %9434 = vdwg.mxu0
    %9435 = vmatpush.msra.mxu0 0.0
    %9436 = vmatpush.msra.mxu0 0.0
    %9437 = vmatpush.msra.mxu0 0.0
    %9438 = vmatpush.msra.mxu0 0.0
    %9439 = vmatpush.msra.mxu0 0.0
    %9440 = vmatpush.msra.mxu0 0.0
    %9441 = vmatpush.msra.mxu0 0.0
    %9442 = vmatpush.msra.mxu0 0.0
    %9443 = vmatpush.msra.mxu0 0.0
    %9444 = vmatpush.msra.mxu0 0.0
    %9445 = vmatpush.msra.mxu0 0.0
    %9446 = vmatpush.msra.mxu0 0.0
    %v9447 = vand.u32 %v9400, 4294901760
    %v9448 = vsub.f32 %v9400, %v9447
    %v9449 = vand.u32 %v9448, 4294901760
    %v9450 = vsub.f32 %v9448, %v9449
    %v9451 = vand.u32 %v9450, 4294901760
    %9452 = vmatpush.msra.mxu0 %v9451
    %v9453 = vand.u32 %v9399, 4294901760
    %v9454 = vsub.f32 %v9399, %v9453
    %v9455 = vand.u32 %v9454, 4294901760
    %v9456 = vsub.f32 %v9454, %v9455
    %v9457 = vand.u32 %v9456, 4294901760
    %9458 = vmatpush.msra.mxu0 %v9457
    %v9459 = vand.u32 %v9398, 4294901760
    %v9460 = vsub.f32 %v9398, %v9459
    %v9461 = vand.u32 %v9460, 4294901760
    %v9462 = vsub.f32 %v9460, %v9461
    %v9463 = vand.u32 %v9462, 4294901760
    %9464 = vmatpush.msra.mxu0 %v9463
    %v9465 = vand.u32 %v9397, 4294901760
    %v9466 = vsub.f32 %v9397, %v9465
    %v9467 = vand.u32 %v9466, 4294901760
    %v9468 = vsub.f32 %v9466, %v9467
    %v9469 = vand.u32 %v9468, 4294901760
    %9470 = vmatpush.msra.mxu0 %v9469
    %v9471 = vand.u32 %v9404, 4294901760
    %9472 = vmatmul.f32.gmra.mxu0 %v9471
    %v9473 = vpop.f32.mrf.mxu0
    %v9474 = vadd.f32 %v9433, %v9473
    %9475 = vdwg.mxu0
    %9476 = vmatpush.msra.mxu0 0.0
    %9477 = vmatpush.msra.mxu0 0.0
    %9478 = vmatpush.msra.mxu0 0.0
    %9479 = vmatpush.msra.mxu0 0.0
    %9480 = vmatpush.msra.mxu0 0.0
    %9481 = vmatpush.msra.mxu0 0.0
    %9482 = vmatpush.msra.mxu0 0.0
    %9483 = vmatpush.msra.mxu0 0.0
    %9484 = vmatpush.msra.mxu0 0.0
    %9485 = vmatpush.msra.mxu0 0.0
    %9486 = vmatpush.msra.mxu0 0.0
    %9487 = vmatpush.msra.mxu0 0.0
    %v9488 = vand.u32 %v9400, 4294901760
    %v9489 = vsub.f32 %v9400, %v9488
    %9490 = vmatpush.msra.mxu0 %v9489
    %v9491 = vand.u32 %v9399, 4294901760
    %v9492 = vsub.f32 %v9399, %v9491
    %9493 = vmatpush.msra.mxu0 %v9492
    %v9494 = vand.u32 %v9398, 4294901760
    %v9495 = vsub.f32 %v9398, %v9494
    %9496 = vmatpush.msra.mxu0 %v9495
    %v9497 = vand.u32 %v9397, 4294901760
    %v9498 = vsub.f32 %v9397, %v9497
    %9499 = vmatpush.msra.mxu0 %v9498
    %v9500 = vand.u32 %v9404, 4294901760
    %v9501 = vsub.f32 %v9404, %v9500
    %9502 = vmatmul.f32.gmra.mxu0 %v9501
    %v9503 = vpop.f32.mrf.mxu0
    %v9504 = vadd.f32 %v9474, %v9503
    %9505 = vdwg.mxu0
    %9506 = vmatpush.msra.mxu0 0.0
    %9507 = vmatpush.msra.mxu0 0.0
    %9508 = vmatpush.msra.mxu0 0.0
    %9509 = vmatpush.msra.mxu0 0.0
    %9510 = vmatpush.msra.mxu0 0.0
    %9511 = vmatpush.msra.mxu0 0.0
    %9512 = vmatpush.msra.mxu0 0.0
    %9513 = vmatpush.msra.mxu0 0.0
    %9514 = vmatpush.msra.mxu0 0.0
    %9515 = vmatpush.msra.mxu0 0.0
    %9516 = vmatpush.msra.mxu0 0.0
    %9517 = vmatpush.msra.mxu0 0.0
    %v9518 = vand.u32 %v9400, 4294901760
    %9519 = vmatpush.msra.mxu0 %v9518
    %v9520 = vand.u32 %v9399, 4294901760
    %9521 = vmatpush.msra.mxu0 %v9520
    %v9522 = vand.u32 %v9398, 4294901760
    %9523 = vmatpush.msra.mxu0 %v9522
    %v9524 = vand.u32 %v9397, 4294901760
    %9525 = vmatpush.msra.mxu0 %v9524
    %v9526 = vand.u32 %v9404, 4294901760
    %v9527 = vsub.f32 %v9404, %v9526
    %v9528 = vand.u32 %v9527, 4294901760
    %9529 = vmatmul.f32.gmra.mxu0 %v9528
    %v9530 = vpop.f32.mrf.mxu0
    %v9531 = vadd.f32 %v9504, %v9530
    %9532 = vdwg.mxu0
    %9533 = vmatpush.msra.mxu0 0.0
    %9534 = vmatpush.msra.mxu0 0.0
    %9535 = vmatpush.msra.mxu0 0.0
    %9536 = vmatpush.msra.mxu0 0.0
    %9537 = vmatpush.msra.mxu0 0.0
    %9538 = vmatpush.msra.mxu0 0.0
    %9539 = vmatpush.msra.mxu0 0.0
    %9540 = vmatpush.msra.mxu0 0.0
    %9541 = vmatpush.msra.mxu0 0.0
    %9542 = vmatpush.msra.mxu0 0.0
    %9543 = vmatpush.msra.mxu0 0.0
    %9544 = vmatpush.msra.mxu0 0.0
    %v9545 = vand.u32 %v9400, 4294901760
    %v9546 = vsub.f32 %v9400, %v9545
    %v9547 = vand.u32 %v9546, 4294901760
    %9548 = vmatpush.msra.mxu0 %v9547
    %v9549 = vand.u32 %v9399, 4294901760
    %v9550 = vsub.f32 %v9399, %v9549
    %v9551 = vand.u32 %v9550, 4294901760
    %9552 = vmatpush.msra.mxu0 %v9551
    %v9553 = vand.u32 %v9398, 4294901760
    %v9554 = vsub.f32 %v9398, %v9553
    %v9555 = vand.u32 %v9554, 4294901760
    %9556 = vmatpush.msra.mxu0 %v9555
    %v9557 = vand.u32 %v9397, 4294901760
    %v9558 = vsub.f32 %v9397, %v9557
    %v9559 = vand.u32 %v9558, 4294901760
    %9560 = vmatpush.msra.mxu0 %v9559
    %v9561 = vand.u32 %v9404, 4294901760
    %9562 = vmatmul.f32.gmra.mxu0 %v9561
    %v9563 = vpop.f32.mrf.mxu0
    %v9564 = vadd.f32 %v9531, %v9563
    %9565 = vdwg.mxu0
    %9566 = vmatpush.msra.mxu0 0.0
    %9567 = vmatpush.msra.mxu0 0.0
    %9568 = vmatpush.msra.mxu0 0.0
    %9569 = vmatpush.msra.mxu0 0.0
    %9570 = vmatpush.msra.mxu0 0.0
    %9571 = vmatpush.msra.mxu0 0.0
    %9572 = vmatpush.msra.mxu0 0.0
    %9573 = vmatpush.msra.mxu0 0.0
    %9574 = vmatpush.msra.mxu0 0.0
    %9575 = vmatpush.msra.mxu0 0.0
    %9576 = vmatpush.msra.mxu0 0.0
    %9577 = vmatpush.msra.mxu0 0.0
    %v9578 = vand.u32 %v9400, 4294901760
    %9579 = vmatpush.msra.mxu0 %v9578
    %v9580 = vand.u32 %v9399, 4294901760
    %9581 = vmatpush.msra.mxu0 %v9580
    %v9582 = vand.u32 %v9398, 4294901760
    %9583 = vmatpush.msra.mxu0 %v9582
    %v9584 = vand.u32 %v9397, 4294901760
    %9585 = vmatpush.msra.mxu0 %v9584
    %v9586 = vand.u32 %v9404, 4294901760
    %9587 = vmatmul.f32.gmra.mxu0 %v9586
    %v9588 = vpop.f32.mrf.mxu0
    %v9589 = vadd.f32 %v9564, %v9588
    %9590 = vdwg.mxu0
    %9592 = vrot.lane.b32.xlu0 %v9589, 64
    %v9593 = vpop.permute.xlu0 %9592
    %v9595 = vadd.f32 %v7933, %v9593
    %v9596 = vxor.u32 %v9595, 2147483648
    %v9597 = vmul.f32 %v9596, 1.442695
    %v9598 = vpow.pop %v9597
    %v9599 = vadd.f32 %v9598, 1.0
    %v9600 = vrcp.pop %v9599
    %v9601 = vmul.f32 %v9599, %v9600
    %v9602 = vsub.f32 1.0, %v9601
    %v9603 = vmul.f32 %v9600, %v9602
    %v9604 = vadd.f32 %v9600, %v9603
    %vm9605 = vweird.f32 %v9599
    %vm9606 = vweird.f32 %v9600
    %vm9607 = vmor %vm9605, %vm9606
    %v9608 = vsel %vm9607, %v9600, %v9604
    %v9609 = vand.u32 2147483647, %v9599
    %vm9610 = vcmp.eq.f32.partialorder %v9609, 8.507059e+37
    %v9611 = vand.u32 %v9599, 2147483648
    %v9612 = vor.u32 1.1754944e-38, %v9611
    %v9613 = vsel %vm9610, %v9612, %v9608
    %v9614 = vmul.f32 1.0, %v9613
    %9616 = vrot.lane.b32.xlu0 %v7934, 64
    %v9617 = vpop.permute.xlu0 %9616
    %v9619 = vmul.f32 %v9614, %v9617
    %v9620 = vadd.f32 %v9589, %v9619
    %v9621 = vtanh.pop %v9620
    %9622 = vrot.lane.b32.xlu0 %v7543, 64
    %v9623 = vpop.permute.xlu0 %9622
    %v9625 = vmul.f32 %v9614, %v9623
    %v9626 = vsub.f32 1.0, %v9614
    %9628 = vrot.lane.b32.xlu0 %v9621, 32
    %v9629 = vpop.permute.xlu0 %9628
    %v9631 = vmul.f32 %v9626, %v9629
    %v9632 = vadd.f32 %v9625, %v9631
    %v9633 = vmul.f32 %v7529, %v9632
    %v9634 = vmul.f32 %v7536, %v7543
    %9636 = vrot.lane.b32.xlu0 %v9634, 64
    %v9637 = vpop.permute.xlu0 %9636
    %v9639 = vadd.f32 %v9633, %v9637
    %9641 = vrot.lane.b32.xlu0 %v9639, 32
    %v9642 = vpop.permute.xlu0 %9641
    %9644 = vrot.lane.b32.xlu0 %v9396, 64
    %v9645 = vpop.permute.xlu0 %9644
    %9648 = vrot.lane.b32.xlu0 %v9221, 64
    %v9649 = vpop.permute.xlu0 %9648
    %v9651 = vsel %vm171, %v9642, %v9645
    %v9652 = vsel %vm825, %v9651, %v9649
    %v9653 = vsel %vm2555, %v9652, 0.0
    %s9654 = scalar_lea.vmem [#allocation15], 24
    %9655 = vst [vmem:[%s9654] sm:$0xff] %v9653
    %9656 = vst.msk [vmem:[#allocation2] sm:$0xff] %vm171, %v9642
    %9657 = vst.msk [vmem:[#allocation3] sm:$0xff] %vm152, %v9242
    // Predicated region
    $region94: #{tpu_custom_call.1} parent=1 // pred_check
      _
    $region95: #{tpu_custom_call.1} parent=1 // pred_check_branch
      %9659 = sbr.rel (0) target = $region97
    $region96: #{tpu_custom_call.1} parent=1 // pred_region
      %9661 = vsyncadd [#allocation8], 0
      %s9662 = sshll.u32 [#allocation15], 4
      %s9663 = int_to_ptr.vmem [resolvable:$true] %s9662
      %s9664 = sshll.u32 %s17, 4
      %s9665 = int_to_ptr.hbm [resolvable:$true] %s9664
      %9670 = dma.vmem_to_hbm [thread:$0]  %s9663, 512, %s9665, [#allocation8], 128, 128, 8
    $region97: #{tpu_custom_call.1} parent=1 // pred_fallthru
      _
    // Predicated region
    $region98: #{tpu_custom_call.1} parent=1 // pred_check
      _
    $region99: #{tpu_custom_call.1} parent=1 // pred_check_branch
      %9672 = sbr.rel (0) target = $region101
    $region100: #{tpu_custom_call.1} parent=1 // pred_region
      %9674 = dma.done [#allocation8], 512
    $region101: #{tpu_custom_call.1} parent=1 // pred_fallthru
      _
    %9675 = vsyncpa [#allocation7], 1
    %9676 = vsyncpa [#allocation10], 1
    %9677 = vsyncpa [#allocation13], 1
    %9678 = vsyncpa [#allocation8], 1

</llo_original>
